<compile_context>
chip_gen: v7x
topology: tpu7x:2x2x1
jax: 0.10.0
libtpu: 0.0.40
codegen_flags: <defaults>
</compile_context>

<pallas_src>
import functools

import jax
import jax.numpy as jnp
from jax.experimental import pallas as pl
from jax.experimental.pallas import tpu as pltpu

# ---------------------------------------------------------------- config ----
CHANNELS = 32
KERNEL_SIZE = 2
N_LAYERS = 8
N_BLOCKS = 3
N_RES = N_BLOCKS * N_LAYERS          # 24 residual blocks
POOL_OUT = 4                         # AdaptiveMaxPool1d(4)


# ---------------------------------------------------------------- kernel ----
def _wavenet_kernel(h0_ref, mask_ref, wd_ref, bd0_ref, wg_ref, bias_ref,
                    bmask_ref, w11_ref, b11_ref, wf_ref, bf_ref,
                    wfc1_ref, bfc1_ref, wfc2_ref, bfc2_ref, out_ref,
                    *, seq_len, mask_idx):
    T = seq_len
    C = CHANNELS
    R = h0_ref.shape[0]              # rows = batch_tile * T
    bb = R // T

    hin = h0_ref[...]                                     # (R, C) f32, = input of layer 0

    # ---- layer 0 (dilation 1): direct two-tap form --------------------------
    d0 = 1
    m2 = mask_ref[mask_idx[d0]]                           # (R, 2C) f32
    m1 = m2[:, :C]                                        # (R, C)
    lhs0 = jnp.concatenate(
        [m1 * pltpu.roll(hin, shift=d0, axis=0), hin], axis=1).astype(jnp.bfloat16)
    z = jnp.dot(lhs0, wd_ref[0], preferred_element_type=jnp.float32) + bd0_ref[...]
    t = jnp.tanh(z)
    g = t[:, :C] * (0.5 * t[:, C:] + 0.5)                 # tanh(filter) * sigmoid(gate)
    skip_sum = jnp.zeros((R, C), jnp.float32)

    # ---- layers 1..23 (unrolled at trace time) -------------------------------
    for nxt in range(1, N_RES):
        j = nxt - 1
        d = 2 ** (nxt % N_LAYERS)
        g16 = g.astype(jnp.bfloat16)

        # off-critical-path: skip / residual update for layer j (= nxt-1)
        skip_prev = (jnp.dot(g16, w11_ref[j], preferred_element_type=jnp.float32)
                     + b11_ref[j])
        skip_sum = skip_sum + skip_prev

        # critical path: z of layer `nxt` directly from (hin_j, g_j)
        if d < T:
            m2 = mask_ref[mask_idx[d]]
            m1 = m2[:, :C]
            lhs_h = jnp.concatenate(
                [m1 * pltpu.roll(hin, shift=d, axis=0), hin], axis=1
            ).astype(jnp.bfloat16)
            lhs_g = jnp.concatenate(
                [m1 * pltpu.roll(g, shift=d, axis=0), g], axis=1
            ).astype(jnp.bfloat16)
            z = (jnp.dot(lhs_h, wd_ref[nxt], preferred_element_type=jnp.float32)
                 + jnp.dot(lhs_g, wg_ref[j], preferred_element_type=jnp.float32)
                 + bias_ref[j] + m2 * bmask_ref[j])
        else:
            # dilation reaches past the sequence: the t-d tap is entirely
            # causal zero-padding -> drop those matmuls at trace time.
            z = (jnp.dot(hin.astype(jnp.bfloat16), wd_ref[nxt, C:, :],
                         preferred_element_type=jnp.float32)
                 + jnp.dot(g16, wg_ref[j, C:, :],
                           preferred_element_type=jnp.float32)
                 + bias_ref[j])

        if nxt < N_RES - 1:
            hin = hin + skip_prev                         # hin_{nxt}, used next iter

        # gated activation, single tanh pass (sigmoid folded into weights)
        t = jnp.tanh(z)
        g = t[:, :C] * (0.5 * t[:, C:] + 0.5)

    # skip of the last layer (dropout == identity at inference)
    skip_sum = skip_sum + (jnp.dot(g.astype(jnp.bfloat16), w11_ref[N_RES - 1],
                                   preferred_element_type=jnp.float32)
                           + b11_ref[N_RES - 1])

    # ---- sum(skips) -> relu -> final 1x1 conv -> relu ------------------------
    y = jnp.maximum(skip_sum, 0.0)
    y = (jnp.dot(y.astype(jnp.bfloat16), wf_ref[...],
                 preferred_element_type=jnp.float32) + bf_ref[...])
    y = jnp.maximum(y, 0.0)                               # (R, C)

    # ---- AdaptiveMaxPool1d(4) with equal T//4 bins + pool-major flatten ------
    # TODO(synk): PyTorch adaptive pooling uses floor/ceil bin edges when
    # T % 4 != 0; only the equal-bin case (T divisible by 4) is implemented.
    seg = T // POOL_OUT
    rows = []
    for b in range(bb):
        pieces = []
        for p in range(POOL_OUT):
            lo = b * T + p * seg
            pieces.append(jnp.max(y[lo:lo + seg, :], axis=0, keepdims=True))
        rows.append(jnp.concatenate(pieces, axis=1))      # (1, 4C)
    feat = jnp.concatenate(rows, axis=0) if bb > 1 else rows[0]   # (bb, 128)

    # ---- fully connected head (f32, tiny) ------------------------------------
    hfc = jnp.maximum(
        jnp.dot(feat, wfc1_ref[...], preferred_element_type=jnp.float32)
        + bfc1_ref[...], 0.0)                             # (bb, 64)
    out_ref[...] = (jnp.dot(hfc, wfc2_ref[...],
                            preferred_element_type=jnp.float32)
                    + bfc2_ref[...])                      # (bb, out_pad)


# --------------------------------------------------------------- wrapper ----
def _prep_params(params, out_pad):
    """Re-layout torch-convention params into the kernel's fused/bf16 layout."""
    C = CHANNELS
    f32 = jnp.float32
    hp = jax.lax.Precision.HIGHEST

    # sigmoid(x) = 0.5*tanh(x/2) + 0.5 -> pre-scale the gate half by 0.5 so the
    # kernel needs only one tanh pass over the (R, 2C) slab.
    gate_scale = jnp.concatenate([jnp.ones((C,), f32), jnp.full((C,), 0.5, f32)])
    wd0 = params["wd0"].astype(f32) * gate_scale          # (N_RES, C, 2C)  tap t-d
    wd1 = params["wd1"].astype(f32) * gate_scale          # (N_RES, C, 2C)  tap t
    bd = params["bd"].astype(f32) * gate_scale            # (N_RES, 2C)
    w11 = params["w11"].astype(f32)                       # (N_RES, C, C)
    b11 = params["b11"].astype(f32)                       # (N_RES, C)

    # fused dilated-conv weight: rows 0:C -> shifted tap, rows C:2C -> current tap
    wd_cat = jnp.concatenate([wd0, wd1], axis=1).astype(jnp.bfloat16)  # (N_RES,2C,2C)
    bd0 = bd[0:1]                                                      # (1, 2C) f32

    # Critical-path fold: for layer l+1,
    #   z_{l+1} = [S(h_l);h_l]@Wd_{l+1} + [S(g_l);g_l]@Wg_{l+1}
    #             + (bd_{l+1} + b11_l@B_{l+1}) + mask_{l+1} * (b11_l@A_{l+1})
    # with Wg_{l+1} = blockdiag(w11_l, w11_l) @ Wd_{l+1}.
    wg_top = jnp.einsum('lij,ljk->lik', w11[:-1], wd0[1:], precision=hp)
    wg_bot = jnp.einsum('lij,ljk->lik', w11[:-1], wd1[1:], precision=hp)
    wg = jnp.concatenate([wg_top, wg_bot], axis=1).astype(jnp.bfloat16)  # (23,2C,2C)
    bias = (bd[1:] + jnp.einsum('lj,ljk->lk', b11[:-1], wd1[1:],
                                precision=hp))[:, None, :]               # (23,1,2C)
    bmask = jnp.einsum('lj,ljk->lk', b11[:-1], wd0[1:],
                       precision=hp)[:, None, :]                         # (23,1,2C)

    w11_b = w11.astype(jnp.bfloat16)                                     # (N_RES,C,C)
    b11_b = b11[:, None, :]                                              # (N_RES,1,C)
    wf = params["wf"].astype(jnp.bfloat16)                               # (C, C)
    bf = params["bf"].astype(f32)                                        # (1, C)

    # fc1: permute rows from torch flatten order (c*POOL + p) to (p*C + c)
    n_hidden = params["wfc1"].shape[1]
    wfc1_k = jnp.transpose(
        params["wfc1"].astype(f32).reshape(C, POOL_OUT, n_hidden),
        (1, 0, 2)).reshape(POOL_OUT * C, n_hidden)
    # pad fc2 to a lane-dense (multiple of 128) output slab
    od = params["wfc2"].shape[1]
    wfc2_p = jnp.pad(params["wfc2"].astype(f32), ((0, 0), (0, out_pad - od)))
    bfc2_p = jnp.pad(params["bfc2"].astype(f32), ((0, 0), (0, out_pad - od)))
    return (wd_cat, bd0, wg, bias, bmask, w11_b, b11_b, wf, bf,
            wfc1_k, params["bfc1"].astype(f32), wfc2_p, bfc2_p)


def _default_batch_block(B, T):
    """Single grid step on 1-TC chips; split only on v7x with enough work."""
    try:
        kind = jax.devices()[0].device_kind.lower()
    except Exception:
        kind = ""
    two_tensorcores = ("v7" in kind) or ("7x" in kind)
    if two_tensorcores and B % 2 == 0 and (B // 2) * T >= 256:
        return B // 2
    return B


@functools.partial(jax.jit, static_argnames=("output_dim", "batch_block"))
def _wavenet_forward_impl(x, params, *, output_dim, batch_block):
    B, T = x.shape
    C = CHANNELS
    assert T % POOL_OUT == 0, "adaptive pool implemented for T % 4 == 0"
    assert T >= 2
    bb = batch_block
    assert B % bb == 0
    nb = B // bb
    R = bb * T
    assert R % 8 == 0, "batch_block * T must be a multiple of 8 (sublane tile)"
    out_pad = pl.cdiv(output_dim, 128) * 128

    # Initial causal Conv1d(1, C, 2) is a 2-tap pointwise op: do it in plain
    # XLA so the kernel input is a lane-dense (R, 32) slab instead of (R, 2).
    xf = x.astype(jnp.float32)
    w0 = params["w0"].astype(jnp.float32)                  # (2, C)
    b0 = params["b0"].astype(jnp.float32)                  # (1, C)
    x_prev = jnp.pad(xf, ((0, 0), (1, 0)))[:, :T]
    h0 = x_prev[..., None] * w0[0] + xf[..., None] * w0[1] + b0   # (B, T, C)
    h0 = h0.reshape(nb, R, C)

    # Causal-shift masks: one pre-broadcast (R, 2C) f32 mask per distinct
    # dilation < T (hoisted out of the 24-layer loop, rolls wrap across the
    # stacked batch but masked rows t < d are zeroed).
    dil_set = sorted({2 ** i for i in range(N_LAYERS) if 2 ** i < T})
    mask_idx = {d: i for i, d in enumerate(dil_set)}
    t_in_elem = jnp.tile(jnp.arange(T, dtype=jnp.int32), bb)          # (R,)
    masks = jnp.stack(
        [jnp.broadcast_to((t_in_elem >= d).astype(jnp.float32)[:, None],
                          (R, 2 * C)) for d in dil_set], axis=0)      # (n_d, R, 2C)

    weights = _prep_params(params, out_pad)

    vmem = pl.BlockSpec(memory_space=pltpu.MemorySpace.VMEM)  # whole array resident
    out = pl.pallas_call(
        functools.partial(_wavenet_kernel, seq_len=T, mask_idx=mask_idx),
        out_shape=jax.ShapeDtypeStruct((nb, bb, out_pad), jnp.float32),
        grid=(nb,),
        in_specs=[pl.BlockSpec((None, R, C), lambda b: (b, 0, 0)), vmem]
                 + [vmem] * len(weights),
        out_specs=pl.BlockSpec((None, bb, out_pad), lambda b: (b, 0, 0)),
        compiler_params=pltpu.CompilerParams(
            dimension_semantics=("parallel",),
            vmem_limit_bytes=32 * 1024 * 1024),
    )(h0, masks, *weights)

    return out.reshape(B, out_pad)[:, :output_dim]


def wavenet_forward(x, params, *, output_dim, batch_block=None):
    B, T = x.shape
    if batch_block is None:
        batch_block = _default_batch_block(B, T)
    return _wavenet_forward_impl(x, params, output_dim=output_dim,
                                 batch_block=batch_block)


# ------------------------------------------------------ parameter set-up ----
def init_params(key, output_dim):
    C = CHANNELS
    ks = jax.random.split(key, 14)
    n = lambda k, s: (jax.random.normal(k, s, jnp.float32) * 0.1)
    return {
        # causal_conv: Conv1d(1, 32, 2) — stored as (taps=2, C_out)
        "w0": n(ks[0], (2, C)),
        "b0": n(ks[1], (1, C)),
        # 24 dilated convs: Conv1d(32, 64, 2) — per tap, transposed (C_in, 2C)
        "wd0": n(ks[2], (N_RES, C, 2 * C)),
        "wd1": n(ks[3], (N_RES, C, 2 * C)),
        "bd": n(ks[4], (N_RES, 2 * C)),
        # 24 1x1 convs: Conv1d(32, 32, 1) — transposed (C_in, C_out)
        "w11": n(ks[5], (N_RES, C, C)),
        "b11": n(ks[6], (N_RES, C)),
        # final 1x1 conv
        "wf": n(ks[7], (C, C)),
        "bf": n(ks[8], (1, C)),
        # fc head: Linear(C*4, 64), Linear(64, output_dim) — transposed
        "wfc1": n(ks[9], (C * POOL_OUT, 64)),
        "bfc1": n(ks[10], (1, 64)),
        "wfc2": n(ks[11], (64, output_dim)),
        "bfc2": n(ks[12], (1, output_dim)),
    }


# ------------------------------------------------- pure-JAX reference -------
def wavenet_reference(x, p):
    B, T = x.shape
    C = CHANNELS
    x_prev = jnp.concatenate(
        [jnp.zeros((B, 1), jnp.float32), x[:, :T - 1]], axis=1)
    h = (x_prev[..., None] * p["w0"][0] + x[..., None] * p["w0"][1]
         + p["b0"][None, :, :])
    skip_sum = jnp.zeros((B, T, C), jnp.float32)
    blk = 0
    for _ in range(N_BLOCKS):
        for i in range(N_LAYERS):
            d = 2 ** i
            if d < T:
                h_shift = jnp.concatenate(
                    [jnp.zeros((B, d, C)), h[:, :T - d, :]], axis=1)
            else:
                h_shift = jnp.zeros((B, T, C))
            z = (h_shift @ p["wd0"][blk] + h @ p["wd1"][blk]
                 + p["bd"][blk][None, None, :])
            g = jnp.tanh(z[..., :C]) * jax.nn.sigmoid(z[..., C:])
            skip = g @ p["w11"][blk] + p["b11"][blk][None, None, :]
            h = h + skip
            skip_sum = skip_sum + skip
            blk += 1
    y = jnp.maximum(skip_sum, 0.0)
    y = jnp.maximum(y @ p["wf"] + p["bf"][None, :, :], 0.0)
    pooled = jnp.max(y.reshape(B, POOL_OUT, T // POOL_OUT, C), axis=2)
    feat = jnp.transpose(pooled, (0, 2, 1)).reshape(B, C * POOL_OUT)
    hfc = jnp.maximum(feat @ p["wfc1"] + p["bfc1"], 0.0)
    return hfc @ p["wfc2"] + p["bfc2"]


# ------------------------------------------------------------------ main ----
if __name__ == "__main__":
    B = 2            # batch
    T = 16           # sequence length (== input_dim of the torch module)
    OUTPUT_DIM = 8

    key = jax.random.PRNGKey(0)
    k_x, k_p = jax.random.split(key)
    x = jax.random.normal(k_x, (B, T), jnp.float32)
    params = init_params(k_p, OUTPUT_DIM)

    out = wavenet_forward(x, params, output_dim=OUTPUT_DIM)
    out = jax.block_until_ready(out)
    assert out.shape == (B, OUTPUT_DIM)
    assert bool(jnp.all(jnp.isfinite(out)))

    ref = wavenet_reference(x, params)
    # kernel uses bf16 MXU operands (f32 accumulation); reference is pure f32
    assert bool(jnp.allclose(out, ref, atol=1e-1, rtol=1e-1)), (
        float(jnp.max(jnp.abs(out - ref))))

    print("KERNEL_OK")
</pallas_src>

<mosaic_0001>
module attributes {stable_mosaic.version = 11 : i64} {
  func.func @_wavenet_kernel(%arg0: i32, %arg1: memref<1x32x32xf32, #tpu.memory_space<vmem>>, %arg2: memref<4x32x64xf32, #tpu.memory_space<vmem>>, %arg3: memref<24x64x64xbf16, #tpu.memory_space<vmem>>, %arg4: memref<1x64xf32, #tpu.memory_space<vmem>>, %arg5: memref<23x64x64xbf16, #tpu.memory_space<vmem>>, %arg6: memref<23x1x64xf32, #tpu.memory_space<vmem>>, %arg7: memref<23x1x64xf32, #tpu.memory_space<vmem>>, %arg8: memref<24x32x32xbf16, #tpu.memory_space<vmem>>, %arg9: memref<24x1x32xf32, #tpu.memory_space<vmem>>, %arg10: memref<32x32xbf16, #tpu.memory_space<vmem>>, %arg11: memref<1x32xf32, #tpu.memory_space<vmem>>, %arg12: memref<128x64xf32, #tpu.memory_space<vmem>>, %arg13: memref<1x64xf32, #tpu.memory_space<vmem>>, %arg14: memref<64x128xf32, #tpu.memory_space<vmem>>, %arg15: memref<1x128xf32, #tpu.memory_space<vmem>>, %arg16: memref<1x2x128xf32, #tpu.memory_space<vmem>>) attributes {dimension_semantics = [#tpu.dimension_semantics<parallel>], iteration_bounds = array<i64: 1>, scalar_prefetch = 0 : i64, scratch_operands = 0 : i64, tpu.core_type = #tpu.core_type<tc>, window_params = [{transform_indices = @transform_0, window_bounds = array<i64: 1, 32, 32>}, {pipeline_mode = #tpu.pipeline_mode<synchronous>, transform_indices = @transform_1, window_bounds = array<i64: 4, 32, 64>}, {pipeline_mode = #tpu.pipeline_mode<synchronous>, transform_indices = @transform_2, window_bounds = array<i64: 24, 64, 64>}, {pipeline_mode = #tpu.pipeline_mode<synchronous>, transform_indices = @transform_3, window_bounds = array<i64: 1, 64>}, {pipeline_mode = #tpu.pipeline_mode<synchronous>, transform_indices = @transform_4, window_bounds = array<i64: 23, 64, 64>}, {pipeline_mode = #tpu.pipeline_mode<synchronous>, transform_indices = @transform_5, window_bounds = array<i64: 23, 1, 64>}, {pipeline_mode = #tpu.pipeline_mode<synchronous>, transform_indices = @transform_6, window_bounds = array<i64: 23, 1, 64>}, {pipeline_mode = #tpu.pipeline_mode<synchronous>, transform_indices = @transform_7, window_bounds = array<i64: 24, 32, 32>}, {pipeline_mode = #tpu.pipeline_mode<synchronous>, transform_indices = @transform_8, window_bounds = array<i64: 24, 1, 32>}, {pipeline_mode = #tpu.pipeline_mode<synchronous>, transform_indices = @transform_9, window_bounds = array<i64: 32, 32>}, {pipeline_mode = #tpu.pipeline_mode<synchronous>, transform_indices = @transform_10, window_bounds = array<i64: 1, 32>}, {pipeline_mode = #tpu.pipeline_mode<synchronous>, transform_indices = @transform_11, window_bounds = array<i64: 128, 64>}, {pipeline_mode = #tpu.pipeline_mode<synchronous>, transform_indices = @transform_12, window_bounds = array<i64: 1, 64>}, {pipeline_mode = #tpu.pipeline_mode<synchronous>, transform_indices = @transform_13, window_bounds = array<i64: 64, 128>}, {pipeline_mode = #tpu.pipeline_mode<synchronous>, transform_indices = @transform_14, window_bounds = array<i64: 1, 128>}, {transform_indices = @transform_15, window_bounds = array<i64: 1, 2, 128>}]} {
    %c0 = arith.constant 0 : index
    %c0_0 = arith.constant 0 : index
    %c0_1 = arith.constant 0 : index
    %0 = vector.load %arg1[%c0, %c0_0, %c0_1] : memref<1x32x32xf32, #tpu.memory_space<vmem>>, vector<1x32x32xf32>
    %1 = vector.shape_cast %0 : vector<1x32x32xf32> to vector<32x32xf32>
    %c0_2 = arith.constant 0 : index
    %c0_3 = arith.constant 0 : index
    %c0_4 = arith.constant 0 : index
    %2 = vector.load %arg2[%c0_2, %c0_3, %c0_4] : memref<4x32x64xf32, #tpu.memory_space<vmem>>, vector<1x32x64xf32>
    %3 = vector.shape_cast %2 : vector<1x32x64xf32> to vector<32x64xf32>
    %4 = vector.extract_strided_slice %3 {offsets = [0, 0], sizes = [32, 32], strides = [1, 1]} : vector<32x64xf32> to vector<32x32xf32>
    %c1_i32 = arith.constant 1 : i32
    %5 = tpu.dynamic_rotate %1 by %c1_i32 dim 0 : vector<32x32xf32>, i32 -> vector<32x32xf32>
    %6 = arith.mulf %4, %5 : vector<32x32xf32>
    %7 = tpu.concatenate %6, %1 in 1 : vector<32x32xf32>, vector<32x32xf32> -> vector<32x64xf32>
    %8 = arith.truncf %7 : vector<32x64xf32> to vector<32x64xbf16>
    %c0_5 = arith.constant 0 : index
    %c0_6 = arith.constant 0 : index
    %c0_7 = arith.constant 0 : index
    %9 = vector.load %arg3[%c0_5, %c0_6, %c0_7] : memref<24x64x64xbf16, #tpu.memory_space<vmem>>, vector<1x64x64xbf16>
    %10 = vector.shape_cast %9 : vector<1x64x64xbf16> to vector<64x64xbf16>
    %cst = arith.constant dense<0.000000e+00> : vector<32x64xf32>
    %11 = tpu.matmul %8, %10, %cst {dimension_numbers = #tpu.dot_dimension_numbers<[1], [0], [0], [1], [0, 0, 1, 1], [], []>} : vector<32x64xbf16>, vector<64x64xbf16>, vector<32x64xf32> -> vector<32x64xf32>
    %c0_8 = arith.constant 0 : index
    %c0_9 = arith.constant 0 : index
    %12 = vector.load %arg4[%c0_8, %c0_9] : memref<1x64xf32, #tpu.memory_space<vmem>>, vector<1x64xf32>
    %13 = vector.broadcast %12 : vector<1x64xf32> to vector<32x64xf32>
    %14 = arith.addf %11, %13 : vector<32x64xf32>
    %15 = math.tanh %14 : vector<32x64xf32>
    %16 = vector.extract_strided_slice %15 {offsets = [0, 0], sizes = [32, 32], strides = [1, 1]} : vector<32x64xf32> to vector<32x32xf32>
    %17 = vector.extract_strided_slice %15 {offsets = [0, 32], sizes = [32, 32], strides = [1, 1]} : vector<32x64xf32> to vector<32x32xf32>
    %cst_10 = arith.constant 5.000000e-01 : f32
    %18 = vector.broadcast %cst_10 : f32 to vector<32x32xf32>
    %19 = arith.mulf %18, %17 : vector<32x32xf32>
    %cst_11 = arith.constant 5.000000e-01 : f32
    %20 = vector.broadcast %cst_11 : f32 to vector<32x32xf32>
    %21 = arith.addf %19, %20 : vector<32x32xf32>
    %22 = arith.mulf %16, %21 : vector<32x32xf32>
    %cst_12 = arith.constant 0.000000e+00 : f32
    %23 = vector.broadcast %cst_12 : f32 to vector<32x32xf32>
    %24 = arith.truncf %22 : vector<32x32xf32> to vector<32x32xbf16>
    %c0_13 = arith.constant 0 : index
    %c0_14 = arith.constant 0 : index
    %c0_15 = arith.constant 0 : index
    %25 = vector.load %arg8[%c0_13, %c0_14, %c0_15] : memref<24x32x32xbf16, #tpu.memory_space<vmem>>, vector<1x32x32xbf16>
    %26 = vector.shape_cast %25 : vector<1x32x32xbf16> to vector<32x32xbf16>
    %cst_16 = arith.constant dense<0.000000e+00> : vector<32x32xf32>
    %27 = tpu.matmul %24, %26, %cst_16 {dimension_numbers = #tpu.dot_dimension_numbers<[1], [0], [0], [1], [0, 0, 1, 1], [], []>} : vector<32x32xbf16>, vector<32x32xbf16>, vector<32x32xf32> -> vector<32x32xf32>
    %c0_17 = arith.constant 0 : index
    %c0_18 = arith.constant 0 : index
    %c0_19 = arith.constant 0 : index
    %28 = vector.load %arg9[%c0_17, %c0_18, %c0_19] : memref<24x1x32xf32, #tpu.memory_space<vmem>>, vector<1x1x32xf32>
    %29 = vector.shape_cast %28 : vector<1x1x32xf32> to vector<1x32xf32>
    %30 = vector.broadcast %29 : vector<1x32xf32> to vector<32x32xf32>
    %31 = arith.addf %27, %30 : vector<32x32xf32>
    %32 = arith.addf %23, %31 : vector<32x32xf32>
    %c1 = arith.constant 1 : index
    %c0_20 = arith.constant 0 : index
    %c0_21 = arith.constant 0 : index
    %33 = vector.load %arg2[%c1, %c0_20, %c0_21] : memref<4x32x64xf32, #tpu.memory_space<vmem>>, vector<1x32x64xf32>
    %34 = vector.shape_cast %33 : vector<1x32x64xf32> to vector<32x64xf32>
    %35 = vector.extract_strided_slice %34 {offsets = [0, 0], sizes = [32, 32], strides = [1, 1]} : vector<32x64xf32> to vector<32x32xf32>
    %c2_i32 = arith.constant 2 : i32
    %36 = tpu.dynamic_rotate %1 by %c2_i32 dim 0 : vector<32x32xf32>, i32 -> vector<32x32xf32>
    %37 = arith.mulf %35, %36 : vector<32x32xf32>
    %38 = tpu.concatenate %37, %1 in 1 : vector<32x32xf32>, vector<32x32xf32> -> vector<32x64xf32>
    %39 = arith.truncf %38 : vector<32x64xf32> to vector<32x64xbf16>
    %c2_i32_22 = arith.constant 2 : i32
    %40 = tpu.dynamic_rotate %22 by %c2_i32_22 dim 0 : vector<32x32xf32>, i32 -> vector<32x32xf32>
    %41 = arith.mulf %35, %40 : vector<32x32xf32>
    %42 = tpu.concatenate %41, %22 in 1 : vector<32x32xf32>, vector<32x32xf32> -> vector<32x64xf32>
    %43 = arith.truncf %42 : vector<32x64xf32> to vector<32x64xbf16>
    %c1_23 = arith.constant 1 : index
    %c0_24 = arith.constant 0 : index
    %c0_25 = arith.constant 0 : index
    %44 = vector.load %arg3[%c1_23, %c0_24, %c0_25] : memref<24x64x64xbf16, #tpu.memory_space<vmem>>, vector<1x64x64xbf16>
    %45 = vector.shape_cast %44 : vector<1x64x64xbf16> to vector<64x64xbf16>
    %cst_26 = arith.constant dense<0.000000e+00> : vector<32x64xf32>
    %46 = tpu.matmul %39, %45, %cst_26 {dimension_numbers = #tpu.dot_dimension_numbers<[1], [0], [0], [1], [0, 0, 1, 1], [], []>} : vector<32x64xbf16>, vector<64x64xbf16>, vector<32x64xf32> -> vector<32x64xf32>
    %c0_27 = arith.constant 0 : index
    %c0_28 = arith.constant 0 : index
    %c0_29 = arith.constant 0 : index
    %47 = vector.load %arg5[%c0_27, %c0_28, %c0_29] : memref<23x64x64xbf16, #tpu.memory_space<vmem>>, vector<1x64x64xbf16>
    %48 = vector.shape_cast %47 : vector<1x64x64xbf16> to vector<64x64xbf16>
    %cst_30 = arith.constant dense<0.000000e+00> : vector<32x64xf32>
    %49 = tpu.matmul %43, %48, %cst_30 {dimension_numbers = #tpu.dot_dimension_numbers<[1], [0], [0], [1], [0, 0, 1, 1], [], []>} : vector<32x64xbf16>, vector<64x64xbf16>, vector<32x64xf32> -> vector<32x64xf32>
    %50 = arith.addf %46, %49 : vector<32x64xf32>
    %c0_31 = arith.constant 0 : index
    %c0_32 = arith.constant 0 : index
    %c0_33 = arith.constant 0 : index
    %51 = vector.load %arg6[%c0_31, %c0_32, %c0_33] : memref<23x1x64xf32, #tpu.memory_space<vmem>>, vector<1x1x64xf32>
    %52 = vector.shape_cast %51 : vector<1x1x64xf32> to vector<1x64xf32>
    %53 = vector.broadcast %52 : vector<1x64xf32> to vector<32x64xf32>
    %54 = arith.addf %50, %53 : vector<32x64xf32>
    %c0_34 = arith.constant 0 : index
    %c0_35 = arith.constant 0 : index
    %c0_36 = arith.constant 0 : index
    %55 = vector.load %arg7[%c0_34, %c0_35, %c0_36] : memref<23x1x64xf32, #tpu.memory_space<vmem>>, vector<1x1x64xf32>
    %56 = vector.shape_cast %55 : vector<1x1x64xf32> to vector<1x64xf32>
    %57 = vector.broadcast %56 : vector<1x64xf32> to vector<32x64xf32>
    %58 = arith.mulf %34, %57 : vector<32x64xf32>
    %59 = arith.addf %54, %58 : vector<32x64xf32>
    %60 = arith.addf %1, %31 : vector<32x32xf32>
    %61 = math.tanh %59 : vector<32x64xf32>
    %62 = vector.extract_strided_slice %61 {offsets = [0, 0], sizes = [32, 32], strides = [1, 1]} : vector<32x64xf32> to vector<32x32xf32>
    %63 = vector.extract_strided_slice %61 {offsets = [0, 32], sizes = [32, 32], strides = [1, 1]} : vector<32x64xf32> to vector<32x32xf32>
    %cst_37 = arith.constant 5.000000e-01 : f32
    %64 = vector.broadcast %cst_37 : f32 to vector<32x32xf32>
    %65 = arith.mulf %64, %63 : vector<32x32xf32>
    %cst_38 = arith.constant 5.000000e-01 : f32
    %66 = vector.broadcast %cst_38 : f32 to vector<32x32xf32>
    %67 = arith.addf %65, %66 : vector<32x32xf32>
    %68 = arith.mulf %62, %67 : vector<32x32xf32>
    %69 = arith.truncf %68 : vector<32x32xf32> to vector<32x32xbf16>
    %c1_39 = arith.constant 1 : index
    %c0_40 = arith.constant 0 : index
    %c0_41 = arith.constant 0 : index
    %70 = vector.load %arg8[%c1_39, %c0_40, %c0_41] : memref<24x32x32xbf16, #tpu.memory_space<vmem>>, vector<1x32x32xbf16>
    %71 = vector.shape_cast %70 : vector<1x32x32xbf16> to vector<32x32xbf16>
    %cst_42 = arith.constant dense<0.000000e+00> : vector<32x32xf32>
    %72 = tpu.matmul %69, %71, %cst_42 {dimension_numbers = #tpu.dot_dimension_numbers<[1], [0], [0], [1], [0, 0, 1, 1], [], []>} : vector<32x32xbf16>, vector<32x32xbf16>, vector<32x32xf32> -> vector<32x32xf32>
    %c1_43 = arith.constant 1 : index
    %c0_44 = arith.constant 0 : index
    %c0_45 = arith.constant 0 : index
    %73 = vector.load %arg9[%c1_43, %c0_44, %c0_45] : memref<24x1x32xf32, #tpu.memory_space<vmem>>, vector<1x1x32xf32>
    %74 = vector.shape_cast %73 : vector<1x1x32xf32> to vector<1x32xf32>
    %75 = vector.broadcast %74 : vector<1x32xf32> to vector<32x32xf32>
    %76 = arith.addf %72, %75 : vector<32x32xf32>
    %77 = arith.addf %32, %76 : vector<32x32xf32>
    %c2 = arith.constant 2 : index
    %c0_46 = arith.constant 0 : index
    %c0_47 = arith.constant 0 : index
    %78 = vector.load %arg2[%c2, %c0_46, %c0_47] : memref<4x32x64xf32, #tpu.memory_space<vmem>>, vector<1x32x64xf32>
    %79 = vector.shape_cast %78 : vector<1x32x64xf32> to vector<32x64xf32>
    %80 = vector.extract_strided_slice %79 {offsets = [0, 0], sizes = [32, 32], strides = [1, 1]} : vector<32x64xf32> to vector<32x32xf32>
    %c4_i32 = arith.constant 4 : i32
    %81 = tpu.dynamic_rotate %60 by %c4_i32 dim 0 : vector<32x32xf32>, i32 -> vector<32x32xf32>
    %82 = arith.mulf %80, %81 : vector<32x32xf32>
    %83 = tpu.concatenate %82, %60 in 1 : vector<32x32xf32>, vector<32x32xf32> -> vector<32x64xf32>
    %84 = arith.truncf %83 : vector<32x64xf32> to vector<32x64xbf16>
    %c4_i32_48 = arith.constant 4 : i32
    %85 = tpu.dynamic_rotate %68 by %c4_i32_48 dim 0 : vector<32x32xf32>, i32 -> vector<32x32xf32>
    %86 = arith.mulf %80, %85 : vector<32x32xf32>
    %87 = tpu.concatenate %86, %68 in 1 : vector<32x32xf32>, vector<32x32xf32> -> vector<32x64xf32>
    %88 = arith.truncf %87 : vector<32x64xf32> to vector<32x64xbf16>
    %c2_49 = arith.constant 2 : index
    %c0_50 = arith.constant 0 : index
    %c0_51 = arith.constant 0 : index
    %89 = vector.load %arg3[%c2_49, %c0_50, %c0_51] : memref<24x64x64xbf16, #tpu.memory_space<vmem>>, vector<1x64x64xbf16>
    %90 = vector.shape_cast %89 : vector<1x64x64xbf16> to vector<64x64xbf16>
    %cst_52 = arith.constant dense<0.000000e+00> : vector<32x64xf32>
    %91 = tpu.matmul %84, %90, %cst_52 {dimension_numbers = #tpu.dot_dimension_numbers<[1], [0], [0], [1], [0, 0, 1, 1], [], []>} : vector<32x64xbf16>, vector<64x64xbf16>, vector<32x64xf32> -> vector<32x64xf32>
    %c1_53 = arith.constant 1 : index
    %c0_54 = arith.constant 0 : index
    %c0_55 = arith.constant 0 : index
    %92 = vector.load %arg5[%c1_53, %c0_54, %c0_55] : memref<23x64x64xbf16, #tpu.memory_space<vmem>>, vector<1x64x64xbf16>
    %93 = vector.shape_cast %92 : vector<1x64x64xbf16> to vector<64x64xbf16>
    %cst_56 = arith.constant dense<0.000000e+00> : vector<32x64xf32>
    %94 = tpu.matmul %88, %93, %cst_56 {dimension_numbers = #tpu.dot_dimension_numbers<[1], [0], [0], [1], [0, 0, 1, 1], [], []>} : vector<32x64xbf16>, vector<64x64xbf16>, vector<32x64xf32> -> vector<32x64xf32>
    %95 = arith.addf %91, %94 : vector<32x64xf32>
    %c1_57 = arith.constant 1 : index
    %c0_58 = arith.constant 0 : index
    %c0_59 = arith.constant 0 : index
    %96 = vector.load %arg6[%c1_57, %c0_58, %c0_59] : memref<23x1x64xf32, #tpu.memory_space<vmem>>, vector<1x1x64xf32>
    %97 = vector.shape_cast %96 : vector<1x1x64xf32> to vector<1x64xf32>
    %98 = vector.broadcast %97 : vector<1x64xf32> to vector<32x64xf32>
    %99 = arith.addf %95, %98 : vector<32x64xf32>
    %c1_60 = arith.constant 1 : index
    %c0_61 = arith.constant 0 : index
    %c0_62 = arith.constant 0 : index
    %100 = vector.load %arg7[%c1_60, %c0_61, %c0_62] : memref<23x1x64xf32, #tpu.memory_space<vmem>>, vector<1x1x64xf32>
    %101 = vector.shape_cast %100 : vector<1x1x64xf32> to vector<1x64xf32>
    %102 = vector.broadcast %101 : vector<1x64xf32> to vector<32x64xf32>
    %103 = arith.mulf %79, %102 : vector<32x64xf32>
    %104 = arith.addf %99, %103 : vector<32x64xf32>
    %105 = arith.addf %60, %76 : vector<32x32xf32>
    %106 = math.tanh %104 : vector<32x64xf32>
    %107 = vector.extract_strided_slice %106 {offsets = [0, 0], sizes = [32, 32], strides = [1, 1]} : vector<32x64xf32> to vector<32x32xf32>
    %108 = vector.extract_strided_slice %106 {offsets = [0, 32], sizes = [32, 32], strides = [1, 1]} : vector<32x64xf32> to vector<32x32xf32>
    %cst_63 = arith.constant 5.000000e-01 : f32
    %109 = vector.broadcast %cst_63 : f32 to vector<32x32xf32>
    %110 = arith.mulf %109, %108 : vector<32x32xf32>
    %cst_64 = arith.constant 5.000000e-01 : f32
    %111 = vector.broadcast %cst_64 : f32 to vector<32x32xf32>
    %112 = arith.addf %110, %111 : vector<32x32xf32>
    %113 = arith.mulf %107, %112 : vector<32x32xf32>
    %114 = arith.truncf %113 : vector<32x32xf32> to vector<32x32xbf16>
    %c2_65 = arith.constant 2 : index
    %c0_66 = arith.constant 0 : index
    %c0_67 = arith.constant 0 : index
    %115 = vector.load %arg8[%c2_65, %c0_66, %c0_67] : memref<24x32x32xbf16, #tpu.memory_space<vmem>>, vector<1x32x32xbf16>
    %116 = vector.shape_cast %115 : vector<1x32x32xbf16> to vector<32x32xbf16>
    %cst_68 = arith.constant dense<0.000000e+00> : vector<32x32xf32>
    %117 = tpu.matmul %114, %116, %cst_68 {dimension_numbers = #tpu.dot_dimension_numbers<[1], [0], [0], [1], [0, 0, 1, 1], [], []>} : vector<32x32xbf16>, vector<32x32xbf16>, vector<32x32xf32> -> vector<32x32xf32>
    %c2_69 = arith.constant 2 : index
    %c0_70 = arith.constant 0 : index
    %c0_71 = arith.constant 0 : index
    %118 = vector.load %arg9[%c2_69, %c0_70, %c0_71] : memref<24x1x32xf32, #tpu.memory_space<vmem>>, vector<1x1x32xf32>
    %119 = vector.shape_cast %118 : vector<1x1x32xf32> to vector<1x32xf32>
    %120 = vector.broadcast %119 : vector<1x32xf32> to vector<32x32xf32>
    %121 = arith.addf %117, %120 : vector<32x32xf32>
    %122 = arith.addf %77, %121 : vector<32x32xf32>
    %c3 = arith.constant 3 : index
    %c0_72 = arith.constant 0 : index
    %c0_73 = arith.constant 0 : index
    %123 = vector.load %arg2[%c3, %c0_72, %c0_73] : memref<4x32x64xf32, #tpu.memory_space<vmem>>, vector<1x32x64xf32>
    %124 = vector.shape_cast %123 : vector<1x32x64xf32> to vector<32x64xf32>
    %125 = vector.extract_strided_slice %124 {offsets = [0, 0], sizes = [32, 32], strides = [1, 1]} : vector<32x64xf32> to vector<32x32xf32>
    %c8_i32 = arith.constant 8 : i32
    %126 = tpu.dynamic_rotate %105 by %c8_i32 dim 0 : vector<32x32xf32>, i32 -> vector<32x32xf32>
    %127 = arith.mulf %125, %126 : vector<32x32xf32>
    %128 = tpu.concatenate %127, %105 in 1 : vector<32x32xf32>, vector<32x32xf32> -> vector<32x64xf32>
    %129 = arith.truncf %128 : vector<32x64xf32> to vector<32x64xbf16>
    %c8_i32_74 = arith.constant 8 : i32
    %130 = tpu.dynamic_rotate %113 by %c8_i32_74 dim 0 : vector<32x32xf32>, i32 -> vector<32x32xf32>
    %131 = arith.mulf %125, %130 : vector<32x32xf32>
    %132 = tpu.concatenate %131, %113 in 1 : vector<32x32xf32>, vector<32x32xf32> -> vector<32x64xf32>
    %133 = arith.truncf %132 : vector<32x64xf32> to vector<32x64xbf16>
    %c3_75 = arith.constant 3 : index
    %c0_76 = arith.constant 0 : index
    %c0_77 = arith.constant 0 : index
    %134 = vector.load %arg3[%c3_75, %c0_76, %c0_77] : memref<24x64x64xbf16, #tpu.memory_space<vmem>>, vector<1x64x64xbf16>
    %135 = vector.shape_cast %134 : vector<1x64x64xbf16> to vector<64x64xbf16>
    %cst_78 = arith.constant dense<0.000000e+00> : vector<32x64xf32>
    %136 = tpu.matmul %129, %135, %cst_78 {dimension_numbers = #tpu.dot_dimension_numbers<[1], [0], [0], [1], [0, 0, 1, 1], [], []>} : vector<32x64xbf16>, vector<64x64xbf16>, vector<32x64xf32> -> vector<32x64xf32>
    %c2_79 = arith.constant 2 : index
    %c0_80 = arith.constant 0 : index
    %c0_81 = arith.constant 0 : index
    %137 = vector.load %arg5[%c2_79, %c0_80, %c0_81] : memref<23x64x64xbf16, #tpu.memory_space<vmem>>, vector<1x64x64xbf16>
    %138 = vector.shape_cast %137 : vector<1x64x64xbf16> to vector<64x64xbf16>
    %cst_82 = arith.constant dense<0.000000e+00> : vector<32x64xf32>
    %139 = tpu.matmul %133, %138, %cst_82 {dimension_numbers = #tpu.dot_dimension_numbers<[1], [0], [0], [1], [0, 0, 1, 1], [], []>} : vector<32x64xbf16>, vector<64x64xbf16>, vector<32x64xf32> -> vector<32x64xf32>
    %140 = arith.addf %136, %139 : vector<32x64xf32>
    %c2_83 = arith.constant 2 : index
    %c0_84 = arith.constant 0 : index
    %c0_85 = arith.constant 0 : index
    %141 = vector.load %arg6[%c2_83, %c0_84, %c0_85] : memref<23x1x64xf32, #tpu.memory_space<vmem>>, vector<1x1x64xf32>
    %142 = vector.shape_cast %141 : vector<1x1x64xf32> to vector<1x64xf32>
    %143 = vector.broadcast %142 : vector<1x64xf32> to vector<32x64xf32>
    %144 = arith.addf %140, %143 : vector<32x64xf32>
    %c2_86 = arith.constant 2 : index
    %c0_87 = arith.constant 0 : index
    %c0_88 = arith.constant 0 : index
    %145 = vector.load %arg7[%c2_86, %c0_87, %c0_88] : memref<23x1x64xf32, #tpu.memory_space<vmem>>, vector<1x1x64xf32>
    %146 = vector.shape_cast %145 : vector<1x1x64xf32> to vector<1x64xf32>
    %147 = vector.broadcast %146 : vector<1x64xf32> to vector<32x64xf32>
    %148 = arith.mulf %124, %147 : vector<32x64xf32>
    %149 = arith.addf %144, %148 : vector<32x64xf32>
    %150 = arith.addf %105, %121 : vector<32x32xf32>
    %151 = math.tanh %149 : vector<32x64xf32>
    %152 = vector.extract_strided_slice %151 {offsets = [0, 0], sizes = [32, 32], strides = [1, 1]} : vector<32x64xf32> to vector<32x32xf32>
    %153 = vector.extract_strided_slice %151 {offsets = [0, 32], sizes = [32, 32], strides = [1, 1]} : vector<32x64xf32> to vector<32x32xf32>
    %cst_89 = arith.constant 5.000000e-01 : f32
    %154 = vector.broadcast %cst_89 : f32 to vector<32x32xf32>
    %155 = arith.mulf %154, %153 : vector<32x32xf32>
    %cst_90 = arith.constant 5.000000e-01 : f32
    %156 = vector.broadcast %cst_90 : f32 to vector<32x32xf32>
    %157 = arith.addf %155, %156 : vector<32x32xf32>
    %158 = arith.mulf %152, %157 : vector<32x32xf32>
    %159 = arith.truncf %158 : vector<32x32xf32> to vector<32x32xbf16>
    %c3_91 = arith.constant 3 : index
    %c0_92 = arith.constant 0 : index
    %c0_93 = arith.constant 0 : index
    %160 = vector.load %arg8[%c3_91, %c0_92, %c0_93] : memref<24x32x32xbf16, #tpu.memory_space<vmem>>, vector<1x32x32xbf16>
    %161 = vector.shape_cast %160 : vector<1x32x32xbf16> to vector<32x32xbf16>
    %cst_94 = arith.constant dense<0.000000e+00> : vector<32x32xf32>
    %162 = tpu.matmul %159, %161, %cst_94 {dimension_numbers = #tpu.dot_dimension_numbers<[1], [0], [0], [1], [0, 0, 1, 1], [], []>} : vector<32x32xbf16>, vector<32x32xbf16>, vector<32x32xf32> -> vector<32x32xf32>
    %c3_95 = arith.constant 3 : index
    %c0_96 = arith.constant 0 : index
    %c0_97 = arith.constant 0 : index
    %163 = vector.load %arg9[%c3_95, %c0_96, %c0_97] : memref<24x1x32xf32, #tpu.memory_space<vmem>>, vector<1x1x32xf32>
    %164 = vector.shape_cast %163 : vector<1x1x32xf32> to vector<1x32xf32>
    %165 = vector.broadcast %164 : vector<1x32xf32> to vector<32x32xf32>
    %166 = arith.addf %162, %165 : vector<32x32xf32>
    %167 = arith.addf %122, %166 : vector<32x32xf32>
    %168 = arith.truncf %150 : vector<32x32xf32> to vector<32x32xbf16>
    %c4 = arith.constant 4 : index
    %c32 = arith.constant 32 : index
    %c0_98 = arith.constant 0 : index
    %169 = vector.load %arg3[%c4, %c32, %c0_98] : memref<24x64x64xbf16, #tpu.memory_space<vmem>>, vector<1x32x64xbf16>
    %170 = vector.shape_cast %169 : vector<1x32x64xbf16> to vector<32x64xbf16>
    %cst_99 = arith.constant dense<0.000000e+00> : vector<32x64xf32>
    %171 = tpu.matmul %168, %170, %cst_99 {dimension_numbers = #tpu.dot_dimension_numbers<[1], [0], [0], [1], [0, 0, 1, 1], [], []>} : vector<32x32xbf16>, vector<32x64xbf16>, vector<32x64xf32> -> vector<32x64xf32>
    %c3_100 = arith.constant 3 : index
    %c32_101 = arith.constant 32 : index
    %c0_102 = arith.constant 0 : index
    %172 = vector.load %arg5[%c3_100, %c32_101, %c0_102] : memref<23x64x64xbf16, #tpu.memory_space<vmem>>, vector<1x32x64xbf16>
    %173 = vector.shape_cast %172 : vector<1x32x64xbf16> to vector<32x64xbf16>
    %cst_103 = arith.constant dense<0.000000e+00> : vector<32x64xf32>
    %174 = tpu.matmul %159, %173, %cst_103 {dimension_numbers = #tpu.dot_dimension_numbers<[1], [0], [0], [1], [0, 0, 1, 1], [], []>} : vector<32x32xbf16>, vector<32x64xbf16>, vector<32x64xf32> -> vector<32x64xf32>
    %175 = arith.addf %171, %174 : vector<32x64xf32>
    %c3_104 = arith.constant 3 : index
    %c0_105 = arith.constant 0 : index
    %c0_106 = arith.constant 0 : index
    %176 = vector.load %arg6[%c3_104, %c0_105, %c0_106] : memref<23x1x64xf32, #tpu.memory_space<vmem>>, vector<1x1x64xf32>
    %177 = vector.shape_cast %176 : vector<1x1x64xf32> to vector<1x64xf32>
    %178 = vector.broadcast %177 : vector<1x64xf32> to vector<32x64xf32>
    %179 = arith.addf %175, %178 : vector<32x64xf32>
    %180 = arith.addf %150, %166 : vector<32x32xf32>
    %181 = math.tanh %179 : vector<32x64xf32>
    %182 = vector.extract_strided_slice %181 {offsets = [0, 0], sizes = [32, 32], strides = [1, 1]} : vector<32x64xf32> to vector<32x32xf32>
    %183 = vector.extract_strided_slice %181 {offsets = [0, 32], sizes = [32, 32], strides = [1, 1]} : vector<32x64xf32> to vector<32x32xf32>
    %cst_107 = arith.constant 5.000000e-01 : f32
    %184 = vector.broadcast %cst_107 : f32 to vector<32x32xf32>
    %185 = arith.mulf %184, %183 : vector<32x32xf32>
    %cst_108 = arith.constant 5.000000e-01 : f32
    %186 = vector.broadcast %cst_108 : f32 to vector<32x32xf32>
    %187 = arith.addf %185, %186 : vector<32x32xf32>
    %188 = arith.mulf %182, %187 : vector<32x32xf32>
    %189 = arith.truncf %188 : vector<32x32xf32> to vector<32x32xbf16>
    %c4_109 = arith.constant 4 : index
    %c0_110 = arith.constant 0 : index
    %c0_111 = arith.constant 0 : index
    %190 = vector.load %arg8[%c4_109, %c0_110, %c0_111] : memref<24x32x32xbf16, #tpu.memory_space<vmem>>, vector<1x32x32xbf16>
    %191 = vector.shape_cast %190 : vector<1x32x32xbf16> to vector<32x32xbf16>
    %cst_112 = arith.constant dense<0.000000e+00> : vector<32x32xf32>
    %192 = tpu.matmul %189, %191, %cst_112 {dimension_numbers = #tpu.dot_dimension_numbers<[1], [0], [0], [1], [0, 0, 1, 1], [], []>} : vector<32x32xbf16>, vector<32x32xbf16>, vector<32x32xf32> -> vector<32x32xf32>
    %c4_113 = arith.constant 4 : index
    %c0_114 = arith.constant 0 : index
    %c0_115 = arith.constant 0 : index
    %193 = vector.load %arg9[%c4_113, %c0_114, %c0_115] : memref<24x1x32xf32, #tpu.memory_space<vmem>>, vector<1x1x32xf32>
    %194 = vector.shape_cast %193 : vector<1x1x32xf32> to vector<1x32xf32>
    %195 = vector.broadcast %194 : vector<1x32xf32> to vector<32x32xf32>
    %196 = arith.addf %192, %195 : vector<32x32xf32>
    %197 = arith.addf %167, %196 : vector<32x32xf32>
    %198 = arith.truncf %180 : vector<32x32xf32> to vector<32x32xbf16>
    %c5 = arith.constant 5 : index
    %c32_116 = arith.constant 32 : index
    %c0_117 = arith.constant 0 : index
    %199 = vector.load %arg3[%c5, %c32_116, %c0_117] : memref<24x64x64xbf16, #tpu.memory_space<vmem>>, vector<1x32x64xbf16>
    %200 = vector.shape_cast %199 : vector<1x32x64xbf16> to vector<32x64xbf16>
    %cst_118 = arith.constant dense<0.000000e+00> : vector<32x64xf32>
    %201 = tpu.matmul %198, %200, %cst_118 {dimension_numbers = #tpu.dot_dimension_numbers<[1], [0], [0], [1], [0, 0, 1, 1], [], []>} : vector<32x32xbf16>, vector<32x64xbf16>, vector<32x64xf32> -> vector<32x64xf32>
    %c4_119 = arith.constant 4 : index
    %c32_120 = arith.constant 32 : index
    %c0_121 = arith.constant 0 : index
    %202 = vector.load %arg5[%c4_119, %c32_120, %c0_121] : memref<23x64x64xbf16, #tpu.memory_space<vmem>>, vector<1x32x64xbf16>
    %203 = vector.shape_cast %202 : vector<1x32x64xbf16> to vector<32x64xbf16>
    %cst_122 = arith.constant dense<0.000000e+00> : vector<32x64xf32>
    %204 = tpu.matmul %189, %203, %cst_122 {dimension_numbers = #tpu.dot_dimension_numbers<[1], [0], [0], [1], [0, 0, 1, 1], [], []>} : vector<32x32xbf16>, vector<32x64xbf16>, vector<32x64xf32> -> vector<32x64xf32>
    %205 = arith.addf %201, %204 : vector<32x64xf32>
    %c4_123 = arith.constant 4 : index
    %c0_124 = arith.constant 0 : index
    %c0_125 = arith.constant 0 : index
    %206 = vector.load %arg6[%c4_123, %c0_124, %c0_125] : memref<23x1x64xf32, #tpu.memory_space<vmem>>, vector<1x1x64xf32>
    %207 = vector.shape_cast %206 : vector<1x1x64xf32> to vector<1x64xf32>
    %208 = vector.broadcast %207 : vector<1x64xf32> to vector<32x64xf32>
    %209 = arith.addf %205, %208 : vector<32x64xf32>
    %210 = arith.addf %180, %196 : vector<32x32xf32>
    %211 = math.tanh %209 : vector<32x64xf32>
    %212 = vector.extract_strided_slice %211 {offsets = [0, 0], sizes = [32, 32], strides = [1, 1]} : vector<32x64xf32> to vector<32x32xf32>
    %213 = vector.extract_strided_slice %211 {offsets = [0, 32], sizes = [32, 32], strides = [1, 1]} : vector<32x64xf32> to vector<32x32xf32>
    %cst_126 = arith.constant 5.000000e-01 : f32
    %214 = vector.broadcast %cst_126 : f32 to vector<32x32xf32>
    %215 = arith.mulf %214, %213 : vector<32x32xf32>
    %cst_127 = arith.constant 5.000000e-01 : f32
    %216 = vector.broadcast %cst_127 : f32 to vector<32x32xf32>
    %217 = arith.addf %215, %216 : vector<32x32xf32>
    %218 = arith.mulf %212, %217 : vector<32x32xf32>
    %219 = arith.truncf %218 : vector<32x32xf32> to vector<32x32xbf16>
    %c5_128 = arith.constant 5 : index
    %c0_129 = arith.constant 0 : index
    %c0_130 = arith.constant 0 : index
    %220 = vector.load %arg8[%c5_128, %c0_129, %c0_130] : memref<24x32x32xbf16, #tpu.memory_space<vmem>>, vector<1x32x32xbf16>
    %221 = vector.shape_cast %220 : vector<1x32x32xbf16> to vector<32x32xbf16>
    %cst_131 = arith.constant dense<0.000000e+00> : vector<32x32xf32>
    %222 = tpu.matmul %219, %221, %cst_131 {dimension_numbers = #tpu.dot_dimension_numbers<[1], [0], [0], [1], [0, 0, 1, 1], [], []>} : vector<32x32xbf16>, vector<32x32xbf16>, vector<32x32xf32> -> vector<32x32xf32>
    %c5_132 = arith.constant 5 : index
    %c0_133 = arith.constant 0 : index
    %c0_134 = arith.constant 0 : index
    %223 = vector.load %arg9[%c5_132, %c0_133, %c0_134] : memref<24x1x32xf32, #tpu.memory_space<vmem>>, vector<1x1x32xf32>
    %224 = vector.shape_cast %223 : vector<1x1x32xf32> to vector<1x32xf32>
    %225 = vector.broadcast %224 : vector<1x32xf32> to vector<32x32xf32>
    %226 = arith.addf %222, %225 : vector<32x32xf32>
    %227 = arith.addf %197, %226 : vector<32x32xf32>
    %228 = arith.truncf %210 : vector<32x32xf32> to vector<32x32xbf16>
    %c6 = arith.constant 6 : index
    %c32_135 = arith.constant 32 : index
    %c0_136 = arith.constant 0 : index
    %229 = vector.load %arg3[%c6, %c32_135, %c0_136] : memref<24x64x64xbf16, #tpu.memory_space<vmem>>, vector<1x32x64xbf16>
    %230 = vector.shape_cast %229 : vector<1x32x64xbf16> to vector<32x64xbf16>
    %cst_137 = arith.constant dense<0.000000e+00> : vector<32x64xf32>
    %231 = tpu.matmul %228, %230, %cst_137 {dimension_numbers = #tpu.dot_dimension_numbers<[1], [0], [0], [1], [0, 0, 1, 1], [], []>} : vector<32x32xbf16>, vector<32x64xbf16>, vector<32x64xf32> -> vector<32x64xf32>
    %c5_138 = arith.constant 5 : index
    %c32_139 = arith.constant 32 : index
    %c0_140 = arith.constant 0 : index
    %232 = vector.load %arg5[%c5_138, %c32_139, %c0_140] : memref<23x64x64xbf16, #tpu.memory_space<vmem>>, vector<1x32x64xbf16>
    %233 = vector.shape_cast %232 : vector<1x32x64xbf16> to vector<32x64xbf16>
    %cst_141 = arith.constant dense<0.000000e+00> : vector<32x64xf32>
    %234 = tpu.matmul %219, %233, %cst_141 {dimension_numbers = #tpu.dot_dimension_numbers<[1], [0], [0], [1], [0, 0, 1, 1], [], []>} : vector<32x32xbf16>, vector<32x64xbf16>, vector<32x64xf32> -> vector<32x64xf32>
    %235 = arith.addf %231, %234 : vector<32x64xf32>
    %c5_142 = arith.constant 5 : index
    %c0_143 = arith.constant 0 : index
    %c0_144 = arith.constant 0 : index
    %236 = vector.load %arg6[%c5_142, %c0_143, %c0_144] : memref<23x1x64xf32, #tpu.memory_space<vmem>>, vector<1x1x64xf32>
    %237 = vector.shape_cast %236 : vector<1x1x64xf32> to vector<1x64xf32>
    %238 = vector.broadcast %237 : vector<1x64xf32> to vector<32x64xf32>
    %239 = arith.addf %235, %238 : vector<32x64xf32>
    %240 = arith.addf %210, %226 : vector<32x32xf32>
    %241 = math.tanh %239 : vector<32x64xf32>
    %242 = vector.extract_strided_slice %241 {offsets = [0, 0], sizes = [32, 32], strides = [1, 1]} : vector<32x64xf32> to vector<32x32xf32>
    %243 = vector.extract_strided_slice %241 {offsets = [0, 32], sizes = [32, 32], strides = [1, 1]} : vector<32x64xf32> to vector<32x32xf32>
    %cst_145 = arith.constant 5.000000e-01 : f32
    %244 = vector.broadcast %cst_145 : f32 to vector<32x32xf32>
    %245 = arith.mulf %244, %243 : vector<32x32xf32>
    %cst_146 = arith.constant 5.000000e-01 : f32
    %246 = vector.broadcast %cst_146 : f32 to vector<32x32xf32>
    %247 = arith.addf %245, %246 : vector<32x32xf32>
    %248 = arith.mulf %242, %247 : vector<32x32xf32>
    %249 = arith.truncf %248 : vector<32x32xf32> to vector<32x32xbf16>
    %c6_147 = arith.constant 6 : index
    %c0_148 = arith.constant 0 : index
    %c0_149 = arith.constant 0 : index
    %250 = vector.load %arg8[%c6_147, %c0_148, %c0_149] : memref<24x32x32xbf16, #tpu.memory_space<vmem>>, vector<1x32x32xbf16>
    %251 = vector.shape_cast %250 : vector<1x32x32xbf16> to vector<32x32xbf16>
    %cst_150 = arith.constant dense<0.000000e+00> : vector<32x32xf32>
    %252 = tpu.matmul %249, %251, %cst_150 {dimension_numbers = #tpu.dot_dimension_numbers<[1], [0], [0], [1], [0, 0, 1, 1], [], []>} : vector<32x32xbf16>, vector<32x32xbf16>, vector<32x32xf32> -> vector<32x32xf32>
    %c6_151 = arith.constant 6 : index
    %c0_152 = arith.constant 0 : index
    %c0_153 = arith.constant 0 : index
    %253 = vector.load %arg9[%c6_151, %c0_152, %c0_153] : memref<24x1x32xf32, #tpu.memory_space<vmem>>, vector<1x1x32xf32>
    %254 = vector.shape_cast %253 : vector<1x1x32xf32> to vector<1x32xf32>
    %255 = vector.broadcast %254 : vector<1x32xf32> to vector<32x32xf32>
    %256 = arith.addf %252, %255 : vector<32x32xf32>
    %257 = arith.addf %227, %256 : vector<32x32xf32>
    %258 = arith.truncf %240 : vector<32x32xf32> to vector<32x32xbf16>
    %c7 = arith.constant 7 : index
    %c32_154 = arith.constant 32 : index
    %c0_155 = arith.constant 0 : index
    %259 = vector.load %arg3[%c7, %c32_154, %c0_155] : memref<24x64x64xbf16, #tpu.memory_space<vmem>>, vector<1x32x64xbf16>
    %260 = vector.shape_cast %259 : vector<1x32x64xbf16> to vector<32x64xbf16>
    %cst_156 = arith.constant dense<0.000000e+00> : vector<32x64xf32>
    %261 = tpu.matmul %258, %260, %cst_156 {dimension_numbers = #tpu.dot_dimension_numbers<[1], [0], [0], [1], [0, 0, 1, 1], [], []>} : vector<32x32xbf16>, vector<32x64xbf16>, vector<32x64xf32> -> vector<32x64xf32>
    %c6_157 = arith.constant 6 : index
    %c32_158 = arith.constant 32 : index
    %c0_159 = arith.constant 0 : index
    %262 = vector.load %arg5[%c6_157, %c32_158, %c0_159] : memref<23x64x64xbf16, #tpu.memory_space<vmem>>, vector<1x32x64xbf16>
    %263 = vector.shape_cast %262 : vector<1x32x64xbf16> to vector<32x64xbf16>
    %cst_160 = arith.constant dense<0.000000e+00> : vector<32x64xf32>
    %264 = tpu.matmul %249, %263, %cst_160 {dimension_numbers = #tpu.dot_dimension_numbers<[1], [0], [0], [1], [0, 0, 1, 1], [], []>} : vector<32x32xbf16>, vector<32x64xbf16>, vector<32x64xf32> -> vector<32x64xf32>
    %265 = arith.addf %261, %264 : vector<32x64xf32>
    %c6_161 = arith.constant 6 : index
    %c0_162 = arith.constant 0 : index
    %c0_163 = arith.constant 0 : index
    %266 = vector.load %arg6[%c6_161, %c0_162, %c0_163] : memref<23x1x64xf32, #tpu.memory_space<vmem>>, vector<1x1x64xf32>
    %267 = vector.shape_cast %266 : vector<1x1x64xf32> to vector<1x64xf32>
    %268 = vector.broadcast %267 : vector<1x64xf32> to vector<32x64xf32>
    %269 = arith.addf %265, %268 : vector<32x64xf32>
    %270 = arith.addf %240, %256 : vector<32x32xf32>
    %271 = math.tanh %269 : vector<32x64xf32>
    %272 = vector.extract_strided_slice %271 {offsets = [0, 0], sizes = [32, 32], strides = [1, 1]} : vector<32x64xf32> to vector<32x32xf32>
    %273 = vector.extract_strided_slice %271 {offsets = [0, 32], sizes = [32, 32], strides = [1, 1]} : vector<32x64xf32> to vector<32x32xf32>
    %cst_164 = arith.constant 5.000000e-01 : f32
    %274 = vector.broadcast %cst_164 : f32 to vector<32x32xf32>
    %275 = arith.mulf %274, %273 : vector<32x32xf32>
    %cst_165 = arith.constant 5.000000e-01 : f32
    %276 = vector.broadcast %cst_165 : f32 to vector<32x32xf32>
    %277 = arith.addf %275, %276 : vector<32x32xf32>
    %278 = arith.mulf %272, %277 : vector<32x32xf32>
    %279 = arith.truncf %278 : vector<32x32xf32> to vector<32x32xbf16>
    %c7_166 = arith.constant 7 : index
    %c0_167 = arith.constant 0 : index
    %c0_168 = arith.constant 0 : index
    %280 = vector.load %arg8[%c7_166, %c0_167, %c0_168] : memref<24x32x32xbf16, #tpu.memory_space<vmem>>, vector<1x32x32xbf16>
    %281 = vector.shape_cast %280 : vector<1x32x32xbf16> to vector<32x32xbf16>
    %cst_169 = arith.constant dense<0.000000e+00> : vector<32x32xf32>
    %282 = tpu.matmul %279, %281, %cst_169 {dimension_numbers = #tpu.dot_dimension_numbers<[1], [0], [0], [1], [0, 0, 1, 1], [], []>} : vector<32x32xbf16>, vector<32x32xbf16>, vector<32x32xf32> -> vector<32x32xf32>
    %c7_170 = arith.constant 7 : index
    %c0_171 = arith.constant 0 : index
    %c0_172 = arith.constant 0 : index
    %283 = vector.load %arg9[%c7_170, %c0_171, %c0_172] : memref<24x1x32xf32, #tpu.memory_space<vmem>>, vector<1x1x32xf32>
    %284 = vector.shape_cast %283 : vector<1x1x32xf32> to vector<1x32xf32>
    %285 = vector.broadcast %284 : vector<1x32xf32> to vector<32x32xf32>
    %286 = arith.addf %282, %285 : vector<32x32xf32>
    %287 = arith.addf %257, %286 : vector<32x32xf32>
    %c0_173 = arith.constant 0 : index
    %c0_174 = arith.constant 0 : index
    %c0_175 = arith.constant 0 : index
    %288 = vector.load %arg2[%c0_173, %c0_174, %c0_175] : memref<4x32x64xf32, #tpu.memory_space<vmem>>, vector<1x32x64xf32>
    %289 = vector.shape_cast %288 : vector<1x32x64xf32> to vector<32x64xf32>
    %290 = vector.extract_strided_slice %289 {offsets = [0, 0], sizes = [32, 32], strides = [1, 1]} : vector<32x64xf32> to vector<32x32xf32>
    %c1_i32_176 = arith.constant 1 : i32
    %291 = tpu.dynamic_rotate %270 by %c1_i32_176 dim 0 : vector<32x32xf32>, i32 -> vector<32x32xf32>
    %292 = arith.mulf %290, %291 : vector<32x32xf32>
    %293 = tpu.concatenate %292, %270 in 1 : vector<32x32xf32>, vector<32x32xf32> -> vector<32x64xf32>
    %294 = arith.truncf %293 : vector<32x64xf32> to vector<32x64xbf16>
    %c1_i32_177 = arith.constant 1 : i32
    %295 = tpu.dynamic_rotate %278 by %c1_i32_177 dim 0 : vector<32x32xf32>, i32 -> vector<32x32xf32>
    %296 = arith.mulf %290, %295 : vector<32x32xf32>
    %297 = tpu.concatenate %296, %278 in 1 : vector<32x32xf32>, vector<32x32xf32> -> vector<32x64xf32>
    %298 = arith.truncf %297 : vector<32x64xf32> to vector<32x64xbf16>
    %c8 = arith.constant 8 : index
    %c0_178 = arith.constant 0 : index
    %c0_179 = arith.constant 0 : index
    %299 = vector.load %arg3[%c8, %c0_178, %c0_179] : memref<24x64x64xbf16, #tpu.memory_space<vmem>>, vector<1x64x64xbf16>
    %300 = vector.shape_cast %299 : vector<1x64x64xbf16> to vector<64x64xbf16>
    %cst_180 = arith.constant dense<0.000000e+00> : vector<32x64xf32>
    %301 = tpu.matmul %294, %300, %cst_180 {dimension_numbers = #tpu.dot_dimension_numbers<[1], [0], [0], [1], [0, 0, 1, 1], [], []>} : vector<32x64xbf16>, vector<64x64xbf16>, vector<32x64xf32> -> vector<32x64xf32>
    %c7_181 = arith.constant 7 : index
    %c0_182 = arith.constant 0 : index
    %c0_183 = arith.constant 0 : index
    %302 = vector.load %arg5[%c7_181, %c0_182, %c0_183] : memref<23x64x64xbf16, #tpu.memory_space<vmem>>, vector<1x64x64xbf16>
    %303 = vector.shape_cast %302 : vector<1x64x64xbf16> to vector<64x64xbf16>
    %cst_184 = arith.constant dense<0.000000e+00> : vector<32x64xf32>
    %304 = tpu.matmul %298, %303, %cst_184 {dimension_numbers = #tpu.dot_dimension_numbers<[1], [0], [0], [1], [0, 0, 1, 1], [], []>} : vector<32x64xbf16>, vector<64x64xbf16>, vector<32x64xf32> -> vector<32x64xf32>
    %305 = arith.addf %301, %304 : vector<32x64xf32>
    %c7_185 = arith.constant 7 : index
    %c0_186 = arith.constant 0 : index
    %c0_187 = arith.constant 0 : index
    %306 = vector.load %arg6[%c7_185, %c0_186, %c0_187] : memref<23x1x64xf32, #tpu.memory_space<vmem>>, vector<1x1x64xf32>
    %307 = vector.shape_cast %306 : vector<1x1x64xf32> to vector<1x64xf32>
    %308 = vector.broadcast %307 : vector<1x64xf32> to vector<32x64xf32>
    %309 = arith.addf %305, %308 : vector<32x64xf32>
    %c7_188 = arith.constant 7 : index
    %c0_189 = arith.constant 0 : index
    %c0_190 = arith.constant 0 : index
    %310 = vector.load %arg7[%c7_188, %c0_189, %c0_190] : memref<23x1x64xf32, #tpu.memory_space<vmem>>, vector<1x1x64xf32>
    %311 = vector.shape_cast %310 : vector<1x1x64xf32> to vector<1x64xf32>
    %312 = vector.broadcast %311 : vector<1x64xf32> to vector<32x64xf32>
    %313 = arith.mulf %289, %312 : vector<32x64xf32>
    %314 = arith.addf %309, %313 : vector<32x64xf32>
    %315 = arith.addf %270, %286 : vector<32x32xf32>
    %316 = math.tanh %314 : vector<32x64xf32>
    %317 = vector.extract_strided_slice %316 {offsets = [0, 0], sizes = [32, 32], strides = [1, 1]} : vector<32x64xf32> to vector<32x32xf32>
    %318 = vector.extract_strided_slice %316 {offsets = [0, 32], sizes = [32, 32], strides = [1, 1]} : vector<32x64xf32> to vector<32x32xf32>
    %cst_191 = arith.constant 5.000000e-01 : f32
    %319 = vector.broadcast %cst_191 : f32 to vector<32x32xf32>
    %320 = arith.mulf %319, %318 : vector<32x32xf32>
    %cst_192 = arith.constant 5.000000e-01 : f32
    %321 = vector.broadcast %cst_192 : f32 to vector<32x32xf32>
    %322 = arith.addf %320, %321 : vector<32x32xf32>
    %323 = arith.mulf %317, %322 : vector<32x32xf32>
    %324 = arith.truncf %323 : vector<32x32xf32> to vector<32x32xbf16>
    %c8_193 = arith.constant 8 : index
    %c0_194 = arith.constant 0 : index
    %c0_195 = arith.constant 0 : index
    %325 = vector.load %arg8[%c8_193, %c0_194, %c0_195] : memref<24x32x32xbf16, #tpu.memory_space<vmem>>, vector<1x32x32xbf16>
    %326 = vector.shape_cast %325 : vector<1x32x32xbf16> to vector<32x32xbf16>
    %cst_196 = arith.constant dense<0.000000e+00> : vector<32x32xf32>
    %327 = tpu.matmul %324, %326, %cst_196 {dimension_numbers = #tpu.dot_dimension_numbers<[1], [0], [0], [1], [0, 0, 1, 1], [], []>} : vector<32x32xbf16>, vector<32x32xbf16>, vector<32x32xf32> -> vector<32x32xf32>
    %c8_197 = arith.constant 8 : index
    %c0_198 = arith.constant 0 : index
    %c0_199 = arith.constant 0 : index
    %328 = vector.load %arg9[%c8_197, %c0_198, %c0_199] : memref<24x1x32xf32, #tpu.memory_space<vmem>>, vector<1x1x32xf32>
    %329 = vector.shape_cast %328 : vector<1x1x32xf32> to vector<1x32xf32>
    %330 = vector.broadcast %329 : vector<1x32xf32> to vector<32x32xf32>
    %331 = arith.addf %327, %330 : vector<32x32xf32>
    %332 = arith.addf %287, %331 : vector<32x32xf32>
    %c1_200 = arith.constant 1 : index
    %c0_201 = arith.constant 0 : index
    %c0_202 = arith.constant 0 : index
    %333 = vector.load %arg2[%c1_200, %c0_201, %c0_202] : memref<4x32x64xf32, #tpu.memory_space<vmem>>, vector<1x32x64xf32>
    %334 = vector.shape_cast %333 : vector<1x32x64xf32> to vector<32x64xf32>
    %335 = vector.extract_strided_slice %334 {offsets = [0, 0], sizes = [32, 32], strides = [1, 1]} : vector<32x64xf32> to vector<32x32xf32>
    %c2_i32_203 = arith.constant 2 : i32
    %336 = tpu.dynamic_rotate %315 by %c2_i32_203 dim 0 : vector<32x32xf32>, i32 -> vector<32x32xf32>
    %337 = arith.mulf %335, %336 : vector<32x32xf32>
    %338 = tpu.concatenate %337, %315 in 1 : vector<32x32xf32>, vector<32x32xf32> -> vector<32x64xf32>
    %339 = arith.truncf %338 : vector<32x64xf32> to vector<32x64xbf16>
    %c2_i32_204 = arith.constant 2 : i32
    %340 = tpu.dynamic_rotate %323 by %c2_i32_204 dim 0 : vector<32x32xf32>, i32 -> vector<32x32xf32>
    %341 = arith.mulf %335, %340 : vector<32x32xf32>
    %342 = tpu.concatenate %341, %323 in 1 : vector<32x32xf32>, vector<32x32xf32> -> vector<32x64xf32>
    %343 = arith.truncf %342 : vector<32x64xf32> to vector<32x64xbf16>
    %c9 = arith.constant 9 : index
    %c0_205 = arith.constant 0 : index
    %c0_206 = arith.constant 0 : index
    %344 = vector.load %arg3[%c9, %c0_205, %c0_206] : memref<24x64x64xbf16, #tpu.memory_space<vmem>>, vector<1x64x64xbf16>
    %345 = vector.shape_cast %344 : vector<1x64x64xbf16> to vector<64x64xbf16>
    %cst_207 = arith.constant dense<0.000000e+00> : vector<32x64xf32>
    %346 = tpu.matmul %339, %345, %cst_207 {dimension_numbers = #tpu.dot_dimension_numbers<[1], [0], [0], [1], [0, 0, 1, 1], [], []>} : vector<32x64xbf16>, vector<64x64xbf16>, vector<32x64xf32> -> vector<32x64xf32>
    %c8_208 = arith.constant 8 : index
    %c0_209 = arith.constant 0 : index
    %c0_210 = arith.constant 0 : index
    %347 = vector.load %arg5[%c8_208, %c0_209, %c0_210] : memref<23x64x64xbf16, #tpu.memory_space<vmem>>, vector<1x64x64xbf16>
    %348 = vector.shape_cast %347 : vector<1x64x64xbf16> to vector<64x64xbf16>
    %cst_211 = arith.constant dense<0.000000e+00> : vector<32x64xf32>
    %349 = tpu.matmul %343, %348, %cst_211 {dimension_numbers = #tpu.dot_dimension_numbers<[1], [0], [0], [1], [0, 0, 1, 1], [], []>} : vector<32x64xbf16>, vector<64x64xbf16>, vector<32x64xf32> -> vector<32x64xf32>
    %350 = arith.addf %346, %349 : vector<32x64xf32>
    %c8_212 = arith.constant 8 : index
    %c0_213 = arith.constant 0 : index
    %c0_214 = arith.constant 0 : index
    %351 = vector.load %arg6[%c8_212, %c0_213, %c0_214] : memref<23x1x64xf32, #tpu.memory_space<vmem>>, vector<1x1x64xf32>
    %352 = vector.shape_cast %351 : vector<1x1x64xf32> to vector<1x64xf32>
    %353 = vector.broadcast %352 : vector<1x64xf32> to vector<32x64xf32>
    %354 = arith.addf %350, %353 : vector<32x64xf32>
    %c8_215 = arith.constant 8 : index
    %c0_216 = arith.constant 0 : index
    %c0_217 = arith.constant 0 : index
    %355 = vector.load %arg7[%c8_215, %c0_216, %c0_217] : memref<23x1x64xf32, #tpu.memory_space<vmem>>, vector<1x1x64xf32>
    %356 = vector.shape_cast %355 : vector<1x1x64xf32> to vector<1x64xf32>
    %357 = vector.broadcast %356 : vector<1x64xf32> to vector<32x64xf32>
    %358 = arith.mulf %334, %357 : vector<32x64xf32>
    %359 = arith.addf %354, %358 : vector<32x64xf32>
    %360 = arith.addf %315, %331 : vector<32x32xf32>
    %361 = math.tanh %359 : vector<32x64xf32>
    %362 = vector.extract_strided_slice %361 {offsets = [0, 0], sizes = [32, 32], strides = [1, 1]} : vector<32x64xf32> to vector<32x32xf32>
    %363 = vector.extract_strided_slice %361 {offsets = [0, 32], sizes = [32, 32], strides = [1, 1]} : vector<32x64xf32> to vector<32x32xf32>
    %cst_218 = arith.constant 5.000000e-01 : f32
    %364 = vector.broadcast %cst_218 : f32 to vector<32x32xf32>
    %365 = arith.mulf %364, %363 : vector<32x32xf32>
    %cst_219 = arith.constant 5.000000e-01 : f32
    %366 = vector.broadcast %cst_219 : f32 to vector<32x32xf32>
    %367 = arith.addf %365, %366 : vector<32x32xf32>
    %368 = arith.mulf %362, %367 : vector<32x32xf32>
    %369 = arith.truncf %368 : vector<32x32xf32> to vector<32x32xbf16>
    %c9_220 = arith.constant 9 : index
    %c0_221 = arith.constant 0 : index
    %c0_222 = arith.constant 0 : index
    %370 = vector.load %arg8[%c9_220, %c0_221, %c0_222] : memref<24x32x32xbf16, #tpu.memory_space<vmem>>, vector<1x32x32xbf16>
    %371 = vector.shape_cast %370 : vector<1x32x32xbf16> to vector<32x32xbf16>
    %cst_223 = arith.constant dense<0.000000e+00> : vector<32x32xf32>
    %372 = tpu.matmul %369, %371, %cst_223 {dimension_numbers = #tpu.dot_dimension_numbers<[1], [0], [0], [1], [0, 0, 1, 1], [], []>} : vector<32x32xbf16>, vector<32x32xbf16>, vector<32x32xf32> -> vector<32x32xf32>
    %c9_224 = arith.constant 9 : index
    %c0_225 = arith.constant 0 : index
    %c0_226 = arith.constant 0 : index
    %373 = vector.load %arg9[%c9_224, %c0_225, %c0_226] : memref<24x1x32xf32, #tpu.memory_space<vmem>>, vector<1x1x32xf32>
    %374 = vector.shape_cast %373 : vector<1x1x32xf32> to vector<1x32xf32>
    %375 = vector.broadcast %374 : vector<1x32xf32> to vector<32x32xf32>
    %376 = arith.addf %372, %375 : vector<32x32xf32>
    %377 = arith.addf %332, %376 : vector<32x32xf32>
    %c2_227 = arith.constant 2 : index
    %c0_228 = arith.constant 0 : index
    %c0_229 = arith.constant 0 : index
    %378 = vector.load %arg2[%c2_227, %c0_228, %c0_229] : memref<4x32x64xf32, #tpu.memory_space<vmem>>, vector<1x32x64xf32>
    %379 = vector.shape_cast %378 : vector<1x32x64xf32> to vector<32x64xf32>
    %380 = vector.extract_strided_slice %379 {offsets = [0, 0], sizes = [32, 32], strides = [1, 1]} : vector<32x64xf32> to vector<32x32xf32>
    %c4_i32_230 = arith.constant 4 : i32
    %381 = tpu.dynamic_rotate %360 by %c4_i32_230 dim 0 : vector<32x32xf32>, i32 -> vector<32x32xf32>
    %382 = arith.mulf %380, %381 : vector<32x32xf32>
    %383 = tpu.concatenate %382, %360 in 1 : vector<32x32xf32>, vector<32x32xf32> -> vector<32x64xf32>
    %384 = arith.truncf %383 : vector<32x64xf32> to vector<32x64xbf16>
    %c4_i32_231 = arith.constant 4 : i32
    %385 = tpu.dynamic_rotate %368 by %c4_i32_231 dim 0 : vector<32x32xf32>, i32 -> vector<32x32xf32>
    %386 = arith.mulf %380, %385 : vector<32x32xf32>
    %387 = tpu.concatenate %386, %368 in 1 : vector<32x32xf32>, vector<32x32xf32> -> vector<32x64xf32>
    %388 = arith.truncf %387 : vector<32x64xf32> to vector<32x64xbf16>
    %c10 = arith.constant 10 : index
    %c0_232 = arith.constant 0 : index
    %c0_233 = arith.constant 0 : index
    %389 = vector.load %arg3[%c10, %c0_232, %c0_233] : memref<24x64x64xbf16, #tpu.memory_space<vmem>>, vector<1x64x64xbf16>
    %390 = vector.shape_cast %389 : vector<1x64x64xbf16> to vector<64x64xbf16>
    %cst_234 = arith.constant dense<0.000000e+00> : vector<32x64xf32>
    %391 = tpu.matmul %384, %390, %cst_234 {dimension_numbers = #tpu.dot_dimension_numbers<[1], [0], [0], [1], [0, 0, 1, 1], [], []>} : vector<32x64xbf16>, vector<64x64xbf16>, vector<32x64xf32> -> vector<32x64xf32>
    %c9_235 = arith.constant 9 : index
    %c0_236 = arith.constant 0 : index
    %c0_237 = arith.constant 0 : index
    %392 = vector.load %arg5[%c9_235, %c0_236, %c0_237] : memref<23x64x64xbf16, #tpu.memory_space<vmem>>, vector<1x64x64xbf16>
    %393 = vector.shape_cast %392 : vector<1x64x64xbf16> to vector<64x64xbf16>
    %cst_238 = arith.constant dense<0.000000e+00> : vector<32x64xf32>
    %394 = tpu.matmul %388, %393, %cst_238 {dimension_numbers = #tpu.dot_dimension_numbers<[1], [0], [0], [1], [0, 0, 1, 1], [], []>} : vector<32x64xbf16>, vector<64x64xbf16>, vector<32x64xf32> -> vector<32x64xf32>
    %395 = arith.addf %391, %394 : vector<32x64xf32>
    %c9_239 = arith.constant 9 : index
    %c0_240 = arith.constant 0 : index
    %c0_241 = arith.constant 0 : index
    %396 = vector.load %arg6[%c9_239, %c0_240, %c0_241] : memref<23x1x64xf32, #tpu.memory_space<vmem>>, vector<1x1x64xf32>
    %397 = vector.shape_cast %396 : vector<1x1x64xf32> to vector<1x64xf32>
    %398 = vector.broadcast %397 : vector<1x64xf32> to vector<32x64xf32>
    %399 = arith.addf %395, %398 : vector<32x64xf32>
    %c9_242 = arith.constant 9 : index
    %c0_243 = arith.constant 0 : index
    %c0_244 = arith.constant 0 : index
    %400 = vector.load %arg7[%c9_242, %c0_243, %c0_244] : memref<23x1x64xf32, #tpu.memory_space<vmem>>, vector<1x1x64xf32>
    %401 = vector.shape_cast %400 : vector<1x1x64xf32> to vector<1x64xf32>
    %402 = vector.broadcast %401 : vector<1x64xf32> to vector<32x64xf32>
    %403 = arith.mulf %379, %402 : vector<32x64xf32>
    %404 = arith.addf %399, %403 : vector<32x64xf32>
    %405 = arith.addf %360, %376 : vector<32x32xf32>
    %406 = math.tanh %404 : vector<32x64xf32>
    %407 = vector.extract_strided_slice %406 {offsets = [0, 0], sizes = [32, 32], strides = [1, 1]} : vector<32x64xf32> to vector<32x32xf32>
    %408 = vector.extract_strided_slice %406 {offsets = [0, 32], sizes = [32, 32], strides = [1, 1]} : vector<32x64xf32> to vector<32x32xf32>
    %cst_245 = arith.constant 5.000000e-01 : f32
    %409 = vector.broadcast %cst_245 : f32 to vector<32x32xf32>
    %410 = arith.mulf %409, %408 : vector<32x32xf32>
    %cst_246 = arith.constant 5.000000e-01 : f32
    %411 = vector.broadcast %cst_246 : f32 to vector<32x32xf32>
    %412 = arith.addf %410, %411 : vector<32x32xf32>
    %413 = arith.mulf %407, %412 : vector<32x32xf32>
    %414 = arith.truncf %413 : vector<32x32xf32> to vector<32x32xbf16>
    %c10_247 = arith.constant 10 : index
    %c0_248 = arith.constant 0 : index
    %c0_249 = arith.constant 0 : index
    %415 = vector.load %arg8[%c10_247, %c0_248, %c0_249] : memref<24x32x32xbf16, #tpu.memory_space<vmem>>, vector<1x32x32xbf16>
    %416 = vector.shape_cast %415 : vector<1x32x32xbf16> to vector<32x32xbf16>
    %cst_250 = arith.constant dense<0.000000e+00> : vector<32x32xf32>
    %417 = tpu.matmul %414, %416, %cst_250 {dimension_numbers = #tpu.dot_dimension_numbers<[1], [0], [0], [1], [0, 0, 1, 1], [], []>} : vector<32x32xbf16>, vector<32x32xbf16>, vector<32x32xf32> -> vector<32x32xf32>
    %c10_251 = arith.constant 10 : index
    %c0_252 = arith.constant 0 : index
    %c0_253 = arith.constant 0 : index
    %418 = vector.load %arg9[%c10_251, %c0_252, %c0_253] : memref<24x1x32xf32, #tpu.memory_space<vmem>>, vector<1x1x32xf32>
    %419 = vector.shape_cast %418 : vector<1x1x32xf32> to vector<1x32xf32>
    %420 = vector.broadcast %419 : vector<1x32xf32> to vector<32x32xf32>
    %421 = arith.addf %417, %420 : vector<32x32xf32>
    %422 = arith.addf %377, %421 : vector<32x32xf32>
    %c3_254 = arith.constant 3 : index
    %c0_255 = arith.constant 0 : index
    %c0_256 = arith.constant 0 : index
    %423 = vector.load %arg2[%c3_254, %c0_255, %c0_256] : memref<4x32x64xf32, #tpu.memory_space<vmem>>, vector<1x32x64xf32>
    %424 = vector.shape_cast %423 : vector<1x32x64xf32> to vector<32x64xf32>
    %425 = vector.extract_strided_slice %424 {offsets = [0, 0], sizes = [32, 32], strides = [1, 1]} : vector<32x64xf32> to vector<32x32xf32>
    %c8_i32_257 = arith.constant 8 : i32
    %426 = tpu.dynamic_rotate %405 by %c8_i32_257 dim 0 : vector<32x32xf32>, i32 -> vector<32x32xf32>
    %427 = arith.mulf %425, %426 : vector<32x32xf32>
    %428 = tpu.concatenate %427, %405 in 1 : vector<32x32xf32>, vector<32x32xf32> -> vector<32x64xf32>
    %429 = arith.truncf %428 : vector<32x64xf32> to vector<32x64xbf16>
    %c8_i32_258 = arith.constant 8 : i32
    %430 = tpu.dynamic_rotate %413 by %c8_i32_258 dim 0 : vector<32x32xf32>, i32 -> vector<32x32xf32>
    %431 = arith.mulf %425, %430 : vector<32x32xf32>
    %432 = tpu.concatenate %431, %413 in 1 : vector<32x32xf32>, vector<32x32xf32> -> vector<32x64xf32>
    %433 = arith.truncf %432 : vector<32x64xf32> to vector<32x64xbf16>
    %c11 = arith.constant 11 : index
    %c0_259 = arith.constant 0 : index
    %c0_260 = arith.constant 0 : index
    %434 = vector.load %arg3[%c11, %c0_259, %c0_260] : memref<24x64x64xbf16, #tpu.memory_space<vmem>>, vector<1x64x64xbf16>
    %435 = vector.shape_cast %434 : vector<1x64x64xbf16> to vector<64x64xbf16>
    %cst_261 = arith.constant dense<0.000000e+00> : vector<32x64xf32>
    %436 = tpu.matmul %429, %435, %cst_261 {dimension_numbers = #tpu.dot_dimension_numbers<[1], [0], [0], [1], [0, 0, 1, 1], [], []>} : vector<32x64xbf16>, vector<64x64xbf16>, vector<32x64xf32> -> vector<32x64xf32>
    %c10_262 = arith.constant 10 : index
    %c0_263 = arith.constant 0 : index
    %c0_264 = arith.constant 0 : index
    %437 = vector.load %arg5[%c10_262, %c0_263, %c0_264] : memref<23x64x64xbf16, #tpu.memory_space<vmem>>, vector<1x64x64xbf16>
    %438 = vector.shape_cast %437 : vector<1x64x64xbf16> to vector<64x64xbf16>
    %cst_265 = arith.constant dense<0.000000e+00> : vector<32x64xf32>
    %439 = tpu.matmul %433, %438, %cst_265 {dimension_numbers = #tpu.dot_dimension_numbers<[1], [0], [0], [1], [0, 0, 1, 1], [], []>} : vector<32x64xbf16>, vector<64x64xbf16>, vector<32x64xf32> -> vector<32x64xf32>
    %440 = arith.addf %436, %439 : vector<32x64xf32>
    %c10_266 = arith.constant 10 : index
    %c0_267 = arith.constant 0 : index
    %c0_268 = arith.constant 0 : index
    %441 = vector.load %arg6[%c10_266, %c0_267, %c0_268] : memref<23x1x64xf32, #tpu.memory_space<vmem>>, vector<1x1x64xf32>
    %442 = vector.shape_cast %441 : vector<1x1x64xf32> to vector<1x64xf32>
    %443 = vector.broadcast %442 : vector<1x64xf32> to vector<32x64xf32>
    %444 = arith.addf %440, %443 : vector<32x64xf32>
    %c10_269 = arith.constant 10 : index
    %c0_270 = arith.constant 0 : index
    %c0_271 = arith.constant 0 : index
    %445 = vector.load %arg7[%c10_269, %c0_270, %c0_271] : memref<23x1x64xf32, #tpu.memory_space<vmem>>, vector<1x1x64xf32>
    %446 = vector.shape_cast %445 : vector<1x1x64xf32> to vector<1x64xf32>
    %447 = vector.broadcast %446 : vector<1x64xf32> to vector<32x64xf32>
    %448 = arith.mulf %424, %447 : vector<32x64xf32>
    %449 = arith.addf %444, %448 : vector<32x64xf32>
    %450 = arith.addf %405, %421 : vector<32x32xf32>
    %451 = math.tanh %449 : vector<32x64xf32>
    %452 = vector.extract_strided_slice %451 {offsets = [0, 0], sizes = [32, 32], strides = [1, 1]} : vector<32x64xf32> to vector<32x32xf32>
    %453 = vector.extract_strided_slice %451 {offsets = [0, 32], sizes = [32, 32], strides = [1, 1]} : vector<32x64xf32> to vector<32x32xf32>
    %cst_272 = arith.constant 5.000000e-01 : f32
    %454 = vector.broadcast %cst_272 : f32 to vector<32x32xf32>
    %455 = arith.mulf %454, %453 : vector<32x32xf32>
    %cst_273 = arith.constant 5.000000e-01 : f32
    %456 = vector.broadcast %cst_273 : f32 to vector<32x32xf32>
    %457 = arith.addf %455, %456 : vector<32x32xf32>
    %458 = arith.mulf %452, %457 : vector<32x32xf32>
    %459 = arith.truncf %458 : vector<32x32xf32> to vector<32x32xbf16>
    %c11_274 = arith.constant 11 : index
    %c0_275 = arith.constant 0 : index
    %c0_276 = arith.constant 0 : index
    %460 = vector.load %arg8[%c11_274, %c0_275, %c0_276] : memref<24x32x32xbf16, #tpu.memory_space<vmem>>, vector<1x32x32xbf16>
    %461 = vector.shape_cast %460 : vector<1x32x32xbf16> to vector<32x32xbf16>
    %cst_277 = arith.constant dense<0.000000e+00> : vector<32x32xf32>
    %462 = tpu.matmul %459, %461, %cst_277 {dimension_numbers = #tpu.dot_dimension_numbers<[1], [0], [0], [1], [0, 0, 1, 1], [], []>} : vector<32x32xbf16>, vector<32x32xbf16>, vector<32x32xf32> -> vector<32x32xf32>
    %c11_278 = arith.constant 11 : index
    %c0_279 = arith.constant 0 : index
    %c0_280 = arith.constant 0 : index
    %463 = vector.load %arg9[%c11_278, %c0_279, %c0_280] : memref<24x1x32xf32, #tpu.memory_space<vmem>>, vector<1x1x32xf32>
    %464 = vector.shape_cast %463 : vector<1x1x32xf32> to vector<1x32xf32>
    %465 = vector.broadcast %464 : vector<1x32xf32> to vector<32x32xf32>
    %466 = arith.addf %462, %465 : vector<32x32xf32>
    %467 = arith.addf %422, %466 : vector<32x32xf32>
    %468 = arith.truncf %450 : vector<32x32xf32> to vector<32x32xbf16>
    %c12 = arith.constant 12 : index
    %c32_281 = arith.constant 32 : index
    %c0_282 = arith.constant 0 : index
    %469 = vector.load %arg3[%c12, %c32_281, %c0_282] : memref<24x64x64xbf16, #tpu.memory_space<vmem>>, vector<1x32x64xbf16>
    %470 = vector.shape_cast %469 : vector<1x32x64xbf16> to vector<32x64xbf16>
    %cst_283 = arith.constant dense<0.000000e+00> : vector<32x64xf32>
    %471 = tpu.matmul %468, %470, %cst_283 {dimension_numbers = #tpu.dot_dimension_numbers<[1], [0], [0], [1], [0, 0, 1, 1], [], []>} : vector<32x32xbf16>, vector<32x64xbf16>, vector<32x64xf32> -> vector<32x64xf32>
    %c11_284 = arith.constant 11 : index
    %c32_285 = arith.constant 32 : index
    %c0_286 = arith.constant 0 : index
    %472 = vector.load %arg5[%c11_284, %c32_285, %c0_286] : memref<23x64x64xbf16, #tpu.memory_space<vmem>>, vector<1x32x64xbf16>
    %473 = vector.shape_cast %472 : vector<1x32x64xbf16> to vector<32x64xbf16>
    %cst_287 = arith.constant dense<0.000000e+00> : vector<32x64xf32>
    %474 = tpu.matmul %459, %473, %cst_287 {dimension_numbers = #tpu.dot_dimension_numbers<[1], [0], [0], [1], [0, 0, 1, 1], [], []>} : vector<32x32xbf16>, vector<32x64xbf16>, vector<32x64xf32> -> vector<32x64xf32>
    %475 = arith.addf %471, %474 : vector<32x64xf32>
    %c11_288 = arith.constant 11 : index
    %c0_289 = arith.constant 0 : index
    %c0_290 = arith.constant 0 : index
    %476 = vector.load %arg6[%c11_288, %c0_289, %c0_290] : memref<23x1x64xf32, #tpu.memory_space<vmem>>, vector<1x1x64xf32>
    %477 = vector.shape_cast %476 : vector<1x1x64xf32> to vector<1x64xf32>
    %478 = vector.broadcast %477 : vector<1x64xf32> to vector<32x64xf32>
    %479 = arith.addf %475, %478 : vector<32x64xf32>
    %480 = arith.addf %450, %466 : vector<32x32xf32>
    %481 = math.tanh %479 : vector<32x64xf32>
    %482 = vector.extract_strided_slice %481 {offsets = [0, 0], sizes = [32, 32], strides = [1, 1]} : vector<32x64xf32> to vector<32x32xf32>
    %483 = vector.extract_strided_slice %481 {offsets = [0, 32], sizes = [32, 32], strides = [1, 1]} : vector<32x64xf32> to vector<32x32xf32>
    %cst_291 = arith.constant 5.000000e-01 : f32
    %484 = vector.broadcast %cst_291 : f32 to vector<32x32xf32>
    %485 = arith.mulf %484, %483 : vector<32x32xf32>
    %cst_292 = arith.constant 5.000000e-01 : f32
    %486 = vector.broadcast %cst_292 : f32 to vector<32x32xf32>
    %487 = arith.addf %485, %486 : vector<32x32xf32>
    %488 = arith.mulf %482, %487 : vector<32x32xf32>
    %489 = arith.truncf %488 : vector<32x32xf32> to vector<32x32xbf16>
    %c12_293 = arith.constant 12 : index
    %c0_294 = arith.constant 0 : index
    %c0_295 = arith.constant 0 : index
    %490 = vector.load %arg8[%c12_293, %c0_294, %c0_295] : memref<24x32x32xbf16, #tpu.memory_space<vmem>>, vector<1x32x32xbf16>
    %491 = vector.shape_cast %490 : vector<1x32x32xbf16> to vector<32x32xbf16>
    %cst_296 = arith.constant dense<0.000000e+00> : vector<32x32xf32>
    %492 = tpu.matmul %489, %491, %cst_296 {dimension_numbers = #tpu.dot_dimension_numbers<[1], [0], [0], [1], [0, 0, 1, 1], [], []>} : vector<32x32xbf16>, vector<32x32xbf16>, vector<32x32xf32> -> vector<32x32xf32>
    %c12_297 = arith.constant 12 : index
    %c0_298 = arith.constant 0 : index
    %c0_299 = arith.constant 0 : index
    %493 = vector.load %arg9[%c12_297, %c0_298, %c0_299] : memref<24x1x32xf32, #tpu.memory_space<vmem>>, vector<1x1x32xf32>
    %494 = vector.shape_cast %493 : vector<1x1x32xf32> to vector<1x32xf32>
    %495 = vector.broadcast %494 : vector<1x32xf32> to vector<32x32xf32>
    %496 = arith.addf %492, %495 : vector<32x32xf32>
    %497 = arith.addf %467, %496 : vector<32x32xf32>
    %498 = arith.truncf %480 : vector<32x32xf32> to vector<32x32xbf16>
    %c13 = arith.constant 13 : index
    %c32_300 = arith.constant 32 : index
    %c0_301 = arith.constant 0 : index
    %499 = vector.load %arg3[%c13, %c32_300, %c0_301] : memref<24x64x64xbf16, #tpu.memory_space<vmem>>, vector<1x32x64xbf16>
    %500 = vector.shape_cast %499 : vector<1x32x64xbf16> to vector<32x64xbf16>
    %cst_302 = arith.constant dense<0.000000e+00> : vector<32x64xf32>
    %501 = tpu.matmul %498, %500, %cst_302 {dimension_numbers = #tpu.dot_dimension_numbers<[1], [0], [0], [1], [0, 0, 1, 1], [], []>} : vector<32x32xbf16>, vector<32x64xbf16>, vector<32x64xf32> -> vector<32x64xf32>
    %c12_303 = arith.constant 12 : index
    %c32_304 = arith.constant 32 : index
    %c0_305 = arith.constant 0 : index
    %502 = vector.load %arg5[%c12_303, %c32_304, %c0_305] : memref<23x64x64xbf16, #tpu.memory_space<vmem>>, vector<1x32x64xbf16>
    %503 = vector.shape_cast %502 : vector<1x32x64xbf16> to vector<32x64xbf16>
    %cst_306 = arith.constant dense<0.000000e+00> : vector<32x64xf32>
    %504 = tpu.matmul %489, %503, %cst_306 {dimension_numbers = #tpu.dot_dimension_numbers<[1], [0], [0], [1], [0, 0, 1, 1], [], []>} : vector<32x32xbf16>, vector<32x64xbf16>, vector<32x64xf32> -> vector<32x64xf32>
    %505 = arith.addf %501, %504 : vector<32x64xf32>
    %c12_307 = arith.constant 12 : index
    %c0_308 = arith.constant 0 : index
    %c0_309 = arith.constant 0 : index
    %506 = vector.load %arg6[%c12_307, %c0_308, %c0_309] : memref<23x1x64xf32, #tpu.memory_space<vmem>>, vector<1x1x64xf32>
    %507 = vector.shape_cast %506 : vector<1x1x64xf32> to vector<1x64xf32>
    %508 = vector.broadcast %507 : vector<1x64xf32> to vector<32x64xf32>
    %509 = arith.addf %505, %508 : vector<32x64xf32>
    %510 = arith.addf %480, %496 : vector<32x32xf32>
    %511 = math.tanh %509 : vector<32x64xf32>
    %512 = vector.extract_strided_slice %511 {offsets = [0, 0], sizes = [32, 32], strides = [1, 1]} : vector<32x64xf32> to vector<32x32xf32>
    %513 = vector.extract_strided_slice %511 {offsets = [0, 32], sizes = [32, 32], strides = [1, 1]} : vector<32x64xf32> to vector<32x32xf32>
    %cst_310 = arith.constant 5.000000e-01 : f32
    %514 = vector.broadcast %cst_310 : f32 to vector<32x32xf32>
    %515 = arith.mulf %514, %513 : vector<32x32xf32>
    %cst_311 = arith.constant 5.000000e-01 : f32
    %516 = vector.broadcast %cst_311 : f32 to vector<32x32xf32>
    %517 = arith.addf %515, %516 : vector<32x32xf32>
    %518 = arith.mulf %512, %517 : vector<32x32xf32>
    %519 = arith.truncf %518 : vector<32x32xf32> to vector<32x32xbf16>
    %c13_312 = arith.constant 13 : index
    %c0_313 = arith.constant 0 : index
    %c0_314 = arith.constant 0 : index
    %520 = vector.load %arg8[%c13_312, %c0_313, %c0_314] : memref<24x32x32xbf16, #tpu.memory_space<vmem>>, vector<1x32x32xbf16>
    %521 = vector.shape_cast %520 : vector<1x32x32xbf16> to vector<32x32xbf16>
    %cst_315 = arith.constant dense<0.000000e+00> : vector<32x32xf32>
    %522 = tpu.matmul %519, %521, %cst_315 {dimension_numbers = #tpu.dot_dimension_numbers<[1], [0], [0], [1], [0, 0, 1, 1], [], []>} : vector<32x32xbf16>, vector<32x32xbf16>, vector<32x32xf32> -> vector<32x32xf32>
    %c13_316 = arith.constant 13 : index
    %c0_317 = arith.constant 0 : index
    %c0_318 = arith.constant 0 : index
    %523 = vector.load %arg9[%c13_316, %c0_317, %c0_318] : memref<24x1x32xf32, #tpu.memory_space<vmem>>, vector<1x1x32xf32>
    %524 = vector.shape_cast %523 : vector<1x1x32xf32> to vector<1x32xf32>
    %525 = vector.broadcast %524 : vector<1x32xf32> to vector<32x32xf32>
    %526 = arith.addf %522, %525 : vector<32x32xf32>
    %527 = arith.addf %497, %526 : vector<32x32xf32>
    %528 = arith.truncf %510 : vector<32x32xf32> to vector<32x32xbf16>
    %c14 = arith.constant 14 : index
    %c32_319 = arith.constant 32 : index
    %c0_320 = arith.constant 0 : index
    %529 = vector.load %arg3[%c14, %c32_319, %c0_320] : memref<24x64x64xbf16, #tpu.memory_space<vmem>>, vector<1x32x64xbf16>
    %530 = vector.shape_cast %529 : vector<1x32x64xbf16> to vector<32x64xbf16>
    %cst_321 = arith.constant dense<0.000000e+00> : vector<32x64xf32>
    %531 = tpu.matmul %528, %530, %cst_321 {dimension_numbers = #tpu.dot_dimension_numbers<[1], [0], [0], [1], [0, 0, 1, 1], [], []>} : vector<32x32xbf16>, vector<32x64xbf16>, vector<32x64xf32> -> vector<32x64xf32>
    %c13_322 = arith.constant 13 : index
    %c32_323 = arith.constant 32 : index
    %c0_324 = arith.constant 0 : index
    %532 = vector.load %arg5[%c13_322, %c32_323, %c0_324] : memref<23x64x64xbf16, #tpu.memory_space<vmem>>, vector<1x32x64xbf16>
    %533 = vector.shape_cast %532 : vector<1x32x64xbf16> to vector<32x64xbf16>
    %cst_325 = arith.constant dense<0.000000e+00> : vector<32x64xf32>
    %534 = tpu.matmul %519, %533, %cst_325 {dimension_numbers = #tpu.dot_dimension_numbers<[1], [0], [0], [1], [0, 0, 1, 1], [], []>} : vector<32x32xbf16>, vector<32x64xbf16>, vector<32x64xf32> -> vector<32x64xf32>
    %535 = arith.addf %531, %534 : vector<32x64xf32>
    %c13_326 = arith.constant 13 : index
    %c0_327 = arith.constant 0 : index
    %c0_328 = arith.constant 0 : index
    %536 = vector.load %arg6[%c13_326, %c0_327, %c0_328] : memref<23x1x64xf32, #tpu.memory_space<vmem>>, vector<1x1x64xf32>
    %537 = vector.shape_cast %536 : vector<1x1x64xf32> to vector<1x64xf32>
    %538 = vector.broadcast %537 : vector<1x64xf32> to vector<32x64xf32>
    %539 = arith.addf %535, %538 : vector<32x64xf32>
    %540 = arith.addf %510, %526 : vector<32x32xf32>
    %541 = math.tanh %539 : vector<32x64xf32>
    %542 = vector.extract_strided_slice %541 {offsets = [0, 0], sizes = [32, 32], strides = [1, 1]} : vector<32x64xf32> to vector<32x32xf32>
    %543 = vector.extract_strided_slice %541 {offsets = [0, 32], sizes = [32, 32], strides = [1, 1]} : vector<32x64xf32> to vector<32x32xf32>
    %cst_329 = arith.constant 5.000000e-01 : f32
    %544 = vector.broadcast %cst_329 : f32 to vector<32x32xf32>
    %545 = arith.mulf %544, %543 : vector<32x32xf32>
    %cst_330 = arith.constant 5.000000e-01 : f32
    %546 = vector.broadcast %cst_330 : f32 to vector<32x32xf32>
    %547 = arith.addf %545, %546 : vector<32x32xf32>
    %548 = arith.mulf %542, %547 : vector<32x32xf32>
    %549 = arith.truncf %548 : vector<32x32xf32> to vector<32x32xbf16>
    %c14_331 = arith.constant 14 : index
    %c0_332 = arith.constant 0 : index
    %c0_333 = arith.constant 0 : index
    %550 = vector.load %arg8[%c14_331, %c0_332, %c0_333] : memref<24x32x32xbf16, #tpu.memory_space<vmem>>, vector<1x32x32xbf16>
    %551 = vector.shape_cast %550 : vector<1x32x32xbf16> to vector<32x32xbf16>
    %cst_334 = arith.constant dense<0.000000e+00> : vector<32x32xf32>
    %552 = tpu.matmul %549, %551, %cst_334 {dimension_numbers = #tpu.dot_dimension_numbers<[1], [0], [0], [1], [0, 0, 1, 1], [], []>} : vector<32x32xbf16>, vector<32x32xbf16>, vector<32x32xf32> -> vector<32x32xf32>
    %c14_335 = arith.constant 14 : index
    %c0_336 = arith.constant 0 : index
    %c0_337 = arith.constant 0 : index
    %553 = vector.load %arg9[%c14_335, %c0_336, %c0_337] : memref<24x1x32xf32, #tpu.memory_space<vmem>>, vector<1x1x32xf32>
    %554 = vector.shape_cast %553 : vector<1x1x32xf32> to vector<1x32xf32>
    %555 = vector.broadcast %554 : vector<1x32xf32> to vector<32x32xf32>
    %556 = arith.addf %552, %555 : vector<32x32xf32>
    %557 = arith.addf %527, %556 : vector<32x32xf32>
    %558 = arith.truncf %540 : vector<32x32xf32> to vector<32x32xbf16>
    %c15 = arith.constant 15 : index
    %c32_338 = arith.constant 32 : index
    %c0_339 = arith.constant 0 : index
    %559 = vector.load %arg3[%c15, %c32_338, %c0_339] : memref<24x64x64xbf16, #tpu.memory_space<vmem>>, vector<1x32x64xbf16>
    %560 = vector.shape_cast %559 : vector<1x32x64xbf16> to vector<32x64xbf16>
    %cst_340 = arith.constant dense<0.000000e+00> : vector<32x64xf32>
    %561 = tpu.matmul %558, %560, %cst_340 {dimension_numbers = #tpu.dot_dimension_numbers<[1], [0], [0], [1], [0, 0, 1, 1], [], []>} : vector<32x32xbf16>, vector<32x64xbf16>, vector<32x64xf32> -> vector<32x64xf32>
    %c14_341 = arith.constant 14 : index
    %c32_342 = arith.constant 32 : index
    %c0_343 = arith.constant 0 : index
    %562 = vector.load %arg5[%c14_341, %c32_342, %c0_343] : memref<23x64x64xbf16, #tpu.memory_space<vmem>>, vector<1x32x64xbf16>
    %563 = vector.shape_cast %562 : vector<1x32x64xbf16> to vector<32x64xbf16>
    %cst_344 = arith.constant dense<0.000000e+00> : vector<32x64xf32>
    %564 = tpu.matmul %549, %563, %cst_344 {dimension_numbers = #tpu.dot_dimension_numbers<[1], [0], [0], [1], [0, 0, 1, 1], [], []>} : vector<32x32xbf16>, vector<32x64xbf16>, vector<32x64xf32> -> vector<32x64xf32>
    %565 = arith.addf %561, %564 : vector<32x64xf32>
    %c14_345 = arith.constant 14 : index
    %c0_346 = arith.constant 0 : index
    %c0_347 = arith.constant 0 : index
    %566 = vector.load %arg6[%c14_345, %c0_346, %c0_347] : memref<23x1x64xf32, #tpu.memory_space<vmem>>, vector<1x1x64xf32>
    %567 = vector.shape_cast %566 : vector<1x1x64xf32> to vector<1x64xf32>
    %568 = vector.broadcast %567 : vector<1x64xf32> to vector<32x64xf32>
    %569 = arith.addf %565, %568 : vector<32x64xf32>
    %570 = arith.addf %540, %556 : vector<32x32xf32>
    %571 = math.tanh %569 : vector<32x64xf32>
    %572 = vector.extract_strided_slice %571 {offsets = [0, 0], sizes = [32, 32], strides = [1, 1]} : vector<32x64xf32> to vector<32x32xf32>
    %573 = vector.extract_strided_slice %571 {offsets = [0, 32], sizes = [32, 32], strides = [1, 1]} : vector<32x64xf32> to vector<32x32xf32>
    %cst_348 = arith.constant 5.000000e-01 : f32
    %574 = vector.broadcast %cst_348 : f32 to vector<32x32xf32>
    %575 = arith.mulf %574, %573 : vector<32x32xf32>
    %cst_349 = arith.constant 5.000000e-01 : f32
    %576 = vector.broadcast %cst_349 : f32 to vector<32x32xf32>
    %577 = arith.addf %575, %576 : vector<32x32xf32>
    %578 = arith.mulf %572, %577 : vector<32x32xf32>
    %579 = arith.truncf %578 : vector<32x32xf32> to vector<32x32xbf16>
    %c15_350 = arith.constant 15 : index
    %c0_351 = arith.constant 0 : index
    %c0_352 = arith.constant 0 : index
    %580 = vector.load %arg8[%c15_350, %c0_351, %c0_352] : memref<24x32x32xbf16, #tpu.memory_space<vmem>>, vector<1x32x32xbf16>
    %581 = vector.shape_cast %580 : vector<1x32x32xbf16> to vector<32x32xbf16>
    %cst_353 = arith.constant dense<0.000000e+00> : vector<32x32xf32>
    %582 = tpu.matmul %579, %581, %cst_353 {dimension_numbers = #tpu.dot_dimension_numbers<[1], [0], [0], [1], [0, 0, 1, 1], [], []>} : vector<32x32xbf16>, vector<32x32xbf16>, vector<32x32xf32> -> vector<32x32xf32>
    %c15_354 = arith.constant 15 : index
    %c0_355 = arith.constant 0 : index
    %c0_356 = arith.constant 0 : index
    %583 = vector.load %arg9[%c15_354, %c0_355, %c0_356] : memref<24x1x32xf32, #tpu.memory_space<vmem>>, vector<1x1x32xf32>
    %584 = vector.shape_cast %583 : vector<1x1x32xf32> to vector<1x32xf32>
    %585 = vector.broadcast %584 : vector<1x32xf32> to vector<32x32xf32>
    %586 = arith.addf %582, %585 : vector<32x32xf32>
    %587 = arith.addf %557, %586 : vector<32x32xf32>
    %c0_357 = arith.constant 0 : index
    %c0_358 = arith.constant 0 : index
    %c0_359 = arith.constant 0 : index
    %588 = vector.load %arg2[%c0_357, %c0_358, %c0_359] : memref<4x32x64xf32, #tpu.memory_space<vmem>>, vector<1x32x64xf32>
    %589 = vector.shape_cast %588 : vector<1x32x64xf32> to vector<32x64xf32>
    %590 = vector.extract_strided_slice %589 {offsets = [0, 0], sizes = [32, 32], strides = [1, 1]} : vector<32x64xf32> to vector<32x32xf32>
    %c1_i32_360 = arith.constant 1 : i32
    %591 = tpu.dynamic_rotate %570 by %c1_i32_360 dim 0 : vector<32x32xf32>, i32 -> vector<32x32xf32>
    %592 = arith.mulf %590, %591 : vector<32x32xf32>
    %593 = tpu.concatenate %592, %570 in 1 : vector<32x32xf32>, vector<32x32xf32> -> vector<32x64xf32>
    %594 = arith.truncf %593 : vector<32x64xf32> to vector<32x64xbf16>
    %c1_i32_361 = arith.constant 1 : i32
    %595 = tpu.dynamic_rotate %578 by %c1_i32_361 dim 0 : vector<32x32xf32>, i32 -> vector<32x32xf32>
    %596 = arith.mulf %590, %595 : vector<32x32xf32>
    %597 = tpu.concatenate %596, %578 in 1 : vector<32x32xf32>, vector<32x32xf32> -> vector<32x64xf32>
    %598 = arith.truncf %597 : vector<32x64xf32> to vector<32x64xbf16>
    %c16 = arith.constant 16 : index
    %c0_362 = arith.constant 0 : index
    %c0_363 = arith.constant 0 : index
    %599 = vector.load %arg3[%c16, %c0_362, %c0_363] : memref<24x64x64xbf16, #tpu.memory_space<vmem>>, vector<1x64x64xbf16>
    %600 = vector.shape_cast %599 : vector<1x64x64xbf16> to vector<64x64xbf16>
    %cst_364 = arith.constant dense<0.000000e+00> : vector<32x64xf32>
    %601 = tpu.matmul %594, %600, %cst_364 {dimension_numbers = #tpu.dot_dimension_numbers<[1], [0], [0], [1], [0, 0, 1, 1], [], []>} : vector<32x64xbf16>, vector<64x64xbf16>, vector<32x64xf32> -> vector<32x64xf32>
    %c15_365 = arith.constant 15 : index
    %c0_366 = arith.constant 0 : index
    %c0_367 = arith.constant 0 : index
    %602 = vector.load %arg5[%c15_365, %c0_366, %c0_367] : memref<23x64x64xbf16, #tpu.memory_space<vmem>>, vector<1x64x64xbf16>
    %603 = vector.shape_cast %602 : vector<1x64x64xbf16> to vector<64x64xbf16>
    %cst_368 = arith.constant dense<0.000000e+00> : vector<32x64xf32>
    %604 = tpu.matmul %598, %603, %cst_368 {dimension_numbers = #tpu.dot_dimension_numbers<[1], [0], [0], [1], [0, 0, 1, 1], [], []>} : vector<32x64xbf16>, vector<64x64xbf16>, vector<32x64xf32> -> vector<32x64xf32>
    %605 = arith.addf %601, %604 : vector<32x64xf32>
    %c15_369 = arith.constant 15 : index
    %c0_370 = arith.constant 0 : index
    %c0_371 = arith.constant 0 : index
    %606 = vector.load %arg6[%c15_369, %c0_370, %c0_371] : memref<23x1x64xf32, #tpu.memory_space<vmem>>, vector<1x1x64xf32>
    %607 = vector.shape_cast %606 : vector<1x1x64xf32> to vector<1x64xf32>
    %608 = vector.broadcast %607 : vector<1x64xf32> to vector<32x64xf32>
    %609 = arith.addf %605, %608 : vector<32x64xf32>
    %c15_372 = arith.constant 15 : index
    %c0_373 = arith.constant 0 : index
    %c0_374 = arith.constant 0 : index
    %610 = vector.load %arg7[%c15_372, %c0_373, %c0_374] : memref<23x1x64xf32, #tpu.memory_space<vmem>>, vector<1x1x64xf32>
    %611 = vector.shape_cast %610 : vector<1x1x64xf32> to vector<1x64xf32>
    %612 = vector.broadcast %611 : vector<1x64xf32> to vector<32x64xf32>
    %613 = arith.mulf %589, %612 : vector<32x64xf32>
    %614 = arith.addf %609, %613 : vector<32x64xf32>
    %615 = arith.addf %570, %586 : vector<32x32xf32>
    %616 = math.tanh %614 : vector<32x64xf32>
    %617 = vector.extract_strided_slice %616 {offsets = [0, 0], sizes = [32, 32], strides = [1, 1]} : vector<32x64xf32> to vector<32x32xf32>
    %618 = vector.extract_strided_slice %616 {offsets = [0, 32], sizes = [32, 32], strides = [1, 1]} : vector<32x64xf32> to vector<32x32xf32>
    %cst_375 = arith.constant 5.000000e-01 : f32
    %619 = vector.broadcast %cst_375 : f32 to vector<32x32xf32>
    %620 = arith.mulf %619, %618 : vector<32x32xf32>
    %cst_376 = arith.constant 5.000000e-01 : f32
    %621 = vector.broadcast %cst_376 : f32 to vector<32x32xf32>
    %622 = arith.addf %620, %621 : vector<32x32xf32>
    %623 = arith.mulf %617, %622 : vector<32x32xf32>
    %624 = arith.truncf %623 : vector<32x32xf32> to vector<32x32xbf16>
    %c16_377 = arith.constant 16 : index
    %c0_378 = arith.constant 0 : index
    %c0_379 = arith.constant 0 : index
    %625 = vector.load %arg8[%c16_377, %c0_378, %c0_379] : memref<24x32x32xbf16, #tpu.memory_space<vmem>>, vector<1x32x32xbf16>
    %626 = vector.shape_cast %625 : vector<1x32x32xbf16> to vector<32x32xbf16>
    %cst_380 = arith.constant dense<0.000000e+00> : vector<32x32xf32>
    %627 = tpu.matmul %624, %626, %cst_380 {dimension_numbers = #tpu.dot_dimension_numbers<[1], [0], [0], [1], [0, 0, 1, 1], [], []>} : vector<32x32xbf16>, vector<32x32xbf16>, vector<32x32xf32> -> vector<32x32xf32>
    %c16_381 = arith.constant 16 : index
    %c0_382 = arith.constant 0 : index
    %c0_383 = arith.constant 0 : index
    %628 = vector.load %arg9[%c16_381, %c0_382, %c0_383] : memref<24x1x32xf32, #tpu.memory_space<vmem>>, vector<1x1x32xf32>
    %629 = vector.shape_cast %628 : vector<1x1x32xf32> to vector<1x32xf32>
    %630 = vector.broadcast %629 : vector<1x32xf32> to vector<32x32xf32>
    %631 = arith.addf %627, %630 : vector<32x32xf32>
    %632 = arith.addf %587, %631 : vector<32x32xf32>
    %c1_384 = arith.constant 1 : index
    %c0_385 = arith.constant 0 : index
    %c0_386 = arith.constant 0 : index
    %633 = vector.load %arg2[%c1_384, %c0_385, %c0_386] : memref<4x32x64xf32, #tpu.memory_space<vmem>>, vector<1x32x64xf32>
    %634 = vector.shape_cast %633 : vector<1x32x64xf32> to vector<32x64xf32>
    %635 = vector.extract_strided_slice %634 {offsets = [0, 0], sizes = [32, 32], strides = [1, 1]} : vector<32x64xf32> to vector<32x32xf32>
    %c2_i32_387 = arith.constant 2 : i32
    %636 = tpu.dynamic_rotate %615 by %c2_i32_387 dim 0 : vector<32x32xf32>, i32 -> vector<32x32xf32>
    %637 = arith.mulf %635, %636 : vector<32x32xf32>
    %638 = tpu.concatenate %637, %615 in 1 : vector<32x32xf32>, vector<32x32xf32> -> vector<32x64xf32>
    %639 = arith.truncf %638 : vector<32x64xf32> to vector<32x64xbf16>
    %c2_i32_388 = arith.constant 2 : i32
    %640 = tpu.dynamic_rotate %623 by %c2_i32_388 dim 0 : vector<32x32xf32>, i32 -> vector<32x32xf32>
    %641 = arith.mulf %635, %640 : vector<32x32xf32>
    %642 = tpu.concatenate %641, %623 in 1 : vector<32x32xf32>, vector<32x32xf32> -> vector<32x64xf32>
    %643 = arith.truncf %642 : vector<32x64xf32> to vector<32x64xbf16>
    %c17 = arith.constant 17 : index
    %c0_389 = arith.constant 0 : index
    %c0_390 = arith.constant 0 : index
    %644 = vector.load %arg3[%c17, %c0_389, %c0_390] : memref<24x64x64xbf16, #tpu.memory_space<vmem>>, vector<1x64x64xbf16>
    %645 = vector.shape_cast %644 : vector<1x64x64xbf16> to vector<64x64xbf16>
    %cst_391 = arith.constant dense<0.000000e+00> : vector<32x64xf32>
    %646 = tpu.matmul %639, %645, %cst_391 {dimension_numbers = #tpu.dot_dimension_numbers<[1], [0], [0], [1], [0, 0, 1, 1], [], []>} : vector<32x64xbf16>, vector<64x64xbf16>, vector<32x64xf32> -> vector<32x64xf32>
    %c16_392 = arith.constant 16 : index
    %c0_393 = arith.constant 0 : index
    %c0_394 = arith.constant 0 : index
    %647 = vector.load %arg5[%c16_392, %c0_393, %c0_394] : memref<23x64x64xbf16, #tpu.memory_space<vmem>>, vector<1x64x64xbf16>
    %648 = vector.shape_cast %647 : vector<1x64x64xbf16> to vector<64x64xbf16>
    %cst_395 = arith.constant dense<0.000000e+00> : vector<32x64xf32>
    %649 = tpu.matmul %643, %648, %cst_395 {dimension_numbers = #tpu.dot_dimension_numbers<[1], [0], [0], [1], [0, 0, 1, 1], [], []>} : vector<32x64xbf16>, vector<64x64xbf16>, vector<32x64xf32> -> vector<32x64xf32>
    %650 = arith.addf %646, %649 : vector<32x64xf32>
    %c16_396 = arith.constant 16 : index
    %c0_397 = arith.constant 0 : index
    %c0_398 = arith.constant 0 : index
    %651 = vector.load %arg6[%c16_396, %c0_397, %c0_398] : memref<23x1x64xf32, #tpu.memory_space<vmem>>, vector<1x1x64xf32>
    %652 = vector.shape_cast %651 : vector<1x1x64xf32> to vector<1x64xf32>
    %653 = vector.broadcast %652 : vector<1x64xf32> to vector<32x64xf32>
    %654 = arith.addf %650, %653 : vector<32x64xf32>
    %c16_399 = arith.constant 16 : index
    %c0_400 = arith.constant 0 : index
    %c0_401 = arith.constant 0 : index
    %655 = vector.load %arg7[%c16_399, %c0_400, %c0_401] : memref<23x1x64xf32, #tpu.memory_space<vmem>>, vector<1x1x64xf32>
    %656 = vector.shape_cast %655 : vector<1x1x64xf32> to vector<1x64xf32>
    %657 = vector.broadcast %656 : vector<1x64xf32> to vector<32x64xf32>
    %658 = arith.mulf %634, %657 : vector<32x64xf32>
    %659 = arith.addf %654, %658 : vector<32x64xf32>
    %660 = arith.addf %615, %631 : vector<32x32xf32>
    %661 = math.tanh %659 : vector<32x64xf32>
    %662 = vector.extract_strided_slice %661 {offsets = [0, 0], sizes = [32, 32], strides = [1, 1]} : vector<32x64xf32> to vector<32x32xf32>
    %663 = vector.extract_strided_slice %661 {offsets = [0, 32], sizes = [32, 32], strides = [1, 1]} : vector<32x64xf32> to vector<32x32xf32>
    %cst_402 = arith.constant 5.000000e-01 : f32
    %664 = vector.broadcast %cst_402 : f32 to vector<32x32xf32>
    %665 = arith.mulf %664, %663 : vector<32x32xf32>
    %cst_403 = arith.constant 5.000000e-01 : f32
    %666 = vector.broadcast %cst_403 : f32 to vector<32x32xf32>
    %667 = arith.addf %665, %666 : vector<32x32xf32>
    %668 = arith.mulf %662, %667 : vector<32x32xf32>
    %669 = arith.truncf %668 : vector<32x32xf32> to vector<32x32xbf16>
    %c17_404 = arith.constant 17 : index
    %c0_405 = arith.constant 0 : index
    %c0_406 = arith.constant 0 : index
    %670 = vector.load %arg8[%c17_404, %c0_405, %c0_406] : memref<24x32x32xbf16, #tpu.memory_space<vmem>>, vector<1x32x32xbf16>
    %671 = vector.shape_cast %670 : vector<1x32x32xbf16> to vector<32x32xbf16>
    %cst_407 = arith.constant dense<0.000000e+00> : vector<32x32xf32>
    %672 = tpu.matmul %669, %671, %cst_407 {dimension_numbers = #tpu.dot_dimension_numbers<[1], [0], [0], [1], [0, 0, 1, 1], [], []>} : vector<32x32xbf16>, vector<32x32xbf16>, vector<32x32xf32> -> vector<32x32xf32>
    %c17_408 = arith.constant 17 : index
    %c0_409 = arith.constant 0 : index
    %c0_410 = arith.constant 0 : index
    %673 = vector.load %arg9[%c17_408, %c0_409, %c0_410] : memref<24x1x32xf32, #tpu.memory_space<vmem>>, vector<1x1x32xf32>
    %674 = vector.shape_cast %673 : vector<1x1x32xf32> to vector<1x32xf32>
    %675 = vector.broadcast %674 : vector<1x32xf32> to vector<32x32xf32>
    %676 = arith.addf %672, %675 : vector<32x32xf32>
    %677 = arith.addf %632, %676 : vector<32x32xf32>
    %c2_411 = arith.constant 2 : index
    %c0_412 = arith.constant 0 : index
    %c0_413 = arith.constant 0 : index
    %678 = vector.load %arg2[%c2_411, %c0_412, %c0_413] : memref<4x32x64xf32, #tpu.memory_space<vmem>>, vector<1x32x64xf32>
    %679 = vector.shape_cast %678 : vector<1x32x64xf32> to vector<32x64xf32>
    %680 = vector.extract_strided_slice %679 {offsets = [0, 0], sizes = [32, 32], strides = [1, 1]} : vector<32x64xf32> to vector<32x32xf32>
    %c4_i32_414 = arith.constant 4 : i32
    %681 = tpu.dynamic_rotate %660 by %c4_i32_414 dim 0 : vector<32x32xf32>, i32 -> vector<32x32xf32>
    %682 = arith.mulf %680, %681 : vector<32x32xf32>
    %683 = tpu.concatenate %682, %660 in 1 : vector<32x32xf32>, vector<32x32xf32> -> vector<32x64xf32>
    %684 = arith.truncf %683 : vector<32x64xf32> to vector<32x64xbf16>
    %c4_i32_415 = arith.constant 4 : i32
    %685 = tpu.dynamic_rotate %668 by %c4_i32_415 dim 0 : vector<32x32xf32>, i32 -> vector<32x32xf32>
    %686 = arith.mulf %680, %685 : vector<32x32xf32>
    %687 = tpu.concatenate %686, %668 in 1 : vector<32x32xf32>, vector<32x32xf32> -> vector<32x64xf32>
    %688 = arith.truncf %687 : vector<32x64xf32> to vector<32x64xbf16>
    %c18 = arith.constant 18 : index
    %c0_416 = arith.constant 0 : index
    %c0_417 = arith.constant 0 : index
    %689 = vector.load %arg3[%c18, %c0_416, %c0_417] : memref<24x64x64xbf16, #tpu.memory_space<vmem>>, vector<1x64x64xbf16>
    %690 = vector.shape_cast %689 : vector<1x64x64xbf16> to vector<64x64xbf16>
    %cst_418 = arith.constant dense<0.000000e+00> : vector<32x64xf32>
    %691 = tpu.matmul %684, %690, %cst_418 {dimension_numbers = #tpu.dot_dimension_numbers<[1], [0], [0], [1], [0, 0, 1, 1], [], []>} : vector<32x64xbf16>, vector<64x64xbf16>, vector<32x64xf32> -> vector<32x64xf32>
    %c17_419 = arith.constant 17 : index
    %c0_420 = arith.constant 0 : index
    %c0_421 = arith.constant 0 : index
    %692 = vector.load %arg5[%c17_419, %c0_420, %c0_421] : memref<23x64x64xbf16, #tpu.memory_space<vmem>>, vector<1x64x64xbf16>
    %693 = vector.shape_cast %692 : vector<1x64x64xbf16> to vector<64x64xbf16>
    %cst_422 = arith.constant dense<0.000000e+00> : vector<32x64xf32>
    %694 = tpu.matmul %688, %693, %cst_422 {dimension_numbers = #tpu.dot_dimension_numbers<[1], [0], [0], [1], [0, 0, 1, 1], [], []>} : vector<32x64xbf16>, vector<64x64xbf16>, vector<32x64xf32> -> vector<32x64xf32>
    %695 = arith.addf %691, %694 : vector<32x64xf32>
    %c17_423 = arith.constant 17 : index
    %c0_424 = arith.constant 0 : index
    %c0_425 = arith.constant 0 : index
    %696 = vector.load %arg6[%c17_423, %c0_424, %c0_425] : memref<23x1x64xf32, #tpu.memory_space<vmem>>, vector<1x1x64xf32>
    %697 = vector.shape_cast %696 : vector<1x1x64xf32> to vector<1x64xf32>
    %698 = vector.broadcast %697 : vector<1x64xf32> to vector<32x64xf32>
    %699 = arith.addf %695, %698 : vector<32x64xf32>
    %c17_426 = arith.constant 17 : index
    %c0_427 = arith.constant 0 : index
    %c0_428 = arith.constant 0 : index
    %700 = vector.load %arg7[%c17_426, %c0_427, %c0_428] : memref<23x1x64xf32, #tpu.memory_space<vmem>>, vector<1x1x64xf32>
    %701 = vector.shape_cast %700 : vector<1x1x64xf32> to vector<1x64xf32>
    %702 = vector.broadcast %701 : vector<1x64xf32> to vector<32x64xf32>
    %703 = arith.mulf %679, %702 : vector<32x64xf32>
    %704 = arith.addf %699, %703 : vector<32x64xf32>
    %705 = arith.addf %660, %676 : vector<32x32xf32>
    %706 = math.tanh %704 : vector<32x64xf32>
    %707 = vector.extract_strided_slice %706 {offsets = [0, 0], sizes = [32, 32], strides = [1, 1]} : vector<32x64xf32> to vector<32x32xf32>
    %708 = vector.extract_strided_slice %706 {offsets = [0, 32], sizes = [32, 32], strides = [1, 1]} : vector<32x64xf32> to vector<32x32xf32>
    %cst_429 = arith.constant 5.000000e-01 : f32
    %709 = vector.broadcast %cst_429 : f32 to vector<32x32xf32>
    %710 = arith.mulf %709, %708 : vector<32x32xf32>
    %cst_430 = arith.constant 5.000000e-01 : f32
    %711 = vector.broadcast %cst_430 : f32 to vector<32x32xf32>
    %712 = arith.addf %710, %711 : vector<32x32xf32>
    %713 = arith.mulf %707, %712 : vector<32x32xf32>
    %714 = arith.truncf %713 : vector<32x32xf32> to vector<32x32xbf16>
    %c18_431 = arith.constant 18 : index
    %c0_432 = arith.constant 0 : index
    %c0_433 = arith.constant 0 : index
    %715 = vector.load %arg8[%c18_431, %c0_432, %c0_433] : memref<24x32x32xbf16, #tpu.memory_space<vmem>>, vector<1x32x32xbf16>
    %716 = vector.shape_cast %715 : vector<1x32x32xbf16> to vector<32x32xbf16>
    %cst_434 = arith.constant dense<0.000000e+00> : vector<32x32xf32>
    %717 = tpu.matmul %714, %716, %cst_434 {dimension_numbers = #tpu.dot_dimension_numbers<[1], [0], [0], [1], [0, 0, 1, 1], [], []>} : vector<32x32xbf16>, vector<32x32xbf16>, vector<32x32xf32> -> vector<32x32xf32>
    %c18_435 = arith.constant 18 : index
    %c0_436 = arith.constant 0 : index
    %c0_437 = arith.constant 0 : index
    %718 = vector.load %arg9[%c18_435, %c0_436, %c0_437] : memref<24x1x32xf32, #tpu.memory_space<vmem>>, vector<1x1x32xf32>
    %719 = vector.shape_cast %718 : vector<1x1x32xf32> to vector<1x32xf32>
    %720 = vector.broadcast %719 : vector<1x32xf32> to vector<32x32xf32>
    %721 = arith.addf %717, %720 : vector<32x32xf32>
    %722 = arith.addf %677, %721 : vector<32x32xf32>
    %c3_438 = arith.constant 3 : index
    %c0_439 = arith.constant 0 : index
    %c0_440 = arith.constant 0 : index
    %723 = vector.load %arg2[%c3_438, %c0_439, %c0_440] : memref<4x32x64xf32, #tpu.memory_space<vmem>>, vector<1x32x64xf32>
    %724 = vector.shape_cast %723 : vector<1x32x64xf32> to vector<32x64xf32>
    %725 = vector.extract_strided_slice %724 {offsets = [0, 0], sizes = [32, 32], strides = [1, 1]} : vector<32x64xf32> to vector<32x32xf32>
    %c8_i32_441 = arith.constant 8 : i32
    %726 = tpu.dynamic_rotate %705 by %c8_i32_441 dim 0 : vector<32x32xf32>, i32 -> vector<32x32xf32>
    %727 = arith.mulf %725, %726 : vector<32x32xf32>
    %728 = tpu.concatenate %727, %705 in 1 : vector<32x32xf32>, vector<32x32xf32> -> vector<32x64xf32>
    %729 = arith.truncf %728 : vector<32x64xf32> to vector<32x64xbf16>
    %c8_i32_442 = arith.constant 8 : i32
    %730 = tpu.dynamic_rotate %713 by %c8_i32_442 dim 0 : vector<32x32xf32>, i32 -> vector<32x32xf32>
    %731 = arith.mulf %725, %730 : vector<32x32xf32>
    %732 = tpu.concatenate %731, %713 in 1 : vector<32x32xf32>, vector<32x32xf32> -> vector<32x64xf32>
    %733 = arith.truncf %732 : vector<32x64xf32> to vector<32x64xbf16>
    %c19 = arith.constant 19 : index
    %c0_443 = arith.constant 0 : index
    %c0_444 = arith.constant 0 : index
    %734 = vector.load %arg3[%c19, %c0_443, %c0_444] : memref<24x64x64xbf16, #tpu.memory_space<vmem>>, vector<1x64x64xbf16>
    %735 = vector.shape_cast %734 : vector<1x64x64xbf16> to vector<64x64xbf16>
    %cst_445 = arith.constant dense<0.000000e+00> : vector<32x64xf32>
    %736 = tpu.matmul %729, %735, %cst_445 {dimension_numbers = #tpu.dot_dimension_numbers<[1], [0], [0], [1], [0, 0, 1, 1], [], []>} : vector<32x64xbf16>, vector<64x64xbf16>, vector<32x64xf32> -> vector<32x64xf32>
    %c18_446 = arith.constant 18 : index
    %c0_447 = arith.constant 0 : index
    %c0_448 = arith.constant 0 : index
    %737 = vector.load %arg5[%c18_446, %c0_447, %c0_448] : memref<23x64x64xbf16, #tpu.memory_space<vmem>>, vector<1x64x64xbf16>
    %738 = vector.shape_cast %737 : vector<1x64x64xbf16> to vector<64x64xbf16>
    %cst_449 = arith.constant dense<0.000000e+00> : vector<32x64xf32>
    %739 = tpu.matmul %733, %738, %cst_449 {dimension_numbers = #tpu.dot_dimension_numbers<[1], [0], [0], [1], [0, 0, 1, 1], [], []>} : vector<32x64xbf16>, vector<64x64xbf16>, vector<32x64xf32> -> vector<32x64xf32>
    %740 = arith.addf %736, %739 : vector<32x64xf32>
    %c18_450 = arith.constant 18 : index
    %c0_451 = arith.constant 0 : index
    %c0_452 = arith.constant 0 : index
    %741 = vector.load %arg6[%c18_450, %c0_451, %c0_452] : memref<23x1x64xf32, #tpu.memory_space<vmem>>, vector<1x1x64xf32>
    %742 = vector.shape_cast %741 : vector<1x1x64xf32> to vector<1x64xf32>
    %743 = vector.broadcast %742 : vector<1x64xf32> to vector<32x64xf32>
    %744 = arith.addf %740, %743 : vector<32x64xf32>
    %c18_453 = arith.constant 18 : index
    %c0_454 = arith.constant 0 : index
    %c0_455 = arith.constant 0 : index
    %745 = vector.load %arg7[%c18_453, %c0_454, %c0_455] : memref<23x1x64xf32, #tpu.memory_space<vmem>>, vector<1x1x64xf32>
    %746 = vector.shape_cast %745 : vector<1x1x64xf32> to vector<1x64xf32>
    %747 = vector.broadcast %746 : vector<1x64xf32> to vector<32x64xf32>
    %748 = arith.mulf %724, %747 : vector<32x64xf32>
    %749 = arith.addf %744, %748 : vector<32x64xf32>
    %750 = arith.addf %705, %721 : vector<32x32xf32>
    %751 = math.tanh %749 : vector<32x64xf32>
    %752 = vector.extract_strided_slice %751 {offsets = [0, 0], sizes = [32, 32], strides = [1, 1]} : vector<32x64xf32> to vector<32x32xf32>
    %753 = vector.extract_strided_slice %751 {offsets = [0, 32], sizes = [32, 32], strides = [1, 1]} : vector<32x64xf32> to vector<32x32xf32>
    %cst_456 = arith.constant 5.000000e-01 : f32
    %754 = vector.broadcast %cst_456 : f32 to vector<32x32xf32>
    %755 = arith.mulf %754, %753 : vector<32x32xf32>
    %cst_457 = arith.constant 5.000000e-01 : f32
    %756 = vector.broadcast %cst_457 : f32 to vector<32x32xf32>
    %757 = arith.addf %755, %756 : vector<32x32xf32>
    %758 = arith.mulf %752, %757 : vector<32x32xf32>
    %759 = arith.truncf %758 : vector<32x32xf32> to vector<32x32xbf16>
    %c19_458 = arith.constant 19 : index
    %c0_459 = arith.constant 0 : index
    %c0_460 = arith.constant 0 : index
    %760 = vector.load %arg8[%c19_458, %c0_459, %c0_460] : memref<24x32x32xbf16, #tpu.memory_space<vmem>>, vector<1x32x32xbf16>
    %761 = vector.shape_cast %760 : vector<1x32x32xbf16> to vector<32x32xbf16>
    %cst_461 = arith.constant dense<0.000000e+00> : vector<32x32xf32>
    %762 = tpu.matmul %759, %761, %cst_461 {dimension_numbers = #tpu.dot_dimension_numbers<[1], [0], [0], [1], [0, 0, 1, 1], [], []>} : vector<32x32xbf16>, vector<32x32xbf16>, vector<32x32xf32> -> vector<32x32xf32>
    %c19_462 = arith.constant 19 : index
    %c0_463 = arith.constant 0 : index
    %c0_464 = arith.constant 0 : index
    %763 = vector.load %arg9[%c19_462, %c0_463, %c0_464] : memref<24x1x32xf32, #tpu.memory_space<vmem>>, vector<1x1x32xf32>
    %764 = vector.shape_cast %763 : vector<1x1x32xf32> to vector<1x32xf32>
    %765 = vector.broadcast %764 : vector<1x32xf32> to vector<32x32xf32>
    %766 = arith.addf %762, %765 : vector<32x32xf32>
    %767 = arith.addf %722, %766 : vector<32x32xf32>
    %768 = arith.truncf %750 : vector<32x32xf32> to vector<32x32xbf16>
    %c20 = arith.constant 20 : index
    %c32_465 = arith.constant 32 : index
    %c0_466 = arith.constant 0 : index
    %769 = vector.load %arg3[%c20, %c32_465, %c0_466] : memref<24x64x64xbf16, #tpu.memory_space<vmem>>, vector<1x32x64xbf16>
    %770 = vector.shape_cast %769 : vector<1x32x64xbf16> to vector<32x64xbf16>
    %cst_467 = arith.constant dense<0.000000e+00> : vector<32x64xf32>
    %771 = tpu.matmul %768, %770, %cst_467 {dimension_numbers = #tpu.dot_dimension_numbers<[1], [0], [0], [1], [0, 0, 1, 1], [], []>} : vector<32x32xbf16>, vector<32x64xbf16>, vector<32x64xf32> -> vector<32x64xf32>
    %c19_468 = arith.constant 19 : index
    %c32_469 = arith.constant 32 : index
    %c0_470 = arith.constant 0 : index
    %772 = vector.load %arg5[%c19_468, %c32_469, %c0_470] : memref<23x64x64xbf16, #tpu.memory_space<vmem>>, vector<1x32x64xbf16>
    %773 = vector.shape_cast %772 : vector<1x32x64xbf16> to vector<32x64xbf16>
    %cst_471 = arith.constant dense<0.000000e+00> : vector<32x64xf32>
    %774 = tpu.matmul %759, %773, %cst_471 {dimension_numbers = #tpu.dot_dimension_numbers<[1], [0], [0], [1], [0, 0, 1, 1], [], []>} : vector<32x32xbf16>, vector<32x64xbf16>, vector<32x64xf32> -> vector<32x64xf32>
    %775 = arith.addf %771, %774 : vector<32x64xf32>
    %c19_472 = arith.constant 19 : index
    %c0_473 = arith.constant 0 : index
    %c0_474 = arith.constant 0 : index
    %776 = vector.load %arg6[%c19_472, %c0_473, %c0_474] : memref<23x1x64xf32, #tpu.memory_space<vmem>>, vector<1x1x64xf32>
    %777 = vector.shape_cast %776 : vector<1x1x64xf32> to vector<1x64xf32>
    %778 = vector.broadcast %777 : vector<1x64xf32> to vector<32x64xf32>
    %779 = arith.addf %775, %778 : vector<32x64xf32>
    %780 = arith.addf %750, %766 : vector<32x32xf32>
    %781 = math.tanh %779 : vector<32x64xf32>
    %782 = vector.extract_strided_slice %781 {offsets = [0, 0], sizes = [32, 32], strides = [1, 1]} : vector<32x64xf32> to vector<32x32xf32>
    %783 = vector.extract_strided_slice %781 {offsets = [0, 32], sizes = [32, 32], strides = [1, 1]} : vector<32x64xf32> to vector<32x32xf32>
    %cst_475 = arith.constant 5.000000e-01 : f32
    %784 = vector.broadcast %cst_475 : f32 to vector<32x32xf32>
    %785 = arith.mulf %784, %783 : vector<32x32xf32>
    %cst_476 = arith.constant 5.000000e-01 : f32
    %786 = vector.broadcast %cst_476 : f32 to vector<32x32xf32>
    %787 = arith.addf %785, %786 : vector<32x32xf32>
    %788 = arith.mulf %782, %787 : vector<32x32xf32>
    %789 = arith.truncf %788 : vector<32x32xf32> to vector<32x32xbf16>
    %c20_477 = arith.constant 20 : index
    %c0_478 = arith.constant 0 : index
    %c0_479 = arith.constant 0 : index
    %790 = vector.load %arg8[%c20_477, %c0_478, %c0_479] : memref<24x32x32xbf16, #tpu.memory_space<vmem>>, vector<1x32x32xbf16>
    %791 = vector.shape_cast %790 : vector<1x32x32xbf16> to vector<32x32xbf16>
    %cst_480 = arith.constant dense<0.000000e+00> : vector<32x32xf32>
    %792 = tpu.matmul %789, %791, %cst_480 {dimension_numbers = #tpu.dot_dimension_numbers<[1], [0], [0], [1], [0, 0, 1, 1], [], []>} : vector<32x32xbf16>, vector<32x32xbf16>, vector<32x32xf32> -> vector<32x32xf32>
    %c20_481 = arith.constant 20 : index
    %c0_482 = arith.constant 0 : index
    %c0_483 = arith.constant 0 : index
    %793 = vector.load %arg9[%c20_481, %c0_482, %c0_483] : memref<24x1x32xf32, #tpu.memory_space<vmem>>, vector<1x1x32xf32>
    %794 = vector.shape_cast %793 : vector<1x1x32xf32> to vector<1x32xf32>
    %795 = vector.broadcast %794 : vector<1x32xf32> to vector<32x32xf32>
    %796 = arith.addf %792, %795 : vector<32x32xf32>
    %797 = arith.addf %767, %796 : vector<32x32xf32>
    %798 = arith.truncf %780 : vector<32x32xf32> to vector<32x32xbf16>
    %c21 = arith.constant 21 : index
    %c32_484 = arith.constant 32 : index
    %c0_485 = arith.constant 0 : index
    %799 = vector.load %arg3[%c21, %c32_484, %c0_485] : memref<24x64x64xbf16, #tpu.memory_space<vmem>>, vector<1x32x64xbf16>
    %800 = vector.shape_cast %799 : vector<1x32x64xbf16> to vector<32x64xbf16>
    %cst_486 = arith.constant dense<0.000000e+00> : vector<32x64xf32>
    %801 = tpu.matmul %798, %800, %cst_486 {dimension_numbers = #tpu.dot_dimension_numbers<[1], [0], [0], [1], [0, 0, 1, 1], [], []>} : vector<32x32xbf16>, vector<32x64xbf16>, vector<32x64xf32> -> vector<32x64xf32>
    %c20_487 = arith.constant 20 : index
    %c32_488 = arith.constant 32 : index
    %c0_489 = arith.constant 0 : index
    %802 = vector.load %arg5[%c20_487, %c32_488, %c0_489] : memref<23x64x64xbf16, #tpu.memory_space<vmem>>, vector<1x32x64xbf16>
    %803 = vector.shape_cast %802 : vector<1x32x64xbf16> to vector<32x64xbf16>
    %cst_490 = arith.constant dense<0.000000e+00> : vector<32x64xf32>
    %804 = tpu.matmul %789, %803, %cst_490 {dimension_numbers = #tpu.dot_dimension_numbers<[1], [0], [0], [1], [0, 0, 1, 1], [], []>} : vector<32x32xbf16>, vector<32x64xbf16>, vector<32x64xf32> -> vector<32x64xf32>
    %805 = arith.addf %801, %804 : vector<32x64xf32>
    %c20_491 = arith.constant 20 : index
    %c0_492 = arith.constant 0 : index
    %c0_493 = arith.constant 0 : index
    %806 = vector.load %arg6[%c20_491, %c0_492, %c0_493] : memref<23x1x64xf32, #tpu.memory_space<vmem>>, vector<1x1x64xf32>
    %807 = vector.shape_cast %806 : vector<1x1x64xf32> to vector<1x64xf32>
    %808 = vector.broadcast %807 : vector<1x64xf32> to vector<32x64xf32>
    %809 = arith.addf %805, %808 : vector<32x64xf32>
    %810 = arith.addf %780, %796 : vector<32x32xf32>
    %811 = math.tanh %809 : vector<32x64xf32>
    %812 = vector.extract_strided_slice %811 {offsets = [0, 0], sizes = [32, 32], strides = [1, 1]} : vector<32x64xf32> to vector<32x32xf32>
    %813 = vector.extract_strided_slice %811 {offsets = [0, 32], sizes = [32, 32], strides = [1, 1]} : vector<32x64xf32> to vector<32x32xf32>
    %cst_494 = arith.constant 5.000000e-01 : f32
    %814 = vector.broadcast %cst_494 : f32 to vector<32x32xf32>
    %815 = arith.mulf %814, %813 : vector<32x32xf32>
    %cst_495 = arith.constant 5.000000e-01 : f32
    %816 = vector.broadcast %cst_495 : f32 to vector<32x32xf32>
    %817 = arith.addf %815, %816 : vector<32x32xf32>
    %818 = arith.mulf %812, %817 : vector<32x32xf32>
    %819 = arith.truncf %818 : vector<32x32xf32> to vector<32x32xbf16>
    %c21_496 = arith.constant 21 : index
    %c0_497 = arith.constant 0 : index
    %c0_498 = arith.constant 0 : index
    %820 = vector.load %arg8[%c21_496, %c0_497, %c0_498] : memref<24x32x32xbf16, #tpu.memory_space<vmem>>, vector<1x32x32xbf16>
    %821 = vector.shape_cast %820 : vector<1x32x32xbf16> to vector<32x32xbf16>
    %cst_499 = arith.constant dense<0.000000e+00> : vector<32x32xf32>
    %822 = tpu.matmul %819, %821, %cst_499 {dimension_numbers = #tpu.dot_dimension_numbers<[1], [0], [0], [1], [0, 0, 1, 1], [], []>} : vector<32x32xbf16>, vector<32x32xbf16>, vector<32x32xf32> -> vector<32x32xf32>
    %c21_500 = arith.constant 21 : index
    %c0_501 = arith.constant 0 : index
    %c0_502 = arith.constant 0 : index
    %823 = vector.load %arg9[%c21_500, %c0_501, %c0_502] : memref<24x1x32xf32, #tpu.memory_space<vmem>>, vector<1x1x32xf32>
    %824 = vector.shape_cast %823 : vector<1x1x32xf32> to vector<1x32xf32>
    %825 = vector.broadcast %824 : vector<1x32xf32> to vector<32x32xf32>
    %826 = arith.addf %822, %825 : vector<32x32xf32>
    %827 = arith.addf %797, %826 : vector<32x32xf32>
    %828 = arith.truncf %810 : vector<32x32xf32> to vector<32x32xbf16>
    %c22 = arith.constant 22 : index
    %c32_503 = arith.constant 32 : index
    %c0_504 = arith.constant 0 : index
    %829 = vector.load %arg3[%c22, %c32_503, %c0_504] : memref<24x64x64xbf16, #tpu.memory_space<vmem>>, vector<1x32x64xbf16>
    %830 = vector.shape_cast %829 : vector<1x32x64xbf16> to vector<32x64xbf16>
    %cst_505 = arith.constant dense<0.000000e+00> : vector<32x64xf32>
    %831 = tpu.matmul %828, %830, %cst_505 {dimension_numbers = #tpu.dot_dimension_numbers<[1], [0], [0], [1], [0, 0, 1, 1], [], []>} : vector<32x32xbf16>, vector<32x64xbf16>, vector<32x64xf32> -> vector<32x64xf32>
    %c21_506 = arith.constant 21 : index
    %c32_507 = arith.constant 32 : index
    %c0_508 = arith.constant 0 : index
    %832 = vector.load %arg5[%c21_506, %c32_507, %c0_508] : memref<23x64x64xbf16, #tpu.memory_space<vmem>>, vector<1x32x64xbf16>
    %833 = vector.shape_cast %832 : vector<1x32x64xbf16> to vector<32x64xbf16>
    %cst_509 = arith.constant dense<0.000000e+00> : vector<32x64xf32>
    %834 = tpu.matmul %819, %833, %cst_509 {dimension_numbers = #tpu.dot_dimension_numbers<[1], [0], [0], [1], [0, 0, 1, 1], [], []>} : vector<32x32xbf16>, vector<32x64xbf16>, vector<32x64xf32> -> vector<32x64xf32>
    %835 = arith.addf %831, %834 : vector<32x64xf32>
    %c21_510 = arith.constant 21 : index
    %c0_511 = arith.constant 0 : index
    %c0_512 = arith.constant 0 : index
    %836 = vector.load %arg6[%c21_510, %c0_511, %c0_512] : memref<23x1x64xf32, #tpu.memory_space<vmem>>, vector<1x1x64xf32>
    %837 = vector.shape_cast %836 : vector<1x1x64xf32> to vector<1x64xf32>
    %838 = vector.broadcast %837 : vector<1x64xf32> to vector<32x64xf32>
    %839 = arith.addf %835, %838 : vector<32x64xf32>
    %840 = arith.addf %810, %826 : vector<32x32xf32>
    %841 = math.tanh %839 : vector<32x64xf32>
    %842 = vector.extract_strided_slice %841 {offsets = [0, 0], sizes = [32, 32], strides = [1, 1]} : vector<32x64xf32> to vector<32x32xf32>
    %843 = vector.extract_strided_slice %841 {offsets = [0, 32], sizes = [32, 32], strides = [1, 1]} : vector<32x64xf32> to vector<32x32xf32>
    %cst_513 = arith.constant 5.000000e-01 : f32
    %844 = vector.broadcast %cst_513 : f32 to vector<32x32xf32>
    %845 = arith.mulf %844, %843 : vector<32x32xf32>
    %cst_514 = arith.constant 5.000000e-01 : f32
    %846 = vector.broadcast %cst_514 : f32 to vector<32x32xf32>
    %847 = arith.addf %845, %846 : vector<32x32xf32>
    %848 = arith.mulf %842, %847 : vector<32x32xf32>
    %849 = arith.truncf %848 : vector<32x32xf32> to vector<32x32xbf16>
    %c22_515 = arith.constant 22 : index
    %c0_516 = arith.constant 0 : index
    %c0_517 = arith.constant 0 : index
    %850 = vector.load %arg8[%c22_515, %c0_516, %c0_517] : memref<24x32x32xbf16, #tpu.memory_space<vmem>>, vector<1x32x32xbf16>
    %851 = vector.shape_cast %850 : vector<1x32x32xbf16> to vector<32x32xbf16>
    %cst_518 = arith.constant dense<0.000000e+00> : vector<32x32xf32>
    %852 = tpu.matmul %849, %851, %cst_518 {dimension_numbers = #tpu.dot_dimension_numbers<[1], [0], [0], [1], [0, 0, 1, 1], [], []>} : vector<32x32xbf16>, vector<32x32xbf16>, vector<32x32xf32> -> vector<32x32xf32>
    %c22_519 = arith.constant 22 : index
    %c0_520 = arith.constant 0 : index
    %c0_521 = arith.constant 0 : index
    %853 = vector.load %arg9[%c22_519, %c0_520, %c0_521] : memref<24x1x32xf32, #tpu.memory_space<vmem>>, vector<1x1x32xf32>
    %854 = vector.shape_cast %853 : vector<1x1x32xf32> to vector<1x32xf32>
    %855 = vector.broadcast %854 : vector<1x32xf32> to vector<32x32xf32>
    %856 = arith.addf %852, %855 : vector<32x32xf32>
    %857 = arith.addf %827, %856 : vector<32x32xf32>
    %858 = arith.truncf %840 : vector<32x32xf32> to vector<32x32xbf16>
    %c23 = arith.constant 23 : index
    %c32_522 = arith.constant 32 : index
    %c0_523 = arith.constant 0 : index
    %859 = vector.load %arg3[%c23, %c32_522, %c0_523] : memref<24x64x64xbf16, #tpu.memory_space<vmem>>, vector<1x32x64xbf16>
    %860 = vector.shape_cast %859 : vector<1x32x64xbf16> to vector<32x64xbf16>
    %cst_524 = arith.constant dense<0.000000e+00> : vector<32x64xf32>
    %861 = tpu.matmul %858, %860, %cst_524 {dimension_numbers = #tpu.dot_dimension_numbers<[1], [0], [0], [1], [0, 0, 1, 1], [], []>} : vector<32x32xbf16>, vector<32x64xbf16>, vector<32x64xf32> -> vector<32x64xf32>
    %c22_525 = arith.constant 22 : index
    %c32_526 = arith.constant 32 : index
    %c0_527 = arith.constant 0 : index
    %862 = vector.load %arg5[%c22_525, %c32_526, %c0_527] : memref<23x64x64xbf16, #tpu.memory_space<vmem>>, vector<1x32x64xbf16>
    %863 = vector.shape_cast %862 : vector<1x32x64xbf16> to vector<32x64xbf16>
    %cst_528 = arith.constant dense<0.000000e+00> : vector<32x64xf32>
    %864 = tpu.matmul %849, %863, %cst_528 {dimension_numbers = #tpu.dot_dimension_numbers<[1], [0], [0], [1], [0, 0, 1, 1], [], []>} : vector<32x32xbf16>, vector<32x64xbf16>, vector<32x64xf32> -> vector<32x64xf32>
    %865 = arith.addf %861, %864 : vector<32x64xf32>
    %c22_529 = arith.constant 22 : index
    %c0_530 = arith.constant 0 : index
    %c0_531 = arith.constant 0 : index
    %866 = vector.load %arg6[%c22_529, %c0_530, %c0_531] : memref<23x1x64xf32, #tpu.memory_space<vmem>>, vector<1x1x64xf32>
    %867 = vector.shape_cast %866 : vector<1x1x64xf32> to vector<1x64xf32>
    %868 = vector.broadcast %867 : vector<1x64xf32> to vector<32x64xf32>
    %869 = arith.addf %865, %868 : vector<32x64xf32>
    %870 = math.tanh %869 : vector<32x64xf32>
    %871 = vector.extract_strided_slice %870 {offsets = [0, 0], sizes = [32, 32], strides = [1, 1]} : vector<32x64xf32> to vector<32x32xf32>
    %872 = vector.extract_strided_slice %870 {offsets = [0, 32], sizes = [32, 32], strides = [1, 1]} : vector<32x64xf32> to vector<32x32xf32>
    %cst_532 = arith.constant 5.000000e-01 : f32
    %873 = vector.broadcast %cst_532 : f32 to vector<32x32xf32>
    %874 = arith.mulf %873, %872 : vector<32x32xf32>
    %cst_533 = arith.constant 5.000000e-01 : f32
    %875 = vector.broadcast %cst_533 : f32 to vector<32x32xf32>
    %876 = arith.addf %874, %875 : vector<32x32xf32>
    %877 = arith.mulf %871, %876 : vector<32x32xf32>
    %878 = arith.truncf %877 : vector<32x32xf32> to vector<32x32xbf16>
    %c23_534 = arith.constant 23 : index
    %c0_535 = arith.constant 0 : index
    %c0_536 = arith.constant 0 : index
    %879 = vector.load %arg8[%c23_534, %c0_535, %c0_536] : memref<24x32x32xbf16, #tpu.memory_space<vmem>>, vector<1x32x32xbf16>
    %880 = vector.shape_cast %879 : vector<1x32x32xbf16> to vector<32x32xbf16>
    %cst_537 = arith.constant dense<0.000000e+00> : vector<32x32xf32>
    %881 = tpu.matmul %878, %880, %cst_537 {dimension_numbers = #tpu.dot_dimension_numbers<[1], [0], [0], [1], [0, 0, 1, 1], [], []>} : vector<32x32xbf16>, vector<32x32xbf16>, vector<32x32xf32> -> vector<32x32xf32>
    %c23_538 = arith.constant 23 : index
    %c0_539 = arith.constant 0 : index
    %c0_540 = arith.constant 0 : index
    %882 = vector.load %arg9[%c23_538, %c0_539, %c0_540] : memref<24x1x32xf32, #tpu.memory_space<vmem>>, vector<1x1x32xf32>
    %883 = vector.shape_cast %882 : vector<1x1x32xf32> to vector<1x32xf32>
    %884 = vector.broadcast %883 : vector<1x32xf32> to vector<32x32xf32>
    %885 = arith.addf %881, %884 : vector<32x32xf32>
    %886 = arith.addf %857, %885 : vector<32x32xf32>
    %cst_541 = arith.constant 0.000000e+00 : f32
    %887 = vector.broadcast %cst_541 : f32 to vector<32x32xf32>
    %888 = arith.maximumf %886, %887 : vector<32x32xf32>
    %889 = arith.truncf %888 : vector<32x32xf32> to vector<32x32xbf16>
    %c0_542 = arith.constant 0 : index
    %c0_543 = arith.constant 0 : index
    %890 = vector.load %arg10[%c0_542, %c0_543] : memref<32x32xbf16, #tpu.memory_space<vmem>>, vector<32x32xbf16>
    %cst_544 = arith.constant dense<0.000000e+00> : vector<32x32xf32>
    %891 = tpu.matmul %889, %890, %cst_544 {dimension_numbers = #tpu.dot_dimension_numbers<[1], [0], [0], [1], [0, 0, 1, 1], [], []>} : vector<32x32xbf16>, vector<32x32xbf16>, vector<32x32xf32> -> vector<32x32xf32>
    %c0_545 = arith.constant 0 : index
    %c0_546 = arith.constant 0 : index
    %892 = vector.load %arg11[%c0_545, %c0_546] : memref<1x32xf32, #tpu.memory_space<vmem>>, vector<1x32xf32>
    %893 = vector.broadcast %892 : vector<1x32xf32> to vector<32x32xf32>
    %894 = arith.addf %891, %893 : vector<32x32xf32>
    %cst_547 = arith.constant 0.000000e+00 : f32
    %895 = vector.broadcast %cst_547 : f32 to vector<32x32xf32>
    %896 = arith.maximumf %894, %895 : vector<32x32xf32>
    %897 = vector.extract_strided_slice %896 {offsets = [0, 0], sizes = [4, 32], strides = [1, 1]} : vector<32x32xf32> to vector<4x32xf32>
    %cst_548 = arith.constant dense<0xFF800000> : vector<32xf32>
    %898 = vector.multi_reduction <maximumf>, %897, %cst_548 [0] : vector<4x32xf32> to vector<32xf32>
    %899 = vector.shape_cast %898 : vector<32xf32> to vector<1x32xf32>
    %900 = vector.extract_strided_slice %896 {offsets = [4, 0], sizes = [4, 32], strides = [1, 1]} : vector<32x32xf32> to vector<4x32xf32>
    %cst_549 = arith.constant dense<0xFF800000> : vector<32xf32>
    %901 = vector.multi_reduction <maximumf>, %900, %cst_549 [0] : vector<4x32xf32> to vector<32xf32>
    %902 = vector.shape_cast %901 : vector<32xf32> to vector<1x32xf32>
    %903 = vector.extract_strided_slice %896 {offsets = [8, 0], sizes = [4, 32], strides = [1, 1]} : vector<32x32xf32> to vector<4x32xf32>
    %cst_550 = arith.constant dense<0xFF800000> : vector<32xf32>
    %904 = vector.multi_reduction <maximumf>, %903, %cst_550 [0] : vector<4x32xf32> to vector<32xf32>
    %905 = vector.shape_cast %904 : vector<32xf32> to vector<1x32xf32>
    %906 = vector.extract_strided_slice %896 {offsets = [12, 0], sizes = [4, 32], strides = [1, 1]} : vector<32x32xf32> to vector<4x32xf32>
    %cst_551 = arith.constant dense<0xFF800000> : vector<32xf32>
    %907 = vector.multi_reduction <maximumf>, %906, %cst_551 [0] : vector<4x32xf32> to vector<32xf32>
    %908 = vector.shape_cast %907 : vector<32xf32> to vector<1x32xf32>
    %909 = tpu.concatenate %899, %902, %905, %908 in 1 : vector<1x32xf32>, vector<1x32xf32>, vector<1x32xf32>, vector<1x32xf32> -> vector<1x128xf32>
    %910 = vector.extract_strided_slice %896 {offsets = [16, 0], sizes = [4, 32], strides = [1, 1]} : vector<32x32xf32> to vector<4x32xf32>
    %cst_552 = arith.constant dense<0xFF800000> : vector<32xf32>
    %911 = vector.multi_reduction <maximumf>, %910, %cst_552 [0] : vector<4x32xf32> to vector<32xf32>
    %912 = vector.shape_cast %911 : vector<32xf32> to vector<1x32xf32>
    %913 = vector.extract_strided_slice %896 {offsets = [20, 0], sizes = [4, 32], strides = [1, 1]} : vector<32x32xf32> to vector<4x32xf32>
    %cst_553 = arith.constant dense<0xFF800000> : vector<32xf32>
    %914 = vector.multi_reduction <maximumf>, %913, %cst_553 [0] : vector<4x32xf32> to vector<32xf32>
    %915 = vector.shape_cast %914 : vector<32xf32> to vector<1x32xf32>
    %916 = vector.extract_strided_slice %896 {offsets = [24, 0], sizes = [4, 32], strides = [1, 1]} : vector<32x32xf32> to vector<4x32xf32>
    %cst_554 = arith.constant dense<0xFF800000> : vector<32xf32>
    %917 = vector.multi_reduction <maximumf>, %916, %cst_554 [0] : vector<4x32xf32> to vector<32xf32>
    %918 = vector.shape_cast %917 : vector<32xf32> to vector<1x32xf32>
    %919 = vector.extract_strided_slice %896 {offsets = [28, 0], sizes = [4, 32], strides = [1, 1]} : vector<32x32xf32> to vector<4x32xf32>
    %cst_555 = arith.constant dense<0xFF800000> : vector<32xf32>
    %920 = vector.multi_reduction <maximumf>, %919, %cst_555 [0] : vector<4x32xf32> to vector<32xf32>
    %921 = vector.shape_cast %920 : vector<32xf32> to vector<1x32xf32>
    %922 = tpu.concatenate %912, %915, %918, %921 in 1 : vector<1x32xf32>, vector<1x32xf32>, vector<1x32xf32>, vector<1x32xf32> -> vector<1x128xf32>
    %923 = tpu.concatenate %909, %922 in 0 : vector<1x128xf32>, vector<1x128xf32> -> vector<2x128xf32>
    %c0_556 = arith.constant 0 : index
    %c0_557 = arith.constant 0 : index
    %924 = vector.load %arg12[%c0_556, %c0_557] : memref<128x64xf32, #tpu.memory_space<vmem>>, vector<128x64xf32>
    %cst_558 = arith.constant dense<0.000000e+00> : vector<2x64xf32>
    %925 = tpu.matmul %923, %924, %cst_558 {dimension_numbers = #tpu.dot_dimension_numbers<[1], [0], [0], [1], [0, 0, 1, 1], [], []>} : vector<2x128xf32>, vector<128x64xf32>, vector<2x64xf32> -> vector<2x64xf32>
    %c0_559 = arith.constant 0 : index
    %c0_560 = arith.constant 0 : index
    %926 = vector.load %arg13[%c0_559, %c0_560] : memref<1x64xf32, #tpu.memory_space<vmem>>, vector<1x64xf32>
    %927 = vector.broadcast %926 : vector<1x64xf32> to vector<2x64xf32>
    %928 = arith.addf %925, %927 : vector<2x64xf32>
    %cst_561 = arith.constant 0.000000e+00 : f32
    %929 = vector.broadcast %cst_561 : f32 to vector<2x64xf32>
    %930 = arith.maximumf %928, %929 : vector<2x64xf32>
    %c0_562 = arith.constant 0 : index
    %c0_563 = arith.constant 0 : index
    %931 = vector.load %arg14[%c0_562, %c0_563] : memref<64x128xf32, #tpu.memory_space<vmem>>, vector<64x128xf32>
    %cst_564 = arith.constant dense<0.000000e+00> : vector<2x128xf32>
    %932 = tpu.matmul %930, %931, %cst_564 {dimension_numbers = #tpu.dot_dimension_numbers<[1], [0], [0], [1], [0, 0, 1, 1], [], []>} : vector<2x64xf32>, vector<64x128xf32>, vector<2x128xf32> -> vector<2x128xf32>
    %c0_565 = arith.constant 0 : index
    %c0_566 = arith.constant 0 : index
    %933 = vector.load %arg15[%c0_565, %c0_566] : memref<1x128xf32, #tpu.memory_space<vmem>>, vector<1x128xf32>
    %934 = vector.broadcast %933 : vector<1x128xf32> to vector<2x128xf32>
    %935 = arith.addf %932, %934 : vector<2x128xf32>
    %c0_567 = arith.constant 0 : index
    %c0_568 = arith.constant 0 : index
    %c0_569 = arith.constant 0 : index
    %936 = vector.load %arg16[%c0_567, %c0_568, %c0_569] : memref<1x2x128xf32, #tpu.memory_space<vmem>>, vector<1x2x128xf32>
    %937 = vector.shape_cast %936 : vector<1x2x128xf32> to vector<2x128xf32>
    %938 = vector.shape_cast %935 : vector<2x128xf32> to vector<1x2x128xf32>
    tpu.vector_store %arg16[%c0_567, %c0_568, %c0_569], %938 {strides = array<i32>} : memref<1x2x128xf32, #tpu.memory_space<vmem>>, vector<1x2x128xf32>,
    return
  }
  func.func @transform_0(%arg0: i32) -> (i32, i32, i32) {
    %c0_i32 = arith.constant 0 : i32
    %c0_i32_0 = arith.constant 0 : i32
    %c0_i32_1 = arith.constant 0 : i32
    return %arg0, %c0_i32, %c0_i32_0 : i32, i32, i32
  }
  func.func @transform_1(%arg0: i32) -> (i32, i32, i32) {
    %c0_i32 = arith.constant 0 : i32
    %c0_i32_0 = arith.constant 0 : i32
    %c0_i32_1 = arith.constant 0 : i32
    %c0_i32_2 = arith.constant 0 : i32
    return %c0_i32, %c0_i32_0, %c0_i32_1 : i32, i32, i32
  }
  func.func @transform_2(%arg0: i32) -> (i32, i32, i32) {
    %c0_i32 = arith.constant 0 : i32
    %c0_i32_0 = arith.constant 0 : i32
    %c0_i32_1 = arith.constant 0 : i32
    %c0_i32_2 = arith.constant 0 : i32
    return %c0_i32, %c0_i32_0, %c0_i32_1 : i32, i32, i32
  }
  func.func @transform_3(%arg0: i32) -> (i32, i32) {
    %c0_i32 = arith.constant 0 : i32
    %c0_i32_0 = arith.constant 0 : i32
    %c0_i32_1 = arith.constant 0 : i32
    return %c0_i32, %c0_i32_0 : i32, i32
  }
  func.func @transform_4(%arg0: i32) -> (i32, i32, i32) {
    %c0_i32 = arith.constant 0 : i32
    %c0_i32_0 = arith.constant 0 : i32
    %c0_i32_1 = arith.constant 0 : i32
    %c0_i32_2 = arith.constant 0 : i32
    return %c0_i32, %c0_i32_0, %c0_i32_1 : i32, i32, i32
  }
  func.func @transform_5(%arg0: i32) -> (i32, i32, i32) {
    %c0_i32 = arith.constant 0 : i32
    %c0_i32_0 = arith.constant 0 : i32
    %c0_i32_1 = arith.constant 0 : i32
    %c0_i32_2 = arith.constant 0 : i32
    return %c0_i32, %c0_i32_0, %c0_i32_1 : i32, i32, i32
  }
  func.func @transform_6(%arg0: i32) -> (i32, i32, i32) {
    %c0_i32 = arith.constant 0 : i32
    %c0_i32_0 = arith.constant 0 : i32
    %c0_i32_1 = arith.constant 0 : i32
    %c0_i32_2 = arith.constant 0 : i32
    return %c0_i32, %c0_i32_0, %c0_i32_1 : i32, i32, i32
  }
  func.func @transform_7(%arg0: i32) -> (i32, i32, i32) {
    %c0_i32 = arith.constant 0 : i32
    %c0_i32_0 = arith.constant 0 : i32
    %c0_i32_1 = arith.constant 0 : i32
    %c0_i32_2 = arith.constant 0 : i32
    return %c0_i32, %c0_i32_0, %c0_i32_1 : i32, i32, i32
  }
  func.func @transform_8(%arg0: i32) -> (i32, i32, i32) {
    %c0_i32 = arith.constant 0 : i32
    %c0_i32_0 = arith.constant 0 : i32
    %c0_i32_1 = arith.constant 0 : i32
    %c0_i32_2 = arith.constant 0 : i32
    return %c0_i32, %c0_i32_0, %c0_i32_1 : i32, i32, i32
  }
  func.func @transform_9(%arg0: i32) -> (i32, i32) {
    %c0_i32 = arith.constant 0 : i32
    %c0_i32_0 = arith.constant 0 : i32
    %c0_i32_1 = arith.constant 0 : i32
    return %c0_i32, %c0_i32_0 : i32, i32
  }
  func.func @transform_10(%arg0: i32) -> (i32, i32) {
    %c0_i32 = arith.constant 0 : i32
    %c0_i32_0 = arith.constant 0 : i32
    %c0_i32_1 = arith.constant 0 : i32
    return %c0_i32, %c0_i32_0 : i32, i32
  }
  func.func @transform_11(%arg0: i32) -> (i32, i32) {
    %c0_i32 = arith.constant 0 : i32
    %c0_i32_0 = arith.constant 0 : i32
    %c0_i32_1 = arith.constant 0 : i32
    return %c0_i32, %c0_i32_0 : i32, i32
  }
  func.func @transform_12(%arg0: i32) -> (i32, i32) {
    %c0_i32 = arith.constant 0 : i32
    %c0_i32_0 = arith.constant 0 : i32
    %c0_i32_1 = arith.constant 0 : i32
    return %c0_i32, %c0_i32_0 : i32, i32
  }
  func.func @transform_13(%arg0: i32) -> (i32, i32) {
    %c0_i32 = arith.constant 0 : i32
    %c0_i32_0 = arith.constant 0 : i32
    %c0_i32_1 = arith.constant 0 : i32
    return %c0_i32, %c0_i32_0 : i32, i32
  }
  func.func @transform_14(%arg0: i32) -> (i32, i32) {
    %c0_i32 = arith.constant 0 : i32
    %c0_i32_0 = arith.constant 0 : i32
    %c0_i32_1 = arith.constant 0 : i32
    return %c0_i32, %c0_i32_0 : i32, i32
  }
  func.func @transform_15(%arg0: i32) -> (i32, i32, i32) {
    %c0_i32 = arith.constant 0 : i32
    %c0_i32_0 = arith.constant 0 : i32
    %c0_i32_1 = arith.constant 0 : i32
    return %arg0, %c0_i32, %c0_i32_0 : i32, i32, i32
  }
}

</mosaic_0001>

<llo_original>
// kernel: _wavenet_forward_impl.1
$region0: #{_wavenet_forward_impl.1}
  #allocation0 [shape = 'u32[]', space=smem, size = 0x4, offset = 0x4, fixed_abs, tag = 'smem constant byte address 0x4 - core index']
  #allocation1 [shape = 'u32[144,128]{1,0:T(1,128)}', space=vmem, size = 0x12000, scoped, tag = 'internal scratch']
  %s0 = inlined_call_operand.vmem [shape: f32[1,32,32], index: 0, kind: input, shape index: {}]
  %s1 = inlined_call_operand.vmem [shape: f32[4,32,64], index: 1, kind: input, shape index: {}]
  %s2 = inlined_call_operand.vmem [shape: bf16[24,64,64], index: 2, kind: input, shape index: {}]
  %s3 = inlined_call_operand.vmem [shape: f32[1,64], index: 3, kind: input, shape index: {}]
  %s4 = inlined_call_operand.vmem [shape: bf16[23,64,64], index: 4, kind: input, shape index: {}]
  %s5 = inlined_call_operand.vmem [shape: f32[23,1,64], index: 5, kind: input, shape index: {}]
  %s6 = inlined_call_operand.vmem [shape: f32[23,1,64], index: 6, kind: input, shape index: {}]
  %s7 = inlined_call_operand.vmem [shape: bf16[24,32,32], index: 7, kind: input, shape index: {}]
  %s8 = inlined_call_operand.vmem [shape: f32[24,1,32], index: 8, kind: input, shape index: {}]
  %s9 = inlined_call_operand.vmem [shape: bf16[32,32], index: 9, kind: input, shape index: {}]
  %s10 = inlined_call_operand.vmem [shape: f32[1,32], index: 10, kind: input, shape index: {}]
  %s11 = inlined_call_operand.vmem [shape: f32[128,64], index: 11, kind: input, shape index: {}]
  %s12 = inlined_call_operand.vmem [shape: f32[1,64], index: 12, kind: input, shape index: {}]
  %s13 = inlined_call_operand.vmem [shape: f32[64,128], index: 13, kind: input, shape index: {}]
  %s14 = inlined_call_operand.vmem [shape: f32[1,128], index: 14, kind: input, shape index: {}]
  %s15 = inlined_call_operand.hbm [shape: f32[1,2,128], index: 15, kind: output, shape index: {}]
  %s16 = sld [smem:[#allocation0]]
  $region70: #{_wavenet_forward_impl.1} parent=0
    _
  %s18 = ssub.s32 1, %s16
  %s19 = scalar_select 0, %s18, %s16
  $region1: #{_wavenet_forward_impl.1} parent=0
    #allocation2 [shape = 'u8[1024]{0}', space=vmem, size = 0x400, scoped, tag = 'output window, operand 0, single buffered']
    #allocation3 [shape = 's32[1]{0}', space=sflag, size = 0x4, scoped, tag = 'scoped memory for _wavenet_forward_impl.1']
    %20 = vsyncpa [#allocation3], 0
    // Predicated region
    $region2: #{_wavenet_forward_impl.1} parent=1 // pred_check
      _
    $region3: #{_wavenet_forward_impl.1} parent=1 // pred_check_branch
      %22 = sbr.rel (0) target = $region5
    $region4: #{_wavenet_forward_impl.1} parent=1 // pred_region
      _
    $region5: #{_wavenet_forward_impl.1} parent=1 // pred_fallthru
      _
    // Predicated region
    $region6: #{_wavenet_forward_impl.1} parent=1 // pred_check
      _
    $region7: #{_wavenet_forward_impl.1} parent=1 // pred_check_branch
      %24 = sbr.rel (0) target = $region9
    $region8: #{_wavenet_forward_impl.1} parent=1 // pred_region
      _
    $region9: #{_wavenet_forward_impl.1} parent=1 // pred_fallthru
      _
    // Predicated region
    $region10: #{_wavenet_forward_impl.1} parent=1 // pred_check
      _
    $region11: #{_wavenet_forward_impl.1} parent=1 // pred_check_branch
      %26 = sbr.rel (0) target = $region13
    $region12: #{_wavenet_forward_impl.1} parent=1 // pred_region
      _
    $region13: #{_wavenet_forward_impl.1} parent=1 // pred_fallthru
      _
    // Predicated region
    $region14: #{_wavenet_forward_impl.1} parent=1 // pred_check
      _
    $region15: #{_wavenet_forward_impl.1} parent=1 // pred_check_branch
      %28 = sbr.rel (0) target = $region17
    $region16: #{_wavenet_forward_impl.1} parent=1 // pred_region
      _
    $region17: #{_wavenet_forward_impl.1} parent=1 // pred_fallthru
      _
    // Predicated region
    $region18: #{_wavenet_forward_impl.1} parent=1 // pred_check
      _
    $region19: #{_wavenet_forward_impl.1} parent=1 // pred_check_branch
      %30 = sbr.rel (0) target = $region21
    $region20: #{_wavenet_forward_impl.1} parent=1 // pred_region
      _
    $region21: #{_wavenet_forward_impl.1} parent=1 // pred_fallthru
      _
    // Predicated region
    $region22: #{_wavenet_forward_impl.1} parent=1 // pred_check
      _
    $region23: #{_wavenet_forward_impl.1} parent=1 // pred_check_branch
      %32 = sbr.rel (0) target = $region25
    $region24: #{_wavenet_forward_impl.1} parent=1 // pred_region
      _
    $region25: #{_wavenet_forward_impl.1} parent=1 // pred_fallthru
      _
    // Predicated region
    $region26: #{_wavenet_forward_impl.1} parent=1 // pred_check
      _
    $region27: #{_wavenet_forward_impl.1} parent=1 // pred_check_branch
      %34 = sbr.rel (0) target = $region29
    $region28: #{_wavenet_forward_impl.1} parent=1 // pred_region
      _
    $region29: #{_wavenet_forward_impl.1} parent=1 // pred_fallthru
      _
    // Predicated region
    $region30: #{_wavenet_forward_impl.1} parent=1 // pred_check
      _
    $region31: #{_wavenet_forward_impl.1} parent=1 // pred_check_branch
      %36 = sbr.rel (0) target = $region33
    $region32: #{_wavenet_forward_impl.1} parent=1 // pred_region
      _
    $region33: #{_wavenet_forward_impl.1} parent=1 // pred_fallthru
      _
    // Predicated region
    $region34: #{_wavenet_forward_impl.1} parent=1 // pred_check
      _
    $region35: #{_wavenet_forward_impl.1} parent=1 // pred_check_branch
      %38 = sbr.rel (0) target = $region37
    $region36: #{_wavenet_forward_impl.1} parent=1 // pred_region
      _
    $region37: #{_wavenet_forward_impl.1} parent=1 // pred_fallthru
      _
    // Predicated region
    $region38: #{_wavenet_forward_impl.1} parent=1 // pred_check
      _
    $region39: #{_wavenet_forward_impl.1} parent=1 // pred_check_branch
      %40 = sbr.rel (0) target = $region41
    $region40: #{_wavenet_forward_impl.1} parent=1 // pred_region
      _
    $region41: #{_wavenet_forward_impl.1} parent=1 // pred_fallthru
      _
    // Predicated region
    $region42: #{_wavenet_forward_impl.1} parent=1 // pred_check
      _
    $region43: #{_wavenet_forward_impl.1} parent=1 // pred_check_branch
      %42 = sbr.rel (0) target = $region45
    $region44: #{_wavenet_forward_impl.1} parent=1 // pred_region
      _
    $region45: #{_wavenet_forward_impl.1} parent=1 // pred_fallthru
      _
    // Predicated region
    $region46: #{_wavenet_forward_impl.1} parent=1 // pred_check
      _
    $region47: #{_wavenet_forward_impl.1} parent=1 // pred_check_branch
      %44 = sbr.rel (0) target = $region49
    $region48: #{_wavenet_forward_impl.1} parent=1 // pred_region
      _
    $region49: #{_wavenet_forward_impl.1} parent=1 // pred_fallthru
      _
    // Predicated region
    $region50: #{_wavenet_forward_impl.1} parent=1 // pred_check
      _
    $region51: #{_wavenet_forward_impl.1} parent=1 // pred_check_branch
      %46 = sbr.rel (0) target = $region53
    $region52: #{_wavenet_forward_impl.1} parent=1 // pred_region
      _
    $region53: #{_wavenet_forward_impl.1} parent=1 // pred_fallthru
      _
    // Predicated region
    $region54: #{_wavenet_forward_impl.1} parent=1 // pred_check
      _
    $region55: #{_wavenet_forward_impl.1} parent=1 // pred_check_branch
      %48 = sbr.rel (0) target = $region57
    $region56: #{_wavenet_forward_impl.1} parent=1 // pred_region
      _
    $region57: #{_wavenet_forward_impl.1} parent=1 // pred_fallthru
      _
    // Predicated region
    $region58: #{_wavenet_forward_impl.1} parent=1 // pred_check
      _
    $region59: #{_wavenet_forward_impl.1} parent=1 // pred_check_branch
      %50 = sbr.rel (0) target = $region61
    $region60: #{_wavenet_forward_impl.1} parent=1 // pred_region
      _
    $region61: #{_wavenet_forward_impl.1} parent=1 // pred_fallthru
      _
    %v52 = vld [vmem:[%s0] sm:$0xff]
    %v53 = vld [vmem:[%s0 + $0x8] sm:$0xff]
    %v54 = vld [vmem:[%s0 + $0x10] sm:$0xff]
    %v55 = vld [vmem:[%s0 + $0x18] sm:$0xff]
    %v56 = vld [vmem:[%s1] sm:$0xff]
    %v57 = vld [vmem:[%s1 + $0x8] sm:$0xff]
    %v58 = vld [vmem:[%s1 + $0x10] sm:$0xff]
    %v59 = vld [vmem:[%s1 + $0x18] sm:$0xff]
    %v60 = vrot.slane %v52, 7
    %v61 = vrot.slane %v53, 7
    %v62 = vrot.slane %v54, 7
    %v63 = vrot.slane %v55, 7
    %v64 = vlaneseq
    %v65 = vshrl.u32 %v64, 7
    %vm66 = vcmp.lt.s32.totalorder %v65, 1
    %v67 = vsel %vm66, %v62, %v63
    %v68 = vsel %vm66, %v61, %v62
    %v69 = vsel %vm66, %v60, %v61
    %v70 = vsel %vm66, %v63, %v60
    %v71 = vmul.f32 %v56, %v70
    %v72 = vmul.f32 %v57, %v69
    %v73 = vmul.f32 %v58, %v68
    %v74 = vmul.f32 %v59, %v67
    %79 = vrot.lane.b32.xlu0 %v52, 32
    %v80 = vpop.permute.xlu0 %79
    %81 = vrot.lane.b32.xlu0 %v53, 32
    %v82 = vpop.permute.xlu0 %81
    %83 = vrot.lane.b32.xlu0 %v54, 32
    %v84 = vpop.permute.xlu0 %83
    %85 = vrot.lane.b32.xlu0 %v55, 32
    %v86 = vpop.permute.xlu0 %85
    %vm91 = vcmask 261120
    %v92 = vsel %vm91, %v71, %v80
    %v93 = vsel %vm91, %v72, %v82
    %v94 = vsel %vm91, %v73, %v84
    %v95 = vsel %vm91, %v74, %v86
    %v96 = vpack.c.bf16 %v93, %v92
    %v97 = vpack.c.bf16 %v95, %v94
    %v98 = vld [vmem:[%s2] sm:$0xf]
    %v99 = vld [vmem:[%s2 + $0x4] sm:$0xf]
    %v100 = vld [vmem:[%s2 + $0x8] sm:$0xf]
    %v101 = vld [vmem:[%s2 + $0xc] sm:$0xf]
    %v102 = vld [vmem:[%s2 + $0x10] sm:$0xf]
    %v103 = vld [vmem:[%s2 + $0x14] sm:$0xf]
    %v104 = vld [vmem:[%s2 + $0x18] sm:$0xf]
    %v105 = vld [vmem:[%s2 + $0x1c] sm:$0xf]
    %v106 = vld [vmem:[%s3] sm:$0x1]
    %v108 = vlaneseq
    %v109 = vshrl.u32 %v108, 7
    %v110 = vsub.s32 0, %v109
    %v111 = vrot.slane %v106, %v110
    %v121 = vunpack.c.l.b16 %v98
    %v122 = vunpack.c.l.b16 %v99
    %v123 = vunpack.c.l.b16 %v100
    %v124 = vunpack.c.l.b16 %v101
    %v125 = vunpack.c.l.b16 %v102
    %v126 = vunpack.c.l.b16 %v103
    %v127 = vunpack.c.l.b16 %v104
    %v128 = vunpack.c.l.b16 %v105
    %v129 = vpack.c.b16 %v122, %v121
    %v130 = vpack.c.b16 %v124, %v123
    %v131 = vpack.c.b16 %v126, %v125
    %v132 = vpack.c.b16 %v128, %v127
    %vm137 = vcmask 523264
    %v139 = vsel %vm137, %v96, 0
    %v142 = vsel %vm137, %v97, 0
    %144 = vmatprep.subr.bf16.mxu0 0
    %145 = vmatpush1.bf16.msra.mxu0 %v129
    %146 = vmatprep.subr.bf16.mxu0 0
    %147 = vmatpush1.bf16.msra.mxu0 %v130
    %148 = vmatprep.subr.bf16.mxu0 0
    %149 = vmatpush1.bf16.msra.mxu0 %v131
    %150 = vmatprep.subr.bf16.mxu0 0
    %151 = vmatpush1.bf16.msra.mxu0 %v132
    %152 = vmatprep.subr.bf16.mxu0 0
    %153 = vmatpush1.bf16.msra.mxu0 0
    %154 = vmatprep.subr.bf16.mxu0 0
    %155 = vmatpush1.bf16.msra.mxu0 0
    %156 = vmatprep.subr.bf16.mxu0 0
    %157 = vmatpush1.bf16.msra.mxu0 0
    %158 = vmatprep.subr.bf16.mxu0 0
    %159 = vmatpush1.bf16.msra.mxu0 0
    %160 = vmatprep.subr.bf16.mxu0 0
    %161 = vmatpush1.bf16.msra.mxu0 0
    %162 = vmatprep.subr.bf16.mxu0 0
    %163 = vmatpush1.bf16.msra.mxu0 0
    %164 = vmatprep.subr.bf16.mxu0 0
    %165 = vmatpush1.bf16.msra.mxu0 0
    %166 = vmatprep.subr.bf16.mxu0 0
    %167 = vmatpush1.bf16.msra.mxu0 0
    %168 = vmatprep.subr.bf16.mxu0 0
    %169 = vmatpush1.bf16.msra.mxu0 0
    %170 = vmatprep.subr.bf16.mxu0 0
    %171 = vmatpush1.bf16.msra.mxu0 0
    %172 = vmatprep.subr.bf16.mxu0 0
    %173 = vmatpush1.bf16.msra.mxu0 0
    %174 = vmatprep.subr.bf16.mxu0 0
    %175 = vmatpush1.bf16.msra.mxu0 0
    %176 = vmatprep.mubr.bf16.mxu0 0
    %177 = vmatmul.mubr.bf16.gmra.mrb[0].mxu0 %v139
    %v178 = vpop.f32.mrb[0].mxu0
    %v179 = vadd.f32 %v111, %v178
    %v180 = vpop.f32.mrb[0].mxu0
    %v181 = vpop.f32.mrb[0].mxu0
    %v182 = vadd.f32 %v111, %v181
    %v183 = vpop.f32.mrb[0].mxu0
    %184 = vmatprep.mubr.bf16.mxu0 0
    %185 = vmatmul.mubr.bf16.gmra.mrb[0].mxu0 %v142
    %v186 = vpop.f32.mrb[0].mxu0
    %v187 = vadd.f32 %v111, %v186
    %v188 = vpop.f32.mrb[0].mxu0
    %v189 = vpop.f32.mrb[0].mxu0
    %v190 = vadd.f32 %v111, %v189
    %v191 = vpop.f32.mrb[0].mxu0
    %192 = vdwg.mxu0
    %v193 = vtanh.pop %v179
    %v194 = vtanh.pop %v182
    %v195 = vtanh.pop %v187
    %v196 = vtanh.pop %v190
    %v197 = vmul.f32 %v193, 0.5
    %v198 = vmul.f32 %v194, 0.5
    %v199 = vmul.f32 %v195, 0.5
    %v200 = vmul.f32 %v196, 0.5
    %v201 = vadd.f32 %v197, 0.5
    %v202 = vadd.f32 %v198, 0.5
    %v203 = vadd.f32 %v199, 0.5
    %v204 = vadd.f32 %v200, 0.5
    %209 = vrot.lane.b32.xlu0 %v201, 96
    %v210 = vpop.permute.xlu0 %209
    %211 = vrot.lane.b32.xlu0 %v202, 96
    %v212 = vpop.permute.xlu0 %211
    %213 = vrot.lane.b32.xlu0 %v203, 96
    %v214 = vpop.permute.xlu0 %213
    %215 = vrot.lane.b32.xlu0 %v204, 96
    %v216 = vpop.permute.xlu0 %215
    %v221 = vmul.f32 %v193, %v210
    %v222 = vmul.f32 %v194, %v212
    %v223 = vmul.f32 %v195, %v214
    %v224 = vmul.f32 %v196, %v216
    %v225 = vpack.c.bf16 %v222, %v221
    %v226 = vpack.c.bf16 %v224, %v223
    %v227 = vld [vmem:[%s7] sm:$0xf]
    %v228 = vld [vmem:[%s7 + $0x4] sm:$0xf]
    %v229 = vld [vmem:[%s7 + $0x8] sm:$0xf]
    %v230 = vld [vmem:[%s7 + $0xc] sm:$0xf]
    %v231 = vld [vmem:[%s8] sm:$0x1]
    %v233 = vlaneseq
    %v234 = vshrl.u32 %v233, 7
    %v235 = vsub.s32 0, %v234
    %v236 = vrot.slane %v231, %v235
    %v242 = vunpack.c.l.b16 %v227
    %v243 = vunpack.c.l.b16 %v228
    %v244 = vunpack.c.l.b16 %v229
    %v245 = vunpack.c.l.b16 %v230
    %v246 = vpack.c.b16 %v243, %v242
    %v247 = vpack.c.b16 %v245, %v244
    %v251 = vsel %vm91, %v225, 0
    %v254 = vsel %vm91, %v226, 0
    %256 = vmatprep.subr.bf16.mxu0 0
    %257 = vmatpush1.bf16.msra.mxu0 %v246
    %258 = vmatprep.subr.bf16.mxu0 0
    %259 = vmatpush1.bf16.msra.mxu0 %v247
    %260 = vmatprep.subr.bf16.mxu0 0
    %261 = vmatpush1.bf16.msra.mxu0 0
    %262 = vmatprep.subr.bf16.mxu0 0
    %263 = vmatpush1.bf16.msra.mxu0 0
    %264 = vmatprep.subr.bf16.mxu0 0
    %265 = vmatpush1.bf16.msra.mxu0 0
    %266 = vmatprep.subr.bf16.mxu0 0
    %267 = vmatpush1.bf16.msra.mxu0 0
    %268 = vmatprep.subr.bf16.mxu0 0
    %269 = vmatpush1.bf16.msra.mxu0 0
    %270 = vmatprep.subr.bf16.mxu0 0
    %271 = vmatpush1.bf16.msra.mxu0 0
    %272 = vmatprep.subr.bf16.mxu0 0
    %273 = vmatpush1.bf16.msra.mxu0 0
    %274 = vmatprep.subr.bf16.mxu0 0
    %275 = vmatpush1.bf16.msra.mxu0 0
    %276 = vmatprep.subr.bf16.mxu0 0
    %277 = vmatpush1.bf16.msra.mxu0 0
    %278 = vmatprep.subr.bf16.mxu0 0
    %279 = vmatpush1.bf16.msra.mxu0 0
    %280 = vmatprep.subr.bf16.mxu0 0
    %281 = vmatpush1.bf16.msra.mxu0 0
    %282 = vmatprep.subr.bf16.mxu0 0
    %283 = vmatpush1.bf16.msra.mxu0 0
    %284 = vmatprep.subr.bf16.mxu0 0
    %285 = vmatpush1.bf16.msra.mxu0 0
    %286 = vmatprep.subr.bf16.mxu0 0
    %287 = vmatpush1.bf16.msra.mxu0 0
    %288 = vmatprep.mubr.bf16.mxu0 0
    %289 = vmatmul.mubr.bf16.gmra.mrb[0].mxu0 %v251
    %v290 = vpop.f32.mrb[0].mxu0
    %v291 = vadd.f32 %v236, %v290
    %v292 = vpop.f32.mrb[0].mxu0
    %v293 = vpop.f32.mrb[0].mxu0
    %v294 = vadd.f32 %v236, %v293
    %v295 = vpop.f32.mrb[0].mxu0
    %296 = vmatprep.mubr.bf16.mxu0 0
    %297 = vmatmul.mubr.bf16.gmra.mrb[0].mxu0 %v254
    %v298 = vpop.f32.mrb[0].mxu0
    %v299 = vadd.f32 %v236, %v298
    %v300 = vpop.f32.mrb[0].mxu0
    %v301 = vpop.f32.mrb[0].mxu0
    %v302 = vadd.f32 %v236, %v301
    %v303 = vpop.f32.mrb[0].mxu0
    %304 = vdwg.mxu0
    %v305 = vadd.f32 %v291, 0.0
    %v306 = vadd.f32 %v294, 0.0
    %v307 = vadd.f32 %v299, 0.0
    %v308 = vadd.f32 %v302, 0.0
    %s309 = scalar_lea.vmem %s1, 32
    %v310 = vld [vmem:[%s309] sm:$0xff]
    %v311 = vld [vmem:[%s309 + $0x8] sm:$0xff]
    %v312 = vld [vmem:[%s309 + $0x10] sm:$0xff]
    %v313 = vld [vmem:[%s309 + $0x18] sm:$0xff]
    %v314 = vrot.slane %v52, 6
    %v315 = vrot.slane %v53, 6
    %v316 = vrot.slane %v54, 6
    %v317 = vrot.slane %v55, 6
    %vm318 = vcmp.lt.s32.totalorder %v65, 2
    %v319 = vsel %vm318, %v316, %v317
    %v320 = vsel %vm318, %v315, %v316
    %v321 = vsel %vm318, %v314, %v315
    %v322 = vsel %vm318, %v317, %v314
    %v323 = vmul.f32 %v310, %v322
    %v324 = vmul.f32 %v311, %v321
    %v325 = vmul.f32 %v312, %v320
    %v326 = vmul.f32 %v313, %v319
    %v327 = vsel %vm91, %v323, %v80
    %v328 = vsel %vm91, %v324, %v82
    %v329 = vsel %vm91, %v325, %v84
    %v330 = vsel %vm91, %v326, %v86
    %v331 = vpack.c.bf16 %v328, %v327
    %v332 = vpack.c.bf16 %v330, %v329
    %v333 = vrot.slane %v221, 6
    %v334 = vrot.slane %v222, 6
    %v335 = vrot.slane %v223, 6
    %v336 = vrot.slane %v224, 6
    %v337 = vsel %vm318, %v335, %v336
    %v338 = vsel %vm318, %v334, %v335
    %v339 = vsel %vm318, %v333, %v334
    %v340 = vsel %vm318, %v336, %v333
    %v341 = vmul.f32 %v310, %v340
    %v342 = vmul.f32 %v311, %v339
    %v343 = vmul.f32 %v312, %v338
    %v344 = vmul.f32 %v313, %v337
    %349 = vrot.lane.b32.xlu0 %v221, 32
    %v350 = vpop.permute.xlu0 %349
    %351 = vrot.lane.b32.xlu0 %v222, 32
    %v352 = vpop.permute.xlu0 %351
    %353 = vrot.lane.b32.xlu0 %v223, 32
    %v354 = vpop.permute.xlu0 %353
    %355 = vrot.lane.b32.xlu0 %v224, 32
    %v356 = vpop.permute.xlu0 %355
    %v361 = vsel %vm91, %v341, %v350
    %v362 = vsel %vm91, %v342, %v352
    %v363 = vsel %vm91, %v343, %v354
    %v364 = vsel %vm91, %v344, %v356
    %v365 = vpack.c.bf16 %v362, %v361
    %v366 = vpack.c.bf16 %v364, %v363
    %s367 = scalar_lea.vmem %s2, 32
    %v368 = vld [vmem:[%s367] sm:$0xf]
    %v369 = vld [vmem:[%s367 + $0x4] sm:$0xf]
    %v370 = vld [vmem:[%s367 + $0x8] sm:$0xf]
    %v371 = vld [vmem:[%s367 + $0xc] sm:$0xf]
    %v372 = vld [vmem:[%s367 + $0x10] sm:$0xf]
    %v373 = vld [vmem:[%s367 + $0x14] sm:$0xf]
    %v374 = vld [vmem:[%s367 + $0x18] sm:$0xf]
    %v375 = vld [vmem:[%s367 + $0x1c] sm:$0xf]
    %v376 = vld [vmem:[%s4] sm:$0xf]
    %v377 = vld [vmem:[%s4 + $0x4] sm:$0xf]
    %v378 = vld [vmem:[%s4 + $0x8] sm:$0xf]
    %v379 = vld [vmem:[%s4 + $0xc] sm:$0xf]
    %v380 = vld [vmem:[%s4 + $0x10] sm:$0xf]
    %v381 = vld [vmem:[%s4 + $0x14] sm:$0xf]
    %v382 = vld [vmem:[%s4 + $0x18] sm:$0xf]
    %v383 = vld [vmem:[%s4 + $0x1c] sm:$0xf]
    %v392 = vunpack.c.l.b16 %v376
    %v393 = vunpack.c.l.b16 %v377
    %v394 = vunpack.c.l.b16 %v378
    %v395 = vunpack.c.l.b16 %v379
    %v396 = vunpack.c.l.b16 %v380
    %v397 = vunpack.c.l.b16 %v381
    %v398 = vunpack.c.l.b16 %v382
    %v399 = vunpack.c.l.b16 %v383
    %v400 = vpack.c.b16 %v393, %v392
    %v401 = vpack.c.b16 %v395, %v394
    %v402 = vpack.c.b16 %v397, %v396
    %v403 = vpack.c.b16 %v399, %v398
    %v409 = vsel %vm137, %v365, 0
    %v412 = vsel %vm137, %v366, 0
    %414 = vmatprep.subr.bf16.mxu0 0
    %415 = vmatpush1.bf16.msra.mxu0 %v400
    %416 = vmatprep.subr.bf16.mxu0 0
    %417 = vmatpush1.bf16.msra.mxu0 %v401
    %418 = vmatprep.subr.bf16.mxu0 0
    %419 = vmatpush1.bf16.msra.mxu0 %v402
    %420 = vmatprep.subr.bf16.mxu0 0
    %421 = vmatpush1.bf16.msra.mxu0 %v403
    %422 = vmatprep.subr.bf16.mxu0 0
    %423 = vmatpush1.bf16.msra.mxu0 0
    %424 = vmatprep.subr.bf16.mxu0 0
    %425 = vmatpush1.bf16.msra.mxu0 0
    %426 = vmatprep.subr.bf16.mxu0 0
    %427 = vmatpush1.bf16.msra.mxu0 0
    %428 = vmatprep.subr.bf16.mxu0 0
    %429 = vmatpush1.bf16.msra.mxu0 0
    %430 = vmatprep.subr.bf16.mxu0 0
    %431 = vmatpush1.bf16.msra.mxu0 0
    %432 = vmatprep.subr.bf16.mxu0 0
    %433 = vmatpush1.bf16.msra.mxu0 0
    %434 = vmatprep.subr.bf16.mxu0 0
    %435 = vmatpush1.bf16.msra.mxu0 0
    %436 = vmatprep.subr.bf16.mxu0 0
    %437 = vmatpush1.bf16.msra.mxu0 0
    %438 = vmatprep.subr.bf16.mxu0 0
    %439 = vmatpush1.bf16.msra.mxu0 0
    %440 = vmatprep.subr.bf16.mxu0 0
    %441 = vmatpush1.bf16.msra.mxu0 0
    %442 = vmatprep.subr.bf16.mxu0 0
    %443 = vmatpush1.bf16.msra.mxu0 0
    %444 = vmatprep.subr.bf16.mxu0 0
    %445 = vmatpush1.bf16.msra.mxu0 0
    %446 = vmatprep.mubr.bf16.mxu0 0
    %447 = vmatmul.mubr.bf16.gmra.mrb[0].mxu0 %v409
    %v448 = vpop.f32.mrb[0].mxu0
    %v449 = vadd.f32 0.0, %v448
    %v450 = vpop.f32.mrb[0].mxu0
    %v451 = vpop.f32.mrb[0].mxu0
    %v452 = vadd.f32 0.0, %v451
    %v453 = vpop.f32.mrb[0].mxu0
    %454 = vmatprep.mubr.bf16.mxu0 0
    %455 = vmatmul.mubr.bf16.gmra.mrb[0].mxu0 %v412
    %v456 = vpop.f32.mrb[0].mxu0
    %v457 = vadd.f32 0.0, %v456
    %v458 = vpop.f32.mrb[0].mxu0
    %v459 = vpop.f32.mrb[0].mxu0
    %v460 = vadd.f32 0.0, %v459
    %v461 = vpop.f32.mrb[0].mxu0
    %462 = vdwg.mxu0
    %v471 = vunpack.c.l.b16 %v368
    %v472 = vunpack.c.l.b16 %v369
    %v473 = vunpack.c.l.b16 %v370
    %v474 = vunpack.c.l.b16 %v371
    %v475 = vunpack.c.l.b16 %v372
    %v476 = vunpack.c.l.b16 %v373
    %v477 = vunpack.c.l.b16 %v374
    %v478 = vunpack.c.l.b16 %v375
    %v479 = vpack.c.b16 %v472, %v471
    %v480 = vpack.c.b16 %v474, %v473
    %v481 = vpack.c.b16 %v476, %v475
    %v482 = vpack.c.b16 %v478, %v477
    %v488 = vsel %vm137, %v331, 0
    %v491 = vsel %vm137, %v332, 0
    %493 = vmatprep.subr.bf16.mxu0 0
    %494 = vmatpush1.bf16.msra.mxu0 %v479
    %495 = vmatprep.subr.bf16.mxu0 0
    %496 = vmatpush1.bf16.msra.mxu0 %v480
    %497 = vmatprep.subr.bf16.mxu0 0
    %498 = vmatpush1.bf16.msra.mxu0 %v481
    %499 = vmatprep.subr.bf16.mxu0 0
    %500 = vmatpush1.bf16.msra.mxu0 %v482
    %501 = vmatprep.subr.bf16.mxu0 0
    %502 = vmatpush1.bf16.msra.mxu0 0
    %503 = vmatprep.subr.bf16.mxu0 0
    %504 = vmatpush1.bf16.msra.mxu0 0
    %505 = vmatprep.subr.bf16.mxu0 0
    %506 = vmatpush1.bf16.msra.mxu0 0
    %507 = vmatprep.subr.bf16.mxu0 0
    %508 = vmatpush1.bf16.msra.mxu0 0
    %509 = vmatprep.subr.bf16.mxu0 0
    %510 = vmatpush1.bf16.msra.mxu0 0
    %511 = vmatprep.subr.bf16.mxu0 0
    %512 = vmatpush1.bf16.msra.mxu0 0
    %513 = vmatprep.subr.bf16.mxu0 0
    %514 = vmatpush1.bf16.msra.mxu0 0
    %515 = vmatprep.subr.bf16.mxu0 0
    %516 = vmatpush1.bf16.msra.mxu0 0
    %517 = vmatprep.subr.bf16.mxu0 0
    %518 = vmatpush1.bf16.msra.mxu0 0
    %519 = vmatprep.subr.bf16.mxu0 0
    %520 = vmatpush1.bf16.msra.mxu0 0
    %521 = vmatprep.subr.bf16.mxu0 0
    %522 = vmatpush1.bf16.msra.mxu0 0
    %523 = vmatprep.subr.bf16.mxu0 0
    %524 = vmatpush1.bf16.msra.mxu0 0
    %525 = vmatprep.mubr.bf16.mxu0 0
    %526 = vmatmul.mubr.bf16.gmra.mrb[0].mxu0 %v488
    %v527 = vpop.f32.mrb[0].mxu0
    %v528 = vadd.f32 %v449, %v527
    %v529 = vpop.f32.mrb[0].mxu0
    %v530 = vpop.f32.mrb[0].mxu0
    %v531 = vadd.f32 %v452, %v530
    %v532 = vpop.f32.mrb[0].mxu0
    %533 = vmatprep.mubr.bf16.mxu0 0
    %534 = vmatmul.mubr.bf16.gmra.mrb[0].mxu0 %v491
    %v535 = vpop.f32.mrb[0].mxu0
    %v536 = vadd.f32 %v457, %v535
    %v537 = vpop.f32.mrb[0].mxu0
    %v538 = vpop.f32.mrb[0].mxu0
    %v539 = vadd.f32 %v460, %v538
    %v540 = vpop.f32.mrb[0].mxu0
    %541 = vdwg.mxu0
    %v542 = vld [vmem:[%s5] sm:$0x1]
    %v544 = vlaneseq
    %v545 = vshrl.u32 %v544, 7
    %v546 = vsub.s32 0, %v545
    %v547 = vrot.slane %v542, %v546
    %v549 = vadd.f32 %v528, %v547
    %v550 = vadd.f32 %v531, %v547
    %v551 = vadd.f32 %v536, %v547
    %v552 = vadd.f32 %v539, %v547
    %v553 = vld [vmem:[%s6] sm:$0x1]
    %v555 = vlaneseq
    %v556 = vshrl.u32 %v555, 7
    %v557 = vsub.s32 0, %v556
    %v558 = vrot.slane %v553, %v557
    %v560 = vmul.f32 %v310, %v558
    %v561 = vmul.f32 %v311, %v558
    %v562 = vmul.f32 %v312, %v558
    %v563 = vmul.f32 %v313, %v558
    %v564 = vadd.f32 %v549, %v560
    %v565 = vadd.f32 %v550, %v561
    %v566 = vadd.f32 %v551, %v562
    %v567 = vadd.f32 %v552, %v563
    %v568 = vadd.f32 %v52, %v291
    %v569 = vadd.f32 %v53, %v294
    %v570 = vadd.f32 %v54, %v299
    %v571 = vadd.f32 %v55, %v302
    %v572 = vtanh.pop %v564
    %v573 = vtanh.pop %v565
    %v574 = vtanh.pop %v566
    %v575 = vtanh.pop %v567
    %v576 = vmul.f32 %v572, 0.5
    %v577 = vmul.f32 %v573, 0.5
    %v578 = vmul.f32 %v574, 0.5
    %v579 = vmul.f32 %v575, 0.5
    %v580 = vadd.f32 %v576, 0.5
    %v581 = vadd.f32 %v577, 0.5
    %v582 = vadd.f32 %v578, 0.5
    %v583 = vadd.f32 %v579, 0.5
    %588 = vrot.lane.b32.xlu0 %v580, 96
    %v589 = vpop.permute.xlu0 %588
    %590 = vrot.lane.b32.xlu0 %v581, 96
    %v591 = vpop.permute.xlu0 %590
    %592 = vrot.lane.b32.xlu0 %v582, 96
    %v593 = vpop.permute.xlu0 %592
    %594 = vrot.lane.b32.xlu0 %v583, 96
    %v595 = vpop.permute.xlu0 %594
    %v600 = vmul.f32 %v572, %v589
    %v601 = vmul.f32 %v573, %v591
    %v602 = vmul.f32 %v574, %v593
    %v603 = vmul.f32 %v575, %v595
    %v604 = vpack.c.bf16 %v601, %v600
    %v605 = vpack.c.bf16 %v603, %v602
    %s606 = scalar_lea.vmem %s7, 16
    %v607 = vld [vmem:[%s606] sm:$0xf]
    %v608 = vld [vmem:[%s606 + $0x4] sm:$0xf]
    %v609 = vld [vmem:[%s606 + $0x8] sm:$0xf]
    %v610 = vld [vmem:[%s606 + $0xc] sm:$0xf]
    %s611 = scalar_lea.vmem %s8, 1
    %v612 = vld [vmem:[%s611] sm:$0x1]
    %v614 = vlaneseq
    %v615 = vshrl.u32 %v614, 7
    %v616 = vsub.s32 0, %v615
    %v617 = vrot.slane %v612, %v616
    %v623 = vunpack.c.l.b16 %v607
    %v624 = vunpack.c.l.b16 %v608
    %v625 = vunpack.c.l.b16 %v609
    %v626 = vunpack.c.l.b16 %v610
    %v627 = vpack.c.b16 %v624, %v623
    %v628 = vpack.c.b16 %v626, %v625
    %v632 = vsel %vm91, %v604, 0
    %v635 = vsel %vm91, %v605, 0
    %637 = vmatprep.subr.bf16.mxu0 0
    %638 = vmatpush1.bf16.msra.mxu0 %v627
    %639 = vmatprep.subr.bf16.mxu0 0
    %640 = vmatpush1.bf16.msra.mxu0 %v628
    %641 = vmatprep.subr.bf16.mxu0 0
    %642 = vmatpush1.bf16.msra.mxu0 0
    %643 = vmatprep.subr.bf16.mxu0 0
    %644 = vmatpush1.bf16.msra.mxu0 0
    %645 = vmatprep.subr.bf16.mxu0 0
    %646 = vmatpush1.bf16.msra.mxu0 0
    %647 = vmatprep.subr.bf16.mxu0 0
    %648 = vmatpush1.bf16.msra.mxu0 0
    %649 = vmatprep.subr.bf16.mxu0 0
    %650 = vmatpush1.bf16.msra.mxu0 0
    %651 = vmatprep.subr.bf16.mxu0 0
    %652 = vmatpush1.bf16.msra.mxu0 0
    %653 = vmatprep.subr.bf16.mxu0 0
    %654 = vmatpush1.bf16.msra.mxu0 0
    %655 = vmatprep.subr.bf16.mxu0 0
    %656 = vmatpush1.bf16.msra.mxu0 0
    %657 = vmatprep.subr.bf16.mxu0 0
    %658 = vmatpush1.bf16.msra.mxu0 0
    %659 = vmatprep.subr.bf16.mxu0 0
    %660 = vmatpush1.bf16.msra.mxu0 0
    %661 = vmatprep.subr.bf16.mxu0 0
    %662 = vmatpush1.bf16.msra.mxu0 0
    %663 = vmatprep.subr.bf16.mxu0 0
    %664 = vmatpush1.bf16.msra.mxu0 0
    %665 = vmatprep.subr.bf16.mxu0 0
    %666 = vmatpush1.bf16.msra.mxu0 0
    %667 = vmatprep.subr.bf16.mxu0 0
    %668 = vmatpush1.bf16.msra.mxu0 0
    %669 = vmatprep.mubr.bf16.mxu0 0
    %670 = vmatmul.mubr.bf16.gmra.mrb[0].mxu0 %v632
    %v671 = vpop.f32.mrb[0].mxu0
    %v672 = vadd.f32 %v617, %v671
    %v673 = vpop.f32.mrb[0].mxu0
    %v674 = vpop.f32.mrb[0].mxu0
    %v675 = vadd.f32 %v617, %v674
    %v676 = vpop.f32.mrb[0].mxu0
    %677 = vmatprep.mubr.bf16.mxu0 0
    %678 = vmatmul.mubr.bf16.gmra.mrb[0].mxu0 %v635
    %v679 = vpop.f32.mrb[0].mxu0
    %v680 = vadd.f32 %v617, %v679
    %v681 = vpop.f32.mrb[0].mxu0
    %v682 = vpop.f32.mrb[0].mxu0
    %v683 = vadd.f32 %v617, %v682
    %v684 = vpop.f32.mrb[0].mxu0
    %685 = vdwg.mxu0
    %v686 = vadd.f32 %v305, %v672
    %v687 = vadd.f32 %v306, %v675
    %v688 = vadd.f32 %v307, %v680
    %v689 = vadd.f32 %v308, %v683
    %s690 = scalar_lea.vmem %s1, 64
    %v691 = vld [vmem:[%s690] sm:$0xff]
    %v692 = vld [vmem:[%s690 + $0x8] sm:$0xff]
    %v693 = vld [vmem:[%s690 + $0x10] sm:$0xff]
    %v694 = vld [vmem:[%s690 + $0x18] sm:$0xff]
    %v695 = vrot.slane %v568, 4
    %v696 = vrot.slane %v569, 4
    %v697 = vrot.slane %v570, 4
    %v698 = vrot.slane %v571, 4
    %vm699 = vcmp.lt.s32.totalorder %v65, 4
    %v700 = vsel %vm699, %v697, %v698
    %v701 = vsel %vm699, %v696, %v697
    %v702 = vsel %vm699, %v695, %v696
    %v703 = vsel %vm699, %v698, %v695
    %v704 = vmul.f32 %v691, %v703
    %v705 = vmul.f32 %v692, %v702
    %v706 = vmul.f32 %v693, %v701
    %v707 = vmul.f32 %v694, %v700
    %712 = vrot.lane.b32.xlu0 %v568, 32
    %v713 = vpop.permute.xlu0 %712
    %714 = vrot.lane.b32.xlu0 %v569, 32
    %v715 = vpop.permute.xlu0 %714
    %716 = vrot.lane.b32.xlu0 %v570, 32
    %v717 = vpop.permute.xlu0 %716
    %718 = vrot.lane.b32.xlu0 %v571, 32
    %v719 = vpop.permute.xlu0 %718
    %v724 = vsel %vm91, %v704, %v713
    %v725 = vsel %vm91, %v705, %v715
    %v726 = vsel %vm91, %v706, %v717
    %v727 = vsel %vm91, %v707, %v719
    %v728 = vpack.c.bf16 %v725, %v724
    %v729 = vpack.c.bf16 %v727, %v726
    %v730 = vrot.slane %v600, 4
    %v731 = vrot.slane %v601, 4
    %v732 = vrot.slane %v602, 4
    %v733 = vrot.slane %v603, 4
    %v734 = vsel %vm699, %v732, %v733
    %v735 = vsel %vm699, %v731, %v732
    %v736 = vsel %vm699, %v730, %v731
    %v737 = vsel %vm699, %v733, %v730
    %v738 = vmul.f32 %v691, %v737
    %v739 = vmul.f32 %v692, %v736
    %v740 = vmul.f32 %v693, %v735
    %v741 = vmul.f32 %v694, %v734
    %746 = vrot.lane.b32.xlu0 %v600, 32
    %v747 = vpop.permute.xlu0 %746
    %748 = vrot.lane.b32.xlu0 %v601, 32
    %v749 = vpop.permute.xlu0 %748
    %750 = vrot.lane.b32.xlu0 %v602, 32
    %v751 = vpop.permute.xlu0 %750
    %752 = vrot.lane.b32.xlu0 %v603, 32
    %v753 = vpop.permute.xlu0 %752
    %v758 = vsel %vm91, %v738, %v747
    %v759 = vsel %vm91, %v739, %v749
    %v760 = vsel %vm91, %v740, %v751
    %v761 = vsel %vm91, %v741, %v753
    %v762 = vpack.c.bf16 %v759, %v758
    %v763 = vpack.c.bf16 %v761, %v760
    %s764 = scalar_lea.vmem %s2, 64
    %v765 = vld [vmem:[%s764] sm:$0xf]
    %v766 = vld [vmem:[%s764 + $0x4] sm:$0xf]
    %v767 = vld [vmem:[%s764 + $0x8] sm:$0xf]
    %v768 = vld [vmem:[%s764 + $0xc] sm:$0xf]
    %v769 = vld [vmem:[%s764 + $0x10] sm:$0xf]
    %v770 = vld [vmem:[%s764 + $0x14] sm:$0xf]
    %v771 = vld [vmem:[%s764 + $0x18] sm:$0xf]
    %v772 = vld [vmem:[%s764 + $0x1c] sm:$0xf]
    %s773 = scalar_lea.vmem %s4, 32
    %v774 = vld [vmem:[%s773] sm:$0xf]
    %v775 = vld [vmem:[%s773 + $0x4] sm:$0xf]
    %v776 = vld [vmem:[%s773 + $0x8] sm:$0xf]
    %v777 = vld [vmem:[%s773 + $0xc] sm:$0xf]
    %v778 = vld [vmem:[%s773 + $0x10] sm:$0xf]
    %v779 = vld [vmem:[%s773 + $0x14] sm:$0xf]
    %v780 = vld [vmem:[%s773 + $0x18] sm:$0xf]
    %v781 = vld [vmem:[%s773 + $0x1c] sm:$0xf]
    %v790 = vunpack.c.l.b16 %v774
    %v791 = vunpack.c.l.b16 %v775
    %v792 = vunpack.c.l.b16 %v776
    %v793 = vunpack.c.l.b16 %v777
    %v794 = vunpack.c.l.b16 %v778
    %v795 = vunpack.c.l.b16 %v779
    %v796 = vunpack.c.l.b16 %v780
    %v797 = vunpack.c.l.b16 %v781
    %v798 = vpack.c.b16 %v791, %v790
    %v799 = vpack.c.b16 %v793, %v792
    %v800 = vpack.c.b16 %v795, %v794
    %v801 = vpack.c.b16 %v797, %v796
    %v807 = vsel %vm137, %v762, 0
    %v810 = vsel %vm137, %v763, 0
    %812 = vmatprep.subr.bf16.mxu0 0
    %813 = vmatpush1.bf16.msra.mxu0 %v798
    %814 = vmatprep.subr.bf16.mxu0 0
    %815 = vmatpush1.bf16.msra.mxu0 %v799
    %816 = vmatprep.subr.bf16.mxu0 0
    %817 = vmatpush1.bf16.msra.mxu0 %v800
    %818 = vmatprep.subr.bf16.mxu0 0
    %819 = vmatpush1.bf16.msra.mxu0 %v801
    %820 = vmatprep.subr.bf16.mxu0 0
    %821 = vmatpush1.bf16.msra.mxu0 0
    %822 = vmatprep.subr.bf16.mxu0 0
    %823 = vmatpush1.bf16.msra.mxu0 0
    %824 = vmatprep.subr.bf16.mxu0 0
    %825 = vmatpush1.bf16.msra.mxu0 0
    %826 = vmatprep.subr.bf16.mxu0 0
    %827 = vmatpush1.bf16.msra.mxu0 0
    %828 = vmatprep.subr.bf16.mxu0 0
    %829 = vmatpush1.bf16.msra.mxu0 0
    %830 = vmatprep.subr.bf16.mxu0 0
    %831 = vmatpush1.bf16.msra.mxu0 0
    %832 = vmatprep.subr.bf16.mxu0 0
    %833 = vmatpush1.bf16.msra.mxu0 0
    %834 = vmatprep.subr.bf16.mxu0 0
    %835 = vmatpush1.bf16.msra.mxu0 0
    %836 = vmatprep.subr.bf16.mxu0 0
    %837 = vmatpush1.bf16.msra.mxu0 0
    %838 = vmatprep.subr.bf16.mxu0 0
    %839 = vmatpush1.bf16.msra.mxu0 0
    %840 = vmatprep.subr.bf16.mxu0 0
    %841 = vmatpush1.bf16.msra.mxu0 0
    %842 = vmatprep.subr.bf16.mxu0 0
    %843 = vmatpush1.bf16.msra.mxu0 0
    %844 = vmatprep.mubr.bf16.mxu0 0
    %845 = vmatmul.mubr.bf16.gmra.mrb[0].mxu0 %v807
    %v846 = vpop.f32.mrb[0].mxu0
    %v847 = vadd.f32 0.0, %v846
    %v848 = vpop.f32.mrb[0].mxu0
    %v849 = vpop.f32.mrb[0].mxu0
    %v850 = vadd.f32 0.0, %v849
    %v851 = vpop.f32.mrb[0].mxu0
    %852 = vmatprep.mubr.bf16.mxu0 0
    %853 = vmatmul.mubr.bf16.gmra.mrb[0].mxu0 %v810
    %v854 = vpop.f32.mrb[0].mxu0
    %v855 = vadd.f32 0.0, %v854
    %v856 = vpop.f32.mrb[0].mxu0
    %v857 = vpop.f32.mrb[0].mxu0
    %v858 = vadd.f32 0.0, %v857
    %v859 = vpop.f32.mrb[0].mxu0
    %860 = vdwg.mxu0
    %v869 = vunpack.c.l.b16 %v765
    %v870 = vunpack.c.l.b16 %v766
    %v871 = vunpack.c.l.b16 %v767
    %v872 = vunpack.c.l.b16 %v768
    %v873 = vunpack.c.l.b16 %v769
    %v874 = vunpack.c.l.b16 %v770
    %v875 = vunpack.c.l.b16 %v771
    %v876 = vunpack.c.l.b16 %v772
    %v877 = vpack.c.b16 %v870, %v869
    %v878 = vpack.c.b16 %v872, %v871
    %v879 = vpack.c.b16 %v874, %v873
    %v880 = vpack.c.b16 %v876, %v875
    %v886 = vsel %vm137, %v728, 0
    %v889 = vsel %vm137, %v729, 0
    %891 = vmatprep.subr.bf16.mxu0 0
    %892 = vmatpush1.bf16.msra.mxu0 %v877
    %893 = vmatprep.subr.bf16.mxu0 0
    %894 = vmatpush1.bf16.msra.mxu0 %v878
    %895 = vmatprep.subr.bf16.mxu0 0
    %896 = vmatpush1.bf16.msra.mxu0 %v879
    %897 = vmatprep.subr.bf16.mxu0 0
    %898 = vmatpush1.bf16.msra.mxu0 %v880
    %899 = vmatprep.subr.bf16.mxu0 0
    %900 = vmatpush1.bf16.msra.mxu0 0
    %901 = vmatprep.subr.bf16.mxu0 0
    %902 = vmatpush1.bf16.msra.mxu0 0
    %903 = vmatprep.subr.bf16.mxu0 0
    %904 = vmatpush1.bf16.msra.mxu0 0
    %905 = vmatprep.subr.bf16.mxu0 0
    %906 = vmatpush1.bf16.msra.mxu0 0
    %907 = vmatprep.subr.bf16.mxu0 0
    %908 = vmatpush1.bf16.msra.mxu0 0
    %909 = vmatprep.subr.bf16.mxu0 0
    %910 = vmatpush1.bf16.msra.mxu0 0
    %911 = vmatprep.subr.bf16.mxu0 0
    %912 = vmatpush1.bf16.msra.mxu0 0
    %913 = vmatprep.subr.bf16.mxu0 0
    %914 = vmatpush1.bf16.msra.mxu0 0
    %915 = vmatprep.subr.bf16.mxu0 0
    %916 = vmatpush1.bf16.msra.mxu0 0
    %917 = vmatprep.subr.bf16.mxu0 0
    %918 = vmatpush1.bf16.msra.mxu0 0
    %919 = vmatprep.subr.bf16.mxu0 0
    %920 = vmatpush1.bf16.msra.mxu0 0
    %921 = vmatprep.subr.bf16.mxu0 0
    %922 = vmatpush1.bf16.msra.mxu0 0
    %923 = vmatprep.mubr.bf16.mxu0 0
    %924 = vmatmul.mubr.bf16.gmra.mrb[0].mxu0 %v886
    %v925 = vpop.f32.mrb[0].mxu0
    %v926 = vadd.f32 %v847, %v925
    %v927 = vpop.f32.mrb[0].mxu0
    %v928 = vpop.f32.mrb[0].mxu0
    %v929 = vadd.f32 %v850, %v928
    %v930 = vpop.f32.mrb[0].mxu0
    %931 = vmatprep.mubr.bf16.mxu0 0
    %932 = vmatmul.mubr.bf16.gmra.mrb[0].mxu0 %v889
    %v933 = vpop.f32.mrb[0].mxu0
    %v934 = vadd.f32 %v855, %v933
    %v935 = vpop.f32.mrb[0].mxu0
    %v936 = vpop.f32.mrb[0].mxu0
    %v937 = vadd.f32 %v858, %v936
    %v938 = vpop.f32.mrb[0].mxu0
    %939 = vdwg.mxu0
    %s940 = scalar_lea.vmem %s5, 1
    %v941 = vld [vmem:[%s940] sm:$0x1]
    %v943 = vlaneseq
    %v944 = vshrl.u32 %v943, 7
    %v945 = vsub.s32 0, %v944
    %v946 = vrot.slane %v941, %v945
    %v948 = vadd.f32 %v926, %v946
    %v949 = vadd.f32 %v929, %v946
    %v950 = vadd.f32 %v934, %v946
    %v951 = vadd.f32 %v937, %v946
    %s952 = scalar_lea.vmem %s6, 1
    %v953 = vld [vmem:[%s952] sm:$0x1]
    %v955 = vlaneseq
    %v956 = vshrl.u32 %v955, 7
    %v957 = vsub.s32 0, %v956
    %v958 = vrot.slane %v953, %v957
    %v960 = vmul.f32 %v691, %v958
    %v961 = vmul.f32 %v692, %v958
    %v962 = vmul.f32 %v693, %v958
    %v963 = vmul.f32 %v694, %v958
    %v964 = vadd.f32 %v948, %v960
    %v965 = vadd.f32 %v949, %v961
    %v966 = vadd.f32 %v950, %v962
    %v967 = vadd.f32 %v951, %v963
    %v968 = vadd.f32 %v568, %v672
    %v969 = vadd.f32 %v569, %v675
    %v970 = vadd.f32 %v570, %v680
    %v971 = vadd.f32 %v571, %v683
    %v972 = vtanh.pop %v964
    %v973 = vtanh.pop %v965
    %v974 = vtanh.pop %v966
    %v975 = vtanh.pop %v967
    %v976 = vmul.f32 %v972, 0.5
    %v977 = vmul.f32 %v973, 0.5
    %v978 = vmul.f32 %v974, 0.5
    %v979 = vmul.f32 %v975, 0.5
    %v980 = vadd.f32 %v976, 0.5
    %v981 = vadd.f32 %v977, 0.5
    %v982 = vadd.f32 %v978, 0.5
    %v983 = vadd.f32 %v979, 0.5
    %988 = vrot.lane.b32.xlu0 %v980, 96
    %v989 = vpop.permute.xlu0 %988
    %990 = vrot.lane.b32.xlu0 %v981, 96
    %v991 = vpop.permute.xlu0 %990
    %992 = vrot.lane.b32.xlu0 %v982, 96
    %v993 = vpop.permute.xlu0 %992
    %994 = vrot.lane.b32.xlu0 %v983, 96
    %v995 = vpop.permute.xlu0 %994
    %v1000 = vmul.f32 %v972, %v989
    %v1001 = vmul.f32 %v973, %v991
    %v1002 = vmul.f32 %v974, %v993
    %v1003 = vmul.f32 %v975, %v995
    %v1004 = vpack.c.bf16 %v1001, %v1000
    %v1005 = vpack.c.bf16 %v1003, %v1002
    %s1006 = scalar_lea.vmem %s7, 32
    %v1007 = vld [vmem:[%s1006] sm:$0xf]
    %v1008 = vld [vmem:[%s1006 + $0x4] sm:$0xf]
    %v1009 = vld [vmem:[%s1006 + $0x8] sm:$0xf]
    %v1010 = vld [vmem:[%s1006 + $0xc] sm:$0xf]
    %s1011 = scalar_lea.vmem %s8, 2
    %v1012 = vld [vmem:[%s1011] sm:$0x1]
    %v1014 = vlaneseq
    %v1015 = vshrl.u32 %v1014, 7
    %v1016 = vsub.s32 0, %v1015
    %v1017 = vrot.slane %v1012, %v1016
    %v1023 = vunpack.c.l.b16 %v1007
    %v1024 = vunpack.c.l.b16 %v1008
    %v1025 = vunpack.c.l.b16 %v1009
    %v1026 = vunpack.c.l.b16 %v1010
    %v1027 = vpack.c.b16 %v1024, %v1023
    %v1028 = vpack.c.b16 %v1026, %v1025
    %v1032 = vsel %vm91, %v1004, 0
    %v1035 = vsel %vm91, %v1005, 0
    %1037 = vmatprep.subr.bf16.mxu0 0
    %1038 = vmatpush1.bf16.msra.mxu0 %v1027
    %1039 = vmatprep.subr.bf16.mxu0 0
    %1040 = vmatpush1.bf16.msra.mxu0 %v1028
    %1041 = vmatprep.subr.bf16.mxu0 0
    %1042 = vmatpush1.bf16.msra.mxu0 0
    %1043 = vmatprep.subr.bf16.mxu0 0
    %1044 = vmatpush1.bf16.msra.mxu0 0
    %1045 = vmatprep.subr.bf16.mxu0 0
    %1046 = vmatpush1.bf16.msra.mxu0 0
    %1047 = vmatprep.subr.bf16.mxu0 0
    %1048 = vmatpush1.bf16.msra.mxu0 0
    %1049 = vmatprep.subr.bf16.mxu0 0
    %1050 = vmatpush1.bf16.msra.mxu0 0
    %1051 = vmatprep.subr.bf16.mxu0 0
    %1052 = vmatpush1.bf16.msra.mxu0 0
    %1053 = vmatprep.subr.bf16.mxu0 0
    %1054 = vmatpush1.bf16.msra.mxu0 0
    %1055 = vmatprep.subr.bf16.mxu0 0
    %1056 = vmatpush1.bf16.msra.mxu0 0
    %1057 = vmatprep.subr.bf16.mxu0 0
    %1058 = vmatpush1.bf16.msra.mxu0 0
    %1059 = vmatprep.subr.bf16.mxu0 0
    %1060 = vmatpush1.bf16.msra.mxu0 0
    %1061 = vmatprep.subr.bf16.mxu0 0
    %1062 = vmatpush1.bf16.msra.mxu0 0
    %1063 = vmatprep.subr.bf16.mxu0 0
    %1064 = vmatpush1.bf16.msra.mxu0 0
    %1065 = vmatprep.subr.bf16.mxu0 0
    %1066 = vmatpush1.bf16.msra.mxu0 0
    %1067 = vmatprep.subr.bf16.mxu0 0
    %1068 = vmatpush1.bf16.msra.mxu0 0
    %1069 = vmatprep.mubr.bf16.mxu0 0
    %1070 = vmatmul.mubr.bf16.gmra.mrb[0].mxu0 %v1032
    %v1071 = vpop.f32.mrb[0].mxu0
    %v1072 = vadd.f32 %v1017, %v1071
    %v1073 = vpop.f32.mrb[0].mxu0
    %v1074 = vpop.f32.mrb[0].mxu0
    %v1075 = vadd.f32 %v1017, %v1074
    %v1076 = vpop.f32.mrb[0].mxu0
    %1077 = vmatprep.mubr.bf16.mxu0 0
    %1078 = vmatmul.mubr.bf16.gmra.mrb[0].mxu0 %v1035
    %v1079 = vpop.f32.mrb[0].mxu0
    %v1080 = vadd.f32 %v1017, %v1079
    %v1081 = vpop.f32.mrb[0].mxu0
    %v1082 = vpop.f32.mrb[0].mxu0
    %v1083 = vadd.f32 %v1017, %v1082
    %v1084 = vpop.f32.mrb[0].mxu0
    %1085 = vdwg.mxu0
    %v1086 = vadd.f32 %v686, %v1072
    %v1087 = vadd.f32 %v687, %v1075
    %v1088 = vadd.f32 %v688, %v1080
    %v1089 = vadd.f32 %v689, %v1083
    %s1090 = scalar_lea.vmem %s1, 96
    %v1091 = vld [vmem:[%s1090] sm:$0xff]
    %v1092 = vld [vmem:[%s1090 + $0x8] sm:$0xff]
    %v1093 = vld [vmem:[%s1090 + $0x10] sm:$0xff]
    %v1094 = vld [vmem:[%s1090 + $0x18] sm:$0xff]
    %v1095 = vmul.f32 %v1091, %v971
    %v1096 = vmul.f32 %v1092, %v968
    %v1097 = vmul.f32 %v1093, %v969
    %v1098 = vmul.f32 %v1094, %v970
    %1103 = vrot.lane.b32.xlu0 %v968, 32
    %v1104 = vpop.permute.xlu0 %1103
    %1105 = vrot.lane.b32.xlu0 %v969, 32
    %v1106 = vpop.permute.xlu0 %1105
    %1107 = vrot.lane.b32.xlu0 %v970, 32
    %v1108 = vpop.permute.xlu0 %1107
    %1109 = vrot.lane.b32.xlu0 %v971, 32
    %v1110 = vpop.permute.xlu0 %1109
    %v1115 = vsel %vm91, %v1095, %v1104
    %v1116 = vsel %vm91, %v1096, %v1106
    %v1117 = vsel %vm91, %v1097, %v1108
    %v1118 = vsel %vm91, %v1098, %v1110
    %v1119 = vpack.c.bf16 %v1116, %v1115
    %v1120 = vpack.c.bf16 %v1118, %v1117
    %v1121 = vmul.f32 %v1091, %v1003
    %v1122 = vmul.f32 %v1092, %v1000
    %v1123 = vmul.f32 %v1093, %v1001
    %v1124 = vmul.f32 %v1094, %v1002
    %1129 = vrot.lane.b32.xlu0 %v1000, 32
    %v1130 = vpop.permute.xlu0 %1129
    %1131 = vrot.lane.b32.xlu0 %v1001, 32
    %v1132 = vpop.permute.xlu0 %1131
    %1133 = vrot.lane.b32.xlu0 %v1002, 32
    %v1134 = vpop.permute.xlu0 %1133
    %1135 = vrot.lane.b32.xlu0 %v1003, 32
    %v1136 = vpop.permute.xlu0 %1135
    %v1141 = vsel %vm91, %v1121, %v1130
    %v1142 = vsel %vm91, %v1122, %v1132
    %v1143 = vsel %vm91, %v1123, %v1134
    %v1144 = vsel %vm91, %v1124, %v1136
    %v1145 = vpack.c.bf16 %v1142, %v1141
    %v1146 = vpack.c.bf16 %v1144, %v1143
    %s1147 = scalar_lea.vmem %s2, 96
    %v1148 = vld [vmem:[%s1147] sm:$0xf]
    %v1149 = vld [vmem:[%s1147 + $0x4] sm:$0xf]
    %v1150 = vld [vmem:[%s1147 + $0x8] sm:$0xf]
    %v1151 = vld [vmem:[%s1147 + $0xc] sm:$0xf]
    %v1152 = vld [vmem:[%s1147 + $0x10] sm:$0xf]
    %v1153 = vld [vmem:[%s1147 + $0x14] sm:$0xf]
    %v1154 = vld [vmem:[%s1147 + $0x18] sm:$0xf]
    %v1155 = vld [vmem:[%s1147 + $0x1c] sm:$0xf]
    %s1156 = scalar_lea.vmem %s4, 64
    %v1157 = vld [vmem:[%s1156] sm:$0xf]
    %v1158 = vld [vmem:[%s1156 + $0x4] sm:$0xf]
    %v1159 = vld [vmem:[%s1156 + $0x8] sm:$0xf]
    %v1160 = vld [vmem:[%s1156 + $0xc] sm:$0xf]
    %v1161 = vld [vmem:[%s1156 + $0x10] sm:$0xf]
    %v1162 = vld [vmem:[%s1156 + $0x14] sm:$0xf]
    %v1163 = vld [vmem:[%s1156 + $0x18] sm:$0xf]
    %v1164 = vld [vmem:[%s1156 + $0x1c] sm:$0xf]
    %v1173 = vunpack.c.l.b16 %v1157
    %v1174 = vunpack.c.l.b16 %v1158
    %v1175 = vunpack.c.l.b16 %v1159
    %v1176 = vunpack.c.l.b16 %v1160
    %v1177 = vunpack.c.l.b16 %v1161
    %v1178 = vunpack.c.l.b16 %v1162
    %v1179 = vunpack.c.l.b16 %v1163
    %v1180 = vunpack.c.l.b16 %v1164
    %v1181 = vpack.c.b16 %v1174, %v1173
    %v1182 = vpack.c.b16 %v1176, %v1175
    %v1183 = vpack.c.b16 %v1178, %v1177
    %v1184 = vpack.c.b16 %v1180, %v1179
    %v1190 = vsel %vm137, %v1145, 0
    %v1193 = vsel %vm137, %v1146, 0
    %1195 = vmatprep.subr.bf16.mxu0 0
    %1196 = vmatpush1.bf16.msra.mxu0 %v1181
    %1197 = vmatprep.subr.bf16.mxu0 0
    %1198 = vmatpush1.bf16.msra.mxu0 %v1182
    %1199 = vmatprep.subr.bf16.mxu0 0
    %1200 = vmatpush1.bf16.msra.mxu0 %v1183
    %1201 = vmatprep.subr.bf16.mxu0 0
    %1202 = vmatpush1.bf16.msra.mxu0 %v1184
    %1203 = vmatprep.subr.bf16.mxu0 0
    %1204 = vmatpush1.bf16.msra.mxu0 0
    %1205 = vmatprep.subr.bf16.mxu0 0
    %1206 = vmatpush1.bf16.msra.mxu0 0
    %1207 = vmatprep.subr.bf16.mxu0 0
    %1208 = vmatpush1.bf16.msra.mxu0 0
    %1209 = vmatprep.subr.bf16.mxu0 0
    %1210 = vmatpush1.bf16.msra.mxu0 0
    %1211 = vmatprep.subr.bf16.mxu0 0
    %1212 = vmatpush1.bf16.msra.mxu0 0
    %1213 = vmatprep.subr.bf16.mxu0 0
    %1214 = vmatpush1.bf16.msra.mxu0 0
    %1215 = vmatprep.subr.bf16.mxu0 0
    %1216 = vmatpush1.bf16.msra.mxu0 0
    %1217 = vmatprep.subr.bf16.mxu0 0
    %1218 = vmatpush1.bf16.msra.mxu0 0
    %1219 = vmatprep.subr.bf16.mxu0 0
    %1220 = vmatpush1.bf16.msra.mxu0 0
    %1221 = vmatprep.subr.bf16.mxu0 0
    %1222 = vmatpush1.bf16.msra.mxu0 0
    %1223 = vmatprep.subr.bf16.mxu0 0
    %1224 = vmatpush1.bf16.msra.mxu0 0
    %1225 = vmatprep.subr.bf16.mxu0 0
    %1226 = vmatpush1.bf16.msra.mxu0 0
    %1227 = vmatprep.mubr.bf16.mxu0 0
    %1228 = vmatmul.mubr.bf16.gmra.mrb[0].mxu0 %v1190
    %v1229 = vpop.f32.mrb[0].mxu0
    %v1230 = vadd.f32 0.0, %v1229
    %v1231 = vpop.f32.mrb[0].mxu0
    %v1232 = vpop.f32.mrb[0].mxu0
    %v1233 = vadd.f32 0.0, %v1232
    %v1234 = vpop.f32.mrb[0].mxu0
    %1235 = vmatprep.mubr.bf16.mxu0 0
    %1236 = vmatmul.mubr.bf16.gmra.mrb[0].mxu0 %v1193
    %v1237 = vpop.f32.mrb[0].mxu0
    %v1238 = vadd.f32 0.0, %v1237
    %v1239 = vpop.f32.mrb[0].mxu0
    %v1240 = vpop.f32.mrb[0].mxu0
    %v1241 = vadd.f32 0.0, %v1240
    %v1242 = vpop.f32.mrb[0].mxu0
    %1243 = vdwg.mxu0
    %v1252 = vunpack.c.l.b16 %v1148
    %v1253 = vunpack.c.l.b16 %v1149
    %v1254 = vunpack.c.l.b16 %v1150
    %v1255 = vunpack.c.l.b16 %v1151
    %v1256 = vunpack.c.l.b16 %v1152
    %v1257 = vunpack.c.l.b16 %v1153
    %v1258 = vunpack.c.l.b16 %v1154
    %v1259 = vunpack.c.l.b16 %v1155
    %v1260 = vpack.c.b16 %v1253, %v1252
    %v1261 = vpack.c.b16 %v1255, %v1254
    %v1262 = vpack.c.b16 %v1257, %v1256
    %v1263 = vpack.c.b16 %v1259, %v1258
    %v1269 = vsel %vm137, %v1119, 0
    %v1272 = vsel %vm137, %v1120, 0
    %1274 = vmatprep.subr.bf16.mxu0 0
    %1275 = vmatpush1.bf16.msra.mxu0 %v1260
    %1276 = vmatprep.subr.bf16.mxu0 0
    %1277 = vmatpush1.bf16.msra.mxu0 %v1261
    %1278 = vmatprep.subr.bf16.mxu0 0
    %1279 = vmatpush1.bf16.msra.mxu0 %v1262
    %1280 = vmatprep.subr.bf16.mxu0 0
    %1281 = vmatpush1.bf16.msra.mxu0 %v1263
    %1282 = vmatprep.subr.bf16.mxu0 0
    %1283 = vmatpush1.bf16.msra.mxu0 0
    %1284 = vmatprep.subr.bf16.mxu0 0
    %1285 = vmatpush1.bf16.msra.mxu0 0
    %1286 = vmatprep.subr.bf16.mxu0 0
    %1287 = vmatpush1.bf16.msra.mxu0 0
    %1288 = vmatprep.subr.bf16.mxu0 0
    %1289 = vmatpush1.bf16.msra.mxu0 0
    %1290 = vmatprep.subr.bf16.mxu0 0
    %1291 = vmatpush1.bf16.msra.mxu0 0
    %1292 = vmatprep.subr.bf16.mxu0 0
    %1293 = vmatpush1.bf16.msra.mxu0 0
    %1294 = vmatprep.subr.bf16.mxu0 0
    %1295 = vmatpush1.bf16.msra.mxu0 0
    %1296 = vmatprep.subr.bf16.mxu0 0
    %1297 = vmatpush1.bf16.msra.mxu0 0
    %1298 = vmatprep.subr.bf16.mxu0 0
    %1299 = vmatpush1.bf16.msra.mxu0 0
    %1300 = vmatprep.subr.bf16.mxu0 0
    %1301 = vmatpush1.bf16.msra.mxu0 0
    %1302 = vmatprep.subr.bf16.mxu0 0
    %1303 = vmatpush1.bf16.msra.mxu0 0
    %1304 = vmatprep.subr.bf16.mxu0 0
    %1305 = vmatpush1.bf16.msra.mxu0 0
    %1306 = vmatprep.mubr.bf16.mxu0 0
    %1307 = vmatmul.mubr.bf16.gmra.mrb[0].mxu0 %v1269
    %v1308 = vpop.f32.mrb[0].mxu0
    %v1309 = vadd.f32 %v1230, %v1308
    %v1310 = vpop.f32.mrb[0].mxu0
    %v1311 = vpop.f32.mrb[0].mxu0
    %v1312 = vadd.f32 %v1233, %v1311
    %v1313 = vpop.f32.mrb[0].mxu0
    %1314 = vmatprep.mubr.bf16.mxu0 0
    %1315 = vmatmul.mubr.bf16.gmra.mrb[0].mxu0 %v1272
    %v1316 = vpop.f32.mrb[0].mxu0
    %v1317 = vadd.f32 %v1238, %v1316
    %v1318 = vpop.f32.mrb[0].mxu0
    %v1319 = vpop.f32.mrb[0].mxu0
    %v1320 = vadd.f32 %v1241, %v1319
    %v1321 = vpop.f32.mrb[0].mxu0
    %1322 = vdwg.mxu0
    %s1323 = scalar_lea.vmem %s5, 2
    %v1324 = vld [vmem:[%s1323] sm:$0x1]
    %v1326 = vlaneseq
    %v1327 = vshrl.u32 %v1326, 7
    %v1328 = vsub.s32 0, %v1327
    %v1329 = vrot.slane %v1324, %v1328
    %v1331 = vadd.f32 %v1309, %v1329
    %v1332 = vadd.f32 %v1312, %v1329
    %v1333 = vadd.f32 %v1317, %v1329
    %v1334 = vadd.f32 %v1320, %v1329
    %s1335 = scalar_lea.vmem %s6, 2
    %v1336 = vld [vmem:[%s1335] sm:$0x1]
    %v1338 = vlaneseq
    %v1339 = vshrl.u32 %v1338, 7
    %v1340 = vsub.s32 0, %v1339
    %v1341 = vrot.slane %v1336, %v1340
    %v1343 = vmul.f32 %v1091, %v1341
    %v1344 = vmul.f32 %v1092, %v1341
    %v1345 = vmul.f32 %v1093, %v1341
    %v1346 = vmul.f32 %v1094, %v1341
    %v1347 = vadd.f32 %v1331, %v1343
    %v1348 = vadd.f32 %v1332, %v1344
    %v1349 = vadd.f32 %v1333, %v1345
    %v1350 = vadd.f32 %v1334, %v1346
    %v1351 = vadd.f32 %v968, %v1072
    %v1352 = vadd.f32 %v969, %v1075
    %v1353 = vadd.f32 %v970, %v1080
    %v1354 = vadd.f32 %v971, %v1083
    %v1355 = vtanh.pop %v1347
    %v1356 = vtanh.pop %v1348
    %v1357 = vtanh.pop %v1349
    %v1358 = vtanh.pop %v1350
    %v1359 = vmul.f32 %v1355, 0.5
    %v1360 = vmul.f32 %v1356, 0.5
    %v1361 = vmul.f32 %v1357, 0.5
    %v1362 = vmul.f32 %v1358, 0.5
    %v1363 = vadd.f32 %v1359, 0.5
    %v1364 = vadd.f32 %v1360, 0.5
    %v1365 = vadd.f32 %v1361, 0.5
    %v1366 = vadd.f32 %v1362, 0.5
    %1371 = vrot.lane.b32.xlu0 %v1363, 96
    %v1372 = vpop.permute.xlu0 %1371
    %1373 = vrot.lane.b32.xlu0 %v1364, 96
    %v1374 = vpop.permute.xlu0 %1373
    %1375 = vrot.lane.b32.xlu0 %v1365, 96
    %v1376 = vpop.permute.xlu0 %1375
    %1377 = vrot.lane.b32.xlu0 %v1366, 96
    %v1378 = vpop.permute.xlu0 %1377
    %v1383 = vmul.f32 %v1355, %v1372
    %v1384 = vmul.f32 %v1356, %v1374
    %v1385 = vmul.f32 %v1357, %v1376
    %v1386 = vmul.f32 %v1358, %v1378
    %v1387 = vpack.c.bf16 %v1384, %v1383
    %v1388 = vpack.c.bf16 %v1386, %v1385
    %s1389 = scalar_lea.vmem %s7, 48
    %v1390 = vld [vmem:[%s1389] sm:$0xf]
    %v1391 = vld [vmem:[%s1389 + $0x4] sm:$0xf]
    %v1392 = vld [vmem:[%s1389 + $0x8] sm:$0xf]
    %v1393 = vld [vmem:[%s1389 + $0xc] sm:$0xf]
    %s1394 = scalar_lea.vmem %s8, 3
    %v1395 = vld [vmem:[%s1394] sm:$0x1]
    %v1397 = vlaneseq
    %v1398 = vshrl.u32 %v1397, 7
    %v1399 = vsub.s32 0, %v1398
    %v1400 = vrot.slane %v1395, %v1399
    %v1406 = vunpack.c.l.b16 %v1390
    %v1407 = vunpack.c.l.b16 %v1391
    %v1408 = vunpack.c.l.b16 %v1392
    %v1409 = vunpack.c.l.b16 %v1393
    %v1410 = vpack.c.b16 %v1407, %v1406
    %v1411 = vpack.c.b16 %v1409, %v1408
    %v1415 = vsel %vm91, %v1387, 0
    %v1418 = vsel %vm91, %v1388, 0
    %1420 = vmatprep.subr.bf16.mxu0 0
    %1421 = vmatpush1.bf16.msra.mxu0 %v1410
    %1422 = vmatprep.subr.bf16.mxu0 0
    %1423 = vmatpush1.bf16.msra.mxu0 %v1411
    %1424 = vmatprep.subr.bf16.mxu0 0
    %1425 = vmatpush1.bf16.msra.mxu0 0
    %1426 = vmatprep.subr.bf16.mxu0 0
    %1427 = vmatpush1.bf16.msra.mxu0 0
    %1428 = vmatprep.subr.bf16.mxu0 0
    %1429 = vmatpush1.bf16.msra.mxu0 0
    %1430 = vmatprep.subr.bf16.mxu0 0
    %1431 = vmatpush1.bf16.msra.mxu0 0
    %1432 = vmatprep.subr.bf16.mxu0 0
    %1433 = vmatpush1.bf16.msra.mxu0 0
    %1434 = vmatprep.subr.bf16.mxu0 0
    %1435 = vmatpush1.bf16.msra.mxu0 0
    %1436 = vmatprep.subr.bf16.mxu0 0
    %1437 = vmatpush1.bf16.msra.mxu0 0
    %1438 = vmatprep.subr.bf16.mxu0 0
    %1439 = vmatpush1.bf16.msra.mxu0 0
    %1440 = vmatprep.subr.bf16.mxu0 0
    %1441 = vmatpush1.bf16.msra.mxu0 0
    %1442 = vmatprep.subr.bf16.mxu0 0
    %1443 = vmatpush1.bf16.msra.mxu0 0
    %1444 = vmatprep.subr.bf16.mxu0 0
    %1445 = vmatpush1.bf16.msra.mxu0 0
    %1446 = vmatprep.subr.bf16.mxu0 0
    %1447 = vmatpush1.bf16.msra.mxu0 0
    %1448 = vmatprep.subr.bf16.mxu0 0
    %1449 = vmatpush1.bf16.msra.mxu0 0
    %1450 = vmatprep.subr.bf16.mxu0 0
    %1451 = vmatpush1.bf16.msra.mxu0 0
    %1452 = vmatprep.mubr.bf16.mxu0 0
    %1453 = vmatmul.mubr.bf16.gmra.mrb[0].mxu0 %v1415
    %v1454 = vpop.f32.mrb[0].mxu0
    %v1455 = vadd.f32 %v1400, %v1454
    %v1456 = vpop.f32.mrb[0].mxu0
    %v1457 = vpop.f32.mrb[0].mxu0
    %v1458 = vadd.f32 %v1400, %v1457
    %v1459 = vpop.f32.mrb[0].mxu0
    %1460 = vmatprep.mubr.bf16.mxu0 0
    %1461 = vmatmul.mubr.bf16.gmra.mrb[0].mxu0 %v1418
    %v1462 = vpop.f32.mrb[0].mxu0
    %v1463 = vadd.f32 %v1400, %v1462
    %v1464 = vpop.f32.mrb[0].mxu0
    %v1465 = vpop.f32.mrb[0].mxu0
    %v1466 = vadd.f32 %v1400, %v1465
    %v1467 = vpop.f32.mrb[0].mxu0
    %1468 = vdwg.mxu0
    %v1469 = vadd.f32 %v1086, %v1455
    %v1470 = vadd.f32 %v1087, %v1458
    %v1471 = vadd.f32 %v1088, %v1463
    %v1472 = vadd.f32 %v1089, %v1466
    %v1473 = vpack.c.bf16 %v1352, %v1351
    %v1474 = vpack.c.bf16 %v1354, %v1353
    %s1475 = scalar_lea.vmem %s2, 128
    %v1476 = vld [vmem:[%s1475 + $0x10] sm:$0xf]
    %v1477 = vld [vmem:[%s1475 + $0x14] sm:$0xf]
    %v1478 = vld [vmem:[%s1475 + $0x18] sm:$0xf]
    %v1479 = vld [vmem:[%s1475 + $0x1c] sm:$0xf]
    %s1480 = scalar_lea.vmem %s4, 96
    %v1481 = vld [vmem:[%s1480 + $0x10] sm:$0xf]
    %v1482 = vld [vmem:[%s1480 + $0x14] sm:$0xf]
    %v1483 = vld [vmem:[%s1480 + $0x18] sm:$0xf]
    %v1484 = vld [vmem:[%s1480 + $0x1c] sm:$0xf]
    %v1489 = vunpack.c.l.b16 %v1481
    %v1490 = vunpack.c.l.b16 %v1482
    %v1491 = vunpack.c.l.b16 %v1483
    %v1492 = vunpack.c.l.b16 %v1484
    %v1493 = vpack.c.b16 %v1490, %v1489
    %v1494 = vpack.c.b16 %v1492, %v1491
    %1497 = vmatprep.subr.bf16.mxu0 0
    %1498 = vmatpush1.bf16.msra.mxu0 %v1493
    %1499 = vmatprep.subr.bf16.mxu0 0
    %1500 = vmatpush1.bf16.msra.mxu0 %v1494
    %1501 = vmatprep.subr.bf16.mxu0 0
    %1502 = vmatpush1.bf16.msra.mxu0 0
    %1503 = vmatprep.subr.bf16.mxu0 0
    %1504 = vmatpush1.bf16.msra.mxu0 0
    %1505 = vmatprep.subr.bf16.mxu0 0
    %1506 = vmatpush1.bf16.msra.mxu0 0
    %1507 = vmatprep.subr.bf16.mxu0 0
    %1508 = vmatpush1.bf16.msra.mxu0 0
    %1509 = vmatprep.subr.bf16.mxu0 0
    %1510 = vmatpush1.bf16.msra.mxu0 0
    %1511 = vmatprep.subr.bf16.mxu0 0
    %1512 = vmatpush1.bf16.msra.mxu0 0
    %1513 = vmatprep.subr.bf16.mxu0 0
    %1514 = vmatpush1.bf16.msra.mxu0 0
    %1515 = vmatprep.subr.bf16.mxu0 0
    %1516 = vmatpush1.bf16.msra.mxu0 0
    %1517 = vmatprep.subr.bf16.mxu0 0
    %1518 = vmatpush1.bf16.msra.mxu0 0
    %1519 = vmatprep.subr.bf16.mxu0 0
    %1520 = vmatpush1.bf16.msra.mxu0 0
    %1521 = vmatprep.subr.bf16.mxu0 0
    %1522 = vmatpush1.bf16.msra.mxu0 0
    %1523 = vmatprep.subr.bf16.mxu0 0
    %1524 = vmatpush1.bf16.msra.mxu0 0
    %1525 = vmatprep.subr.bf16.mxu0 0
    %1526 = vmatpush1.bf16.msra.mxu0 0
    %1527 = vmatprep.subr.bf16.mxu0 0
    %1528 = vmatpush1.bf16.msra.mxu0 0
    %1529 = vmatprep.mubr.bf16.mxu0 0
    %1530 = vmatmul.mubr.bf16.gmra.mrb[0].mxu0 %v1415
    %v1531 = vpop.f32.mrb[0].mxu0
    %v1532 = vadd.f32 0.0, %v1531
    %v1533 = vpop.f32.mrb[0].mxu0
    %v1534 = vpop.f32.mrb[0].mxu0
    %v1535 = vadd.f32 0.0, %v1534
    %v1536 = vpop.f32.mrb[0].mxu0
    %1537 = vmatprep.mubr.bf16.mxu0 0
    %1538 = vmatmul.mubr.bf16.gmra.mrb[0].mxu0 %v1418
    %v1539 = vpop.f32.mrb[0].mxu0
    %v1540 = vadd.f32 0.0, %v1539
    %v1541 = vpop.f32.mrb[0].mxu0
    %v1542 = vpop.f32.mrb[0].mxu0
    %v1543 = vadd.f32 0.0, %v1542
    %v1544 = vpop.f32.mrb[0].mxu0
    %1545 = vdwg.mxu0
    %v1550 = vunpack.c.l.b16 %v1476
    %v1551 = vunpack.c.l.b16 %v1477
    %v1552 = vunpack.c.l.b16 %v1478
    %v1553 = vunpack.c.l.b16 %v1479
    %v1554 = vpack.c.b16 %v1551, %v1550
    %v1555 = vpack.c.b16 %v1553, %v1552
    %v1559 = vsel %vm91, %v1473, 0
    %v1562 = vsel %vm91, %v1474, 0
    %1564 = vmatprep.subr.bf16.mxu0 0
    %1565 = vmatpush1.bf16.msra.mxu0 %v1554
    %1566 = vmatprep.subr.bf16.mxu0 0
    %1567 = vmatpush1.bf16.msra.mxu0 %v1555
    %1568 = vmatprep.subr.bf16.mxu0 0
    %1569 = vmatpush1.bf16.msra.mxu0 0
    %1570 = vmatprep.subr.bf16.mxu0 0
    %1571 = vmatpush1.bf16.msra.mxu0 0
    %1572 = vmatprep.subr.bf16.mxu0 0
    %1573 = vmatpush1.bf16.msra.mxu0 0
    %1574 = vmatprep.subr.bf16.mxu0 0
    %1575 = vmatpush1.bf16.msra.mxu0 0
    %1576 = vmatprep.subr.bf16.mxu0 0
    %1577 = vmatpush1.bf16.msra.mxu0 0
    %1578 = vmatprep.subr.bf16.mxu0 0
    %1579 = vmatpush1.bf16.msra.mxu0 0
    %1580 = vmatprep.subr.bf16.mxu0 0
    %1581 = vmatpush1.bf16.msra.mxu0 0
    %1582 = vmatprep.subr.bf16.mxu0 0
    %1583 = vmatpush1.bf16.msra.mxu0 0
    %1584 = vmatprep.subr.bf16.mxu0 0
    %1585 = vmatpush1.bf16.msra.mxu0 0
    %1586 = vmatprep.subr.bf16.mxu0 0
    %1587 = vmatpush1.bf16.msra.mxu0 0
    %1588 = vmatprep.subr.bf16.mxu0 0
    %1589 = vmatpush1.bf16.msra.mxu0 0
    %1590 = vmatprep.subr.bf16.mxu0 0
    %1591 = vmatpush1.bf16.msra.mxu0 0
    %1592 = vmatprep.subr.bf16.mxu0 0
    %1593 = vmatpush1.bf16.msra.mxu0 0
    %1594 = vmatprep.subr.bf16.mxu0 0
    %1595 = vmatpush1.bf16.msra.mxu0 0
    %1596 = vmatprep.mubr.bf16.mxu0 0
    %1597 = vmatmul.mubr.bf16.gmra.mrb[0].mxu0 %v1559
    %v1598 = vpop.f32.mrb[0].mxu0
    %v1599 = vadd.f32 %v1532, %v1598
    %v1600 = vpop.f32.mrb[0].mxu0
    %v1601 = vpop.f32.mrb[0].mxu0
    %v1602 = vadd.f32 %v1535, %v1601
    %v1603 = vpop.f32.mrb[0].mxu0
    %1604 = vmatprep.mubr.bf16.mxu0 0
    %1605 = vmatmul.mubr.bf16.gmra.mrb[0].mxu0 %v1562
    %v1606 = vpop.f32.mrb[0].mxu0
    %v1607 = vadd.f32 %v1540, %v1606
    %v1608 = vpop.f32.mrb[0].mxu0
    %v1609 = vpop.f32.mrb[0].mxu0
    %v1610 = vadd.f32 %v1543, %v1609
    %v1611 = vpop.f32.mrb[0].mxu0
    %1612 = vdwg.mxu0
    %s1613 = scalar_lea.vmem %s5, 3
    %v1614 = vld [vmem:[%s1613] sm:$0x1]
    %v1616 = vlaneseq
    %v1617 = vshrl.u32 %v1616, 7
    %v1618 = vsub.s32 0, %v1617
    %v1619 = vrot.slane %v1614, %v1618
    %v1621 = vadd.f32 %v1599, %v1619
    %v1622 = vadd.f32 %v1602, %v1619
    %v1623 = vadd.f32 %v1607, %v1619
    %v1624 = vadd.f32 %v1610, %v1619
    %v1625 = vadd.f32 %v1351, %v1455
    %v1626 = vadd.f32 %v1352, %v1458
    %v1627 = vadd.f32 %v1353, %v1463
    %v1628 = vadd.f32 %v1354, %v1466
    %v1629 = vtanh.pop %v1621
    %v1630 = vtanh.pop %v1622
    %v1631 = vtanh.pop %v1623
    %v1632 = vtanh.pop %v1624
    %v1633 = vmul.f32 %v1629, 0.5
    %v1634 = vmul.f32 %v1630, 0.5
    %v1635 = vmul.f32 %v1631, 0.5
    %v1636 = vmul.f32 %v1632, 0.5
    %v1637 = vadd.f32 %v1633, 0.5
    %v1638 = vadd.f32 %v1634, 0.5
    %v1639 = vadd.f32 %v1635, 0.5
    %v1640 = vadd.f32 %v1636, 0.5
    %1645 = vrot.lane.b32.xlu0 %v1637, 96
    %v1646 = vpop.permute.xlu0 %1645
    %1647 = vrot.lane.b32.xlu0 %v1638, 96
    %v1648 = vpop.permute.xlu0 %1647
    %1649 = vrot.lane.b32.xlu0 %v1639, 96
    %v1650 = vpop.permute.xlu0 %1649
    %1651 = vrot.lane.b32.xlu0 %v1640, 96
    %v1652 = vpop.permute.xlu0 %1651
    %v1657 = vmul.f32 %v1629, %v1646
    %v1658 = vmul.f32 %v1630, %v1648
    %v1659 = vmul.f32 %v1631, %v1650
    %v1660 = vmul.f32 %v1632, %v1652
    %v1661 = vpack.c.bf16 %v1658, %v1657
    %v1662 = vpack.c.bf16 %v1660, %v1659
    %s1663 = scalar_lea.vmem %s7, 64
    %v1664 = vld [vmem:[%s1663] sm:$0xf]
    %v1665 = vld [vmem:[%s1663 + $0x4] sm:$0xf]
    %v1666 = vld [vmem:[%s1663 + $0x8] sm:$0xf]
    %v1667 = vld [vmem:[%s1663 + $0xc] sm:$0xf]
    %s1668 = scalar_lea.vmem %s8, 4
    %v1669 = vld [vmem:[%s1668] sm:$0x1]
    %v1671 = vlaneseq
    %v1672 = vshrl.u32 %v1671, 7
    %v1673 = vsub.s32 0, %v1672
    %v1674 = vrot.slane %v1669, %v1673
    %v1680 = vunpack.c.l.b16 %v1664
    %v1681 = vunpack.c.l.b16 %v1665
    %v1682 = vunpack.c.l.b16 %v1666
    %v1683 = vunpack.c.l.b16 %v1667
    %v1684 = vpack.c.b16 %v1681, %v1680
    %v1685 = vpack.c.b16 %v1683, %v1682
    %v1689 = vsel %vm91, %v1661, 0
    %v1692 = vsel %vm91, %v1662, 0
    %1694 = vmatprep.subr.bf16.mxu0 0
    %1695 = vmatpush1.bf16.msra.mxu0 %v1684
    %1696 = vmatprep.subr.bf16.mxu0 0
    %1697 = vmatpush1.bf16.msra.mxu0 %v1685
    %1698 = vmatprep.subr.bf16.mxu0 0
    %1699 = vmatpush1.bf16.msra.mxu0 0
    %1700 = vmatprep.subr.bf16.mxu0 0
    %1701 = vmatpush1.bf16.msra.mxu0 0
    %1702 = vmatprep.subr.bf16.mxu0 0
    %1703 = vmatpush1.bf16.msra.mxu0 0
    %1704 = vmatprep.subr.bf16.mxu0 0
    %1705 = vmatpush1.bf16.msra.mxu0 0
    %1706 = vmatprep.subr.bf16.mxu0 0
    %1707 = vmatpush1.bf16.msra.mxu0 0
    %1708 = vmatprep.subr.bf16.mxu0 0
    %1709 = vmatpush1.bf16.msra.mxu0 0
    %1710 = vmatprep.subr.bf16.mxu0 0
    %1711 = vmatpush1.bf16.msra.mxu0 0
    %1712 = vmatprep.subr.bf16.mxu0 0
    %1713 = vmatpush1.bf16.msra.mxu0 0
    %1714 = vmatprep.subr.bf16.mxu0 0
    %1715 = vmatpush1.bf16.msra.mxu0 0
    %1716 = vmatprep.subr.bf16.mxu0 0
    %1717 = vmatpush1.bf16.msra.mxu0 0
    %1718 = vmatprep.subr.bf16.mxu0 0
    %1719 = vmatpush1.bf16.msra.mxu0 0
    %1720 = vmatprep.subr.bf16.mxu0 0
    %1721 = vmatpush1.bf16.msra.mxu0 0
    %1722 = vmatprep.subr.bf16.mxu0 0
    %1723 = vmatpush1.bf16.msra.mxu0 0
    %1724 = vmatprep.subr.bf16.mxu0 0
    %1725 = vmatpush1.bf16.msra.mxu0 0
    %1726 = vmatprep.mubr.bf16.mxu0 0
    %1727 = vmatmul.mubr.bf16.gmra.mrb[0].mxu0 %v1689
    %v1728 = vpop.f32.mrb[0].mxu0
    %v1729 = vadd.f32 %v1674, %v1728
    %v1730 = vpop.f32.mrb[0].mxu0
    %v1731 = vpop.f32.mrb[0].mxu0
    %v1732 = vadd.f32 %v1674, %v1731
    %v1733 = vpop.f32.mrb[0].mxu0
    %1734 = vmatprep.mubr.bf16.mxu0 0
    %1735 = vmatmul.mubr.bf16.gmra.mrb[0].mxu0 %v1692
    %v1736 = vpop.f32.mrb[0].mxu0
    %v1737 = vadd.f32 %v1674, %v1736
    %v1738 = vpop.f32.mrb[0].mxu0
    %v1739 = vpop.f32.mrb[0].mxu0
    %v1740 = vadd.f32 %v1674, %v1739
    %v1741 = vpop.f32.mrb[0].mxu0
    %1742 = vdwg.mxu0
    %v1743 = vadd.f32 %v1469, %v1729
    %v1744 = vadd.f32 %v1470, %v1732
    %v1745 = vadd.f32 %v1471, %v1737
    %v1746 = vadd.f32 %v1472, %v1740
    %v1747 = vpack.c.bf16 %v1626, %v1625
    %v1748 = vpack.c.bf16 %v1628, %v1627
    %s1749 = scalar_lea.vmem %s2, 160
    %v1750 = vld [vmem:[%s1749 + $0x10] sm:$0xf]
    %v1751 = vld [vmem:[%s1749 + $0x14] sm:$0xf]
    %v1752 = vld [vmem:[%s1749 + $0x18] sm:$0xf]
    %v1753 = vld [vmem:[%s1749 + $0x1c] sm:$0xf]
    %s1754 = scalar_lea.vmem %s4, 128
    %v1755 = vld [vmem:[%s1754 + $0x10] sm:$0xf]
    %v1756 = vld [vmem:[%s1754 + $0x14] sm:$0xf]
    %v1757 = vld [vmem:[%s1754 + $0x18] sm:$0xf]
    %v1758 = vld [vmem:[%s1754 + $0x1c] sm:$0xf]
    %v1763 = vunpack.c.l.b16 %v1755
    %v1764 = vunpack.c.l.b16 %v1756
    %v1765 = vunpack.c.l.b16 %v1757
    %v1766 = vunpack.c.l.b16 %v1758
    %v1767 = vpack.c.b16 %v1764, %v1763
    %v1768 = vpack.c.b16 %v1766, %v1765
    %1771 = vmatprep.subr.bf16.mxu0 0
    %1772 = vmatpush1.bf16.msra.mxu0 %v1767
    %1773 = vmatprep.subr.bf16.mxu0 0
    %1774 = vmatpush1.bf16.msra.mxu0 %v1768
    %1775 = vmatprep.subr.bf16.mxu0 0
    %1776 = vmatpush1.bf16.msra.mxu0 0
    %1777 = vmatprep.subr.bf16.mxu0 0
    %1778 = vmatpush1.bf16.msra.mxu0 0
    %1779 = vmatprep.subr.bf16.mxu0 0
    %1780 = vmatpush1.bf16.msra.mxu0 0
    %1781 = vmatprep.subr.bf16.mxu0 0
    %1782 = vmatpush1.bf16.msra.mxu0 0
    %1783 = vmatprep.subr.bf16.mxu0 0
    %1784 = vmatpush1.bf16.msra.mxu0 0
    %1785 = vmatprep.subr.bf16.mxu0 0
    %1786 = vmatpush1.bf16.msra.mxu0 0
    %1787 = vmatprep.subr.bf16.mxu0 0
    %1788 = vmatpush1.bf16.msra.mxu0 0
    %1789 = vmatprep.subr.bf16.mxu0 0
    %1790 = vmatpush1.bf16.msra.mxu0 0
    %1791 = vmatprep.subr.bf16.mxu0 0
    %1792 = vmatpush1.bf16.msra.mxu0 0
    %1793 = vmatprep.subr.bf16.mxu0 0
    %1794 = vmatpush1.bf16.msra.mxu0 0
    %1795 = vmatprep.subr.bf16.mxu0 0
    %1796 = vmatpush1.bf16.msra.mxu0 0
    %1797 = vmatprep.subr.bf16.mxu0 0
    %1798 = vmatpush1.bf16.msra.mxu0 0
    %1799 = vmatprep.subr.bf16.mxu0 0
    %1800 = vmatpush1.bf16.msra.mxu0 0
    %1801 = vmatprep.subr.bf16.mxu0 0
    %1802 = vmatpush1.bf16.msra.mxu0 0
    %1803 = vmatprep.mubr.bf16.mxu0 0
    %1804 = vmatmul.mubr.bf16.gmra.mrb[0].mxu0 %v1689
    %v1805 = vpop.f32.mrb[0].mxu0
    %v1806 = vadd.f32 0.0, %v1805
    %v1807 = vpop.f32.mrb[0].mxu0
    %v1808 = vpop.f32.mrb[0].mxu0
    %v1809 = vadd.f32 0.0, %v1808
    %v1810 = vpop.f32.mrb[0].mxu0
    %1811 = vmatprep.mubr.bf16.mxu0 0
    %1812 = vmatmul.mubr.bf16.gmra.mrb[0].mxu0 %v1692
    %v1813 = vpop.f32.mrb[0].mxu0
    %v1814 = vadd.f32 0.0, %v1813
    %v1815 = vpop.f32.mrb[0].mxu0
    %v1816 = vpop.f32.mrb[0].mxu0
    %v1817 = vadd.f32 0.0, %v1816
    %v1818 = vpop.f32.mrb[0].mxu0
    %1819 = vdwg.mxu0
    %v1824 = vunpack.c.l.b16 %v1750
    %v1825 = vunpack.c.l.b16 %v1751
    %v1826 = vunpack.c.l.b16 %v1752
    %v1827 = vunpack.c.l.b16 %v1753
    %v1828 = vpack.c.b16 %v1825, %v1824
    %v1829 = vpack.c.b16 %v1827, %v1826
    %v1833 = vsel %vm91, %v1747, 0
    %v1836 = vsel %vm91, %v1748, 0
    %1838 = vmatprep.subr.bf16.mxu0 0
    %1839 = vmatpush1.bf16.msra.mxu0 %v1828
    %1840 = vmatprep.subr.bf16.mxu0 0
    %1841 = vmatpush1.bf16.msra.mxu0 %v1829
    %1842 = vmatprep.subr.bf16.mxu0 0
    %1843 = vmatpush1.bf16.msra.mxu0 0
    %1844 = vmatprep.subr.bf16.mxu0 0
    %1845 = vmatpush1.bf16.msra.mxu0 0
    %1846 = vmatprep.subr.bf16.mxu0 0
    %1847 = vmatpush1.bf16.msra.mxu0 0
    %1848 = vmatprep.subr.bf16.mxu0 0
    %1849 = vmatpush1.bf16.msra.mxu0 0
    %1850 = vmatprep.subr.bf16.mxu0 0
    %1851 = vmatpush1.bf16.msra.mxu0 0
    %1852 = vmatprep.subr.bf16.mxu0 0
    %1853 = vmatpush1.bf16.msra.mxu0 0
    %1854 = vmatprep.subr.bf16.mxu0 0
    %1855 = vmatpush1.bf16.msra.mxu0 0
    %1856 = vmatprep.subr.bf16.mxu0 0
    %1857 = vmatpush1.bf16.msra.mxu0 0
    %1858 = vmatprep.subr.bf16.mxu0 0
    %1859 = vmatpush1.bf16.msra.mxu0 0
    %1860 = vmatprep.subr.bf16.mxu0 0
    %1861 = vmatpush1.bf16.msra.mxu0 0
    %1862 = vmatprep.subr.bf16.mxu0 0
    %1863 = vmatpush1.bf16.msra.mxu0 0
    %1864 = vmatprep.subr.bf16.mxu0 0
    %1865 = vmatpush1.bf16.msra.mxu0 0
    %1866 = vmatprep.subr.bf16.mxu0 0
    %1867 = vmatpush1.bf16.msra.mxu0 0
    %1868 = vmatprep.subr.bf16.mxu0 0
    %1869 = vmatpush1.bf16.msra.mxu0 0
    %1870 = vmatprep.mubr.bf16.mxu0 0
    %1871 = vmatmul.mubr.bf16.gmra.mrb[0].mxu0 %v1833
    %v1872 = vpop.f32.mrb[0].mxu0
    %v1873 = vadd.f32 %v1806, %v1872
    %v1874 = vpop.f32.mrb[0].mxu0
    %v1875 = vpop.f32.mrb[0].mxu0
    %v1876 = vadd.f32 %v1809, %v1875
    %v1877 = vpop.f32.mrb[0].mxu0
    %1878 = vmatprep.mubr.bf16.mxu0 0
    %1879 = vmatmul.mubr.bf16.gmra.mrb[0].mxu0 %v1836
    %v1880 = vpop.f32.mrb[0].mxu0
    %v1881 = vadd.f32 %v1814, %v1880
    %v1882 = vpop.f32.mrb[0].mxu0
    %v1883 = vpop.f32.mrb[0].mxu0
    %v1884 = vadd.f32 %v1817, %v1883
    %v1885 = vpop.f32.mrb[0].mxu0
    %1886 = vdwg.mxu0
    %s1887 = scalar_lea.vmem %s5, 4
    %v1888 = vld [vmem:[%s1887] sm:$0x1]
    %v1890 = vlaneseq
    %v1891 = vshrl.u32 %v1890, 7
    %v1892 = vsub.s32 0, %v1891
    %v1893 = vrot.slane %v1888, %v1892
    %v1895 = vadd.f32 %v1873, %v1893
    %v1896 = vadd.f32 %v1876, %v1893
    %v1897 = vadd.f32 %v1881, %v1893
    %v1898 = vadd.f32 %v1884, %v1893
    %v1899 = vadd.f32 %v1625, %v1729
    %v1900 = vadd.f32 %v1626, %v1732
    %v1901 = vadd.f32 %v1627, %v1737
    %v1902 = vadd.f32 %v1628, %v1740
    %v1903 = vtanh.pop %v1895
    %v1904 = vtanh.pop %v1896
    %v1905 = vtanh.pop %v1897
    %v1906 = vtanh.pop %v1898
    %v1907 = vmul.f32 %v1903, 0.5
    %v1908 = vmul.f32 %v1904, 0.5
    %v1909 = vmul.f32 %v1905, 0.5
    %v1910 = vmul.f32 %v1906, 0.5
    %v1911 = vadd.f32 %v1907, 0.5
    %v1912 = vadd.f32 %v1908, 0.5
    %v1913 = vadd.f32 %v1909, 0.5
    %v1914 = vadd.f32 %v1910, 0.5
    %1919 = vrot.lane.b32.xlu0 %v1911, 96
    %v1920 = vpop.permute.xlu0 %1919
    %1921 = vrot.lane.b32.xlu0 %v1912, 96
    %v1922 = vpop.permute.xlu0 %1921
    %1923 = vrot.lane.b32.xlu0 %v1913, 96
    %v1924 = vpop.permute.xlu0 %1923
    %1925 = vrot.lane.b32.xlu0 %v1914, 96
    %v1926 = vpop.permute.xlu0 %1925
    %v1931 = vmul.f32 %v1903, %v1920
    %v1932 = vmul.f32 %v1904, %v1922
    %v1933 = vmul.f32 %v1905, %v1924
    %v1934 = vmul.f32 %v1906, %v1926
    %v1935 = vpack.c.bf16 %v1932, %v1931
    %v1936 = vpack.c.bf16 %v1934, %v1933
    %s1937 = scalar_lea.vmem %s7, 80
    %v1938 = vld [vmem:[%s1937] sm:$0xf]
    %v1939 = vld [vmem:[%s1937 + $0x4] sm:$0xf]
    %v1940 = vld [vmem:[%s1937 + $0x8] sm:$0xf]
    %v1941 = vld [vmem:[%s1937 + $0xc] sm:$0xf]
    %s1942 = scalar_lea.vmem %s8, 5
    %v1943 = vld [vmem:[%s1942] sm:$0x1]
    %v1945 = vlaneseq
    %v1946 = vshrl.u32 %v1945, 7
    %v1947 = vsub.s32 0, %v1946
    %v1948 = vrot.slane %v1943, %v1947
    %v1954 = vunpack.c.l.b16 %v1938
    %v1955 = vunpack.c.l.b16 %v1939
    %v1956 = vunpack.c.l.b16 %v1940
    %v1957 = vunpack.c.l.b16 %v1941
    %v1958 = vpack.c.b16 %v1955, %v1954
    %v1959 = vpack.c.b16 %v1957, %v1956
    %v1963 = vsel %vm91, %v1935, 0
    %v1966 = vsel %vm91, %v1936, 0
    %1968 = vmatprep.subr.bf16.mxu0 0
    %1969 = vmatpush1.bf16.msra.mxu0 %v1958
    %1970 = vmatprep.subr.bf16.mxu0 0
    %1971 = vmatpush1.bf16.msra.mxu0 %v1959
    %1972 = vmatprep.subr.bf16.mxu0 0
    %1973 = vmatpush1.bf16.msra.mxu0 0
    %1974 = vmatprep.subr.bf16.mxu0 0
    %1975 = vmatpush1.bf16.msra.mxu0 0
    %1976 = vmatprep.subr.bf16.mxu0 0
    %1977 = vmatpush1.bf16.msra.mxu0 0
    %1978 = vmatprep.subr.bf16.mxu0 0
    %1979 = vmatpush1.bf16.msra.mxu0 0
    %1980 = vmatprep.subr.bf16.mxu0 0
    %1981 = vmatpush1.bf16.msra.mxu0 0
    %1982 = vmatprep.subr.bf16.mxu0 0
    %1983 = vmatpush1.bf16.msra.mxu0 0
    %1984 = vmatprep.subr.bf16.mxu0 0
    %1985 = vmatpush1.bf16.msra.mxu0 0
    %1986 = vmatprep.subr.bf16.mxu0 0
    %1987 = vmatpush1.bf16.msra.mxu0 0
    %1988 = vmatprep.subr.bf16.mxu0 0
    %1989 = vmatpush1.bf16.msra.mxu0 0
    %1990 = vmatprep.subr.bf16.mxu0 0
    %1991 = vmatpush1.bf16.msra.mxu0 0
    %1992 = vmatprep.subr.bf16.mxu0 0
    %1993 = vmatpush1.bf16.msra.mxu0 0
    %1994 = vmatprep.subr.bf16.mxu0 0
    %1995 = vmatpush1.bf16.msra.mxu0 0
    %1996 = vmatprep.subr.bf16.mxu0 0
    %1997 = vmatpush1.bf16.msra.mxu0 0
    %1998 = vmatprep.subr.bf16.mxu0 0
    %1999 = vmatpush1.bf16.msra.mxu0 0
    %2000 = vmatprep.mubr.bf16.mxu0 0
    %2001 = vmatmul.mubr.bf16.gmra.mrb[0].mxu0 %v1963
    %v2002 = vpop.f32.mrb[0].mxu0
    %v2003 = vadd.f32 %v1948, %v2002
    %v2004 = vpop.f32.mrb[0].mxu0
    %v2005 = vpop.f32.mrb[0].mxu0
    %v2006 = vadd.f32 %v1948, %v2005
    %v2007 = vpop.f32.mrb[0].mxu0
    %2008 = vmatprep.mubr.bf16.mxu0 0
    %2009 = vmatmul.mubr.bf16.gmra.mrb[0].mxu0 %v1966
    %v2010 = vpop.f32.mrb[0].mxu0
    %v2011 = vadd.f32 %v1948, %v2010
    %v2012 = vpop.f32.mrb[0].mxu0
    %v2013 = vpop.f32.mrb[0].mxu0
    %v2014 = vadd.f32 %v1948, %v2013
    %v2015 = vpop.f32.mrb[0].mxu0
    %2016 = vdwg.mxu0
    %v2017 = vadd.f32 %v1743, %v2003
    %v2018 = vadd.f32 %v1744, %v2006
    %v2019 = vadd.f32 %v1745, %v2011
    %v2020 = vadd.f32 %v1746, %v2014
    %v2021 = vpack.c.bf16 %v1900, %v1899
    %v2022 = vpack.c.bf16 %v1902, %v1901
    %s2023 = scalar_lea.vmem %s2, 192
    %v2024 = vld [vmem:[%s2023 + $0x10] sm:$0xf]
    %v2025 = vld [vmem:[%s2023 + $0x14] sm:$0xf]
    %v2026 = vld [vmem:[%s2023 + $0x18] sm:$0xf]
    %v2027 = vld [vmem:[%s2023 + $0x1c] sm:$0xf]
    %s2028 = scalar_lea.vmem %s4, 160
    %v2029 = vld [vmem:[%s2028 + $0x10] sm:$0xf]
    %v2030 = vld [vmem:[%s2028 + $0x14] sm:$0xf]
    %v2031 = vld [vmem:[%s2028 + $0x18] sm:$0xf]
    %v2032 = vld [vmem:[%s2028 + $0x1c] sm:$0xf]
    %v2037 = vunpack.c.l.b16 %v2029
    %v2038 = vunpack.c.l.b16 %v2030
    %v2039 = vunpack.c.l.b16 %v2031
    %v2040 = vunpack.c.l.b16 %v2032
    %v2041 = vpack.c.b16 %v2038, %v2037
    %v2042 = vpack.c.b16 %v2040, %v2039
    %2045 = vmatprep.subr.bf16.mxu0 0
    %2046 = vmatpush1.bf16.msra.mxu0 %v2041
    %2047 = vmatprep.subr.bf16.mxu0 0
    %2048 = vmatpush1.bf16.msra.mxu0 %v2042
    %2049 = vmatprep.subr.bf16.mxu0 0
    %2050 = vmatpush1.bf16.msra.mxu0 0
    %2051 = vmatprep.subr.bf16.mxu0 0
    %2052 = vmatpush1.bf16.msra.mxu0 0
    %2053 = vmatprep.subr.bf16.mxu0 0
    %2054 = vmatpush1.bf16.msra.mxu0 0
    %2055 = vmatprep.subr.bf16.mxu0 0
    %2056 = vmatpush1.bf16.msra.mxu0 0
    %2057 = vmatprep.subr.bf16.mxu0 0
    %2058 = vmatpush1.bf16.msra.mxu0 0
    %2059 = vmatprep.subr.bf16.mxu0 0
    %2060 = vmatpush1.bf16.msra.mxu0 0
    %2061 = vmatprep.subr.bf16.mxu0 0
    %2062 = vmatpush1.bf16.msra.mxu0 0
    %2063 = vmatprep.subr.bf16.mxu0 0
    %2064 = vmatpush1.bf16.msra.mxu0 0
    %2065 = vmatprep.subr.bf16.mxu0 0
    %2066 = vmatpush1.bf16.msra.mxu0 0
    %2067 = vmatprep.subr.bf16.mxu0 0
    %2068 = vmatpush1.bf16.msra.mxu0 0
    %2069 = vmatprep.subr.bf16.mxu0 0
    %2070 = vmatpush1.bf16.msra.mxu0 0
    %2071 = vmatprep.subr.bf16.mxu0 0
    %2072 = vmatpush1.bf16.msra.mxu0 0
    %2073 = vmatprep.subr.bf16.mxu0 0
    %2074 = vmatpush1.bf16.msra.mxu0 0
    %2075 = vmatprep.subr.bf16.mxu0 0
    %2076 = vmatpush1.bf16.msra.mxu0 0
    %2077 = vmatprep.mubr.bf16.mxu0 0
    %2078 = vmatmul.mubr.bf16.gmra.mrb[0].mxu0 %v1963
    %v2079 = vpop.f32.mrb[0].mxu0
    %v2080 = vadd.f32 0.0, %v2079
    %v2081 = vpop.f32.mrb[0].mxu0
    %v2082 = vpop.f32.mrb[0].mxu0
    %v2083 = vadd.f32 0.0, %v2082
    %v2084 = vpop.f32.mrb[0].mxu0
    %2085 = vmatprep.mubr.bf16.mxu0 0
    %2086 = vmatmul.mubr.bf16.gmra.mrb[0].mxu0 %v1966
    %v2087 = vpop.f32.mrb[0].mxu0
    %v2088 = vadd.f32 0.0, %v2087
    %v2089 = vpop.f32.mrb[0].mxu0
    %v2090 = vpop.f32.mrb[0].mxu0
    %v2091 = vadd.f32 0.0, %v2090
    %v2092 = vpop.f32.mrb[0].mxu0
    %2093 = vdwg.mxu0
    %v2098 = vunpack.c.l.b16 %v2024
    %v2099 = vunpack.c.l.b16 %v2025
    %v2100 = vunpack.c.l.b16 %v2026
    %v2101 = vunpack.c.l.b16 %v2027
    %v2102 = vpack.c.b16 %v2099, %v2098
    %v2103 = vpack.c.b16 %v2101, %v2100
    %v2107 = vsel %vm91, %v2021, 0
    %v2110 = vsel %vm91, %v2022, 0
    %2112 = vmatprep.subr.bf16.mxu0 0
    %2113 = vmatpush1.bf16.msra.mxu0 %v2102
    %2114 = vmatprep.subr.bf16.mxu0 0
    %2115 = vmatpush1.bf16.msra.mxu0 %v2103
    %2116 = vmatprep.subr.bf16.mxu0 0
    %2117 = vmatpush1.bf16.msra.mxu0 0
    %2118 = vmatprep.subr.bf16.mxu0 0
    %2119 = vmatpush1.bf16.msra.mxu0 0
    %2120 = vmatprep.subr.bf16.mxu0 0
    %2121 = vmatpush1.bf16.msra.mxu0 0
    %2122 = vmatprep.subr.bf16.mxu0 0
    %2123 = vmatpush1.bf16.msra.mxu0 0
    %2124 = vmatprep.subr.bf16.mxu0 0
    %2125 = vmatpush1.bf16.msra.mxu0 0
    %2126 = vmatprep.subr.bf16.mxu0 0
    %2127 = vmatpush1.bf16.msra.mxu0 0
    %2128 = vmatprep.subr.bf16.mxu0 0
    %2129 = vmatpush1.bf16.msra.mxu0 0
    %2130 = vmatprep.subr.bf16.mxu0 0
    %2131 = vmatpush1.bf16.msra.mxu0 0
    %2132 = vmatprep.subr.bf16.mxu0 0
    %2133 = vmatpush1.bf16.msra.mxu0 0
    %2134 = vmatprep.subr.bf16.mxu0 0
    %2135 = vmatpush1.bf16.msra.mxu0 0
    %2136 = vmatprep.subr.bf16.mxu0 0
    %2137 = vmatpush1.bf16.msra.mxu0 0
    %2138 = vmatprep.subr.bf16.mxu0 0
    %2139 = vmatpush1.bf16.msra.mxu0 0
    %2140 = vmatprep.subr.bf16.mxu0 0
    %2141 = vmatpush1.bf16.msra.mxu0 0
    %2142 = vmatprep.subr.bf16.mxu0 0
    %2143 = vmatpush1.bf16.msra.mxu0 0
    %2144 = vmatprep.mubr.bf16.mxu0 0
    %2145 = vmatmul.mubr.bf16.gmra.mrb[0].mxu0 %v2107
    %v2146 = vpop.f32.mrb[0].mxu0
    %v2147 = vadd.f32 %v2080, %v2146
    %v2148 = vpop.f32.mrb[0].mxu0
    %v2149 = vpop.f32.mrb[0].mxu0
    %v2150 = vadd.f32 %v2083, %v2149
    %v2151 = vpop.f32.mrb[0].mxu0
    %2152 = vmatprep.mubr.bf16.mxu0 0
    %2153 = vmatmul.mubr.bf16.gmra.mrb[0].mxu0 %v2110
    %v2154 = vpop.f32.mrb[0].mxu0
    %v2155 = vadd.f32 %v2088, %v2154
    %v2156 = vpop.f32.mrb[0].mxu0
    %v2157 = vpop.f32.mrb[0].mxu0
    %v2158 = vadd.f32 %v2091, %v2157
    %v2159 = vpop.f32.mrb[0].mxu0
    %2160 = vdwg.mxu0
    %s2161 = scalar_lea.vmem %s5, 5
    %v2162 = vld [vmem:[%s2161] sm:$0x1]
    %v2164 = vlaneseq
    %v2165 = vshrl.u32 %v2164, 7
    %v2166 = vsub.s32 0, %v2165
    %v2167 = vrot.slane %v2162, %v2166
    %v2169 = vadd.f32 %v2147, %v2167
    %v2170 = vadd.f32 %v2150, %v2167
    %v2171 = vadd.f32 %v2155, %v2167
    %v2172 = vadd.f32 %v2158, %v2167
    %v2173 = vadd.f32 %v1899, %v2003
    %v2174 = vadd.f32 %v1900, %v2006
    %v2175 = vadd.f32 %v1901, %v2011
    %v2176 = vadd.f32 %v1902, %v2014
    %v2177 = vtanh.pop %v2169
    %v2178 = vtanh.pop %v2170
    %v2179 = vtanh.pop %v2171
    %v2180 = vtanh.pop %v2172
    %v2181 = vmul.f32 %v2177, 0.5
    %v2182 = vmul.f32 %v2178, 0.5
    %v2183 = vmul.f32 %v2179, 0.5
    %v2184 = vmul.f32 %v2180, 0.5
    %v2185 = vadd.f32 %v2181, 0.5
    %v2186 = vadd.f32 %v2182, 0.5
    %v2187 = vadd.f32 %v2183, 0.5
    %v2188 = vadd.f32 %v2184, 0.5
    %2193 = vrot.lane.b32.xlu0 %v2185, 96
    %v2194 = vpop.permute.xlu0 %2193
    %2195 = vrot.lane.b32.xlu0 %v2186, 96
    %v2196 = vpop.permute.xlu0 %2195
    %2197 = vrot.lane.b32.xlu0 %v2187, 96
    %v2198 = vpop.permute.xlu0 %2197
    %2199 = vrot.lane.b32.xlu0 %v2188, 96
    %v2200 = vpop.permute.xlu0 %2199
    %v2205 = vmul.f32 %v2177, %v2194
    %v2206 = vmul.f32 %v2178, %v2196
    %v2207 = vmul.f32 %v2179, %v2198
    %v2208 = vmul.f32 %v2180, %v2200
    %v2209 = vpack.c.bf16 %v2206, %v2205
    %v2210 = vpack.c.bf16 %v2208, %v2207
    %s2211 = scalar_lea.vmem %s7, 96
    %v2212 = vld [vmem:[%s2211] sm:$0xf]
    %v2213 = vld [vmem:[%s2211 + $0x4] sm:$0xf]
    %v2214 = vld [vmem:[%s2211 + $0x8] sm:$0xf]
    %v2215 = vld [vmem:[%s2211 + $0xc] sm:$0xf]
    %s2216 = scalar_lea.vmem %s8, 6
    %v2217 = vld [vmem:[%s2216] sm:$0x1]
    %v2219 = vlaneseq
    %v2220 = vshrl.u32 %v2219, 7
    %v2221 = vsub.s32 0, %v2220
    %v2222 = vrot.slane %v2217, %v2221
    %v2228 = vunpack.c.l.b16 %v2212
    %v2229 = vunpack.c.l.b16 %v2213
    %v2230 = vunpack.c.l.b16 %v2214
    %v2231 = vunpack.c.l.b16 %v2215
    %v2232 = vpack.c.b16 %v2229, %v2228
    %v2233 = vpack.c.b16 %v2231, %v2230
    %v2237 = vsel %vm91, %v2209, 0
    %v2240 = vsel %vm91, %v2210, 0
    %2242 = vmatprep.subr.bf16.mxu0 0
    %2243 = vmatpush1.bf16.msra.mxu0 %v2232
    %2244 = vmatprep.subr.bf16.mxu0 0
    %2245 = vmatpush1.bf16.msra.mxu0 %v2233
    %2246 = vmatprep.subr.bf16.mxu0 0
    %2247 = vmatpush1.bf16.msra.mxu0 0
    %2248 = vmatprep.subr.bf16.mxu0 0
    %2249 = vmatpush1.bf16.msra.mxu0 0
    %2250 = vmatprep.subr.bf16.mxu0 0
    %2251 = vmatpush1.bf16.msra.mxu0 0
    %2252 = vmatprep.subr.bf16.mxu0 0
    %2253 = vmatpush1.bf16.msra.mxu0 0
    %2254 = vmatprep.subr.bf16.mxu0 0
    %2255 = vmatpush1.bf16.msra.mxu0 0
    %2256 = vmatprep.subr.bf16.mxu0 0
    %2257 = vmatpush1.bf16.msra.mxu0 0
    %2258 = vmatprep.subr.bf16.mxu0 0
    %2259 = vmatpush1.bf16.msra.mxu0 0
    %2260 = vmatprep.subr.bf16.mxu0 0
    %2261 = vmatpush1.bf16.msra.mxu0 0
    %2262 = vmatprep.subr.bf16.mxu0 0
    %2263 = vmatpush1.bf16.msra.mxu0 0
    %2264 = vmatprep.subr.bf16.mxu0 0
    %2265 = vmatpush1.bf16.msra.mxu0 0
    %2266 = vmatprep.subr.bf16.mxu0 0
    %2267 = vmatpush1.bf16.msra.mxu0 0
    %2268 = vmatprep.subr.bf16.mxu0 0
    %2269 = vmatpush1.bf16.msra.mxu0 0
    %2270 = vmatprep.subr.bf16.mxu0 0
    %2271 = vmatpush1.bf16.msra.mxu0 0
    %2272 = vmatprep.subr.bf16.mxu0 0
    %2273 = vmatpush1.bf16.msra.mxu0 0
    %2274 = vmatprep.mubr.bf16.mxu0 0
    %2275 = vmatmul.mubr.bf16.gmra.mrb[0].mxu0 %v2237
    %v2276 = vpop.f32.mrb[0].mxu0
    %v2277 = vadd.f32 %v2222, %v2276
    %v2278 = vpop.f32.mrb[0].mxu0
    %v2279 = vpop.f32.mrb[0].mxu0
    %v2280 = vadd.f32 %v2222, %v2279
    %v2281 = vpop.f32.mrb[0].mxu0
    %2282 = vmatprep.mubr.bf16.mxu0 0
    %2283 = vmatmul.mubr.bf16.gmra.mrb[0].mxu0 %v2240
    %v2284 = vpop.f32.mrb[0].mxu0
    %v2285 = vadd.f32 %v2222, %v2284
    %v2286 = vpop.f32.mrb[0].mxu0
    %v2287 = vpop.f32.mrb[0].mxu0
    %v2288 = vadd.f32 %v2222, %v2287
    %v2289 = vpop.f32.mrb[0].mxu0
    %2290 = vdwg.mxu0
    %v2291 = vadd.f32 %v2017, %v2277
    %v2292 = vadd.f32 %v2018, %v2280
    %v2293 = vadd.f32 %v2019, %v2285
    %v2294 = vadd.f32 %v2020, %v2288
    %v2295 = vpack.c.bf16 %v2174, %v2173
    %v2296 = vpack.c.bf16 %v2176, %v2175
    %s2297 = scalar_lea.vmem %s2, 224
    %v2298 = vld [vmem:[%s2297 + $0x10] sm:$0xf]
    %v2299 = vld [vmem:[%s2297 + $0x14] sm:$0xf]
    %v2300 = vld [vmem:[%s2297 + $0x18] sm:$0xf]
    %v2301 = vld [vmem:[%s2297 + $0x1c] sm:$0xf]
    %s2302 = scalar_lea.vmem %s4, 192
    %v2303 = vld [vmem:[%s2302 + $0x10] sm:$0xf]
    %v2304 = vld [vmem:[%s2302 + $0x14] sm:$0xf]
    %v2305 = vld [vmem:[%s2302 + $0x18] sm:$0xf]
    %v2306 = vld [vmem:[%s2302 + $0x1c] sm:$0xf]
    %v2311 = vunpack.c.l.b16 %v2303
    %v2312 = vunpack.c.l.b16 %v2304
    %v2313 = vunpack.c.l.b16 %v2305
    %v2314 = vunpack.c.l.b16 %v2306
    %v2315 = vpack.c.b16 %v2312, %v2311
    %v2316 = vpack.c.b16 %v2314, %v2313
    %2319 = vmatprep.subr.bf16.mxu0 0
    %2320 = vmatpush1.bf16.msra.mxu0 %v2315
    %2321 = vmatprep.subr.bf16.mxu0 0
    %2322 = vmatpush1.bf16.msra.mxu0 %v2316
    %2323 = vmatprep.subr.bf16.mxu0 0
    %2324 = vmatpush1.bf16.msra.mxu0 0
    %2325 = vmatprep.subr.bf16.mxu0 0
    %2326 = vmatpush1.bf16.msra.mxu0 0
    %2327 = vmatprep.subr.bf16.mxu0 0
    %2328 = vmatpush1.bf16.msra.mxu0 0
    %2329 = vmatprep.subr.bf16.mxu0 0
    %2330 = vmatpush1.bf16.msra.mxu0 0
    %2331 = vmatprep.subr.bf16.mxu0 0
    %2332 = vmatpush1.bf16.msra.mxu0 0
    %2333 = vmatprep.subr.bf16.mxu0 0
    %2334 = vmatpush1.bf16.msra.mxu0 0
    %2335 = vmatprep.subr.bf16.mxu0 0
    %2336 = vmatpush1.bf16.msra.mxu0 0
    %2337 = vmatprep.subr.bf16.mxu0 0
    %2338 = vmatpush1.bf16.msra.mxu0 0
    %2339 = vmatprep.subr.bf16.mxu0 0
    %2340 = vmatpush1.bf16.msra.mxu0 0
    %2341 = vmatprep.subr.bf16.mxu0 0
    %2342 = vmatpush1.bf16.msra.mxu0 0
    %2343 = vmatprep.subr.bf16.mxu0 0
    %2344 = vmatpush1.bf16.msra.mxu0 0
    %2345 = vmatprep.subr.bf16.mxu0 0
    %2346 = vmatpush1.bf16.msra.mxu0 0
    %2347 = vmatprep.subr.bf16.mxu0 0
    %2348 = vmatpush1.bf16.msra.mxu0 0
    %2349 = vmatprep.subr.bf16.mxu0 0
    %2350 = vmatpush1.bf16.msra.mxu0 0
    %2351 = vmatprep.mubr.bf16.mxu0 0
    %2352 = vmatmul.mubr.bf16.gmra.mrb[0].mxu0 %v2237
    %v2353 = vpop.f32.mrb[0].mxu0
    %v2354 = vadd.f32 0.0, %v2353
    %v2355 = vpop.f32.mrb[0].mxu0
    %v2356 = vpop.f32.mrb[0].mxu0
    %v2357 = vadd.f32 0.0, %v2356
    %v2358 = vpop.f32.mrb[0].mxu0
    %2359 = vmatprep.mubr.bf16.mxu0 0
    %2360 = vmatmul.mubr.bf16.gmra.mrb[0].mxu0 %v2240
    %v2361 = vpop.f32.mrb[0].mxu0
    %v2362 = vadd.f32 0.0, %v2361
    %v2363 = vpop.f32.mrb[0].mxu0
    %v2364 = vpop.f32.mrb[0].mxu0
    %v2365 = vadd.f32 0.0, %v2364
    %v2366 = vpop.f32.mrb[0].mxu0
    %2367 = vdwg.mxu0
    %v2372 = vunpack.c.l.b16 %v2298
    %v2373 = vunpack.c.l.b16 %v2299
    %v2374 = vunpack.c.l.b16 %v2300
    %v2375 = vunpack.c.l.b16 %v2301
    %v2376 = vpack.c.b16 %v2373, %v2372
    %v2377 = vpack.c.b16 %v2375, %v2374
    %v2381 = vsel %vm91, %v2295, 0
    %v2384 = vsel %vm91, %v2296, 0
    %2386 = vmatprep.subr.bf16.mxu0 0
    %2387 = vmatpush1.bf16.msra.mxu0 %v2376
    %2388 = vmatprep.subr.bf16.mxu0 0
    %2389 = vmatpush1.bf16.msra.mxu0 %v2377
    %2390 = vmatprep.subr.bf16.mxu0 0
    %2391 = vmatpush1.bf16.msra.mxu0 0
    %2392 = vmatprep.subr.bf16.mxu0 0
    %2393 = vmatpush1.bf16.msra.mxu0 0
    %2394 = vmatprep.subr.bf16.mxu0 0
    %2395 = vmatpush1.bf16.msra.mxu0 0
    %2396 = vmatprep.subr.bf16.mxu0 0
    %2397 = vmatpush1.bf16.msra.mxu0 0
    %2398 = vmatprep.subr.bf16.mxu0 0
    %2399 = vmatpush1.bf16.msra.mxu0 0
    %2400 = vmatprep.subr.bf16.mxu0 0
    %2401 = vmatpush1.bf16.msra.mxu0 0
    %2402 = vmatprep.subr.bf16.mxu0 0
    %2403 = vmatpush1.bf16.msra.mxu0 0
    %2404 = vmatprep.subr.bf16.mxu0 0
    %2405 = vmatpush1.bf16.msra.mxu0 0
    %2406 = vmatprep.subr.bf16.mxu0 0
    %2407 = vmatpush1.bf16.msra.mxu0 0
    %2408 = vmatprep.subr.bf16.mxu0 0
    %2409 = vmatpush1.bf16.msra.mxu0 0
    %2410 = vmatprep.subr.bf16.mxu0 0
    %2411 = vmatpush1.bf16.msra.mxu0 0
    %2412 = vmatprep.subr.bf16.mxu0 0
    %2413 = vmatpush1.bf16.msra.mxu0 0
    %2414 = vmatprep.subr.bf16.mxu0 0
    %2415 = vmatpush1.bf16.msra.mxu0 0
    %2416 = vmatprep.subr.bf16.mxu0 0
    %2417 = vmatpush1.bf16.msra.mxu0 0
    %2418 = vmatprep.mubr.bf16.mxu0 0
    %2419 = vmatmul.mubr.bf16.gmra.mrb[0].mxu0 %v2381
    %v2420 = vpop.f32.mrb[0].mxu0
    %v2421 = vadd.f32 %v2354, %v2420
    %v2422 = vpop.f32.mrb[0].mxu0
    %v2423 = vpop.f32.mrb[0].mxu0
    %v2424 = vadd.f32 %v2357, %v2423
    %v2425 = vpop.f32.mrb[0].mxu0
    %2426 = vmatprep.mubr.bf16.mxu0 0
    %2427 = vmatmul.mubr.bf16.gmra.mrb[0].mxu0 %v2384
    %v2428 = vpop.f32.mrb[0].mxu0
    %v2429 = vadd.f32 %v2362, %v2428
    %v2430 = vpop.f32.mrb[0].mxu0
    %v2431 = vpop.f32.mrb[0].mxu0
    %v2432 = vadd.f32 %v2365, %v2431
    %v2433 = vpop.f32.mrb[0].mxu0
    %2434 = vdwg.mxu0
    %s2435 = scalar_lea.vmem %s5, 6
    %v2436 = vld [vmem:[%s2435] sm:$0x1]
    %v2438 = vlaneseq
    %v2439 = vshrl.u32 %v2438, 7
    %v2440 = vsub.s32 0, %v2439
    %v2441 = vrot.slane %v2436, %v2440
    %v2443 = vadd.f32 %v2421, %v2441
    %v2444 = vadd.f32 %v2424, %v2441
    %v2445 = vadd.f32 %v2429, %v2441
    %v2446 = vadd.f32 %v2432, %v2441
    %v2447 = vadd.f32 %v2173, %v2277
    %v2448 = vadd.f32 %v2174, %v2280
    %v2449 = vadd.f32 %v2175, %v2285
    %v2450 = vadd.f32 %v2176, %v2288
    %v2451 = vtanh.pop %v2443
    %v2452 = vtanh.pop %v2444
    %v2453 = vtanh.pop %v2445
    %v2454 = vtanh.pop %v2446
    %v2455 = vmul.f32 %v2451, 0.5
    %v2456 = vmul.f32 %v2452, 0.5
    %v2457 = vmul.f32 %v2453, 0.5
    %v2458 = vmul.f32 %v2454, 0.5
    %v2459 = vadd.f32 %v2455, 0.5
    %v2460 = vadd.f32 %v2456, 0.5
    %v2461 = vadd.f32 %v2457, 0.5
    %v2462 = vadd.f32 %v2458, 0.5
    %2467 = vrot.lane.b32.xlu0 %v2459, 96
    %v2468 = vpop.permute.xlu0 %2467
    %2469 = vrot.lane.b32.xlu0 %v2460, 96
    %v2470 = vpop.permute.xlu0 %2469
    %2471 = vrot.lane.b32.xlu0 %v2461, 96
    %v2472 = vpop.permute.xlu0 %2471
    %2473 = vrot.lane.b32.xlu0 %v2462, 96
    %v2474 = vpop.permute.xlu0 %2473
    %v2479 = vmul.f32 %v2451, %v2468
    %v2480 = vmul.f32 %v2452, %v2470
    %v2481 = vmul.f32 %v2453, %v2472
    %v2482 = vmul.f32 %v2454, %v2474
    %v2483 = vpack.c.bf16 %v2480, %v2479
    %v2484 = vpack.c.bf16 %v2482, %v2481
    %s2485 = scalar_lea.vmem %s7, 112
    %v2486 = vld [vmem:[%s2485] sm:$0xf]
    %v2487 = vld [vmem:[%s2485 + $0x4] sm:$0xf]
    %v2488 = vld [vmem:[%s2485 + $0x8] sm:$0xf]
    %v2489 = vld [vmem:[%s2485 + $0xc] sm:$0xf]
    %s2490 = scalar_lea.vmem %s8, 7
    %v2491 = vld [vmem:[%s2490] sm:$0x1]
    %v2493 = vlaneseq
    %v2494 = vshrl.u32 %v2493, 7
    %v2495 = vsub.s32 0, %v2494
    %v2496 = vrot.slane %v2491, %v2495
    %v2502 = vunpack.c.l.b16 %v2486
    %v2503 = vunpack.c.l.b16 %v2487
    %v2504 = vunpack.c.l.b16 %v2488
    %v2505 = vunpack.c.l.b16 %v2489
    %v2506 = vpack.c.b16 %v2503, %v2502
    %v2507 = vpack.c.b16 %v2505, %v2504
    %v2511 = vsel %vm91, %v2483, 0
    %v2514 = vsel %vm91, %v2484, 0
    %2516 = vmatprep.subr.bf16.mxu0 0
    %2517 = vmatpush1.bf16.msra.mxu0 %v2506
    %2518 = vmatprep.subr.bf16.mxu0 0
    %2519 = vmatpush1.bf16.msra.mxu0 %v2507
    %2520 = vmatprep.subr.bf16.mxu0 0
    %2521 = vmatpush1.bf16.msra.mxu0 0
    %2522 = vmatprep.subr.bf16.mxu0 0
    %2523 = vmatpush1.bf16.msra.mxu0 0
    %2524 = vmatprep.subr.bf16.mxu0 0
    %2525 = vmatpush1.bf16.msra.mxu0 0
    %2526 = vmatprep.subr.bf16.mxu0 0
    %2527 = vmatpush1.bf16.msra.mxu0 0
    %2528 = vmatprep.subr.bf16.mxu0 0
    %2529 = vmatpush1.bf16.msra.mxu0 0
    %2530 = vmatprep.subr.bf16.mxu0 0
    %2531 = vmatpush1.bf16.msra.mxu0 0
    %2532 = vmatprep.subr.bf16.mxu0 0
    %2533 = vmatpush1.bf16.msra.mxu0 0
    %2534 = vmatprep.subr.bf16.mxu0 0
    %2535 = vmatpush1.bf16.msra.mxu0 0
    %2536 = vmatprep.subr.bf16.mxu0 0
    %2537 = vmatpush1.bf16.msra.mxu0 0
    %2538 = vmatprep.subr.bf16.mxu0 0
    %2539 = vmatpush1.bf16.msra.mxu0 0
    %2540 = vmatprep.subr.bf16.mxu0 0
    %2541 = vmatpush1.bf16.msra.mxu0 0
    %2542 = vmatprep.subr.bf16.mxu0 0
    %2543 = vmatpush1.bf16.msra.mxu0 0
    %2544 = vmatprep.subr.bf16.mxu0 0
    %2545 = vmatpush1.bf16.msra.mxu0 0
    %2546 = vmatprep.subr.bf16.mxu0 0
    %2547 = vmatpush1.bf16.msra.mxu0 0
    %2548 = vmatprep.mubr.bf16.mxu0 0
    %2549 = vmatmul.mubr.bf16.gmra.mrb[0].mxu0 %v2511
    %v2550 = vpop.f32.mrb[0].mxu0
    %v2551 = vadd.f32 %v2496, %v2550
    %v2552 = vpop.f32.mrb[0].mxu0
    %v2553 = vpop.f32.mrb[0].mxu0
    %v2554 = vadd.f32 %v2496, %v2553
    %v2555 = vpop.f32.mrb[0].mxu0
    %2556 = vmatprep.mubr.bf16.mxu0 0
    %2557 = vmatmul.mubr.bf16.gmra.mrb[0].mxu0 %v2514
    %v2558 = vpop.f32.mrb[0].mxu0
    %v2559 = vadd.f32 %v2496, %v2558
    %v2560 = vpop.f32.mrb[0].mxu0
    %v2561 = vpop.f32.mrb[0].mxu0
    %v2562 = vadd.f32 %v2496, %v2561
    %v2563 = vpop.f32.mrb[0].mxu0
    %2564 = vdwg.mxu0
    %v2565 = vadd.f32 %v2291, %v2551
    %v2566 = vadd.f32 %v2292, %v2554
    %v2567 = vadd.f32 %v2293, %v2559
    %v2568 = vadd.f32 %v2294, %v2562
    %v2569 = vrot.slane %v2447, 7
    %v2570 = vrot.slane %v2448, 7
    %v2571 = vrot.slane %v2449, 7
    %v2572 = vrot.slane %v2450, 7
    %v2573 = vsel %vm66, %v2571, %v2572
    %v2574 = vsel %vm66, %v2570, %v2571
    %v2575 = vsel %vm66, %v2569, %v2570
    %v2576 = vsel %vm66, %v2572, %v2569
    %v2577 = vmul.f32 %v56, %v2576
    %v2578 = vmul.f32 %v57, %v2575
    %v2579 = vmul.f32 %v58, %v2574
    %v2580 = vmul.f32 %v59, %v2573
    %2585 = vrot.lane.b32.xlu0 %v2447, 32
    %v2586 = vpop.permute.xlu0 %2585
    %2587 = vrot.lane.b32.xlu0 %v2448, 32
    %v2588 = vpop.permute.xlu0 %2587
    %2589 = vrot.lane.b32.xlu0 %v2449, 32
    %v2590 = vpop.permute.xlu0 %2589
    %2591 = vrot.lane.b32.xlu0 %v2450, 32
    %v2592 = vpop.permute.xlu0 %2591
    %v2597 = vsel %vm91, %v2577, %v2586
    %v2598 = vsel %vm91, %v2578, %v2588
    %v2599 = vsel %vm91, %v2579, %v2590
    %v2600 = vsel %vm91, %v2580, %v2592
    %v2601 = vpack.c.bf16 %v2598, %v2597
    %v2602 = vpack.c.bf16 %v2600, %v2599
    %v2603 = vrot.slane %v2479, 7
    %v2604 = vrot.slane %v2480, 7
    %v2605 = vrot.slane %v2481, 7
    %v2606 = vrot.slane %v2482, 7
    %v2607 = vsel %vm66, %v2605, %v2606
    %v2608 = vsel %vm66, %v2604, %v2605
    %v2609 = vsel %vm66, %v2603, %v2604
    %v2610 = vsel %vm66, %v2606, %v2603
    %v2611 = vmul.f32 %v56, %v2610
    %v2612 = vmul.f32 %v57, %v2609
    %v2613 = vmul.f32 %v58, %v2608
    %v2614 = vmul.f32 %v59, %v2607
    %2619 = vrot.lane.b32.xlu0 %v2479, 32
    %v2620 = vpop.permute.xlu0 %2619
    %2621 = vrot.lane.b32.xlu0 %v2480, 32
    %v2622 = vpop.permute.xlu0 %2621
    %2623 = vrot.lane.b32.xlu0 %v2481, 32
    %v2624 = vpop.permute.xlu0 %2623
    %2625 = vrot.lane.b32.xlu0 %v2482, 32
    %v2626 = vpop.permute.xlu0 %2625
    %v2631 = vsel %vm91, %v2611, %v2620
    %v2632 = vsel %vm91, %v2612, %v2622
    %v2633 = vsel %vm91, %v2613, %v2624
    %v2634 = vsel %vm91, %v2614, %v2626
    %v2635 = vpack.c.bf16 %v2632, %v2631
    %v2636 = vpack.c.bf16 %v2634, %v2633
    %s2637 = scalar_lea.vmem %s2, 256
    %v2638 = vld [vmem:[%s2637] sm:$0xf]
    %v2639 = vld [vmem:[%s2637 + $0x4] sm:$0xf]
    %v2640 = vld [vmem:[%s2637 + $0x8] sm:$0xf]
    %v2641 = vld [vmem:[%s2637 + $0xc] sm:$0xf]
    %v2642 = vld [vmem:[%s2637 + $0x10] sm:$0xf]
    %v2643 = vld [vmem:[%s2637 + $0x14] sm:$0xf]
    %v2644 = vld [vmem:[%s2637 + $0x18] sm:$0xf]
    %v2645 = vld [vmem:[%s2637 + $0x1c] sm:$0xf]
    %s2646 = scalar_lea.vmem %s4, 224
    %v2647 = vld [vmem:[%s2646] sm:$0xf]
    %v2648 = vld [vmem:[%s2646 + $0x4] sm:$0xf]
    %v2649 = vld [vmem:[%s2646 + $0x8] sm:$0xf]
    %v2650 = vld [vmem:[%s2646 + $0xc] sm:$0xf]
    %v2651 = vld [vmem:[%s2646 + $0x10] sm:$0xf]
    %v2652 = vld [vmem:[%s2646 + $0x14] sm:$0xf]
    %v2653 = vld [vmem:[%s2646 + $0x18] sm:$0xf]
    %v2654 = vld [vmem:[%s2646 + $0x1c] sm:$0xf]
    %v2663 = vunpack.c.l.b16 %v2647
    %v2664 = vunpack.c.l.b16 %v2648
    %v2665 = vunpack.c.l.b16 %v2649
    %v2666 = vunpack.c.l.b16 %v2650
    %v2667 = vunpack.c.l.b16 %v2651
    %v2668 = vunpack.c.l.b16 %v2652
    %v2669 = vunpack.c.l.b16 %v2653
    %v2670 = vunpack.c.l.b16 %v2654
    %v2671 = vpack.c.b16 %v2664, %v2663
    %v2672 = vpack.c.b16 %v2666, %v2665
    %v2673 = vpack.c.b16 %v2668, %v2667
    %v2674 = vpack.c.b16 %v2670, %v2669
    %v2680 = vsel %vm137, %v2635, 0
    %v2683 = vsel %vm137, %v2636, 0
    %2685 = vmatprep.subr.bf16.mxu0 0
    %2686 = vmatpush1.bf16.msra.mxu0 %v2671
    %2687 = vmatprep.subr.bf16.mxu0 0
    %2688 = vmatpush1.bf16.msra.mxu0 %v2672
    %2689 = vmatprep.subr.bf16.mxu0 0
    %2690 = vmatpush1.bf16.msra.mxu0 %v2673
    %2691 = vmatprep.subr.bf16.mxu0 0
    %2692 = vmatpush1.bf16.msra.mxu0 %v2674
    %2693 = vmatprep.subr.bf16.mxu0 0
    %2694 = vmatpush1.bf16.msra.mxu0 0
    %2695 = vmatprep.subr.bf16.mxu0 0
    %2696 = vmatpush1.bf16.msra.mxu0 0
    %2697 = vmatprep.subr.bf16.mxu0 0
    %2698 = vmatpush1.bf16.msra.mxu0 0
    %2699 = vmatprep.subr.bf16.mxu0 0
    %2700 = vmatpush1.bf16.msra.mxu0 0
    %2701 = vmatprep.subr.bf16.mxu0 0
    %2702 = vmatpush1.bf16.msra.mxu0 0
    %2703 = vmatprep.subr.bf16.mxu0 0
    %2704 = vmatpush1.bf16.msra.mxu0 0
    %2705 = vmatprep.subr.bf16.mxu0 0
    %2706 = vmatpush1.bf16.msra.mxu0 0
    %2707 = vmatprep.subr.bf16.mxu0 0
    %2708 = vmatpush1.bf16.msra.mxu0 0
    %2709 = vmatprep.subr.bf16.mxu0 0
    %2710 = vmatpush1.bf16.msra.mxu0 0
    %2711 = vmatprep.subr.bf16.mxu0 0
    %2712 = vmatpush1.bf16.msra.mxu0 0
    %2713 = vmatprep.subr.bf16.mxu0 0
    %2714 = vmatpush1.bf16.msra.mxu0 0
    %2715 = vmatprep.subr.bf16.mxu0 0
    %2716 = vmatpush1.bf16.msra.mxu0 0
    %2717 = vmatprep.mubr.bf16.mxu0 0
    %2718 = vmatmul.mubr.bf16.gmra.mrb[0].mxu0 %v2680
    %v2719 = vpop.f32.mrb[0].mxu0
    %v2720 = vadd.f32 0.0, %v2719
    %v2721 = vpop.f32.mrb[0].mxu0
    %v2722 = vpop.f32.mrb[0].mxu0
    %v2723 = vadd.f32 0.0, %v2722
    %v2724 = vpop.f32.mrb[0].mxu0
    %2725 = vmatprep.mubr.bf16.mxu0 0
    %2726 = vmatmul.mubr.bf16.gmra.mrb[0].mxu0 %v2683
    %v2727 = vpop.f32.mrb[0].mxu0
    %v2728 = vadd.f32 0.0, %v2727
    %v2729 = vpop.f32.mrb[0].mxu0
    %v2730 = vpop.f32.mrb[0].mxu0
    %v2731 = vadd.f32 0.0, %v2730
    %v2732 = vpop.f32.mrb[0].mxu0
    %2733 = vdwg.mxu0
    %v2742 = vunpack.c.l.b16 %v2638
    %v2743 = vunpack.c.l.b16 %v2639
    %v2744 = vunpack.c.l.b16 %v2640
    %v2745 = vunpack.c.l.b16 %v2641
    %v2746 = vunpack.c.l.b16 %v2642
    %v2747 = vunpack.c.l.b16 %v2643
    %v2748 = vunpack.c.l.b16 %v2644
    %v2749 = vunpack.c.l.b16 %v2645
    %v2750 = vpack.c.b16 %v2743, %v2742
    %v2751 = vpack.c.b16 %v2745, %v2744
    %v2752 = vpack.c.b16 %v2747, %v2746
    %v2753 = vpack.c.b16 %v2749, %v2748
    %v2759 = vsel %vm137, %v2601, 0
    %v2762 = vsel %vm137, %v2602, 0
    %2764 = vmatprep.subr.bf16.mxu0 0
    %2765 = vmatpush1.bf16.msra.mxu0 %v2750
    %2766 = vmatprep.subr.bf16.mxu0 0
    %2767 = vmatpush1.bf16.msra.mxu0 %v2751
    %2768 = vmatprep.subr.bf16.mxu0 0
    %2769 = vmatpush1.bf16.msra.mxu0 %v2752
    %2770 = vmatprep.subr.bf16.mxu0 0
    %2771 = vmatpush1.bf16.msra.mxu0 %v2753
    %2772 = vmatprep.subr.bf16.mxu0 0
    %2773 = vmatpush1.bf16.msra.mxu0 0
    %2774 = vmatprep.subr.bf16.mxu0 0
    %2775 = vmatpush1.bf16.msra.mxu0 0
    %2776 = vmatprep.subr.bf16.mxu0 0
    %2777 = vmatpush1.bf16.msra.mxu0 0
    %2778 = vmatprep.subr.bf16.mxu0 0
    %2779 = vmatpush1.bf16.msra.mxu0 0
    %2780 = vmatprep.subr.bf16.mxu0 0
    %2781 = vmatpush1.bf16.msra.mxu0 0
    %2782 = vmatprep.subr.bf16.mxu0 0
    %2783 = vmatpush1.bf16.msra.mxu0 0
    %2784 = vmatprep.subr.bf16.mxu0 0
    %2785 = vmatpush1.bf16.msra.mxu0 0
    %2786 = vmatprep.subr.bf16.mxu0 0
    %2787 = vmatpush1.bf16.msra.mxu0 0
    %2788 = vmatprep.subr.bf16.mxu0 0
    %2789 = vmatpush1.bf16.msra.mxu0 0
    %2790 = vmatprep.subr.bf16.mxu0 0
    %2791 = vmatpush1.bf16.msra.mxu0 0
    %2792 = vmatprep.subr.bf16.mxu0 0
    %2793 = vmatpush1.bf16.msra.mxu0 0
    %2794 = vmatprep.subr.bf16.mxu0 0
    %2795 = vmatpush1.bf16.msra.mxu0 0
    %2796 = vmatprep.mubr.bf16.mxu0 0
    %2797 = vmatmul.mubr.bf16.gmra.mrb[0].mxu0 %v2759
    %v2798 = vpop.f32.mrb[0].mxu0
    %v2799 = vadd.f32 %v2720, %v2798
    %v2800 = vpop.f32.mrb[0].mxu0
    %v2801 = vpop.f32.mrb[0].mxu0
    %v2802 = vadd.f32 %v2723, %v2801
    %v2803 = vpop.f32.mrb[0].mxu0
    %2804 = vmatprep.mubr.bf16.mxu0 0
    %2805 = vmatmul.mubr.bf16.gmra.mrb[0].mxu0 %v2762
    %v2806 = vpop.f32.mrb[0].mxu0
    %v2807 = vadd.f32 %v2728, %v2806
    %v2808 = vpop.f32.mrb[0].mxu0
    %v2809 = vpop.f32.mrb[0].mxu0
    %v2810 = vadd.f32 %v2731, %v2809
    %v2811 = vpop.f32.mrb[0].mxu0
    %2812 = vdwg.mxu0
    %s2813 = scalar_lea.vmem %s5, 7
    %v2814 = vld [vmem:[%s2813] sm:$0x1]
    %v2816 = vlaneseq
    %v2817 = vshrl.u32 %v2816, 7
    %v2818 = vsub.s32 0, %v2817
    %v2819 = vrot.slane %v2814, %v2818
    %v2821 = vadd.f32 %v2799, %v2819
    %v2822 = vadd.f32 %v2802, %v2819
    %v2823 = vadd.f32 %v2807, %v2819
    %v2824 = vadd.f32 %v2810, %v2819
    %s2825 = scalar_lea.vmem %s6, 7
    %v2826 = vld [vmem:[%s2825] sm:$0x1]
    %v2828 = vlaneseq
    %v2829 = vshrl.u32 %v2828, 7
    %v2830 = vsub.s32 0, %v2829
    %v2831 = vrot.slane %v2826, %v2830
    %v2833 = vmul.f32 %v56, %v2831
    %v2834 = vmul.f32 %v57, %v2831
    %v2835 = vmul.f32 %v58, %v2831
    %v2836 = vmul.f32 %v59, %v2831
    %v2837 = vadd.f32 %v2821, %v2833
    %v2838 = vadd.f32 %v2822, %v2834
    %v2839 = vadd.f32 %v2823, %v2835
    %v2840 = vadd.f32 %v2824, %v2836
    %v2841 = vadd.f32 %v2447, %v2551
    %v2842 = vadd.f32 %v2448, %v2554
    %v2843 = vadd.f32 %v2449, %v2559
    %v2844 = vadd.f32 %v2450, %v2562
    %v2845 = vtanh.pop %v2837
    %v2846 = vtanh.pop %v2838
    %v2847 = vtanh.pop %v2839
    %v2848 = vtanh.pop %v2840
    %v2849 = vmul.f32 %v2845, 0.5
    %v2850 = vmul.f32 %v2846, 0.5
    %v2851 = vmul.f32 %v2847, 0.5
    %v2852 = vmul.f32 %v2848, 0.5
    %v2853 = vadd.f32 %v2849, 0.5
    %v2854 = vadd.f32 %v2850, 0.5
    %v2855 = vadd.f32 %v2851, 0.5
    %v2856 = vadd.f32 %v2852, 0.5
    %2861 = vrot.lane.b32.xlu0 %v2853, 96
    %v2862 = vpop.permute.xlu0 %2861
    %2863 = vrot.lane.b32.xlu0 %v2854, 96
    %v2864 = vpop.permute.xlu0 %2863
    %2865 = vrot.lane.b32.xlu0 %v2855, 96
    %v2866 = vpop.permute.xlu0 %2865
    %2867 = vrot.lane.b32.xlu0 %v2856, 96
    %v2868 = vpop.permute.xlu0 %2867
    %v2873 = vmul.f32 %v2845, %v2862
    %v2874 = vmul.f32 %v2846, %v2864
    %v2875 = vmul.f32 %v2847, %v2866
    %v2876 = vmul.f32 %v2848, %v2868
    %v2877 = vpack.c.bf16 %v2874, %v2873
    %v2878 = vpack.c.bf16 %v2876, %v2875
    %s2879 = scalar_lea.vmem %s7, 128
    %v2880 = vld [vmem:[%s2879] sm:$0xf]
    %v2881 = vld [vmem:[%s2879 + $0x4] sm:$0xf]
    %v2882 = vld [vmem:[%s2879 + $0x8] sm:$0xf]
    %v2883 = vld [vmem:[%s2879 + $0xc] sm:$0xf]
    %s2884 = scalar_lea.vmem %s8, 8
    %v2885 = vld [vmem:[%s2884] sm:$0x1]
    %v2887 = vlaneseq
    %v2888 = vshrl.u32 %v2887, 7
    %v2889 = vsub.s32 0, %v2888
    %v2890 = vrot.slane %v2885, %v2889
    %v2896 = vunpack.c.l.b16 %v2880
    %v2897 = vunpack.c.l.b16 %v2881
    %v2898 = vunpack.c.l.b16 %v2882
    %v2899 = vunpack.c.l.b16 %v2883
    %v2900 = vpack.c.b16 %v2897, %v2896
    %v2901 = vpack.c.b16 %v2899, %v2898
    %v2905 = vsel %vm91, %v2877, 0
    %v2908 = vsel %vm91, %v2878, 0
    %2910 = vmatprep.subr.bf16.mxu0 0
    %2911 = vmatpush1.bf16.msra.mxu0 %v2900
    %2912 = vmatprep.subr.bf16.mxu0 0
    %2913 = vmatpush1.bf16.msra.mxu0 %v2901
    %2914 = vmatprep.subr.bf16.mxu0 0
    %2915 = vmatpush1.bf16.msra.mxu0 0
    %2916 = vmatprep.subr.bf16.mxu0 0
    %2917 = vmatpush1.bf16.msra.mxu0 0
    %2918 = vmatprep.subr.bf16.mxu0 0
    %2919 = vmatpush1.bf16.msra.mxu0 0
    %2920 = vmatprep.subr.bf16.mxu0 0
    %2921 = vmatpush1.bf16.msra.mxu0 0
    %2922 = vmatprep.subr.bf16.mxu0 0
    %2923 = vmatpush1.bf16.msra.mxu0 0
    %2924 = vmatprep.subr.bf16.mxu0 0
    %2925 = vmatpush1.bf16.msra.mxu0 0
    %2926 = vmatprep.subr.bf16.mxu0 0
    %2927 = vmatpush1.bf16.msra.mxu0 0
    %2928 = vmatprep.subr.bf16.mxu0 0
    %2929 = vmatpush1.bf16.msra.mxu0 0
    %2930 = vmatprep.subr.bf16.mxu0 0
    %2931 = vmatpush1.bf16.msra.mxu0 0
    %2932 = vmatprep.subr.bf16.mxu0 0
    %2933 = vmatpush1.bf16.msra.mxu0 0
    %2934 = vmatprep.subr.bf16.mxu0 0
    %2935 = vmatpush1.bf16.msra.mxu0 0
    %2936 = vmatprep.subr.bf16.mxu0 0
    %2937 = vmatpush1.bf16.msra.mxu0 0
    %2938 = vmatprep.subr.bf16.mxu0 0
    %2939 = vmatpush1.bf16.msra.mxu0 0
    %2940 = vmatprep.subr.bf16.mxu0 0
    %2941 = vmatpush1.bf16.msra.mxu0 0
    %2942 = vmatprep.mubr.bf16.mxu0 0
    %2943 = vmatmul.mubr.bf16.gmra.mrb[0].mxu0 %v2905
    %v2944 = vpop.f32.mrb[0].mxu0
    %v2945 = vadd.f32 %v2890, %v2944
    %v2946 = vpop.f32.mrb[0].mxu0
    %v2947 = vpop.f32.mrb[0].mxu0
    %v2948 = vadd.f32 %v2890, %v2947
    %v2949 = vpop.f32.mrb[0].mxu0
    %2950 = vmatprep.mubr.bf16.mxu0 0
    %2951 = vmatmul.mubr.bf16.gmra.mrb[0].mxu0 %v2908
    %v2952 = vpop.f32.mrb[0].mxu0
    %v2953 = vadd.f32 %v2890, %v2952
    %v2954 = vpop.f32.mrb[0].mxu0
    %v2955 = vpop.f32.mrb[0].mxu0
    %v2956 = vadd.f32 %v2890, %v2955
    %v2957 = vpop.f32.mrb[0].mxu0
    %2958 = vdwg.mxu0
    %v2959 = vadd.f32 %v2565, %v2945
    %v2960 = vadd.f32 %v2566, %v2948
    %v2961 = vadd.f32 %v2567, %v2953
    %v2962 = vadd.f32 %v2568, %v2956
    %v2963 = vrot.slane %v2841, 6
    %v2964 = vrot.slane %v2842, 6
    %v2965 = vrot.slane %v2843, 6
    %v2966 = vrot.slane %v2844, 6
    %v2967 = vsel %vm318, %v2965, %v2966
    %v2968 = vsel %vm318, %v2964, %v2965
    %v2969 = vsel %vm318, %v2963, %v2964
    %v2970 = vsel %vm318, %v2966, %v2963
    %v2971 = vmul.f32 %v310, %v2970
    %v2972 = vmul.f32 %v311, %v2969
    %v2973 = vmul.f32 %v312, %v2968
    %v2974 = vmul.f32 %v313, %v2967
    %2979 = vrot.lane.b32.xlu0 %v2841, 32
    %v2980 = vpop.permute.xlu0 %2979
    %2981 = vrot.lane.b32.xlu0 %v2842, 32
    %v2982 = vpop.permute.xlu0 %2981
    %2983 = vrot.lane.b32.xlu0 %v2843, 32
    %v2984 = vpop.permute.xlu0 %2983
    %2985 = vrot.lane.b32.xlu0 %v2844, 32
    %v2986 = vpop.permute.xlu0 %2985
    %v2991 = vsel %vm91, %v2971, %v2980
    %v2992 = vsel %vm91, %v2972, %v2982
    %v2993 = vsel %vm91, %v2973, %v2984
    %v2994 = vsel %vm91, %v2974, %v2986
    %v2995 = vpack.c.bf16 %v2992, %v2991
    %v2996 = vpack.c.bf16 %v2994, %v2993
    %v2997 = vrot.slane %v2873, 6
    %v2998 = vrot.slane %v2874, 6
    %v2999 = vrot.slane %v2875, 6
    %v3000 = vrot.slane %v2876, 6
    %v3001 = vsel %vm318, %v2999, %v3000
    %v3002 = vsel %vm318, %v2998, %v2999
    %v3003 = vsel %vm318, %v2997, %v2998
    %v3004 = vsel %vm318, %v3000, %v2997
    %v3005 = vmul.f32 %v310, %v3004
    %v3006 = vmul.f32 %v311, %v3003
    %v3007 = vmul.f32 %v312, %v3002
    %v3008 = vmul.f32 %v313, %v3001
    %3013 = vrot.lane.b32.xlu0 %v2873, 32
    %v3014 = vpop.permute.xlu0 %3013
    %3015 = vrot.lane.b32.xlu0 %v2874, 32
    %v3016 = vpop.permute.xlu0 %3015
    %3017 = vrot.lane.b32.xlu0 %v2875, 32
    %v3018 = vpop.permute.xlu0 %3017
    %3019 = vrot.lane.b32.xlu0 %v2876, 32
    %v3020 = vpop.permute.xlu0 %3019
    %v3025 = vsel %vm91, %v3005, %v3014
    %v3026 = vsel %vm91, %v3006, %v3016
    %v3027 = vsel %vm91, %v3007, %v3018
    %v3028 = vsel %vm91, %v3008, %v3020
    %v3029 = vpack.c.bf16 %v3026, %v3025
    %v3030 = vpack.c.bf16 %v3028, %v3027
    %s3031 = scalar_lea.vmem %s2, 288
    %v3032 = vld [vmem:[%s3031] sm:$0xf]
    %v3033 = vld [vmem:[%s3031 + $0x4] sm:$0xf]
    %v3034 = vld [vmem:[%s3031 + $0x8] sm:$0xf]
    %v3035 = vld [vmem:[%s3031 + $0xc] sm:$0xf]
    %v3036 = vld [vmem:[%s3031 + $0x10] sm:$0xf]
    %v3037 = vld [vmem:[%s3031 + $0x14] sm:$0xf]
    %v3038 = vld [vmem:[%s3031 + $0x18] sm:$0xf]
    %v3039 = vld [vmem:[%s3031 + $0x1c] sm:$0xf]
    %s3040 = scalar_lea.vmem %s4, 256
    %v3041 = vld [vmem:[%s3040] sm:$0xf]
    %v3042 = vld [vmem:[%s3040 + $0x4] sm:$0xf]
    %v3043 = vld [vmem:[%s3040 + $0x8] sm:$0xf]
    %v3044 = vld [vmem:[%s3040 + $0xc] sm:$0xf]
    %v3045 = vld [vmem:[%s3040 + $0x10] sm:$0xf]
    %v3046 = vld [vmem:[%s3040 + $0x14] sm:$0xf]
    %v3047 = vld [vmem:[%s3040 + $0x18] sm:$0xf]
    %v3048 = vld [vmem:[%s3040 + $0x1c] sm:$0xf]
    %v3057 = vunpack.c.l.b16 %v3041
    %v3058 = vunpack.c.l.b16 %v3042
    %v3059 = vunpack.c.l.b16 %v3043
    %v3060 = vunpack.c.l.b16 %v3044
    %v3061 = vunpack.c.l.b16 %v3045
    %v3062 = vunpack.c.l.b16 %v3046
    %v3063 = vunpack.c.l.b16 %v3047
    %v3064 = vunpack.c.l.b16 %v3048
    %v3065 = vpack.c.b16 %v3058, %v3057
    %v3066 = vpack.c.b16 %v3060, %v3059
    %v3067 = vpack.c.b16 %v3062, %v3061
    %v3068 = vpack.c.b16 %v3064, %v3063
    %v3074 = vsel %vm137, %v3029, 0
    %v3077 = vsel %vm137, %v3030, 0
    %3079 = vmatprep.subr.bf16.mxu0 0
    %3080 = vmatpush1.bf16.msra.mxu0 %v3065
    %3081 = vmatprep.subr.bf16.mxu0 0
    %3082 = vmatpush1.bf16.msra.mxu0 %v3066
    %3083 = vmatprep.subr.bf16.mxu0 0
    %3084 = vmatpush1.bf16.msra.mxu0 %v3067
    %3085 = vmatprep.subr.bf16.mxu0 0
    %3086 = vmatpush1.bf16.msra.mxu0 %v3068
    %3087 = vmatprep.subr.bf16.mxu0 0
    %3088 = vmatpush1.bf16.msra.mxu0 0
    %3089 = vmatprep.subr.bf16.mxu0 0
    %3090 = vmatpush1.bf16.msra.mxu0 0
    %3091 = vmatprep.subr.bf16.mxu0 0
    %3092 = vmatpush1.bf16.msra.mxu0 0
    %3093 = vmatprep.subr.bf16.mxu0 0
    %3094 = vmatpush1.bf16.msra.mxu0 0
    %3095 = vmatprep.subr.bf16.mxu0 0
    %3096 = vmatpush1.bf16.msra.mxu0 0
    %3097 = vmatprep.subr.bf16.mxu0 0
    %3098 = vmatpush1.bf16.msra.mxu0 0
    %3099 = vmatprep.subr.bf16.mxu0 0
    %3100 = vmatpush1.bf16.msra.mxu0 0
    %3101 = vmatprep.subr.bf16.mxu0 0
    %3102 = vmatpush1.bf16.msra.mxu0 0
    %3103 = vmatprep.subr.bf16.mxu0 0
    %3104 = vmatpush1.bf16.msra.mxu0 0
    %3105 = vmatprep.subr.bf16.mxu0 0
    %3106 = vmatpush1.bf16.msra.mxu0 0
    %3107 = vmatprep.subr.bf16.mxu0 0
    %3108 = vmatpush1.bf16.msra.mxu0 0
    %3109 = vmatprep.subr.bf16.mxu0 0
    %3110 = vmatpush1.bf16.msra.mxu0 0
    %3111 = vmatprep.mubr.bf16.mxu0 0
    %3112 = vmatmul.mubr.bf16.gmra.mrb[0].mxu0 %v3074
    %v3113 = vpop.f32.mrb[0].mxu0
    %v3114 = vadd.f32 0.0, %v3113
    %v3115 = vpop.f32.mrb[0].mxu0
    %v3116 = vpop.f32.mrb[0].mxu0
    %v3117 = vadd.f32 0.0, %v3116
    %v3118 = vpop.f32.mrb[0].mxu0
    %3119 = vmatprep.mubr.bf16.mxu0 0
    %3120 = vmatmul.mubr.bf16.gmra.mrb[0].mxu0 %v3077
    %v3121 = vpop.f32.mrb[0].mxu0
    %v3122 = vadd.f32 0.0, %v3121
    %v3123 = vpop.f32.mrb[0].mxu0
    %v3124 = vpop.f32.mrb[0].mxu0
    %v3125 = vadd.f32 0.0, %v3124
    %v3126 = vpop.f32.mrb[0].mxu0
    %3127 = vdwg.mxu0
    %v3136 = vunpack.c.l.b16 %v3032
    %v3137 = vunpack.c.l.b16 %v3033
    %v3138 = vunpack.c.l.b16 %v3034
    %v3139 = vunpack.c.l.b16 %v3035
    %v3140 = vunpack.c.l.b16 %v3036
    %v3141 = vunpack.c.l.b16 %v3037
    %v3142 = vunpack.c.l.b16 %v3038
    %v3143 = vunpack.c.l.b16 %v3039
    %v3144 = vpack.c.b16 %v3137, %v3136
    %v3145 = vpack.c.b16 %v3139, %v3138
    %v3146 = vpack.c.b16 %v3141, %v3140
    %v3147 = vpack.c.b16 %v3143, %v3142
    %v3153 = vsel %vm137, %v2995, 0
    %v3156 = vsel %vm137, %v2996, 0
    %3158 = vmatprep.subr.bf16.mxu0 0
    %3159 = vmatpush1.bf16.msra.mxu0 %v3144
    %3160 = vmatprep.subr.bf16.mxu0 0
    %3161 = vmatpush1.bf16.msra.mxu0 %v3145
    %3162 = vmatprep.subr.bf16.mxu0 0
    %3163 = vmatpush1.bf16.msra.mxu0 %v3146
    %3164 = vmatprep.subr.bf16.mxu0 0
    %3165 = vmatpush1.bf16.msra.mxu0 %v3147
    %3166 = vmatprep.subr.bf16.mxu0 0
    %3167 = vmatpush1.bf16.msra.mxu0 0
    %3168 = vmatprep.subr.bf16.mxu0 0
    %3169 = vmatpush1.bf16.msra.mxu0 0
    %3170 = vmatprep.subr.bf16.mxu0 0
    %3171 = vmatpush1.bf16.msra.mxu0 0
    %3172 = vmatprep.subr.bf16.mxu0 0
    %3173 = vmatpush1.bf16.msra.mxu0 0
    %3174 = vmatprep.subr.bf16.mxu0 0
    %3175 = vmatpush1.bf16.msra.mxu0 0
    %3176 = vmatprep.subr.bf16.mxu0 0
    %3177 = vmatpush1.bf16.msra.mxu0 0
    %3178 = vmatprep.subr.bf16.mxu0 0
    %3179 = vmatpush1.bf16.msra.mxu0 0
    %3180 = vmatprep.subr.bf16.mxu0 0
    %3181 = vmatpush1.bf16.msra.mxu0 0
    %3182 = vmatprep.subr.bf16.mxu0 0
    %3183 = vmatpush1.bf16.msra.mxu0 0
    %3184 = vmatprep.subr.bf16.mxu0 0
    %3185 = vmatpush1.bf16.msra.mxu0 0
    %3186 = vmatprep.subr.bf16.mxu0 0
    %3187 = vmatpush1.bf16.msra.mxu0 0
    %3188 = vmatprep.subr.bf16.mxu0 0
    %3189 = vmatpush1.bf16.msra.mxu0 0
    %3190 = vmatprep.mubr.bf16.mxu0 0
    %3191 = vmatmul.mubr.bf16.gmra.mrb[0].mxu0 %v3153
    %v3192 = vpop.f32.mrb[0].mxu0
    %v3193 = vadd.f32 %v3114, %v3192
    %v3194 = vpop.f32.mrb[0].mxu0
    %v3195 = vpop.f32.mrb[0].mxu0
    %v3196 = vadd.f32 %v3117, %v3195
    %v3197 = vpop.f32.mrb[0].mxu0
    %3198 = vmatprep.mubr.bf16.mxu0 0
    %3199 = vmatmul.mubr.bf16.gmra.mrb[0].mxu0 %v3156
    %v3200 = vpop.f32.mrb[0].mxu0
    %v3201 = vadd.f32 %v3122, %v3200
    %v3202 = vpop.f32.mrb[0].mxu0
    %v3203 = vpop.f32.mrb[0].mxu0
    %v3204 = vadd.f32 %v3125, %v3203
    %v3205 = vpop.f32.mrb[0].mxu0
    %3206 = vdwg.mxu0
    %s3207 = scalar_lea.vmem %s5, 8
    %v3208 = vld [vmem:[%s3207] sm:$0x1]
    %v3210 = vlaneseq
    %v3211 = vshrl.u32 %v3210, 7
    %v3212 = vsub.s32 0, %v3211
    %v3213 = vrot.slane %v3208, %v3212
    %v3215 = vadd.f32 %v3193, %v3213
    %v3216 = vadd.f32 %v3196, %v3213
    %v3217 = vadd.f32 %v3201, %v3213
    %v3218 = vadd.f32 %v3204, %v3213
    %s3219 = scalar_lea.vmem %s6, 8
    %v3220 = vld [vmem:[%s3219] sm:$0x1]
    %v3222 = vlaneseq
    %v3223 = vshrl.u32 %v3222, 7
    %v3224 = vsub.s32 0, %v3223
    %v3225 = vrot.slane %v3220, %v3224
    %v3227 = vmul.f32 %v310, %v3225
    %v3228 = vmul.f32 %v311, %v3225
    %v3229 = vmul.f32 %v312, %v3225
    %v3230 = vmul.f32 %v313, %v3225
    %v3231 = vadd.f32 %v3215, %v3227
    %v3232 = vadd.f32 %v3216, %v3228
    %v3233 = vadd.f32 %v3217, %v3229
    %v3234 = vadd.f32 %v3218, %v3230
    %v3235 = vadd.f32 %v2841, %v2945
    %v3236 = vadd.f32 %v2842, %v2948
    %v3237 = vadd.f32 %v2843, %v2953
    %v3238 = vadd.f32 %v2844, %v2956
    %v3239 = vtanh.pop %v3231
    %v3240 = vtanh.pop %v3232
    %v3241 = vtanh.pop %v3233
    %v3242 = vtanh.pop %v3234
    %v3243 = vmul.f32 %v3239, 0.5
    %v3244 = vmul.f32 %v3240, 0.5
    %v3245 = vmul.f32 %v3241, 0.5
    %v3246 = vmul.f32 %v3242, 0.5
    %v3247 = vadd.f32 %v3243, 0.5
    %v3248 = vadd.f32 %v3244, 0.5
    %v3249 = vadd.f32 %v3245, 0.5
    %v3250 = vadd.f32 %v3246, 0.5
    %3255 = vrot.lane.b32.xlu0 %v3247, 96
    %v3256 = vpop.permute.xlu0 %3255
    %3257 = vrot.lane.b32.xlu0 %v3248, 96
    %v3258 = vpop.permute.xlu0 %3257
    %3259 = vrot.lane.b32.xlu0 %v3249, 96
    %v3260 = vpop.permute.xlu0 %3259
    %3261 = vrot.lane.b32.xlu0 %v3250, 96
    %v3262 = vpop.permute.xlu0 %3261
    %v3267 = vmul.f32 %v3239, %v3256
    %v3268 = vmul.f32 %v3240, %v3258
    %v3269 = vmul.f32 %v3241, %v3260
    %v3270 = vmul.f32 %v3242, %v3262
    %v3271 = vpack.c.bf16 %v3268, %v3267
    %v3272 = vpack.c.bf16 %v3270, %v3269
    %s3273 = scalar_lea.vmem %s7, 144
    %v3274 = vld [vmem:[%s3273] sm:$0xf]
    %v3275 = vld [vmem:[%s3273 + $0x4] sm:$0xf]
    %v3276 = vld [vmem:[%s3273 + $0x8] sm:$0xf]
    %v3277 = vld [vmem:[%s3273 + $0xc] sm:$0xf]
    %s3278 = scalar_lea.vmem %s8, 9
    %v3279 = vld [vmem:[%s3278] sm:$0x1]
    %v3281 = vlaneseq
    %v3282 = vshrl.u32 %v3281, 7
    %v3283 = vsub.s32 0, %v3282
    %v3284 = vrot.slane %v3279, %v3283
    %v3290 = vunpack.c.l.b16 %v3274
    %v3291 = vunpack.c.l.b16 %v3275
    %v3292 = vunpack.c.l.b16 %v3276
    %v3293 = vunpack.c.l.b16 %v3277
    %v3294 = vpack.c.b16 %v3291, %v3290
    %v3295 = vpack.c.b16 %v3293, %v3292
    %v3299 = vsel %vm91, %v3271, 0
    %v3302 = vsel %vm91, %v3272, 0
    %3304 = vmatprep.subr.bf16.mxu0 0
    %3305 = vmatpush1.bf16.msra.mxu0 %v3294
    %3306 = vmatprep.subr.bf16.mxu0 0
    %3307 = vmatpush1.bf16.msra.mxu0 %v3295
    %3308 = vmatprep.subr.bf16.mxu0 0
    %3309 = vmatpush1.bf16.msra.mxu0 0
    %3310 = vmatprep.subr.bf16.mxu0 0
    %3311 = vmatpush1.bf16.msra.mxu0 0
    %3312 = vmatprep.subr.bf16.mxu0 0
    %3313 = vmatpush1.bf16.msra.mxu0 0
    %3314 = vmatprep.subr.bf16.mxu0 0
    %3315 = vmatpush1.bf16.msra.mxu0 0
    %3316 = vmatprep.subr.bf16.mxu0 0
    %3317 = vmatpush1.bf16.msra.mxu0 0
    %3318 = vmatprep.subr.bf16.mxu0 0
    %3319 = vmatpush1.bf16.msra.mxu0 0
    %3320 = vmatprep.subr.bf16.mxu0 0
    %3321 = vmatpush1.bf16.msra.mxu0 0
    %3322 = vmatprep.subr.bf16.mxu0 0
    %3323 = vmatpush1.bf16.msra.mxu0 0
    %3324 = vmatprep.subr.bf16.mxu0 0
    %3325 = vmatpush1.bf16.msra.mxu0 0
    %3326 = vmatprep.subr.bf16.mxu0 0
    %3327 = vmatpush1.bf16.msra.mxu0 0
    %3328 = vmatprep.subr.bf16.mxu0 0
    %3329 = vmatpush1.bf16.msra.mxu0 0
    %3330 = vmatprep.subr.bf16.mxu0 0
    %3331 = vmatpush1.bf16.msra.mxu0 0
    %3332 = vmatprep.subr.bf16.mxu0 0
    %3333 = vmatpush1.bf16.msra.mxu0 0
    %3334 = vmatprep.subr.bf16.mxu0 0
    %3335 = vmatpush1.bf16.msra.mxu0 0
    %3336 = vmatprep.mubr.bf16.mxu0 0
    %3337 = vmatmul.mubr.bf16.gmra.mrb[0].mxu0 %v3299
    %v3338 = vpop.f32.mrb[0].mxu0
    %v3339 = vadd.f32 %v3284, %v3338
    %v3340 = vpop.f32.mrb[0].mxu0
    %v3341 = vpop.f32.mrb[0].mxu0
    %v3342 = vadd.f32 %v3284, %v3341
    %v3343 = vpop.f32.mrb[0].mxu0
    %3344 = vmatprep.mubr.bf16.mxu0 0
    %3345 = vmatmul.mubr.bf16.gmra.mrb[0].mxu0 %v3302
    %v3346 = vpop.f32.mrb[0].mxu0
    %v3347 = vadd.f32 %v3284, %v3346
    %v3348 = vpop.f32.mrb[0].mxu0
    %v3349 = vpop.f32.mrb[0].mxu0
    %v3350 = vadd.f32 %v3284, %v3349
    %v3351 = vpop.f32.mrb[0].mxu0
    %3352 = vdwg.mxu0
    %v3353 = vadd.f32 %v2959, %v3339
    %v3354 = vadd.f32 %v2960, %v3342
    %v3355 = vadd.f32 %v2961, %v3347
    %v3356 = vadd.f32 %v2962, %v3350
    %v3357 = vrot.slane %v3235, 4
    %v3358 = vrot.slane %v3236, 4
    %v3359 = vrot.slane %v3237, 4
    %v3360 = vrot.slane %v3238, 4
    %v3361 = vsel %vm699, %v3359, %v3360
    %v3362 = vsel %vm699, %v3358, %v3359
    %v3363 = vsel %vm699, %v3357, %v3358
    %v3364 = vsel %vm699, %v3360, %v3357
    %v3365 = vmul.f32 %v691, %v3364
    %v3366 = vmul.f32 %v692, %v3363
    %v3367 = vmul.f32 %v693, %v3362
    %v3368 = vmul.f32 %v694, %v3361
    %3373 = vrot.lane.b32.xlu0 %v3235, 32
    %v3374 = vpop.permute.xlu0 %3373
    %3375 = vrot.lane.b32.xlu0 %v3236, 32
    %v3376 = vpop.permute.xlu0 %3375
    %3377 = vrot.lane.b32.xlu0 %v3237, 32
    %v3378 = vpop.permute.xlu0 %3377
    %3379 = vrot.lane.b32.xlu0 %v3238, 32
    %v3380 = vpop.permute.xlu0 %3379
    %v3385 = vsel %vm91, %v3365, %v3374
    %v3386 = vsel %vm91, %v3366, %v3376
    %v3387 = vsel %vm91, %v3367, %v3378
    %v3388 = vsel %vm91, %v3368, %v3380
    %v3389 = vpack.c.bf16 %v3386, %v3385
    %v3390 = vpack.c.bf16 %v3388, %v3387
    %v3391 = vrot.slane %v3267, 4
    %v3392 = vrot.slane %v3268, 4
    %v3393 = vrot.slane %v3269, 4
    %v3394 = vrot.slane %v3270, 4
    %v3395 = vsel %vm699, %v3393, %v3394
    %v3396 = vsel %vm699, %v3392, %v3393
    %v3397 = vsel %vm699, %v3391, %v3392
    %v3398 = vsel %vm699, %v3394, %v3391
    %v3399 = vmul.f32 %v691, %v3398
    %v3400 = vmul.f32 %v692, %v3397
    %v3401 = vmul.f32 %v693, %v3396
    %v3402 = vmul.f32 %v694, %v3395
    %3407 = vrot.lane.b32.xlu0 %v3267, 32
    %v3408 = vpop.permute.xlu0 %3407
    %3409 = vrot.lane.b32.xlu0 %v3268, 32
    %v3410 = vpop.permute.xlu0 %3409
    %3411 = vrot.lane.b32.xlu0 %v3269, 32
    %v3412 = vpop.permute.xlu0 %3411
    %3413 = vrot.lane.b32.xlu0 %v3270, 32
    %v3414 = vpop.permute.xlu0 %3413
    %v3419 = vsel %vm91, %v3399, %v3408
    %v3420 = vsel %vm91, %v3400, %v3410
    %v3421 = vsel %vm91, %v3401, %v3412
    %v3422 = vsel %vm91, %v3402, %v3414
    %v3423 = vpack.c.bf16 %v3420, %v3419
    %v3424 = vpack.c.bf16 %v3422, %v3421
    %s3425 = scalar_lea.vmem %s2, 320
    %v3426 = vld [vmem:[%s3425] sm:$0xf]
    %v3427 = vld [vmem:[%s3425 + $0x4] sm:$0xf]
    %v3428 = vld [vmem:[%s3425 + $0x8] sm:$0xf]
    %v3429 = vld [vmem:[%s3425 + $0xc] sm:$0xf]
    %v3430 = vld [vmem:[%s3425 + $0x10] sm:$0xf]
    %v3431 = vld [vmem:[%s3425 + $0x14] sm:$0xf]
    %v3432 = vld [vmem:[%s3425 + $0x18] sm:$0xf]
    %v3433 = vld [vmem:[%s3425 + $0x1c] sm:$0xf]
    %s3434 = scalar_lea.vmem %s4, 288
    %v3435 = vld [vmem:[%s3434] sm:$0xf]
    %v3436 = vld [vmem:[%s3434 + $0x4] sm:$0xf]
    %v3437 = vld [vmem:[%s3434 + $0x8] sm:$0xf]
    %v3438 = vld [vmem:[%s3434 + $0xc] sm:$0xf]
    %v3439 = vld [vmem:[%s3434 + $0x10] sm:$0xf]
    %v3440 = vld [vmem:[%s3434 + $0x14] sm:$0xf]
    %v3441 = vld [vmem:[%s3434 + $0x18] sm:$0xf]
    %v3442 = vld [vmem:[%s3434 + $0x1c] sm:$0xf]
    %v3451 = vunpack.c.l.b16 %v3435
    %v3452 = vunpack.c.l.b16 %v3436
    %v3453 = vunpack.c.l.b16 %v3437
    %v3454 = vunpack.c.l.b16 %v3438
    %v3455 = vunpack.c.l.b16 %v3439
    %v3456 = vunpack.c.l.b16 %v3440
    %v3457 = vunpack.c.l.b16 %v3441
    %v3458 = vunpack.c.l.b16 %v3442
    %v3459 = vpack.c.b16 %v3452, %v3451
    %v3460 = vpack.c.b16 %v3454, %v3453
    %v3461 = vpack.c.b16 %v3456, %v3455
    %v3462 = vpack.c.b16 %v3458, %v3457
    %v3468 = vsel %vm137, %v3423, 0
    %v3471 = vsel %vm137, %v3424, 0
    %3473 = vmatprep.subr.bf16.mxu0 0
    %3474 = vmatpush1.bf16.msra.mxu0 %v3459
    %3475 = vmatprep.subr.bf16.mxu0 0
    %3476 = vmatpush1.bf16.msra.mxu0 %v3460
    %3477 = vmatprep.subr.bf16.mxu0 0
    %3478 = vmatpush1.bf16.msra.mxu0 %v3461
    %3479 = vmatprep.subr.bf16.mxu0 0
    %3480 = vmatpush1.bf16.msra.mxu0 %v3462
    %3481 = vmatprep.subr.bf16.mxu0 0
    %3482 = vmatpush1.bf16.msra.mxu0 0
    %3483 = vmatprep.subr.bf16.mxu0 0
    %3484 = vmatpush1.bf16.msra.mxu0 0
    %3485 = vmatprep.subr.bf16.mxu0 0
    %3486 = vmatpush1.bf16.msra.mxu0 0
    %3487 = vmatprep.subr.bf16.mxu0 0
    %3488 = vmatpush1.bf16.msra.mxu0 0
    %3489 = vmatprep.subr.bf16.mxu0 0
    %3490 = vmatpush1.bf16.msra.mxu0 0
    %3491 = vmatprep.subr.bf16.mxu0 0
    %3492 = vmatpush1.bf16.msra.mxu0 0
    %3493 = vmatprep.subr.bf16.mxu0 0
    %3494 = vmatpush1.bf16.msra.mxu0 0
    %3495 = vmatprep.subr.bf16.mxu0 0
    %3496 = vmatpush1.bf16.msra.mxu0 0
    %3497 = vmatprep.subr.bf16.mxu0 0
    %3498 = vmatpush1.bf16.msra.mxu0 0
    %3499 = vmatprep.subr.bf16.mxu0 0
    %3500 = vmatpush1.bf16.msra.mxu0 0
    %3501 = vmatprep.subr.bf16.mxu0 0
    %3502 = vmatpush1.bf16.msra.mxu0 0
    %3503 = vmatprep.subr.bf16.mxu0 0
    %3504 = vmatpush1.bf16.msra.mxu0 0
    %3505 = vmatprep.mubr.bf16.mxu0 0
    %3506 = vmatmul.mubr.bf16.gmra.mrb[0].mxu0 %v3468
    %v3507 = vpop.f32.mrb[0].mxu0
    %v3508 = vadd.f32 0.0, %v3507
    %v3509 = vpop.f32.mrb[0].mxu0
    %v3510 = vpop.f32.mrb[0].mxu0
    %v3511 = vadd.f32 0.0, %v3510
    %v3512 = vpop.f32.mrb[0].mxu0
    %3513 = vmatprep.mubr.bf16.mxu0 0
    %3514 = vmatmul.mubr.bf16.gmra.mrb[0].mxu0 %v3471
    %v3515 = vpop.f32.mrb[0].mxu0
    %v3516 = vadd.f32 0.0, %v3515
    %v3517 = vpop.f32.mrb[0].mxu0
    %v3518 = vpop.f32.mrb[0].mxu0
    %v3519 = vadd.f32 0.0, %v3518
    %v3520 = vpop.f32.mrb[0].mxu0
    %3521 = vdwg.mxu0
    %v3530 = vunpack.c.l.b16 %v3426
    %v3531 = vunpack.c.l.b16 %v3427
    %v3532 = vunpack.c.l.b16 %v3428
    %v3533 = vunpack.c.l.b16 %v3429
    %v3534 = vunpack.c.l.b16 %v3430
    %v3535 = vunpack.c.l.b16 %v3431
    %v3536 = vunpack.c.l.b16 %v3432
    %v3537 = vunpack.c.l.b16 %v3433
    %v3538 = vpack.c.b16 %v3531, %v3530
    %v3539 = vpack.c.b16 %v3533, %v3532
    %v3540 = vpack.c.b16 %v3535, %v3534
    %v3541 = vpack.c.b16 %v3537, %v3536
    %v3547 = vsel %vm137, %v3389, 0
    %v3550 = vsel %vm137, %v3390, 0
    %3552 = vmatprep.subr.bf16.mxu0 0
    %3553 = vmatpush1.bf16.msra.mxu0 %v3538
    %3554 = vmatprep.subr.bf16.mxu0 0
    %3555 = vmatpush1.bf16.msra.mxu0 %v3539
    %3556 = vmatprep.subr.bf16.mxu0 0
    %3557 = vmatpush1.bf16.msra.mxu0 %v3540
    %3558 = vmatprep.subr.bf16.mxu0 0
    %3559 = vmatpush1.bf16.msra.mxu0 %v3541
    %3560 = vmatprep.subr.bf16.mxu0 0
    %3561 = vmatpush1.bf16.msra.mxu0 0
    %3562 = vmatprep.subr.bf16.mxu0 0
    %3563 = vmatpush1.bf16.msra.mxu0 0
    %3564 = vmatprep.subr.bf16.mxu0 0
    %3565 = vmatpush1.bf16.msra.mxu0 0
    %3566 = vmatprep.subr.bf16.mxu0 0
    %3567 = vmatpush1.bf16.msra.mxu0 0
    %3568 = vmatprep.subr.bf16.mxu0 0
    %3569 = vmatpush1.bf16.msra.mxu0 0
    %3570 = vmatprep.subr.bf16.mxu0 0
    %3571 = vmatpush1.bf16.msra.mxu0 0
    %3572 = vmatprep.subr.bf16.mxu0 0
    %3573 = vmatpush1.bf16.msra.mxu0 0
    %3574 = vmatprep.subr.bf16.mxu0 0
    %3575 = vmatpush1.bf16.msra.mxu0 0
    %3576 = vmatprep.subr.bf16.mxu0 0
    %3577 = vmatpush1.bf16.msra.mxu0 0
    %3578 = vmatprep.subr.bf16.mxu0 0
    %3579 = vmatpush1.bf16.msra.mxu0 0
    %3580 = vmatprep.subr.bf16.mxu0 0
    %3581 = vmatpush1.bf16.msra.mxu0 0
    %3582 = vmatprep.subr.bf16.mxu0 0
    %3583 = vmatpush1.bf16.msra.mxu0 0
    %3584 = vmatprep.mubr.bf16.mxu0 0
    %3585 = vmatmul.mubr.bf16.gmra.mrb[0].mxu0 %v3547
    %v3586 = vpop.f32.mrb[0].mxu0
    %v3587 = vadd.f32 %v3508, %v3586
    %v3588 = vpop.f32.mrb[0].mxu0
    %v3589 = vpop.f32.mrb[0].mxu0
    %v3590 = vadd.f32 %v3511, %v3589
    %v3591 = vpop.f32.mrb[0].mxu0
    %3592 = vmatprep.mubr.bf16.mxu0 0
    %3593 = vmatmul.mubr.bf16.gmra.mrb[0].mxu0 %v3550
    %v3594 = vpop.f32.mrb[0].mxu0
    %v3595 = vadd.f32 %v3516, %v3594
    %v3596 = vpop.f32.mrb[0].mxu0
    %v3597 = vpop.f32.mrb[0].mxu0
    %v3598 = vadd.f32 %v3519, %v3597
    %v3599 = vpop.f32.mrb[0].mxu0
    %3600 = vdwg.mxu0
    %s3601 = scalar_lea.vmem %s5, 9
    %v3602 = vld [vmem:[%s3601] sm:$0x1]
    %v3604 = vlaneseq
    %v3605 = vshrl.u32 %v3604, 7
    %v3606 = vsub.s32 0, %v3605
    %v3607 = vrot.slane %v3602, %v3606
    %v3609 = vadd.f32 %v3587, %v3607
    %v3610 = vadd.f32 %v3590, %v3607
    %v3611 = vadd.f32 %v3595, %v3607
    %v3612 = vadd.f32 %v3598, %v3607
    %s3613 = scalar_lea.vmem %s6, 9
    %v3614 = vld [vmem:[%s3613] sm:$0x1]
    %v3616 = vlaneseq
    %v3617 = vshrl.u32 %v3616, 7
    %v3618 = vsub.s32 0, %v3617
    %v3619 = vrot.slane %v3614, %v3618
    %v3621 = vmul.f32 %v691, %v3619
    %v3622 = vmul.f32 %v692, %v3619
    %v3623 = vmul.f32 %v693, %v3619
    %v3624 = vmul.f32 %v694, %v3619
    %v3625 = vadd.f32 %v3609, %v3621
    %v3626 = vadd.f32 %v3610, %v3622
    %v3627 = vadd.f32 %v3611, %v3623
    %v3628 = vadd.f32 %v3612, %v3624
    %v3629 = vadd.f32 %v3235, %v3339
    %v3630 = vadd.f32 %v3236, %v3342
    %v3631 = vadd.f32 %v3237, %v3347
    %v3632 = vadd.f32 %v3238, %v3350
    %v3633 = vtanh.pop %v3625
    %v3634 = vtanh.pop %v3626
    %v3635 = vtanh.pop %v3627
    %v3636 = vtanh.pop %v3628
    %v3637 = vmul.f32 %v3633, 0.5
    %v3638 = vmul.f32 %v3634, 0.5
    %v3639 = vmul.f32 %v3635, 0.5
    %v3640 = vmul.f32 %v3636, 0.5
    %v3641 = vadd.f32 %v3637, 0.5
    %v3642 = vadd.f32 %v3638, 0.5
    %v3643 = vadd.f32 %v3639, 0.5
    %v3644 = vadd.f32 %v3640, 0.5
    %3649 = vrot.lane.b32.xlu0 %v3641, 96
    %v3650 = vpop.permute.xlu0 %3649
    %3651 = vrot.lane.b32.xlu0 %v3642, 96
    %v3652 = vpop.permute.xlu0 %3651
    %3653 = vrot.lane.b32.xlu0 %v3643, 96
    %v3654 = vpop.permute.xlu0 %3653
    %3655 = vrot.lane.b32.xlu0 %v3644, 96
    %v3656 = vpop.permute.xlu0 %3655
    %v3661 = vmul.f32 %v3633, %v3650
    %v3662 = vmul.f32 %v3634, %v3652
    %v3663 = vmul.f32 %v3635, %v3654
    %v3664 = vmul.f32 %v3636, %v3656
    %v3665 = vpack.c.bf16 %v3662, %v3661
    %v3666 = vpack.c.bf16 %v3664, %v3663
    %s3667 = scalar_lea.vmem %s7, 160
    %v3668 = vld [vmem:[%s3667] sm:$0xf]
    %v3669 = vld [vmem:[%s3667 + $0x4] sm:$0xf]
    %v3670 = vld [vmem:[%s3667 + $0x8] sm:$0xf]
    %v3671 = vld [vmem:[%s3667 + $0xc] sm:$0xf]
    %s3672 = scalar_lea.vmem %s8, 10
    %v3673 = vld [vmem:[%s3672] sm:$0x1]
    %v3675 = vlaneseq
    %v3676 = vshrl.u32 %v3675, 7
    %v3677 = vsub.s32 0, %v3676
    %v3678 = vrot.slane %v3673, %v3677
    %v3684 = vunpack.c.l.b16 %v3668
    %v3685 = vunpack.c.l.b16 %v3669
    %v3686 = vunpack.c.l.b16 %v3670
    %v3687 = vunpack.c.l.b16 %v3671
    %v3688 = vpack.c.b16 %v3685, %v3684
    %v3689 = vpack.c.b16 %v3687, %v3686
    %v3693 = vsel %vm91, %v3665, 0
    %v3696 = vsel %vm91, %v3666, 0
    %3698 = vmatprep.subr.bf16.mxu0 0
    %3699 = vmatpush1.bf16.msra.mxu0 %v3688
    %3700 = vmatprep.subr.bf16.mxu0 0
    %3701 = vmatpush1.bf16.msra.mxu0 %v3689
    %3702 = vmatprep.subr.bf16.mxu0 0
    %3703 = vmatpush1.bf16.msra.mxu0 0
    %3704 = vmatprep.subr.bf16.mxu0 0
    %3705 = vmatpush1.bf16.msra.mxu0 0
    %3706 = vmatprep.subr.bf16.mxu0 0
    %3707 = vmatpush1.bf16.msra.mxu0 0
    %3708 = vmatprep.subr.bf16.mxu0 0
    %3709 = vmatpush1.bf16.msra.mxu0 0
    %3710 = vmatprep.subr.bf16.mxu0 0
    %3711 = vmatpush1.bf16.msra.mxu0 0
    %3712 = vmatprep.subr.bf16.mxu0 0
    %3713 = vmatpush1.bf16.msra.mxu0 0
    %3714 = vmatprep.subr.bf16.mxu0 0
    %3715 = vmatpush1.bf16.msra.mxu0 0
    %3716 = vmatprep.subr.bf16.mxu0 0
    %3717 = vmatpush1.bf16.msra.mxu0 0
    %3718 = vmatprep.subr.bf16.mxu0 0
    %3719 = vmatpush1.bf16.msra.mxu0 0
    %3720 = vmatprep.subr.bf16.mxu0 0
    %3721 = vmatpush1.bf16.msra.mxu0 0
    %3722 = vmatprep.subr.bf16.mxu0 0
    %3723 = vmatpush1.bf16.msra.mxu0 0
    %3724 = vmatprep.subr.bf16.mxu0 0
    %3725 = vmatpush1.bf16.msra.mxu0 0
    %3726 = vmatprep.subr.bf16.mxu0 0
    %3727 = vmatpush1.bf16.msra.mxu0 0
    %3728 = vmatprep.subr.bf16.mxu0 0
    %3729 = vmatpush1.bf16.msra.mxu0 0
    %3730 = vmatprep.mubr.bf16.mxu0 0
    %3731 = vmatmul.mubr.bf16.gmra.mrb[0].mxu0 %v3693
    %v3732 = vpop.f32.mrb[0].mxu0
    %v3733 = vadd.f32 %v3678, %v3732
    %v3734 = vpop.f32.mrb[0].mxu0
    %v3735 = vpop.f32.mrb[0].mxu0
    %v3736 = vadd.f32 %v3678, %v3735
    %v3737 = vpop.f32.mrb[0].mxu0
    %3738 = vmatprep.mubr.bf16.mxu0 0
    %3739 = vmatmul.mubr.bf16.gmra.mrb[0].mxu0 %v3696
    %v3740 = vpop.f32.mrb[0].mxu0
    %v3741 = vadd.f32 %v3678, %v3740
    %v3742 = vpop.f32.mrb[0].mxu0
    %v3743 = vpop.f32.mrb[0].mxu0
    %v3744 = vadd.f32 %v3678, %v3743
    %v3745 = vpop.f32.mrb[0].mxu0
    %3746 = vdwg.mxu0
    %v3747 = vadd.f32 %v3353, %v3733
    %v3748 = vadd.f32 %v3354, %v3736
    %v3749 = vadd.f32 %v3355, %v3741
    %v3750 = vadd.f32 %v3356, %v3744
    %v3751 = vmul.f32 %v1091, %v3632
    %v3752 = vmul.f32 %v1092, %v3629
    %v3753 = vmul.f32 %v1093, %v3630
    %v3754 = vmul.f32 %v1094, %v3631
    %3759 = vrot.lane.b32.xlu0 %v3629, 32
    %v3760 = vpop.permute.xlu0 %3759
    %3761 = vrot.lane.b32.xlu0 %v3630, 32
    %v3762 = vpop.permute.xlu0 %3761
    %3763 = vrot.lane.b32.xlu0 %v3631, 32
    %v3764 = vpop.permute.xlu0 %3763
    %3765 = vrot.lane.b32.xlu0 %v3632, 32
    %v3766 = vpop.permute.xlu0 %3765
    %v3771 = vsel %vm91, %v3751, %v3760
    %v3772 = vsel %vm91, %v3752, %v3762
    %v3773 = vsel %vm91, %v3753, %v3764
    %v3774 = vsel %vm91, %v3754, %v3766
    %v3775 = vpack.c.bf16 %v3772, %v3771
    %v3776 = vpack.c.bf16 %v3774, %v3773
    %v3777 = vmul.f32 %v1091, %v3664
    %v3778 = vmul.f32 %v1092, %v3661
    %v3779 = vmul.f32 %v1093, %v3662
    %v3780 = vmul.f32 %v1094, %v3663
    %3785 = vrot.lane.b32.xlu0 %v3661, 32
    %v3786 = vpop.permute.xlu0 %3785
    %3787 = vrot.lane.b32.xlu0 %v3662, 32
    %v3788 = vpop.permute.xlu0 %3787
    %3789 = vrot.lane.b32.xlu0 %v3663, 32
    %v3790 = vpop.permute.xlu0 %3789
    %3791 = vrot.lane.b32.xlu0 %v3664, 32
    %v3792 = vpop.permute.xlu0 %3791
    %v3797 = vsel %vm91, %v3777, %v3786
    %v3798 = vsel %vm91, %v3778, %v3788
    %v3799 = vsel %vm91, %v3779, %v3790
    %v3800 = vsel %vm91, %v3780, %v3792
    %v3801 = vpack.c.bf16 %v3798, %v3797
    %v3802 = vpack.c.bf16 %v3800, %v3799
    %s3803 = scalar_lea.vmem %s2, 352
    %v3804 = vld [vmem:[%s3803] sm:$0xf]
    %v3805 = vld [vmem:[%s3803 + $0x4] sm:$0xf]
    %v3806 = vld [vmem:[%s3803 + $0x8] sm:$0xf]
    %v3807 = vld [vmem:[%s3803 + $0xc] sm:$0xf]
    %v3808 = vld [vmem:[%s3803 + $0x10] sm:$0xf]
    %v3809 = vld [vmem:[%s3803 + $0x14] sm:$0xf]
    %v3810 = vld [vmem:[%s3803 + $0x18] sm:$0xf]
    %v3811 = vld [vmem:[%s3803 + $0x1c] sm:$0xf]
    %s3812 = scalar_lea.vmem %s4, 320
    %v3813 = vld [vmem:[%s3812] sm:$0xf]
    %v3814 = vld [vmem:[%s3812 + $0x4] sm:$0xf]
    %v3815 = vld [vmem:[%s3812 + $0x8] sm:$0xf]
    %v3816 = vld [vmem:[%s3812 + $0xc] sm:$0xf]
    %v3817 = vld [vmem:[%s3812 + $0x10] sm:$0xf]
    %v3818 = vld [vmem:[%s3812 + $0x14] sm:$0xf]
    %v3819 = vld [vmem:[%s3812 + $0x18] sm:$0xf]
    %v3820 = vld [vmem:[%s3812 + $0x1c] sm:$0xf]
    %v3829 = vunpack.c.l.b16 %v3813
    %v3830 = vunpack.c.l.b16 %v3814
    %v3831 = vunpack.c.l.b16 %v3815
    %v3832 = vunpack.c.l.b16 %v3816
    %v3833 = vunpack.c.l.b16 %v3817
    %v3834 = vunpack.c.l.b16 %v3818
    %v3835 = vunpack.c.l.b16 %v3819
    %v3836 = vunpack.c.l.b16 %v3820
    %v3837 = vpack.c.b16 %v3830, %v3829
    %v3838 = vpack.c.b16 %v3832, %v3831
    %v3839 = vpack.c.b16 %v3834, %v3833
    %v3840 = vpack.c.b16 %v3836, %v3835
    %v3846 = vsel %vm137, %v3801, 0
    %v3849 = vsel %vm137, %v3802, 0
    %3851 = vmatprep.subr.bf16.mxu0 0
    %3852 = vmatpush1.bf16.msra.mxu0 %v3837
    %3853 = vmatprep.subr.bf16.mxu0 0
    %3854 = vmatpush1.bf16.msra.mxu0 %v3838
    %3855 = vmatprep.subr.bf16.mxu0 0
    %3856 = vmatpush1.bf16.msra.mxu0 %v3839
    %3857 = vmatprep.subr.bf16.mxu0 0
    %3858 = vmatpush1.bf16.msra.mxu0 %v3840
    %3859 = vmatprep.subr.bf16.mxu0 0
    %3860 = vmatpush1.bf16.msra.mxu0 0
    %3861 = vmatprep.subr.bf16.mxu0 0
    %3862 = vmatpush1.bf16.msra.mxu0 0
    %3863 = vmatprep.subr.bf16.mxu0 0
    %3864 = vmatpush1.bf16.msra.mxu0 0
    %3865 = vmatprep.subr.bf16.mxu0 0
    %3866 = vmatpush1.bf16.msra.mxu0 0
    %3867 = vmatprep.subr.bf16.mxu0 0
    %3868 = vmatpush1.bf16.msra.mxu0 0
    %3869 = vmatprep.subr.bf16.mxu0 0
    %3870 = vmatpush1.bf16.msra.mxu0 0
    %3871 = vmatprep.subr.bf16.mxu0 0
    %3872 = vmatpush1.bf16.msra.mxu0 0
    %3873 = vmatprep.subr.bf16.mxu0 0
    %3874 = vmatpush1.bf16.msra.mxu0 0
    %3875 = vmatprep.subr.bf16.mxu0 0
    %3876 = vmatpush1.bf16.msra.mxu0 0
    %3877 = vmatprep.subr.bf16.mxu0 0
    %3878 = vmatpush1.bf16.msra.mxu0 0
    %3879 = vmatprep.subr.bf16.mxu0 0
    %3880 = vmatpush1.bf16.msra.mxu0 0
    %3881 = vmatprep.subr.bf16.mxu0 0
    %3882 = vmatpush1.bf16.msra.mxu0 0
    %3883 = vmatprep.mubr.bf16.mxu0 0
    %3884 = vmatmul.mubr.bf16.gmra.mrb[0].mxu0 %v3846
    %v3885 = vpop.f32.mrb[0].mxu0
    %v3886 = vadd.f32 0.0, %v3885
    %v3887 = vpop.f32.mrb[0].mxu0
    %v3888 = vpop.f32.mrb[0].mxu0
    %v3889 = vadd.f32 0.0, %v3888
    %v3890 = vpop.f32.mrb[0].mxu0
    %3891 = vmatprep.mubr.bf16.mxu0 0
    %3892 = vmatmul.mubr.bf16.gmra.mrb[0].mxu0 %v3849
    %v3893 = vpop.f32.mrb[0].mxu0
    %v3894 = vadd.f32 0.0, %v3893
    %v3895 = vpop.f32.mrb[0].mxu0
    %v3896 = vpop.f32.mrb[0].mxu0
    %v3897 = vadd.f32 0.0, %v3896
    %v3898 = vpop.f32.mrb[0].mxu0
    %3899 = vdwg.mxu0
    %v3908 = vunpack.c.l.b16 %v3804
    %v3909 = vunpack.c.l.b16 %v3805
    %v3910 = vunpack.c.l.b16 %v3806
    %v3911 = vunpack.c.l.b16 %v3807
    %v3912 = vunpack.c.l.b16 %v3808
    %v3913 = vunpack.c.l.b16 %v3809
    %v3914 = vunpack.c.l.b16 %v3810
    %v3915 = vunpack.c.l.b16 %v3811
    %v3916 = vpack.c.b16 %v3909, %v3908
    %v3917 = vpack.c.b16 %v3911, %v3910
    %v3918 = vpack.c.b16 %v3913, %v3912
    %v3919 = vpack.c.b16 %v3915, %v3914
    %v3925 = vsel %vm137, %v3775, 0
    %v3928 = vsel %vm137, %v3776, 0
    %3930 = vmatprep.subr.bf16.mxu0 0
    %3931 = vmatpush1.bf16.msra.mxu0 %v3916
    %3932 = vmatprep.subr.bf16.mxu0 0
    %3933 = vmatpush1.bf16.msra.mxu0 %v3917
    %3934 = vmatprep.subr.bf16.mxu0 0
    %3935 = vmatpush1.bf16.msra.mxu0 %v3918
    %3936 = vmatprep.subr.bf16.mxu0 0
    %3937 = vmatpush1.bf16.msra.mxu0 %v3919
    %3938 = vmatprep.subr.bf16.mxu0 0
    %3939 = vmatpush1.bf16.msra.mxu0 0
    %3940 = vmatprep.subr.bf16.mxu0 0
    %3941 = vmatpush1.bf16.msra.mxu0 0
    %3942 = vmatprep.subr.bf16.mxu0 0
    %3943 = vmatpush1.bf16.msra.mxu0 0
    %3944 = vmatprep.subr.bf16.mxu0 0
    %3945 = vmatpush1.bf16.msra.mxu0 0
    %3946 = vmatprep.subr.bf16.mxu0 0
    %3947 = vmatpush1.bf16.msra.mxu0 0
    %3948 = vmatprep.subr.bf16.mxu0 0
    %3949 = vmatpush1.bf16.msra.mxu0 0
    %3950 = vmatprep.subr.bf16.mxu0 0
    %3951 = vmatpush1.bf16.msra.mxu0 0
    %3952 = vmatprep.subr.bf16.mxu0 0
    %3953 = vmatpush1.bf16.msra.mxu0 0
    %3954 = vmatprep.subr.bf16.mxu0 0
    %3955 = vmatpush1.bf16.msra.mxu0 0
    %3956 = vmatprep.subr.bf16.mxu0 0
    %3957 = vmatpush1.bf16.msra.mxu0 0
    %3958 = vmatprep.subr.bf16.mxu0 0
    %3959 = vmatpush1.bf16.msra.mxu0 0
    %3960 = vmatprep.subr.bf16.mxu0 0
    %3961 = vmatpush1.bf16.msra.mxu0 0
    %3962 = vmatprep.mubr.bf16.mxu0 0
    %3963 = vmatmul.mubr.bf16.gmra.mrb[0].mxu0 %v3925
    %v3964 = vpop.f32.mrb[0].mxu0
    %v3965 = vadd.f32 %v3886, %v3964
    %v3966 = vpop.f32.mrb[0].mxu0
    %v3967 = vpop.f32.mrb[0].mxu0
    %v3968 = vadd.f32 %v3889, %v3967
    %v3969 = vpop.f32.mrb[0].mxu0
    %3970 = vmatprep.mubr.bf16.mxu0 0
    %3971 = vmatmul.mubr.bf16.gmra.mrb[0].mxu0 %v3928
    %v3972 = vpop.f32.mrb[0].mxu0
    %v3973 = vadd.f32 %v3894, %v3972
    %v3974 = vpop.f32.mrb[0].mxu0
    %v3975 = vpop.f32.mrb[0].mxu0
    %v3976 = vadd.f32 %v3897, %v3975
    %v3977 = vpop.f32.mrb[0].mxu0
    %3978 = vdwg.mxu0
    %s3979 = scalar_lea.vmem %s5, 10
    %v3980 = vld [vmem:[%s3979] sm:$0x1]
    %v3982 = vlaneseq
    %v3983 = vshrl.u32 %v3982, 7
    %v3984 = vsub.s32 0, %v3983
    %v3985 = vrot.slane %v3980, %v3984
    %v3987 = vadd.f32 %v3965, %v3985
    %v3988 = vadd.f32 %v3968, %v3985
    %v3989 = vadd.f32 %v3973, %v3985
    %v3990 = vadd.f32 %v3976, %v3985
    %s3991 = scalar_lea.vmem %s6, 10
    %v3992 = vld [vmem:[%s3991] sm:$0x1]
    %v3994 = vlaneseq
    %v3995 = vshrl.u32 %v3994, 7
    %v3996 = vsub.s32 0, %v3995
    %v3997 = vrot.slane %v3992, %v3996
    %v3999 = vmul.f32 %v1091, %v3997
    %v4000 = vmul.f32 %v1092, %v3997
    %v4001 = vmul.f32 %v1093, %v3997
    %v4002 = vmul.f32 %v1094, %v3997
    %v4003 = vadd.f32 %v3987, %v3999
    %v4004 = vadd.f32 %v3988, %v4000
    %v4005 = vadd.f32 %v3989, %v4001
    %v4006 = vadd.f32 %v3990, %v4002
    %v4007 = vadd.f32 %v3629, %v3733
    %v4008 = vadd.f32 %v3630, %v3736
    %v4009 = vadd.f32 %v3631, %v3741
    %v4010 = vadd.f32 %v3632, %v3744
    %v4011 = vtanh.pop %v4003
    %v4012 = vtanh.pop %v4004
    %v4013 = vtanh.pop %v4005
    %v4014 = vtanh.pop %v4006
    %v4015 = vmul.f32 %v4011, 0.5
    %v4016 = vmul.f32 %v4012, 0.5
    %v4017 = vmul.f32 %v4013, 0.5
    %v4018 = vmul.f32 %v4014, 0.5
    %v4019 = vadd.f32 %v4015, 0.5
    %v4020 = vadd.f32 %v4016, 0.5
    %v4021 = vadd.f32 %v4017, 0.5
    %v4022 = vadd.f32 %v4018, 0.5
    %4027 = vrot.lane.b32.xlu0 %v4019, 96
    %v4028 = vpop.permute.xlu0 %4027
    %4029 = vrot.lane.b32.xlu0 %v4020, 96
    %v4030 = vpop.permute.xlu0 %4029
    %4031 = vrot.lane.b32.xlu0 %v4021, 96
    %v4032 = vpop.permute.xlu0 %4031
    %4033 = vrot.lane.b32.xlu0 %v4022, 96
    %v4034 = vpop.permute.xlu0 %4033
    %v4039 = vmul.f32 %v4011, %v4028
    %v4040 = vmul.f32 %v4012, %v4030
    %v4041 = vmul.f32 %v4013, %v4032
    %v4042 = vmul.f32 %v4014, %v4034
    %v4043 = vpack.c.bf16 %v4040, %v4039
    %v4044 = vpack.c.bf16 %v4042, %v4041
    %s4045 = scalar_lea.vmem %s7, 176
    %v4046 = vld [vmem:[%s4045] sm:$0xf]
    %v4047 = vld [vmem:[%s4045 + $0x4] sm:$0xf]
    %v4048 = vld [vmem:[%s4045 + $0x8] sm:$0xf]
    %v4049 = vld [vmem:[%s4045 + $0xc] sm:$0xf]
    %s4050 = scalar_lea.vmem %s8, 11
    %v4051 = vld [vmem:[%s4050] sm:$0x1]
    %v4053 = vlaneseq
    %v4054 = vshrl.u32 %v4053, 7
    %v4055 = vsub.s32 0, %v4054
    %v4056 = vrot.slane %v4051, %v4055
    %v4062 = vunpack.c.l.b16 %v4046
    %v4063 = vunpack.c.l.b16 %v4047
    %v4064 = vunpack.c.l.b16 %v4048
    %v4065 = vunpack.c.l.b16 %v4049
    %v4066 = vpack.c.b16 %v4063, %v4062
    %v4067 = vpack.c.b16 %v4065, %v4064
    %v4071 = vsel %vm91, %v4043, 0
    %v4074 = vsel %vm91, %v4044, 0
    %4076 = vmatprep.subr.bf16.mxu0 0
    %4077 = vmatpush1.bf16.msra.mxu0 %v4066
    %4078 = vmatprep.subr.bf16.mxu0 0
    %4079 = vmatpush1.bf16.msra.mxu0 %v4067
    %4080 = vmatprep.subr.bf16.mxu0 0
    %4081 = vmatpush1.bf16.msra.mxu0 0
    %4082 = vmatprep.subr.bf16.mxu0 0
    %4083 = vmatpush1.bf16.msra.mxu0 0
    %4084 = vmatprep.subr.bf16.mxu0 0
    %4085 = vmatpush1.bf16.msra.mxu0 0
    %4086 = vmatprep.subr.bf16.mxu0 0
    %4087 = vmatpush1.bf16.msra.mxu0 0
    %4088 = vmatprep.subr.bf16.mxu0 0
    %4089 = vmatpush1.bf16.msra.mxu0 0
    %4090 = vmatprep.subr.bf16.mxu0 0
    %4091 = vmatpush1.bf16.msra.mxu0 0
    %4092 = vmatprep.subr.bf16.mxu0 0
    %4093 = vmatpush1.bf16.msra.mxu0 0
    %4094 = vmatprep.subr.bf16.mxu0 0
    %4095 = vmatpush1.bf16.msra.mxu0 0
    %4096 = vmatprep.subr.bf16.mxu0 0
    %4097 = vmatpush1.bf16.msra.mxu0 0
    %4098 = vmatprep.subr.bf16.mxu0 0
    %4099 = vmatpush1.bf16.msra.mxu0 0
    %4100 = vmatprep.subr.bf16.mxu0 0
    %4101 = vmatpush1.bf16.msra.mxu0 0
    %4102 = vmatprep.subr.bf16.mxu0 0
    %4103 = vmatpush1.bf16.msra.mxu0 0
    %4104 = vmatprep.subr.bf16.mxu0 0
    %4105 = vmatpush1.bf16.msra.mxu0 0
    %4106 = vmatprep.subr.bf16.mxu0 0
    %4107 = vmatpush1.bf16.msra.mxu0 0
    %4108 = vmatprep.mubr.bf16.mxu0 0
    %4109 = vmatmul.mubr.bf16.gmra.mrb[0].mxu0 %v4071
    %v4110 = vpop.f32.mrb[0].mxu0
    %v4111 = vadd.f32 %v4056, %v4110
    %v4112 = vpop.f32.mrb[0].mxu0
    %v4113 = vpop.f32.mrb[0].mxu0
    %v4114 = vadd.f32 %v4056, %v4113
    %v4115 = vpop.f32.mrb[0].mxu0
    %4116 = vmatprep.mubr.bf16.mxu0 0
    %4117 = vmatmul.mubr.bf16.gmra.mrb[0].mxu0 %v4074
    %v4118 = vpop.f32.mrb[0].mxu0
    %v4119 = vadd.f32 %v4056, %v4118
    %v4120 = vpop.f32.mrb[0].mxu0
    %v4121 = vpop.f32.mrb[0].mxu0
    %v4122 = vadd.f32 %v4056, %v4121
    %v4123 = vpop.f32.mrb[0].mxu0
    %4124 = vdwg.mxu0
    %v4125 = vadd.f32 %v3747, %v4111
    %v4126 = vadd.f32 %v3748, %v4114
    %v4127 = vadd.f32 %v3749, %v4119
    %v4128 = vadd.f32 %v3750, %v4122
    %v4129 = vpack.c.bf16 %v4008, %v4007
    %v4130 = vpack.c.bf16 %v4010, %v4009
    %s4131 = scalar_lea.vmem %s2, 384
    %v4132 = vld [vmem:[%s4131 + $0x10] sm:$0xf]
    %v4133 = vld [vmem:[%s4131 + $0x14] sm:$0xf]
    %v4134 = vld [vmem:[%s4131 + $0x18] sm:$0xf]
    %v4135 = vld [vmem:[%s4131 + $0x1c] sm:$0xf]
    %s4136 = scalar_lea.vmem %s4, 352
    %v4137 = vld [vmem:[%s4136 + $0x10] sm:$0xf]
    %v4138 = vld [vmem:[%s4136 + $0x14] sm:$0xf]
    %v4139 = vld [vmem:[%s4136 + $0x18] sm:$0xf]
    %v4140 = vld [vmem:[%s4136 + $0x1c] sm:$0xf]
    %v4145 = vunpack.c.l.b16 %v4137
    %v4146 = vunpack.c.l.b16 %v4138
    %v4147 = vunpack.c.l.b16 %v4139
    %v4148 = vunpack.c.l.b16 %v4140
    %v4149 = vpack.c.b16 %v4146, %v4145
    %v4150 = vpack.c.b16 %v4148, %v4147
    %4153 = vmatprep.subr.bf16.mxu0 0
    %4154 = vmatpush1.bf16.msra.mxu0 %v4149
    %4155 = vmatprep.subr.bf16.mxu0 0
    %4156 = vmatpush1.bf16.msra.mxu0 %v4150
    %4157 = vmatprep.subr.bf16.mxu0 0
    %4158 = vmatpush1.bf16.msra.mxu0 0
    %4159 = vmatprep.subr.bf16.mxu0 0
    %4160 = vmatpush1.bf16.msra.mxu0 0
    %4161 = vmatprep.subr.bf16.mxu0 0
    %4162 = vmatpush1.bf16.msra.mxu0 0
    %4163 = vmatprep.subr.bf16.mxu0 0
    %4164 = vmatpush1.bf16.msra.mxu0 0
    %4165 = vmatprep.subr.bf16.mxu0 0
    %4166 = vmatpush1.bf16.msra.mxu0 0
    %4167 = vmatprep.subr.bf16.mxu0 0
    %4168 = vmatpush1.bf16.msra.mxu0 0
    %4169 = vmatprep.subr.bf16.mxu0 0
    %4170 = vmatpush1.bf16.msra.mxu0 0
    %4171 = vmatprep.subr.bf16.mxu0 0
    %4172 = vmatpush1.bf16.msra.mxu0 0
    %4173 = vmatprep.subr.bf16.mxu0 0
    %4174 = vmatpush1.bf16.msra.mxu0 0
    %4175 = vmatprep.subr.bf16.mxu0 0
    %4176 = vmatpush1.bf16.msra.mxu0 0
    %4177 = vmatprep.subr.bf16.mxu0 0
    %4178 = vmatpush1.bf16.msra.mxu0 0
    %4179 = vmatprep.subr.bf16.mxu0 0
    %4180 = vmatpush1.bf16.msra.mxu0 0
    %4181 = vmatprep.subr.bf16.mxu0 0
    %4182 = vmatpush1.bf16.msra.mxu0 0
    %4183 = vmatprep.subr.bf16.mxu0 0
    %4184 = vmatpush1.bf16.msra.mxu0 0
    %4185 = vmatprep.mubr.bf16.mxu0 0
    %4186 = vmatmul.mubr.bf16.gmra.mrb[0].mxu0 %v4071
    %v4187 = vpop.f32.mrb[0].mxu0
    %v4188 = vadd.f32 0.0, %v4187
    %v4189 = vpop.f32.mrb[0].mxu0
    %v4190 = vpop.f32.mrb[0].mxu0
    %v4191 = vadd.f32 0.0, %v4190
    %v4192 = vpop.f32.mrb[0].mxu0
    %4193 = vmatprep.mubr.bf16.mxu0 0
    %4194 = vmatmul.mubr.bf16.gmra.mrb[0].mxu0 %v4074
    %v4195 = vpop.f32.mrb[0].mxu0
    %v4196 = vadd.f32 0.0, %v4195
    %v4197 = vpop.f32.mrb[0].mxu0
    %v4198 = vpop.f32.mrb[0].mxu0
    %v4199 = vadd.f32 0.0, %v4198
    %v4200 = vpop.f32.mrb[0].mxu0
    %4201 = vdwg.mxu0
    %v4206 = vunpack.c.l.b16 %v4132
    %v4207 = vunpack.c.l.b16 %v4133
    %v4208 = vunpack.c.l.b16 %v4134
    %v4209 = vunpack.c.l.b16 %v4135
    %v4210 = vpack.c.b16 %v4207, %v4206
    %v4211 = vpack.c.b16 %v4209, %v4208
    %v4215 = vsel %vm91, %v4129, 0
    %v4218 = vsel %vm91, %v4130, 0
    %4220 = vmatprep.subr.bf16.mxu0 0
    %4221 = vmatpush1.bf16.msra.mxu0 %v4210
    %4222 = vmatprep.subr.bf16.mxu0 0
    %4223 = vmatpush1.bf16.msra.mxu0 %v4211
    %4224 = vmatprep.subr.bf16.mxu0 0
    %4225 = vmatpush1.bf16.msra.mxu0 0
    %4226 = vmatprep.subr.bf16.mxu0 0
    %4227 = vmatpush1.bf16.msra.mxu0 0
    %4228 = vmatprep.subr.bf16.mxu0 0
    %4229 = vmatpush1.bf16.msra.mxu0 0
    %4230 = vmatprep.subr.bf16.mxu0 0
    %4231 = vmatpush1.bf16.msra.mxu0 0
    %4232 = vmatprep.subr.bf16.mxu0 0
    %4233 = vmatpush1.bf16.msra.mxu0 0
    %4234 = vmatprep.subr.bf16.mxu0 0
    %4235 = vmatpush1.bf16.msra.mxu0 0
    %4236 = vmatprep.subr.bf16.mxu0 0
    %4237 = vmatpush1.bf16.msra.mxu0 0
    %4238 = vmatprep.subr.bf16.mxu0 0
    %4239 = vmatpush1.bf16.msra.mxu0 0
    %4240 = vmatprep.subr.bf16.mxu0 0
    %4241 = vmatpush1.bf16.msra.mxu0 0
    %4242 = vmatprep.subr.bf16.mxu0 0
    %4243 = vmatpush1.bf16.msra.mxu0 0
    %4244 = vmatprep.subr.bf16.mxu0 0
    %4245 = vmatpush1.bf16.msra.mxu0 0
    %4246 = vmatprep.subr.bf16.mxu0 0
    %4247 = vmatpush1.bf16.msra.mxu0 0
    %4248 = vmatprep.subr.bf16.mxu0 0
    %4249 = vmatpush1.bf16.msra.mxu0 0
    %4250 = vmatprep.subr.bf16.mxu0 0
    %4251 = vmatpush1.bf16.msra.mxu0 0
    %4252 = vmatprep.mubr.bf16.mxu0 0
    %4253 = vmatmul.mubr.bf16.gmra.mrb[0].mxu0 %v4215
    %v4254 = vpop.f32.mrb[0].mxu0
    %v4255 = vadd.f32 %v4188, %v4254
    %v4256 = vpop.f32.mrb[0].mxu0
    %v4257 = vpop.f32.mrb[0].mxu0
    %v4258 = vadd.f32 %v4191, %v4257
    %v4259 = vpop.f32.mrb[0].mxu0
    %4260 = vmatprep.mubr.bf16.mxu0 0
    %4261 = vmatmul.mubr.bf16.gmra.mrb[0].mxu0 %v4218
    %v4262 = vpop.f32.mrb[0].mxu0
    %v4263 = vadd.f32 %v4196, %v4262
    %v4264 = vpop.f32.mrb[0].mxu0
    %v4265 = vpop.f32.mrb[0].mxu0
    %v4266 = vadd.f32 %v4199, %v4265
    %v4267 = vpop.f32.mrb[0].mxu0
    %4268 = vdwg.mxu0
    %s4269 = scalar_lea.vmem %s5, 11
    %v4270 = vld [vmem:[%s4269] sm:$0x1]
    %v4272 = vlaneseq
    %v4273 = vshrl.u32 %v4272, 7
    %v4274 = vsub.s32 0, %v4273
    %v4275 = vrot.slane %v4270, %v4274
    %v4277 = vadd.f32 %v4255, %v4275
    %v4278 = vadd.f32 %v4258, %v4275
    %v4279 = vadd.f32 %v4263, %v4275
    %v4280 = vadd.f32 %v4266, %v4275
    %v4281 = vadd.f32 %v4007, %v4111
    %v4282 = vadd.f32 %v4008, %v4114
    %v4283 = vadd.f32 %v4009, %v4119
    %v4284 = vadd.f32 %v4010, %v4122
    %v4285 = vtanh.pop %v4277
    %v4286 = vtanh.pop %v4278
    %v4287 = vtanh.pop %v4279
    %v4288 = vtanh.pop %v4280
    %v4289 = vmul.f32 %v4285, 0.5
    %v4290 = vmul.f32 %v4286, 0.5
    %v4291 = vmul.f32 %v4287, 0.5
    %v4292 = vmul.f32 %v4288, 0.5
    %v4293 = vadd.f32 %v4289, 0.5
    %v4294 = vadd.f32 %v4290, 0.5
    %v4295 = vadd.f32 %v4291, 0.5
    %v4296 = vadd.f32 %v4292, 0.5
    %4301 = vrot.lane.b32.xlu0 %v4293, 96
    %v4302 = vpop.permute.xlu0 %4301
    %4303 = vrot.lane.b32.xlu0 %v4294, 96
    %v4304 = vpop.permute.xlu0 %4303
    %4305 = vrot.lane.b32.xlu0 %v4295, 96
    %v4306 = vpop.permute.xlu0 %4305
    %4307 = vrot.lane.b32.xlu0 %v4296, 96
    %v4308 = vpop.permute.xlu0 %4307
    %v4313 = vmul.f32 %v4285, %v4302
    %v4314 = vmul.f32 %v4286, %v4304
    %v4315 = vmul.f32 %v4287, %v4306
    %v4316 = vmul.f32 %v4288, %v4308
    %v4317 = vpack.c.bf16 %v4314, %v4313
    %v4318 = vpack.c.bf16 %v4316, %v4315
    %s4319 = scalar_lea.vmem %s7, 192
    %v4320 = vld [vmem:[%s4319] sm:$0xf]
    %v4321 = vld [vmem:[%s4319 + $0x4] sm:$0xf]
    %v4322 = vld [vmem:[%s4319 + $0x8] sm:$0xf]
    %v4323 = vld [vmem:[%s4319 + $0xc] sm:$0xf]
    %s4324 = scalar_lea.vmem %s8, 12
    %v4325 = vld [vmem:[%s4324] sm:$0x1]
    %v4327 = vlaneseq
    %v4328 = vshrl.u32 %v4327, 7
    %v4329 = vsub.s32 0, %v4328
    %v4330 = vrot.slane %v4325, %v4329
    %v4336 = vunpack.c.l.b16 %v4320
    %v4337 = vunpack.c.l.b16 %v4321
    %v4338 = vunpack.c.l.b16 %v4322
    %v4339 = vunpack.c.l.b16 %v4323
    %v4340 = vpack.c.b16 %v4337, %v4336
    %v4341 = vpack.c.b16 %v4339, %v4338
    %v4345 = vsel %vm91, %v4317, 0
    %v4348 = vsel %vm91, %v4318, 0
    %4350 = vmatprep.subr.bf16.mxu0 0
    %4351 = vmatpush1.bf16.msra.mxu0 %v4340
    %4352 = vmatprep.subr.bf16.mxu0 0
    %4353 = vmatpush1.bf16.msra.mxu0 %v4341
    %4354 = vmatprep.subr.bf16.mxu0 0
    %4355 = vmatpush1.bf16.msra.mxu0 0
    %4356 = vmatprep.subr.bf16.mxu0 0
    %4357 = vmatpush1.bf16.msra.mxu0 0
    %4358 = vmatprep.subr.bf16.mxu0 0
    %4359 = vmatpush1.bf16.msra.mxu0 0
    %4360 = vmatprep.subr.bf16.mxu0 0
    %4361 = vmatpush1.bf16.msra.mxu0 0
    %4362 = vmatprep.subr.bf16.mxu0 0
    %4363 = vmatpush1.bf16.msra.mxu0 0
    %4364 = vmatprep.subr.bf16.mxu0 0
    %4365 = vmatpush1.bf16.msra.mxu0 0
    %4366 = vmatprep.subr.bf16.mxu0 0
    %4367 = vmatpush1.bf16.msra.mxu0 0
    %4368 = vmatprep.subr.bf16.mxu0 0
    %4369 = vmatpush1.bf16.msra.mxu0 0
    %4370 = vmatprep.subr.bf16.mxu0 0
    %4371 = vmatpush1.bf16.msra.mxu0 0
    %4372 = vmatprep.subr.bf16.mxu0 0
    %4373 = vmatpush1.bf16.msra.mxu0 0
    %4374 = vmatprep.subr.bf16.mxu0 0
    %4375 = vmatpush1.bf16.msra.mxu0 0
    %4376 = vmatprep.subr.bf16.mxu0 0
    %4377 = vmatpush1.bf16.msra.mxu0 0
    %4378 = vmatprep.subr.bf16.mxu0 0
    %4379 = vmatpush1.bf16.msra.mxu0 0
    %4380 = vmatprep.subr.bf16.mxu0 0
    %4381 = vmatpush1.bf16.msra.mxu0 0
    %4382 = vmatprep.mubr.bf16.mxu0 0
    %4383 = vmatmul.mubr.bf16.gmra.mrb[0].mxu0 %v4345
    %v4384 = vpop.f32.mrb[0].mxu0
    %v4385 = vadd.f32 %v4330, %v4384
    %v4386 = vpop.f32.mrb[0].mxu0
    %v4387 = vpop.f32.mrb[0].mxu0
    %v4388 = vadd.f32 %v4330, %v4387
    %v4389 = vpop.f32.mrb[0].mxu0
    %4390 = vmatprep.mubr.bf16.mxu0 0
    %4391 = vmatmul.mubr.bf16.gmra.mrb[0].mxu0 %v4348
    %v4392 = vpop.f32.mrb[0].mxu0
    %v4393 = vadd.f32 %v4330, %v4392
    %v4394 = vpop.f32.mrb[0].mxu0
    %v4395 = vpop.f32.mrb[0].mxu0
    %v4396 = vadd.f32 %v4330, %v4395
    %v4397 = vpop.f32.mrb[0].mxu0
    %4398 = vdwg.mxu0
    %v4399 = vadd.f32 %v4125, %v4385
    %v4400 = vadd.f32 %v4126, %v4388
    %v4401 = vadd.f32 %v4127, %v4393
    %v4402 = vadd.f32 %v4128, %v4396
    %v4403 = vpack.c.bf16 %v4282, %v4281
    %v4404 = vpack.c.bf16 %v4284, %v4283
    %s4405 = scalar_lea.vmem %s2, 416
    %v4406 = vld [vmem:[%s4405 + $0x10] sm:$0xf]
    %v4407 = vld [vmem:[%s4405 + $0x14] sm:$0xf]
    %v4408 = vld [vmem:[%s4405 + $0x18] sm:$0xf]
    %v4409 = vld [vmem:[%s4405 + $0x1c] sm:$0xf]
    %s4410 = scalar_lea.vmem %s4, 384
    %v4411 = vld [vmem:[%s4410 + $0x10] sm:$0xf]
    %v4412 = vld [vmem:[%s4410 + $0x14] sm:$0xf]
    %v4413 = vld [vmem:[%s4410 + $0x18] sm:$0xf]
    %v4414 = vld [vmem:[%s4410 + $0x1c] sm:$0xf]
    %v4419 = vunpack.c.l.b16 %v4411
    %v4420 = vunpack.c.l.b16 %v4412
    %v4421 = vunpack.c.l.b16 %v4413
    %v4422 = vunpack.c.l.b16 %v4414
    %v4423 = vpack.c.b16 %v4420, %v4419
    %v4424 = vpack.c.b16 %v4422, %v4421
    %4427 = vmatprep.subr.bf16.mxu0 0
    %4428 = vmatpush1.bf16.msra.mxu0 %v4423
    %4429 = vmatprep.subr.bf16.mxu0 0
    %4430 = vmatpush1.bf16.msra.mxu0 %v4424
    %4431 = vmatprep.subr.bf16.mxu0 0
    %4432 = vmatpush1.bf16.msra.mxu0 0
    %4433 = vmatprep.subr.bf16.mxu0 0
    %4434 = vmatpush1.bf16.msra.mxu0 0
    %4435 = vmatprep.subr.bf16.mxu0 0
    %4436 = vmatpush1.bf16.msra.mxu0 0
    %4437 = vmatprep.subr.bf16.mxu0 0
    %4438 = vmatpush1.bf16.msra.mxu0 0
    %4439 = vmatprep.subr.bf16.mxu0 0
    %4440 = vmatpush1.bf16.msra.mxu0 0
    %4441 = vmatprep.subr.bf16.mxu0 0
    %4442 = vmatpush1.bf16.msra.mxu0 0
    %4443 = vmatprep.subr.bf16.mxu0 0
    %4444 = vmatpush1.bf16.msra.mxu0 0
    %4445 = vmatprep.subr.bf16.mxu0 0
    %4446 = vmatpush1.bf16.msra.mxu0 0
    %4447 = vmatprep.subr.bf16.mxu0 0
    %4448 = vmatpush1.bf16.msra.mxu0 0
    %4449 = vmatprep.subr.bf16.mxu0 0
    %4450 = vmatpush1.bf16.msra.mxu0 0
    %4451 = vmatprep.subr.bf16.mxu0 0
    %4452 = vmatpush1.bf16.msra.mxu0 0
    %4453 = vmatprep.subr.bf16.mxu0 0
    %4454 = vmatpush1.bf16.msra.mxu0 0
    %4455 = vmatprep.subr.bf16.mxu0 0
    %4456 = vmatpush1.bf16.msra.mxu0 0
    %4457 = vmatprep.subr.bf16.mxu0 0
    %4458 = vmatpush1.bf16.msra.mxu0 0
    %4459 = vmatprep.mubr.bf16.mxu0 0
    %4460 = vmatmul.mubr.bf16.gmra.mrb[0].mxu0 %v4345
    %v4461 = vpop.f32.mrb[0].mxu0
    %v4462 = vadd.f32 0.0, %v4461
    %v4463 = vpop.f32.mrb[0].mxu0
    %v4464 = vpop.f32.mrb[0].mxu0
    %v4465 = vadd.f32 0.0, %v4464
    %v4466 = vpop.f32.mrb[0].mxu0
    %4467 = vmatprep.mubr.bf16.mxu0 0
    %4468 = vmatmul.mubr.bf16.gmra.mrb[0].mxu0 %v4348
    %v4469 = vpop.f32.mrb[0].mxu0
    %v4470 = vadd.f32 0.0, %v4469
    %v4471 = vpop.f32.mrb[0].mxu0
    %v4472 = vpop.f32.mrb[0].mxu0
    %v4473 = vadd.f32 0.0, %v4472
    %v4474 = vpop.f32.mrb[0].mxu0
    %4475 = vdwg.mxu0
    %v4480 = vunpack.c.l.b16 %v4406
    %v4481 = vunpack.c.l.b16 %v4407
    %v4482 = vunpack.c.l.b16 %v4408
    %v4483 = vunpack.c.l.b16 %v4409
    %v4484 = vpack.c.b16 %v4481, %v4480
    %v4485 = vpack.c.b16 %v4483, %v4482
    %v4489 = vsel %vm91, %v4403, 0
    %v4492 = vsel %vm91, %v4404, 0
    %4494 = vmatprep.subr.bf16.mxu0 0
    %4495 = vmatpush1.bf16.msra.mxu0 %v4484
    %4496 = vmatprep.subr.bf16.mxu0 0
    %4497 = vmatpush1.bf16.msra.mxu0 %v4485
    %4498 = vmatprep.subr.bf16.mxu0 0
    %4499 = vmatpush1.bf16.msra.mxu0 0
    %4500 = vmatprep.subr.bf16.mxu0 0
    %4501 = vmatpush1.bf16.msra.mxu0 0
    %4502 = vmatprep.subr.bf16.mxu0 0
    %4503 = vmatpush1.bf16.msra.mxu0 0
    %4504 = vmatprep.subr.bf16.mxu0 0
    %4505 = vmatpush1.bf16.msra.mxu0 0
    %4506 = vmatprep.subr.bf16.mxu0 0
    %4507 = vmatpush1.bf16.msra.mxu0 0
    %4508 = vmatprep.subr.bf16.mxu0 0
    %4509 = vmatpush1.bf16.msra.mxu0 0
    %4510 = vmatprep.subr.bf16.mxu0 0
    %4511 = vmatpush1.bf16.msra.mxu0 0
    %4512 = vmatprep.subr.bf16.mxu0 0
    %4513 = vmatpush1.bf16.msra.mxu0 0
    %4514 = vmatprep.subr.bf16.mxu0 0
    %4515 = vmatpush1.bf16.msra.mxu0 0
    %4516 = vmatprep.subr.bf16.mxu0 0
    %4517 = vmatpush1.bf16.msra.mxu0 0
    %4518 = vmatprep.subr.bf16.mxu0 0
    %4519 = vmatpush1.bf16.msra.mxu0 0
    %4520 = vmatprep.subr.bf16.mxu0 0
    %4521 = vmatpush1.bf16.msra.mxu0 0
    %4522 = vmatprep.subr.bf16.mxu0 0
    %4523 = vmatpush1.bf16.msra.mxu0 0
    %4524 = vmatprep.subr.bf16.mxu0 0
    %4525 = vmatpush1.bf16.msra.mxu0 0
    %4526 = vmatprep.mubr.bf16.mxu0 0
    %4527 = vmatmul.mubr.bf16.gmra.mrb[0].mxu0 %v4489
    %v4528 = vpop.f32.mrb[0].mxu0
    %v4529 = vadd.f32 %v4462, %v4528
    %v4530 = vpop.f32.mrb[0].mxu0
    %v4531 = vpop.f32.mrb[0].mxu0
    %v4532 = vadd.f32 %v4465, %v4531
    %v4533 = vpop.f32.mrb[0].mxu0
    %4534 = vmatprep.mubr.bf16.mxu0 0
    %4535 = vmatmul.mubr.bf16.gmra.mrb[0].mxu0 %v4492
    %v4536 = vpop.f32.mrb[0].mxu0
    %v4537 = vadd.f32 %v4470, %v4536
    %v4538 = vpop.f32.mrb[0].mxu0
    %v4539 = vpop.f32.mrb[0].mxu0
    %v4540 = vadd.f32 %v4473, %v4539
    %v4541 = vpop.f32.mrb[0].mxu0
    %4542 = vdwg.mxu0
    %s4543 = scalar_lea.vmem %s5, 12
    %v4544 = vld [vmem:[%s4543] sm:$0x1]
    %v4546 = vlaneseq
    %v4547 = vshrl.u32 %v4546, 7
    %v4548 = vsub.s32 0, %v4547
    %v4549 = vrot.slane %v4544, %v4548
    %v4551 = vadd.f32 %v4529, %v4549
    %v4552 = vadd.f32 %v4532, %v4549
    %v4553 = vadd.f32 %v4537, %v4549
    %v4554 = vadd.f32 %v4540, %v4549
    %v4555 = vadd.f32 %v4281, %v4385
    %v4556 = vadd.f32 %v4282, %v4388
    %v4557 = vadd.f32 %v4283, %v4393
    %v4558 = vadd.f32 %v4284, %v4396
    %v4559 = vtanh.pop %v4551
    %v4560 = vtanh.pop %v4552
    %v4561 = vtanh.pop %v4553
    %v4562 = vtanh.pop %v4554
    %v4563 = vmul.f32 %v4559, 0.5
    %v4564 = vmul.f32 %v4560, 0.5
    %v4565 = vmul.f32 %v4561, 0.5
    %v4566 = vmul.f32 %v4562, 0.5
    %v4567 = vadd.f32 %v4563, 0.5
    %v4568 = vadd.f32 %v4564, 0.5
    %v4569 = vadd.f32 %v4565, 0.5
    %v4570 = vadd.f32 %v4566, 0.5
    %4575 = vrot.lane.b32.xlu0 %v4567, 96
    %v4576 = vpop.permute.xlu0 %4575
    %4577 = vrot.lane.b32.xlu0 %v4568, 96
    %v4578 = vpop.permute.xlu0 %4577
    %4579 = vrot.lane.b32.xlu0 %v4569, 96
    %v4580 = vpop.permute.xlu0 %4579
    %4581 = vrot.lane.b32.xlu0 %v4570, 96
    %v4582 = vpop.permute.xlu0 %4581
    %v4587 = vmul.f32 %v4559, %v4576
    %v4588 = vmul.f32 %v4560, %v4578
    %v4589 = vmul.f32 %v4561, %v4580
    %v4590 = vmul.f32 %v4562, %v4582
    %v4591 = vpack.c.bf16 %v4588, %v4587
    %v4592 = vpack.c.bf16 %v4590, %v4589
    %s4593 = scalar_lea.vmem %s7, 208
    %v4594 = vld [vmem:[%s4593] sm:$0xf]
    %v4595 = vld [vmem:[%s4593 + $0x4] sm:$0xf]
    %v4596 = vld [vmem:[%s4593 + $0x8] sm:$0xf]
    %v4597 = vld [vmem:[%s4593 + $0xc] sm:$0xf]
    %s4598 = scalar_lea.vmem %s8, 13
    %v4599 = vld [vmem:[%s4598] sm:$0x1]
    %v4601 = vlaneseq
    %v4602 = vshrl.u32 %v4601, 7
    %v4603 = vsub.s32 0, %v4602
    %v4604 = vrot.slane %v4599, %v4603
    %v4610 = vunpack.c.l.b16 %v4594
    %v4611 = vunpack.c.l.b16 %v4595
    %v4612 = vunpack.c.l.b16 %v4596
    %v4613 = vunpack.c.l.b16 %v4597
    %v4614 = vpack.c.b16 %v4611, %v4610
    %v4615 = vpack.c.b16 %v4613, %v4612
    %v4619 = vsel %vm91, %v4591, 0
    %v4622 = vsel %vm91, %v4592, 0
    %4624 = vmatprep.subr.bf16.mxu0 0
    %4625 = vmatpush1.bf16.msra.mxu0 %v4614
    %4626 = vmatprep.subr.bf16.mxu0 0
    %4627 = vmatpush1.bf16.msra.mxu0 %v4615
    %4628 = vmatprep.subr.bf16.mxu0 0
    %4629 = vmatpush1.bf16.msra.mxu0 0
    %4630 = vmatprep.subr.bf16.mxu0 0
    %4631 = vmatpush1.bf16.msra.mxu0 0
    %4632 = vmatprep.subr.bf16.mxu0 0
    %4633 = vmatpush1.bf16.msra.mxu0 0
    %4634 = vmatprep.subr.bf16.mxu0 0
    %4635 = vmatpush1.bf16.msra.mxu0 0
    %4636 = vmatprep.subr.bf16.mxu0 0
    %4637 = vmatpush1.bf16.msra.mxu0 0
    %4638 = vmatprep.subr.bf16.mxu0 0
    %4639 = vmatpush1.bf16.msra.mxu0 0
    %4640 = vmatprep.subr.bf16.mxu0 0
    %4641 = vmatpush1.bf16.msra.mxu0 0
    %4642 = vmatprep.subr.bf16.mxu0 0
    %4643 = vmatpush1.bf16.msra.mxu0 0
    %4644 = vmatprep.subr.bf16.mxu0 0
    %4645 = vmatpush1.bf16.msra.mxu0 0
    %4646 = vmatprep.subr.bf16.mxu0 0
    %4647 = vmatpush1.bf16.msra.mxu0 0
    %4648 = vmatprep.subr.bf16.mxu0 0
    %4649 = vmatpush1.bf16.msra.mxu0 0
    %4650 = vmatprep.subr.bf16.mxu0 0
    %4651 = vmatpush1.bf16.msra.mxu0 0
    %4652 = vmatprep.subr.bf16.mxu0 0
    %4653 = vmatpush1.bf16.msra.mxu0 0
    %4654 = vmatprep.subr.bf16.mxu0 0
    %4655 = vmatpush1.bf16.msra.mxu0 0
    %4656 = vmatprep.mubr.bf16.mxu0 0
    %4657 = vmatmul.mubr.bf16.gmra.mrb[0].mxu0 %v4619
    %v4658 = vpop.f32.mrb[0].mxu0
    %v4659 = vadd.f32 %v4604, %v4658
    %v4660 = vpop.f32.mrb[0].mxu0
    %v4661 = vpop.f32.mrb[0].mxu0
    %v4662 = vadd.f32 %v4604, %v4661
    %v4663 = vpop.f32.mrb[0].mxu0
    %4664 = vmatprep.mubr.bf16.mxu0 0
    %4665 = vmatmul.mubr.bf16.gmra.mrb[0].mxu0 %v4622
    %v4666 = vpop.f32.mrb[0].mxu0
    %v4667 = vadd.f32 %v4604, %v4666
    %v4668 = vpop.f32.mrb[0].mxu0
    %v4669 = vpop.f32.mrb[0].mxu0
    %v4670 = vadd.f32 %v4604, %v4669
    %v4671 = vpop.f32.mrb[0].mxu0
    %4672 = vdwg.mxu0
    %v4673 = vadd.f32 %v4399, %v4659
    %v4674 = vadd.f32 %v4400, %v4662
    %v4675 = vadd.f32 %v4401, %v4667
    %v4676 = vadd.f32 %v4402, %v4670
    %v4677 = vpack.c.bf16 %v4556, %v4555
    %v4678 = vpack.c.bf16 %v4558, %v4557
    %s4679 = scalar_lea.vmem %s2, 448
    %v4680 = vld [vmem:[%s4679 + $0x10] sm:$0xf]
    %v4681 = vld [vmem:[%s4679 + $0x14] sm:$0xf]
    %v4682 = vld [vmem:[%s4679 + $0x18] sm:$0xf]
    %v4683 = vld [vmem:[%s4679 + $0x1c] sm:$0xf]
    %s4684 = scalar_lea.vmem %s4, 416
    %v4685 = vld [vmem:[%s4684 + $0x10] sm:$0xf]
    %v4686 = vld [vmem:[%s4684 + $0x14] sm:$0xf]
    %v4687 = vld [vmem:[%s4684 + $0x18] sm:$0xf]
    %v4688 = vld [vmem:[%s4684 + $0x1c] sm:$0xf]
    %v4693 = vunpack.c.l.b16 %v4685
    %v4694 = vunpack.c.l.b16 %v4686
    %v4695 = vunpack.c.l.b16 %v4687
    %v4696 = vunpack.c.l.b16 %v4688
    %v4697 = vpack.c.b16 %v4694, %v4693
    %v4698 = vpack.c.b16 %v4696, %v4695
    %4701 = vmatprep.subr.bf16.mxu0 0
    %4702 = vmatpush1.bf16.msra.mxu0 %v4697
    %4703 = vmatprep.subr.bf16.mxu0 0
    %4704 = vmatpush1.bf16.msra.mxu0 %v4698
    %4705 = vmatprep.subr.bf16.mxu0 0
    %4706 = vmatpush1.bf16.msra.mxu0 0
    %4707 = vmatprep.subr.bf16.mxu0 0
    %4708 = vmatpush1.bf16.msra.mxu0 0
    %4709 = vmatprep.subr.bf16.mxu0 0
    %4710 = vmatpush1.bf16.msra.mxu0 0
    %4711 = vmatprep.subr.bf16.mxu0 0
    %4712 = vmatpush1.bf16.msra.mxu0 0
    %4713 = vmatprep.subr.bf16.mxu0 0
    %4714 = vmatpush1.bf16.msra.mxu0 0
    %4715 = vmatprep.subr.bf16.mxu0 0
    %4716 = vmatpush1.bf16.msra.mxu0 0
    %4717 = vmatprep.subr.bf16.mxu0 0
    %4718 = vmatpush1.bf16.msra.mxu0 0
    %4719 = vmatprep.subr.bf16.mxu0 0
    %4720 = vmatpush1.bf16.msra.mxu0 0
    %4721 = vmatprep.subr.bf16.mxu0 0
    %4722 = vmatpush1.bf16.msra.mxu0 0
    %4723 = vmatprep.subr.bf16.mxu0 0
    %4724 = vmatpush1.bf16.msra.mxu0 0
    %4725 = vmatprep.subr.bf16.mxu0 0
    %4726 = vmatpush1.bf16.msra.mxu0 0
    %4727 = vmatprep.subr.bf16.mxu0 0
    %4728 = vmatpush1.bf16.msra.mxu0 0
    %4729 = vmatprep.subr.bf16.mxu0 0
    %4730 = vmatpush1.bf16.msra.mxu0 0
    %4731 = vmatprep.subr.bf16.mxu0 0
    %4732 = vmatpush1.bf16.msra.mxu0 0
    %4733 = vmatprep.mubr.bf16.mxu0 0
    %4734 = vmatmul.mubr.bf16.gmra.mrb[0].mxu0 %v4619
    %v4735 = vpop.f32.mrb[0].mxu0
    %v4736 = vadd.f32 0.0, %v4735
    %v4737 = vpop.f32.mrb[0].mxu0
    %v4738 = vpop.f32.mrb[0].mxu0
    %v4739 = vadd.f32 0.0, %v4738
    %v4740 = vpop.f32.mrb[0].mxu0
    %4741 = vmatprep.mubr.bf16.mxu0 0
    %4742 = vmatmul.mubr.bf16.gmra.mrb[0].mxu0 %v4622
    %v4743 = vpop.f32.mrb[0].mxu0
    %v4744 = vadd.f32 0.0, %v4743
    %v4745 = vpop.f32.mrb[0].mxu0
    %v4746 = vpop.f32.mrb[0].mxu0
    %v4747 = vadd.f32 0.0, %v4746
    %v4748 = vpop.f32.mrb[0].mxu0
    %4749 = vdwg.mxu0
    %v4754 = vunpack.c.l.b16 %v4680
    %v4755 = vunpack.c.l.b16 %v4681
    %v4756 = vunpack.c.l.b16 %v4682
    %v4757 = vunpack.c.l.b16 %v4683
    %v4758 = vpack.c.b16 %v4755, %v4754
    %v4759 = vpack.c.b16 %v4757, %v4756
    %v4763 = vsel %vm91, %v4677, 0
    %v4766 = vsel %vm91, %v4678, 0
    %4768 = vmatprep.subr.bf16.mxu0 0
    %4769 = vmatpush1.bf16.msra.mxu0 %v4758
    %4770 = vmatprep.subr.bf16.mxu0 0
    %4771 = vmatpush1.bf16.msra.mxu0 %v4759
    %4772 = vmatprep.subr.bf16.mxu0 0
    %4773 = vmatpush1.bf16.msra.mxu0 0
    %4774 = vmatprep.subr.bf16.mxu0 0
    %4775 = vmatpush1.bf16.msra.mxu0 0
    %4776 = vmatprep.subr.bf16.mxu0 0
    %4777 = vmatpush1.bf16.msra.mxu0 0
    %4778 = vmatprep.subr.bf16.mxu0 0
    %4779 = vmatpush1.bf16.msra.mxu0 0
    %4780 = vmatprep.subr.bf16.mxu0 0
    %4781 = vmatpush1.bf16.msra.mxu0 0
    %4782 = vmatprep.subr.bf16.mxu0 0
    %4783 = vmatpush1.bf16.msra.mxu0 0
    %4784 = vmatprep.subr.bf16.mxu0 0
    %4785 = vmatpush1.bf16.msra.mxu0 0
    %4786 = vmatprep.subr.bf16.mxu0 0
    %4787 = vmatpush1.bf16.msra.mxu0 0
    %4788 = vmatprep.subr.bf16.mxu0 0
    %4789 = vmatpush1.bf16.msra.mxu0 0
    %4790 = vmatprep.subr.bf16.mxu0 0
    %4791 = vmatpush1.bf16.msra.mxu0 0
    %4792 = vmatprep.subr.bf16.mxu0 0
    %4793 = vmatpush1.bf16.msra.mxu0 0
    %4794 = vmatprep.subr.bf16.mxu0 0
    %4795 = vmatpush1.bf16.msra.mxu0 0
    %4796 = vmatprep.subr.bf16.mxu0 0
    %4797 = vmatpush1.bf16.msra.mxu0 0
    %4798 = vmatprep.subr.bf16.mxu0 0
    %4799 = vmatpush1.bf16.msra.mxu0 0
    %4800 = vmatprep.mubr.bf16.mxu0 0
    %4801 = vmatmul.mubr.bf16.gmra.mrb[0].mxu0 %v4763
    %v4802 = vpop.f32.mrb[0].mxu0
    %v4803 = vadd.f32 %v4736, %v4802
    %v4804 = vpop.f32.mrb[0].mxu0
    %v4805 = vpop.f32.mrb[0].mxu0
    %v4806 = vadd.f32 %v4739, %v4805
    %v4807 = vpop.f32.mrb[0].mxu0
    %4808 = vmatprep.mubr.bf16.mxu0 0
    %4809 = vmatmul.mubr.bf16.gmra.mrb[0].mxu0 %v4766
    %v4810 = vpop.f32.mrb[0].mxu0
    %v4811 = vadd.f32 %v4744, %v4810
    %v4812 = vpop.f32.mrb[0].mxu0
    %v4813 = vpop.f32.mrb[0].mxu0
    %v4814 = vadd.f32 %v4747, %v4813
    %v4815 = vpop.f32.mrb[0].mxu0
    %4816 = vdwg.mxu0
    %s4817 = scalar_lea.vmem %s5, 13
    %v4818 = vld [vmem:[%s4817] sm:$0x1]
    %v4820 = vlaneseq
    %v4821 = vshrl.u32 %v4820, 7
    %v4822 = vsub.s32 0, %v4821
    %v4823 = vrot.slane %v4818, %v4822
    %v4825 = vadd.f32 %v4803, %v4823
    %v4826 = vadd.f32 %v4806, %v4823
    %v4827 = vadd.f32 %v4811, %v4823
    %v4828 = vadd.f32 %v4814, %v4823
    %v4829 = vadd.f32 %v4555, %v4659
    %v4830 = vadd.f32 %v4556, %v4662
    %v4831 = vadd.f32 %v4557, %v4667
    %v4832 = vadd.f32 %v4558, %v4670
    %v4833 = vtanh.pop %v4825
    %v4834 = vtanh.pop %v4826
    %v4835 = vtanh.pop %v4827
    %v4836 = vtanh.pop %v4828
    %v4837 = vmul.f32 %v4833, 0.5
    %v4838 = vmul.f32 %v4834, 0.5
    %v4839 = vmul.f32 %v4835, 0.5
    %v4840 = vmul.f32 %v4836, 0.5
    %v4841 = vadd.f32 %v4837, 0.5
    %v4842 = vadd.f32 %v4838, 0.5
    %v4843 = vadd.f32 %v4839, 0.5
    %v4844 = vadd.f32 %v4840, 0.5
    %4849 = vrot.lane.b32.xlu0 %v4841, 96
    %v4850 = vpop.permute.xlu0 %4849
    %4851 = vrot.lane.b32.xlu0 %v4842, 96
    %v4852 = vpop.permute.xlu0 %4851
    %4853 = vrot.lane.b32.xlu0 %v4843, 96
    %v4854 = vpop.permute.xlu0 %4853
    %4855 = vrot.lane.b32.xlu0 %v4844, 96
    %v4856 = vpop.permute.xlu0 %4855
    %v4861 = vmul.f32 %v4833, %v4850
    %v4862 = vmul.f32 %v4834, %v4852
    %v4863 = vmul.f32 %v4835, %v4854
    %v4864 = vmul.f32 %v4836, %v4856
    %v4865 = vpack.c.bf16 %v4862, %v4861
    %v4866 = vpack.c.bf16 %v4864, %v4863
    %s4867 = scalar_lea.vmem %s7, 224
    %v4868 = vld [vmem:[%s4867] sm:$0xf]
    %v4869 = vld [vmem:[%s4867 + $0x4] sm:$0xf]
    %v4870 = vld [vmem:[%s4867 + $0x8] sm:$0xf]
    %v4871 = vld [vmem:[%s4867 + $0xc] sm:$0xf]
    %s4872 = scalar_lea.vmem %s8, 14
    %v4873 = vld [vmem:[%s4872] sm:$0x1]
    %v4875 = vlaneseq
    %v4876 = vshrl.u32 %v4875, 7
    %v4877 = vsub.s32 0, %v4876
    %v4878 = vrot.slane %v4873, %v4877
    %v4884 = vunpack.c.l.b16 %v4868
    %v4885 = vunpack.c.l.b16 %v4869
    %v4886 = vunpack.c.l.b16 %v4870
    %v4887 = vunpack.c.l.b16 %v4871
    %v4888 = vpack.c.b16 %v4885, %v4884
    %v4889 = vpack.c.b16 %v4887, %v4886
    %v4893 = vsel %vm91, %v4865, 0
    %v4896 = vsel %vm91, %v4866, 0
    %4898 = vmatprep.subr.bf16.mxu0 0
    %4899 = vmatpush1.bf16.msra.mxu0 %v4888
    %4900 = vmatprep.subr.bf16.mxu0 0
    %4901 = vmatpush1.bf16.msra.mxu0 %v4889
    %4902 = vmatprep.subr.bf16.mxu0 0
    %4903 = vmatpush1.bf16.msra.mxu0 0
    %4904 = vmatprep.subr.bf16.mxu0 0
    %4905 = vmatpush1.bf16.msra.mxu0 0
    %4906 = vmatprep.subr.bf16.mxu0 0
    %4907 = vmatpush1.bf16.msra.mxu0 0
    %4908 = vmatprep.subr.bf16.mxu0 0
    %4909 = vmatpush1.bf16.msra.mxu0 0
    %4910 = vmatprep.subr.bf16.mxu0 0
    %4911 = vmatpush1.bf16.msra.mxu0 0
    %4912 = vmatprep.subr.bf16.mxu0 0
    %4913 = vmatpush1.bf16.msra.mxu0 0
    %4914 = vmatprep.subr.bf16.mxu0 0
    %4915 = vmatpush1.bf16.msra.mxu0 0
    %4916 = vmatprep.subr.bf16.mxu0 0
    %4917 = vmatpush1.bf16.msra.mxu0 0
    %4918 = vmatprep.subr.bf16.mxu0 0
    %4919 = vmatpush1.bf16.msra.mxu0 0
    %4920 = vmatprep.subr.bf16.mxu0 0
    %4921 = vmatpush1.bf16.msra.mxu0 0
    %4922 = vmatprep.subr.bf16.mxu0 0
    %4923 = vmatpush1.bf16.msra.mxu0 0
    %4924 = vmatprep.subr.bf16.mxu0 0
    %4925 = vmatpush1.bf16.msra.mxu0 0
    %4926 = vmatprep.subr.bf16.mxu0 0
    %4927 = vmatpush1.bf16.msra.mxu0 0
    %4928 = vmatprep.subr.bf16.mxu0 0
    %4929 = vmatpush1.bf16.msra.mxu0 0
    %4930 = vmatprep.mubr.bf16.mxu0 0
    %4931 = vmatmul.mubr.bf16.gmra.mrb[0].mxu0 %v4893
    %v4932 = vpop.f32.mrb[0].mxu0
    %v4933 = vadd.f32 %v4878, %v4932
    %v4934 = vpop.f32.mrb[0].mxu0
    %v4935 = vpop.f32.mrb[0].mxu0
    %v4936 = vadd.f32 %v4878, %v4935
    %v4937 = vpop.f32.mrb[0].mxu0
    %4938 = vmatprep.mubr.bf16.mxu0 0
    %4939 = vmatmul.mubr.bf16.gmra.mrb[0].mxu0 %v4896
    %v4940 = vpop.f32.mrb[0].mxu0
    %v4941 = vadd.f32 %v4878, %v4940
    %v4942 = vpop.f32.mrb[0].mxu0
    %v4943 = vpop.f32.mrb[0].mxu0
    %v4944 = vadd.f32 %v4878, %v4943
    %v4945 = vpop.f32.mrb[0].mxu0
    %4946 = vdwg.mxu0
    %v4947 = vadd.f32 %v4673, %v4933
    %v4948 = vadd.f32 %v4674, %v4936
    %v4949 = vadd.f32 %v4675, %v4941
    %v4950 = vadd.f32 %v4676, %v4944
    %v4951 = vpack.c.bf16 %v4830, %v4829
    %v4952 = vpack.c.bf16 %v4832, %v4831
    %s4953 = scalar_lea.vmem %s2, 480
    %v4954 = vld [vmem:[%s4953 + $0x10] sm:$0xf]
    %v4955 = vld [vmem:[%s4953 + $0x14] sm:$0xf]
    %v4956 = vld [vmem:[%s4953 + $0x18] sm:$0xf]
    %v4957 = vld [vmem:[%s4953 + $0x1c] sm:$0xf]
    %s4958 = scalar_lea.vmem %s4, 448
    %v4959 = vld [vmem:[%s4958 + $0x10] sm:$0xf]
    %v4960 = vld [vmem:[%s4958 + $0x14] sm:$0xf]
    %v4961 = vld [vmem:[%s4958 + $0x18] sm:$0xf]
    %v4962 = vld [vmem:[%s4958 + $0x1c] sm:$0xf]
    %v4967 = vunpack.c.l.b16 %v4959
    %v4968 = vunpack.c.l.b16 %v4960
    %v4969 = vunpack.c.l.b16 %v4961
    %v4970 = vunpack.c.l.b16 %v4962
    %v4971 = vpack.c.b16 %v4968, %v4967
    %v4972 = vpack.c.b16 %v4970, %v4969
    %4975 = vmatprep.subr.bf16.mxu0 0
    %4976 = vmatpush1.bf16.msra.mxu0 %v4971
    %4977 = vmatprep.subr.bf16.mxu0 0
    %4978 = vmatpush1.bf16.msra.mxu0 %v4972
    %4979 = vmatprep.subr.bf16.mxu0 0
    %4980 = vmatpush1.bf16.msra.mxu0 0
    %4981 = vmatprep.subr.bf16.mxu0 0
    %4982 = vmatpush1.bf16.msra.mxu0 0
    %4983 = vmatprep.subr.bf16.mxu0 0
    %4984 = vmatpush1.bf16.msra.mxu0 0
    %4985 = vmatprep.subr.bf16.mxu0 0
    %4986 = vmatpush1.bf16.msra.mxu0 0
    %4987 = vmatprep.subr.bf16.mxu0 0
    %4988 = vmatpush1.bf16.msra.mxu0 0
    %4989 = vmatprep.subr.bf16.mxu0 0
    %4990 = vmatpush1.bf16.msra.mxu0 0
    %4991 = vmatprep.subr.bf16.mxu0 0
    %4992 = vmatpush1.bf16.msra.mxu0 0
    %4993 = vmatprep.subr.bf16.mxu0 0
    %4994 = vmatpush1.bf16.msra.mxu0 0
    %4995 = vmatprep.subr.bf16.mxu0 0
    %4996 = vmatpush1.bf16.msra.mxu0 0
    %4997 = vmatprep.subr.bf16.mxu0 0
    %4998 = vmatpush1.bf16.msra.mxu0 0
    %4999 = vmatprep.subr.bf16.mxu0 0
    %5000 = vmatpush1.bf16.msra.mxu0 0
    %5001 = vmatprep.subr.bf16.mxu0 0
    %5002 = vmatpush1.bf16.msra.mxu0 0
    %5003 = vmatprep.subr.bf16.mxu0 0
    %5004 = vmatpush1.bf16.msra.mxu0 0
    %5005 = vmatprep.subr.bf16.mxu0 0
    %5006 = vmatpush1.bf16.msra.mxu0 0
    %5007 = vmatprep.mubr.bf16.mxu0 0
    %5008 = vmatmul.mubr.bf16.gmra.mrb[0].mxu0 %v4893
    %v5009 = vpop.f32.mrb[0].mxu0
    %v5010 = vadd.f32 0.0, %v5009
    %v5011 = vpop.f32.mrb[0].mxu0
    %v5012 = vpop.f32.mrb[0].mxu0
    %v5013 = vadd.f32 0.0, %v5012
    %v5014 = vpop.f32.mrb[0].mxu0
    %5015 = vmatprep.mubr.bf16.mxu0 0
    %5016 = vmatmul.mubr.bf16.gmra.mrb[0].mxu0 %v4896
    %v5017 = vpop.f32.mrb[0].mxu0
    %v5018 = vadd.f32 0.0, %v5017
    %v5019 = vpop.f32.mrb[0].mxu0
    %v5020 = vpop.f32.mrb[0].mxu0
    %v5021 = vadd.f32 0.0, %v5020
    %v5022 = vpop.f32.mrb[0].mxu0
    %5023 = vdwg.mxu0
    %v5028 = vunpack.c.l.b16 %v4954
    %v5029 = vunpack.c.l.b16 %v4955
    %v5030 = vunpack.c.l.b16 %v4956
    %v5031 = vunpack.c.l.b16 %v4957
    %v5032 = vpack.c.b16 %v5029, %v5028
    %v5033 = vpack.c.b16 %v5031, %v5030
    %v5037 = vsel %vm91, %v4951, 0
    %v5040 = vsel %vm91, %v4952, 0
    %5042 = vmatprep.subr.bf16.mxu0 0
    %5043 = vmatpush1.bf16.msra.mxu0 %v5032
    %5044 = vmatprep.subr.bf16.mxu0 0
    %5045 = vmatpush1.bf16.msra.mxu0 %v5033
    %5046 = vmatprep.subr.bf16.mxu0 0
    %5047 = vmatpush1.bf16.msra.mxu0 0
    %5048 = vmatprep.subr.bf16.mxu0 0
    %5049 = vmatpush1.bf16.msra.mxu0 0
    %5050 = vmatprep.subr.bf16.mxu0 0
    %5051 = vmatpush1.bf16.msra.mxu0 0
    %5052 = vmatprep.subr.bf16.mxu0 0
    %5053 = vmatpush1.bf16.msra.mxu0 0
    %5054 = vmatprep.subr.bf16.mxu0 0
    %5055 = vmatpush1.bf16.msra.mxu0 0
    %5056 = vmatprep.subr.bf16.mxu0 0
    %5057 = vmatpush1.bf16.msra.mxu0 0
    %5058 = vmatprep.subr.bf16.mxu0 0
    %5059 = vmatpush1.bf16.msra.mxu0 0
    %5060 = vmatprep.subr.bf16.mxu0 0
    %5061 = vmatpush1.bf16.msra.mxu0 0
    %5062 = vmatprep.subr.bf16.mxu0 0
    %5063 = vmatpush1.bf16.msra.mxu0 0
    %5064 = vmatprep.subr.bf16.mxu0 0
    %5065 = vmatpush1.bf16.msra.mxu0 0
    %5066 = vmatprep.subr.bf16.mxu0 0
    %5067 = vmatpush1.bf16.msra.mxu0 0
    %5068 = vmatprep.subr.bf16.mxu0 0
    %5069 = vmatpush1.bf16.msra.mxu0 0
    %5070 = vmatprep.subr.bf16.mxu0 0
    %5071 = vmatpush1.bf16.msra.mxu0 0
    %5072 = vmatprep.subr.bf16.mxu0 0
    %5073 = vmatpush1.bf16.msra.mxu0 0
    %5074 = vmatprep.mubr.bf16.mxu0 0
    %5075 = vmatmul.mubr.bf16.gmra.mrb[0].mxu0 %v5037
    %v5076 = vpop.f32.mrb[0].mxu0
    %v5077 = vadd.f32 %v5010, %v5076
    %v5078 = vpop.f32.mrb[0].mxu0
    %v5079 = vpop.f32.mrb[0].mxu0
    %v5080 = vadd.f32 %v5013, %v5079
    %v5081 = vpop.f32.mrb[0].mxu0
    %5082 = vmatprep.mubr.bf16.mxu0 0
    %5083 = vmatmul.mubr.bf16.gmra.mrb[0].mxu0 %v5040
    %v5084 = vpop.f32.mrb[0].mxu0
    %v5085 = vadd.f32 %v5018, %v5084
    %v5086 = vpop.f32.mrb[0].mxu0
    %v5087 = vpop.f32.mrb[0].mxu0
    %v5088 = vadd.f32 %v5021, %v5087
    %v5089 = vpop.f32.mrb[0].mxu0
    %5090 = vdwg.mxu0
    %s5091 = scalar_lea.vmem %s5, 14
    %v5092 = vld [vmem:[%s5091] sm:$0x1]
    %v5094 = vlaneseq
    %v5095 = vshrl.u32 %v5094, 7
    %v5096 = vsub.s32 0, %v5095
    %v5097 = vrot.slane %v5092, %v5096
    %v5099 = vadd.f32 %v5077, %v5097
    %v5100 = vadd.f32 %v5080, %v5097
    %v5101 = vadd.f32 %v5085, %v5097
    %v5102 = vadd.f32 %v5088, %v5097
    %v5103 = vadd.f32 %v4829, %v4933
    %v5104 = vadd.f32 %v4830, %v4936
    %v5105 = vadd.f32 %v4831, %v4941
    %v5106 = vadd.f32 %v4832, %v4944
    %v5107 = vtanh.pop %v5099
    %v5108 = vtanh.pop %v5100
    %v5109 = vtanh.pop %v5101
    %v5110 = vtanh.pop %v5102
    %v5111 = vmul.f32 %v5107, 0.5
    %v5112 = vmul.f32 %v5108, 0.5
    %v5113 = vmul.f32 %v5109, 0.5
    %v5114 = vmul.f32 %v5110, 0.5
    %v5115 = vadd.f32 %v5111, 0.5
    %v5116 = vadd.f32 %v5112, 0.5
    %v5117 = vadd.f32 %v5113, 0.5
    %v5118 = vadd.f32 %v5114, 0.5
    %5123 = vrot.lane.b32.xlu0 %v5115, 96
    %v5124 = vpop.permute.xlu0 %5123
    %5125 = vrot.lane.b32.xlu0 %v5116, 96
    %v5126 = vpop.permute.xlu0 %5125
    %5127 = vrot.lane.b32.xlu0 %v5117, 96
    %v5128 = vpop.permute.xlu0 %5127
    %5129 = vrot.lane.b32.xlu0 %v5118, 96
    %v5130 = vpop.permute.xlu0 %5129
    %v5135 = vmul.f32 %v5107, %v5124
    %v5136 = vmul.f32 %v5108, %v5126
    %v5137 = vmul.f32 %v5109, %v5128
    %v5138 = vmul.f32 %v5110, %v5130
    %v5139 = vpack.c.bf16 %v5136, %v5135
    %v5140 = vpack.c.bf16 %v5138, %v5137
    %s5141 = scalar_lea.vmem %s7, 240
    %v5142 = vld [vmem:[%s5141] sm:$0xf]
    %v5143 = vld [vmem:[%s5141 + $0x4] sm:$0xf]
    %v5144 = vld [vmem:[%s5141 + $0x8] sm:$0xf]
    %v5145 = vld [vmem:[%s5141 + $0xc] sm:$0xf]
    %s5146 = scalar_lea.vmem %s8, 15
    %v5147 = vld [vmem:[%s5146] sm:$0x1]
    %v5149 = vlaneseq
    %v5150 = vshrl.u32 %v5149, 7
    %v5151 = vsub.s32 0, %v5150
    %v5152 = vrot.slane %v5147, %v5151
    %v5158 = vunpack.c.l.b16 %v5142
    %v5159 = vunpack.c.l.b16 %v5143
    %v5160 = vunpack.c.l.b16 %v5144
    %v5161 = vunpack.c.l.b16 %v5145
    %v5162 = vpack.c.b16 %v5159, %v5158
    %v5163 = vpack.c.b16 %v5161, %v5160
    %v5167 = vsel %vm91, %v5139, 0
    %v5170 = vsel %vm91, %v5140, 0
    %5172 = vmatprep.subr.bf16.mxu0 0
    %5173 = vmatpush1.bf16.msra.mxu0 %v5162
    %5174 = vmatprep.subr.bf16.mxu0 0
    %5175 = vmatpush1.bf16.msra.mxu0 %v5163
    %5176 = vmatprep.subr.bf16.mxu0 0
    %5177 = vmatpush1.bf16.msra.mxu0 0
    %5178 = vmatprep.subr.bf16.mxu0 0
    %5179 = vmatpush1.bf16.msra.mxu0 0
    %5180 = vmatprep.subr.bf16.mxu0 0
    %5181 = vmatpush1.bf16.msra.mxu0 0
    %5182 = vmatprep.subr.bf16.mxu0 0
    %5183 = vmatpush1.bf16.msra.mxu0 0
    %5184 = vmatprep.subr.bf16.mxu0 0
    %5185 = vmatpush1.bf16.msra.mxu0 0
    %5186 = vmatprep.subr.bf16.mxu0 0
    %5187 = vmatpush1.bf16.msra.mxu0 0
    %5188 = vmatprep.subr.bf16.mxu0 0
    %5189 = vmatpush1.bf16.msra.mxu0 0
    %5190 = vmatprep.subr.bf16.mxu0 0
    %5191 = vmatpush1.bf16.msra.mxu0 0
    %5192 = vmatprep.subr.bf16.mxu0 0
    %5193 = vmatpush1.bf16.msra.mxu0 0
    %5194 = vmatprep.subr.bf16.mxu0 0
    %5195 = vmatpush1.bf16.msra.mxu0 0
    %5196 = vmatprep.subr.bf16.mxu0 0
    %5197 = vmatpush1.bf16.msra.mxu0 0
    %5198 = vmatprep.subr.bf16.mxu0 0
    %5199 = vmatpush1.bf16.msra.mxu0 0
    %5200 = vmatprep.subr.bf16.mxu0 0
    %5201 = vmatpush1.bf16.msra.mxu0 0
    %5202 = vmatprep.subr.bf16.mxu0 0
    %5203 = vmatpush1.bf16.msra.mxu0 0
    %5204 = vmatprep.mubr.bf16.mxu0 0
    %5205 = vmatmul.mubr.bf16.gmra.mrb[0].mxu0 %v5167
    %v5206 = vpop.f32.mrb[0].mxu0
    %v5207 = vadd.f32 %v5152, %v5206
    %v5208 = vpop.f32.mrb[0].mxu0
    %v5209 = vpop.f32.mrb[0].mxu0
    %v5210 = vadd.f32 %v5152, %v5209
    %v5211 = vpop.f32.mrb[0].mxu0
    %5212 = vmatprep.mubr.bf16.mxu0 0
    %5213 = vmatmul.mubr.bf16.gmra.mrb[0].mxu0 %v5170
    %v5214 = vpop.f32.mrb[0].mxu0
    %v5215 = vadd.f32 %v5152, %v5214
    %v5216 = vpop.f32.mrb[0].mxu0
    %v5217 = vpop.f32.mrb[0].mxu0
    %v5218 = vadd.f32 %v5152, %v5217
    %v5219 = vpop.f32.mrb[0].mxu0
    %5220 = vdwg.mxu0
    %v5221 = vadd.f32 %v4947, %v5207
    %v5222 = vadd.f32 %v4948, %v5210
    %v5223 = vadd.f32 %v4949, %v5215
    %v5224 = vadd.f32 %v4950, %v5218
    %v5225 = vrot.slane %v5103, 7
    %v5226 = vrot.slane %v5104, 7
    %v5227 = vrot.slane %v5105, 7
    %v5228 = vrot.slane %v5106, 7
    %v5229 = vsel %vm66, %v5227, %v5228
    %v5230 = vsel %vm66, %v5226, %v5227
    %v5231 = vsel %vm66, %v5225, %v5226
    %v5232 = vsel %vm66, %v5228, %v5225
    %v5233 = vmul.f32 %v56, %v5232
    %v5234 = vmul.f32 %v57, %v5231
    %v5235 = vmul.f32 %v58, %v5230
    %v5236 = vmul.f32 %v59, %v5229
    %5241 = vrot.lane.b32.xlu0 %v5103, 32
    %v5242 = vpop.permute.xlu0 %5241
    %5243 = vrot.lane.b32.xlu0 %v5104, 32
    %v5244 = vpop.permute.xlu0 %5243
    %5245 = vrot.lane.b32.xlu0 %v5105, 32
    %v5246 = vpop.permute.xlu0 %5245
    %5247 = vrot.lane.b32.xlu0 %v5106, 32
    %v5248 = vpop.permute.xlu0 %5247
    %v5253 = vsel %vm91, %v5233, %v5242
    %v5254 = vsel %vm91, %v5234, %v5244
    %v5255 = vsel %vm91, %v5235, %v5246
    %v5256 = vsel %vm91, %v5236, %v5248
    %v5257 = vpack.c.bf16 %v5254, %v5253
    %v5258 = vpack.c.bf16 %v5256, %v5255
    %v5259 = vrot.slane %v5135, 7
    %v5260 = vrot.slane %v5136, 7
    %v5261 = vrot.slane %v5137, 7
    %v5262 = vrot.slane %v5138, 7
    %v5263 = vsel %vm66, %v5261, %v5262
    %v5264 = vsel %vm66, %v5260, %v5261
    %v5265 = vsel %vm66, %v5259, %v5260
    %v5266 = vsel %vm66, %v5262, %v5259
    %v5267 = vmul.f32 %v56, %v5266
    %v5268 = vmul.f32 %v57, %v5265
    %v5269 = vmul.f32 %v58, %v5264
    %v5270 = vmul.f32 %v59, %v5263
    %5275 = vrot.lane.b32.xlu0 %v5135, 32
    %v5276 = vpop.permute.xlu0 %5275
    %5277 = vrot.lane.b32.xlu0 %v5136, 32
    %v5278 = vpop.permute.xlu0 %5277
    %5279 = vrot.lane.b32.xlu0 %v5137, 32
    %v5280 = vpop.permute.xlu0 %5279
    %5281 = vrot.lane.b32.xlu0 %v5138, 32
    %v5282 = vpop.permute.xlu0 %5281
    %v5287 = vsel %vm91, %v5267, %v5276
    %v5288 = vsel %vm91, %v5268, %v5278
    %v5289 = vsel %vm91, %v5269, %v5280
    %v5290 = vsel %vm91, %v5270, %v5282
    %v5291 = vpack.c.bf16 %v5288, %v5287
    %v5292 = vpack.c.bf16 %v5290, %v5289
    %s5293 = scalar_lea.vmem %s2, 512
    %v5294 = vld [vmem:[%s5293] sm:$0xf]
    %v5295 = vld [vmem:[%s5293 + $0x4] sm:$0xf]
    %v5296 = vld [vmem:[%s5293 + $0x8] sm:$0xf]
    %v5297 = vld [vmem:[%s5293 + $0xc] sm:$0xf]
    %v5298 = vld [vmem:[%s5293 + $0x10] sm:$0xf]
    %v5299 = vld [vmem:[%s5293 + $0x14] sm:$0xf]
    %v5300 = vld [vmem:[%s5293 + $0x18] sm:$0xf]
    %v5301 = vld [vmem:[%s5293 + $0x1c] sm:$0xf]
    %s5302 = scalar_lea.vmem %s4, 480
    %v5303 = vld [vmem:[%s5302] sm:$0xf]
    %v5304 = vld [vmem:[%s5302 + $0x4] sm:$0xf]
    %v5305 = vld [vmem:[%s5302 + $0x8] sm:$0xf]
    %v5306 = vld [vmem:[%s5302 + $0xc] sm:$0xf]
    %v5307 = vld [vmem:[%s5302 + $0x10] sm:$0xf]
    %v5308 = vld [vmem:[%s5302 + $0x14] sm:$0xf]
    %v5309 = vld [vmem:[%s5302 + $0x18] sm:$0xf]
    %v5310 = vld [vmem:[%s5302 + $0x1c] sm:$0xf]
    %v5319 = vunpack.c.l.b16 %v5303
    %v5320 = vunpack.c.l.b16 %v5304
    %v5321 = vunpack.c.l.b16 %v5305
    %v5322 = vunpack.c.l.b16 %v5306
    %v5323 = vunpack.c.l.b16 %v5307
    %v5324 = vunpack.c.l.b16 %v5308
    %v5325 = vunpack.c.l.b16 %v5309
    %v5326 = vunpack.c.l.b16 %v5310
    %v5327 = vpack.c.b16 %v5320, %v5319
    %v5328 = vpack.c.b16 %v5322, %v5321
    %v5329 = vpack.c.b16 %v5324, %v5323
    %v5330 = vpack.c.b16 %v5326, %v5325
    %v5336 = vsel %vm137, %v5291, 0
    %v5339 = vsel %vm137, %v5292, 0
    %5341 = vmatprep.subr.bf16.mxu0 0
    %5342 = vmatpush1.bf16.msra.mxu0 %v5327
    %5343 = vmatprep.subr.bf16.mxu0 0
    %5344 = vmatpush1.bf16.msra.mxu0 %v5328
    %5345 = vmatprep.subr.bf16.mxu0 0
    %5346 = vmatpush1.bf16.msra.mxu0 %v5329
    %5347 = vmatprep.subr.bf16.mxu0 0
    %5348 = vmatpush1.bf16.msra.mxu0 %v5330
    %5349 = vmatprep.subr.bf16.mxu0 0
    %5350 = vmatpush1.bf16.msra.mxu0 0
    %5351 = vmatprep.subr.bf16.mxu0 0
    %5352 = vmatpush1.bf16.msra.mxu0 0
    %5353 = vmatprep.subr.bf16.mxu0 0
    %5354 = vmatpush1.bf16.msra.mxu0 0
    %5355 = vmatprep.subr.bf16.mxu0 0
    %5356 = vmatpush1.bf16.msra.mxu0 0
    %5357 = vmatprep.subr.bf16.mxu0 0
    %5358 = vmatpush1.bf16.msra.mxu0 0
    %5359 = vmatprep.subr.bf16.mxu0 0
    %5360 = vmatpush1.bf16.msra.mxu0 0
    %5361 = vmatprep.subr.bf16.mxu0 0
    %5362 = vmatpush1.bf16.msra.mxu0 0
    %5363 = vmatprep.subr.bf16.mxu0 0
    %5364 = vmatpush1.bf16.msra.mxu0 0
    %5365 = vmatprep.subr.bf16.mxu0 0
    %5366 = vmatpush1.bf16.msra.mxu0 0
    %5367 = vmatprep.subr.bf16.mxu0 0
    %5368 = vmatpush1.bf16.msra.mxu0 0
    %5369 = vmatprep.subr.bf16.mxu0 0
    %5370 = vmatpush1.bf16.msra.mxu0 0
    %5371 = vmatprep.subr.bf16.mxu0 0
    %5372 = vmatpush1.bf16.msra.mxu0 0
    %5373 = vmatprep.mubr.bf16.mxu0 0
    %5374 = vmatmul.mubr.bf16.gmra.mrb[0].mxu0 %v5336
    %v5375 = vpop.f32.mrb[0].mxu0
    %v5376 = vadd.f32 0.0, %v5375
    %v5377 = vpop.f32.mrb[0].mxu0
    %v5378 = vpop.f32.mrb[0].mxu0
    %v5379 = vadd.f32 0.0, %v5378
    %v5380 = vpop.f32.mrb[0].mxu0
    %5381 = vmatprep.mubr.bf16.mxu0 0
    %5382 = vmatmul.mubr.bf16.gmra.mrb[0].mxu0 %v5339
    %v5383 = vpop.f32.mrb[0].mxu0
    %v5384 = vadd.f32 0.0, %v5383
    %v5385 = vpop.f32.mrb[0].mxu0
    %v5386 = vpop.f32.mrb[0].mxu0
    %v5387 = vadd.f32 0.0, %v5386
    %v5388 = vpop.f32.mrb[0].mxu0
    %5389 = vdwg.mxu0
    %v5398 = vunpack.c.l.b16 %v5294
    %v5399 = vunpack.c.l.b16 %v5295
    %v5400 = vunpack.c.l.b16 %v5296
    %v5401 = vunpack.c.l.b16 %v5297
    %v5402 = vunpack.c.l.b16 %v5298
    %v5403 = vunpack.c.l.b16 %v5299
    %v5404 = vunpack.c.l.b16 %v5300
    %v5405 = vunpack.c.l.b16 %v5301
    %v5406 = vpack.c.b16 %v5399, %v5398
    %v5407 = vpack.c.b16 %v5401, %v5400
    %v5408 = vpack.c.b16 %v5403, %v5402
    %v5409 = vpack.c.b16 %v5405, %v5404
    %v5415 = vsel %vm137, %v5257, 0
    %v5418 = vsel %vm137, %v5258, 0
    %5420 = vmatprep.subr.bf16.mxu0 0
    %5421 = vmatpush1.bf16.msra.mxu0 %v5406
    %5422 = vmatprep.subr.bf16.mxu0 0
    %5423 = vmatpush1.bf16.msra.mxu0 %v5407
    %5424 = vmatprep.subr.bf16.mxu0 0
    %5425 = vmatpush1.bf16.msra.mxu0 %v5408
    %5426 = vmatprep.subr.bf16.mxu0 0
    %5427 = vmatpush1.bf16.msra.mxu0 %v5409
    %5428 = vmatprep.subr.bf16.mxu0 0
    %5429 = vmatpush1.bf16.msra.mxu0 0
    %5430 = vmatprep.subr.bf16.mxu0 0
    %5431 = vmatpush1.bf16.msra.mxu0 0
    %5432 = vmatprep.subr.bf16.mxu0 0
    %5433 = vmatpush1.bf16.msra.mxu0 0
    %5434 = vmatprep.subr.bf16.mxu0 0
    %5435 = vmatpush1.bf16.msra.mxu0 0
    %5436 = vmatprep.subr.bf16.mxu0 0
    %5437 = vmatpush1.bf16.msra.mxu0 0
    %5438 = vmatprep.subr.bf16.mxu0 0
    %5439 = vmatpush1.bf16.msra.mxu0 0
    %5440 = vmatprep.subr.bf16.mxu0 0
    %5441 = vmatpush1.bf16.msra.mxu0 0
    %5442 = vmatprep.subr.bf16.mxu0 0
    %5443 = vmatpush1.bf16.msra.mxu0 0
    %5444 = vmatprep.subr.bf16.mxu0 0
    %5445 = vmatpush1.bf16.msra.mxu0 0
    %5446 = vmatprep.subr.bf16.mxu0 0
    %5447 = vmatpush1.bf16.msra.mxu0 0
    %5448 = vmatprep.subr.bf16.mxu0 0
    %5449 = vmatpush1.bf16.msra.mxu0 0
    %5450 = vmatprep.subr.bf16.mxu0 0
    %5451 = vmatpush1.bf16.msra.mxu0 0
    %5452 = vmatprep.mubr.bf16.mxu0 0
    %5453 = vmatmul.mubr.bf16.gmra.mrb[0].mxu0 %v5415
    %v5454 = vpop.f32.mrb[0].mxu0
    %v5455 = vadd.f32 %v5376, %v5454
    %v5456 = vpop.f32.mrb[0].mxu0
    %v5457 = vpop.f32.mrb[0].mxu0
    %v5458 = vadd.f32 %v5379, %v5457
    %v5459 = vpop.f32.mrb[0].mxu0
    %5460 = vmatprep.mubr.bf16.mxu0 0
    %5461 = vmatmul.mubr.bf16.gmra.mrb[0].mxu0 %v5418
    %v5462 = vpop.f32.mrb[0].mxu0
    %v5463 = vadd.f32 %v5384, %v5462
    %v5464 = vpop.f32.mrb[0].mxu0
    %v5465 = vpop.f32.mrb[0].mxu0
    %v5466 = vadd.f32 %v5387, %v5465
    %v5467 = vpop.f32.mrb[0].mxu0
    %5468 = vdwg.mxu0
    %s5469 = scalar_lea.vmem %s5, 15
    %v5470 = vld [vmem:[%s5469] sm:$0x1]
    %v5472 = vlaneseq
    %v5473 = vshrl.u32 %v5472, 7
    %v5474 = vsub.s32 0, %v5473
    %v5475 = vrot.slane %v5470, %v5474
    %v5477 = vadd.f32 %v5455, %v5475
    %v5478 = vadd.f32 %v5458, %v5475
    %v5479 = vadd.f32 %v5463, %v5475
    %v5480 = vadd.f32 %v5466, %v5475
    %s5481 = scalar_lea.vmem %s6, 15
    %v5482 = vld [vmem:[%s5481] sm:$0x1]
    %v5484 = vlaneseq
    %v5485 = vshrl.u32 %v5484, 7
    %v5486 = vsub.s32 0, %v5485
    %v5487 = vrot.slane %v5482, %v5486
    %v5489 = vmul.f32 %v56, %v5487
    %v5490 = vmul.f32 %v57, %v5487
    %v5491 = vmul.f32 %v58, %v5487
    %v5492 = vmul.f32 %v59, %v5487
    %v5493 = vadd.f32 %v5477, %v5489
    %v5494 = vadd.f32 %v5478, %v5490
    %v5495 = vadd.f32 %v5479, %v5491
    %v5496 = vadd.f32 %v5480, %v5492
    %v5497 = vadd.f32 %v5103, %v5207
    %v5498 = vadd.f32 %v5104, %v5210
    %v5499 = vadd.f32 %v5105, %v5215
    %v5500 = vadd.f32 %v5106, %v5218
    %v5501 = vtanh.pop %v5493
    %v5502 = vtanh.pop %v5494
    %v5503 = vtanh.pop %v5495
    %v5504 = vtanh.pop %v5496
    %v5505 = vmul.f32 %v5501, 0.5
    %v5506 = vmul.f32 %v5502, 0.5
    %v5507 = vmul.f32 %v5503, 0.5
    %v5508 = vmul.f32 %v5504, 0.5
    %v5509 = vadd.f32 %v5505, 0.5
    %v5510 = vadd.f32 %v5506, 0.5
    %v5511 = vadd.f32 %v5507, 0.5
    %v5512 = vadd.f32 %v5508, 0.5
    %5517 = vrot.lane.b32.xlu0 %v5509, 96
    %v5518 = vpop.permute.xlu0 %5517
    %5519 = vrot.lane.b32.xlu0 %v5510, 96
    %v5520 = vpop.permute.xlu0 %5519
    %5521 = vrot.lane.b32.xlu0 %v5511, 96
    %v5522 = vpop.permute.xlu0 %5521
    %5523 = vrot.lane.b32.xlu0 %v5512, 96
    %v5524 = vpop.permute.xlu0 %5523
    %v5529 = vmul.f32 %v5501, %v5518
    %v5530 = vmul.f32 %v5502, %v5520
    %v5531 = vmul.f32 %v5503, %v5522
    %v5532 = vmul.f32 %v5504, %v5524
    %v5533 = vpack.c.bf16 %v5530, %v5529
    %v5534 = vpack.c.bf16 %v5532, %v5531
    %s5535 = scalar_lea.vmem %s7, 256
    %v5536 = vld [vmem:[%s5535] sm:$0xf]
    %v5537 = vld [vmem:[%s5535 + $0x4] sm:$0xf]
    %v5538 = vld [vmem:[%s5535 + $0x8] sm:$0xf]
    %v5539 = vld [vmem:[%s5535 + $0xc] sm:$0xf]
    %s5540 = scalar_lea.vmem %s8, 16
    %v5541 = vld [vmem:[%s5540] sm:$0x1]
    %v5543 = vlaneseq
    %v5544 = vshrl.u32 %v5543, 7
    %v5545 = vsub.s32 0, %v5544
    %v5546 = vrot.slane %v5541, %v5545
    %v5552 = vunpack.c.l.b16 %v5536
    %v5553 = vunpack.c.l.b16 %v5537
    %v5554 = vunpack.c.l.b16 %v5538
    %v5555 = vunpack.c.l.b16 %v5539
    %v5556 = vpack.c.b16 %v5553, %v5552
    %v5557 = vpack.c.b16 %v5555, %v5554
    %v5561 = vsel %vm91, %v5533, 0
    %v5564 = vsel %vm91, %v5534, 0
    %5566 = vmatprep.subr.bf16.mxu0 0
    %5567 = vmatpush1.bf16.msra.mxu0 %v5556
    %5568 = vmatprep.subr.bf16.mxu0 0
    %5569 = vmatpush1.bf16.msra.mxu0 %v5557
    %5570 = vmatprep.subr.bf16.mxu0 0
    %5571 = vmatpush1.bf16.msra.mxu0 0
    %5572 = vmatprep.subr.bf16.mxu0 0
    %5573 = vmatpush1.bf16.msra.mxu0 0
    %5574 = vmatprep.subr.bf16.mxu0 0
    %5575 = vmatpush1.bf16.msra.mxu0 0
    %5576 = vmatprep.subr.bf16.mxu0 0
    %5577 = vmatpush1.bf16.msra.mxu0 0
    %5578 = vmatprep.subr.bf16.mxu0 0
    %5579 = vmatpush1.bf16.msra.mxu0 0
    %5580 = vmatprep.subr.bf16.mxu0 0
    %5581 = vmatpush1.bf16.msra.mxu0 0
    %5582 = vmatprep.subr.bf16.mxu0 0
    %5583 = vmatpush1.bf16.msra.mxu0 0
    %5584 = vmatprep.subr.bf16.mxu0 0
    %5585 = vmatpush1.bf16.msra.mxu0 0
    %5586 = vmatprep.subr.bf16.mxu0 0
    %5587 = vmatpush1.bf16.msra.mxu0 0
    %5588 = vmatprep.subr.bf16.mxu0 0
    %5589 = vmatpush1.bf16.msra.mxu0 0
    %5590 = vmatprep.subr.bf16.mxu0 0
    %5591 = vmatpush1.bf16.msra.mxu0 0
    %5592 = vmatprep.subr.bf16.mxu0 0
    %5593 = vmatpush1.bf16.msra.mxu0 0
    %5594 = vmatprep.subr.bf16.mxu0 0
    %5595 = vmatpush1.bf16.msra.mxu0 0
    %5596 = vmatprep.subr.bf16.mxu0 0
    %5597 = vmatpush1.bf16.msra.mxu0 0
    %5598 = vmatprep.mubr.bf16.mxu0 0
    %5599 = vmatmul.mubr.bf16.gmra.mrb[0].mxu0 %v5561
    %v5600 = vpop.f32.mrb[0].mxu0
    %v5601 = vadd.f32 %v5546, %v5600
    %v5602 = vpop.f32.mrb[0].mxu0
    %v5603 = vpop.f32.mrb[0].mxu0
    %v5604 = vadd.f32 %v5546, %v5603
    %v5605 = vpop.f32.mrb[0].mxu0
    %5606 = vmatprep.mubr.bf16.mxu0 0
    %5607 = vmatmul.mubr.bf16.gmra.mrb[0].mxu0 %v5564
    %v5608 = vpop.f32.mrb[0].mxu0
    %v5609 = vadd.f32 %v5546, %v5608
    %v5610 = vpop.f32.mrb[0].mxu0
    %v5611 = vpop.f32.mrb[0].mxu0
    %v5612 = vadd.f32 %v5546, %v5611
    %v5613 = vpop.f32.mrb[0].mxu0
    %5614 = vdwg.mxu0
    %v5615 = vadd.f32 %v5221, %v5601
    %v5616 = vadd.f32 %v5222, %v5604
    %v5617 = vadd.f32 %v5223, %v5609
    %v5618 = vadd.f32 %v5224, %v5612
    %v5619 = vrot.slane %v5497, 6
    %v5620 = vrot.slane %v5498, 6
    %v5621 = vrot.slane %v5499, 6
    %v5622 = vrot.slane %v5500, 6
    %v5623 = vsel %vm318, %v5621, %v5622
    %v5624 = vsel %vm318, %v5620, %v5621
    %v5625 = vsel %vm318, %v5619, %v5620
    %v5626 = vsel %vm318, %v5622, %v5619
    %v5627 = vmul.f32 %v310, %v5626
    %v5628 = vmul.f32 %v311, %v5625
    %v5629 = vmul.f32 %v312, %v5624
    %v5630 = vmul.f32 %v313, %v5623
    %5635 = vrot.lane.b32.xlu0 %v5497, 32
    %v5636 = vpop.permute.xlu0 %5635
    %5637 = vrot.lane.b32.xlu0 %v5498, 32
    %v5638 = vpop.permute.xlu0 %5637
    %5639 = vrot.lane.b32.xlu0 %v5499, 32
    %v5640 = vpop.permute.xlu0 %5639
    %5641 = vrot.lane.b32.xlu0 %v5500, 32
    %v5642 = vpop.permute.xlu0 %5641
    %v5647 = vsel %vm91, %v5627, %v5636
    %v5648 = vsel %vm91, %v5628, %v5638
    %v5649 = vsel %vm91, %v5629, %v5640
    %v5650 = vsel %vm91, %v5630, %v5642
    %v5651 = vpack.c.bf16 %v5648, %v5647
    %v5652 = vpack.c.bf16 %v5650, %v5649
    %v5653 = vrot.slane %v5529, 6
    %v5654 = vrot.slane %v5530, 6
    %v5655 = vrot.slane %v5531, 6
    %v5656 = vrot.slane %v5532, 6
    %v5657 = vsel %vm318, %v5655, %v5656
    %v5658 = vsel %vm318, %v5654, %v5655
    %v5659 = vsel %vm318, %v5653, %v5654
    %v5660 = vsel %vm318, %v5656, %v5653
    %v5661 = vmul.f32 %v310, %v5660
    %v5662 = vmul.f32 %v311, %v5659
    %v5663 = vmul.f32 %v312, %v5658
    %v5664 = vmul.f32 %v313, %v5657
    %5669 = vrot.lane.b32.xlu0 %v5529, 32
    %v5670 = vpop.permute.xlu0 %5669
    %5671 = vrot.lane.b32.xlu0 %v5530, 32
    %v5672 = vpop.permute.xlu0 %5671
    %5673 = vrot.lane.b32.xlu0 %v5531, 32
    %v5674 = vpop.permute.xlu0 %5673
    %5675 = vrot.lane.b32.xlu0 %v5532, 32
    %v5676 = vpop.permute.xlu0 %5675
    %v5681 = vsel %vm91, %v5661, %v5670
    %v5682 = vsel %vm91, %v5662, %v5672
    %v5683 = vsel %vm91, %v5663, %v5674
    %v5684 = vsel %vm91, %v5664, %v5676
    %v5685 = vpack.c.bf16 %v5682, %v5681
    %v5686 = vpack.c.bf16 %v5684, %v5683
    %s5687 = scalar_lea.vmem %s2, 544
    %v5688 = vld [vmem:[%s5687] sm:$0xf]
    %v5689 = vld [vmem:[%s5687 + $0x4] sm:$0xf]
    %v5690 = vld [vmem:[%s5687 + $0x8] sm:$0xf]
    %v5691 = vld [vmem:[%s5687 + $0xc] sm:$0xf]
    %v5692 = vld [vmem:[%s5687 + $0x10] sm:$0xf]
    %v5693 = vld [vmem:[%s5687 + $0x14] sm:$0xf]
    %v5694 = vld [vmem:[%s5687 + $0x18] sm:$0xf]
    %v5695 = vld [vmem:[%s5687 + $0x1c] sm:$0xf]
    %s5696 = scalar_lea.vmem %s4, 512
    %v5697 = vld [vmem:[%s5696] sm:$0xf]
    %v5698 = vld [vmem:[%s5696 + $0x4] sm:$0xf]
    %v5699 = vld [vmem:[%s5696 + $0x8] sm:$0xf]
    %v5700 = vld [vmem:[%s5696 + $0xc] sm:$0xf]
    %v5701 = vld [vmem:[%s5696 + $0x10] sm:$0xf]
    %v5702 = vld [vmem:[%s5696 + $0x14] sm:$0xf]
    %v5703 = vld [vmem:[%s5696 + $0x18] sm:$0xf]
    %v5704 = vld [vmem:[%s5696 + $0x1c] sm:$0xf]
    %v5713 = vunpack.c.l.b16 %v5697
    %v5714 = vunpack.c.l.b16 %v5698
    %v5715 = vunpack.c.l.b16 %v5699
    %v5716 = vunpack.c.l.b16 %v5700
    %v5717 = vunpack.c.l.b16 %v5701
    %v5718 = vunpack.c.l.b16 %v5702
    %v5719 = vunpack.c.l.b16 %v5703
    %v5720 = vunpack.c.l.b16 %v5704
    %v5721 = vpack.c.b16 %v5714, %v5713
    %v5722 = vpack.c.b16 %v5716, %v5715
    %v5723 = vpack.c.b16 %v5718, %v5717
    %v5724 = vpack.c.b16 %v5720, %v5719
    %v5730 = vsel %vm137, %v5685, 0
    %v5733 = vsel %vm137, %v5686, 0
    %5735 = vmatprep.subr.bf16.mxu0 0
    %5736 = vmatpush1.bf16.msra.mxu0 %v5721
    %5737 = vmatprep.subr.bf16.mxu0 0
    %5738 = vmatpush1.bf16.msra.mxu0 %v5722
    %5739 = vmatprep.subr.bf16.mxu0 0
    %5740 = vmatpush1.bf16.msra.mxu0 %v5723
    %5741 = vmatprep.subr.bf16.mxu0 0
    %5742 = vmatpush1.bf16.msra.mxu0 %v5724
    %5743 = vmatprep.subr.bf16.mxu0 0
    %5744 = vmatpush1.bf16.msra.mxu0 0
    %5745 = vmatprep.subr.bf16.mxu0 0
    %5746 = vmatpush1.bf16.msra.mxu0 0
    %5747 = vmatprep.subr.bf16.mxu0 0
    %5748 = vmatpush1.bf16.msra.mxu0 0
    %5749 = vmatprep.subr.bf16.mxu0 0
    %5750 = vmatpush1.bf16.msra.mxu0 0
    %5751 = vmatprep.subr.bf16.mxu0 0
    %5752 = vmatpush1.bf16.msra.mxu0 0
    %5753 = vmatprep.subr.bf16.mxu0 0
    %5754 = vmatpush1.bf16.msra.mxu0 0
    %5755 = vmatprep.subr.bf16.mxu0 0
    %5756 = vmatpush1.bf16.msra.mxu0 0
    %5757 = vmatprep.subr.bf16.mxu0 0
    %5758 = vmatpush1.bf16.msra.mxu0 0
    %5759 = vmatprep.subr.bf16.mxu0 0
    %5760 = vmatpush1.bf16.msra.mxu0 0
    %5761 = vmatprep.subr.bf16.mxu0 0
    %5762 = vmatpush1.bf16.msra.mxu0 0
    %5763 = vmatprep.subr.bf16.mxu0 0
    %5764 = vmatpush1.bf16.msra.mxu0 0
    %5765 = vmatprep.subr.bf16.mxu0 0
    %5766 = vmatpush1.bf16.msra.mxu0 0
    %5767 = vmatprep.mubr.bf16.mxu0 0
    %5768 = vmatmul.mubr.bf16.gmra.mrb[0].mxu0 %v5730
    %v5769 = vpop.f32.mrb[0].mxu0
    %v5770 = vadd.f32 0.0, %v5769
    %v5771 = vpop.f32.mrb[0].mxu0
    %v5772 = vpop.f32.mrb[0].mxu0
    %v5773 = vadd.f32 0.0, %v5772
    %v5774 = vpop.f32.mrb[0].mxu0
    %5775 = vmatprep.mubr.bf16.mxu0 0
    %5776 = vmatmul.mubr.bf16.gmra.mrb[0].mxu0 %v5733
    %v5777 = vpop.f32.mrb[0].mxu0
    %v5778 = vadd.f32 0.0, %v5777
    %v5779 = vpop.f32.mrb[0].mxu0
    %v5780 = vpop.f32.mrb[0].mxu0
    %v5781 = vadd.f32 0.0, %v5780
    %v5782 = vpop.f32.mrb[0].mxu0
    %5783 = vdwg.mxu0
    %v5792 = vunpack.c.l.b16 %v5688
    %v5793 = vunpack.c.l.b16 %v5689
    %v5794 = vunpack.c.l.b16 %v5690
    %v5795 = vunpack.c.l.b16 %v5691
    %v5796 = vunpack.c.l.b16 %v5692
    %v5797 = vunpack.c.l.b16 %v5693
    %v5798 = vunpack.c.l.b16 %v5694
    %v5799 = vunpack.c.l.b16 %v5695
    %v5800 = vpack.c.b16 %v5793, %v5792
    %v5801 = vpack.c.b16 %v5795, %v5794
    %v5802 = vpack.c.b16 %v5797, %v5796
    %v5803 = vpack.c.b16 %v5799, %v5798
    %v5809 = vsel %vm137, %v5651, 0
    %v5812 = vsel %vm137, %v5652, 0
    %5814 = vmatprep.subr.bf16.mxu0 0
    %5815 = vmatpush1.bf16.msra.mxu0 %v5800
    %5816 = vmatprep.subr.bf16.mxu0 0
    %5817 = vmatpush1.bf16.msra.mxu0 %v5801
    %5818 = vmatprep.subr.bf16.mxu0 0
    %5819 = vmatpush1.bf16.msra.mxu0 %v5802
    %5820 = vmatprep.subr.bf16.mxu0 0
    %5821 = vmatpush1.bf16.msra.mxu0 %v5803
    %5822 = vmatprep.subr.bf16.mxu0 0
    %5823 = vmatpush1.bf16.msra.mxu0 0
    %5824 = vmatprep.subr.bf16.mxu0 0
    %5825 = vmatpush1.bf16.msra.mxu0 0
    %5826 = vmatprep.subr.bf16.mxu0 0
    %5827 = vmatpush1.bf16.msra.mxu0 0
    %5828 = vmatprep.subr.bf16.mxu0 0
    %5829 = vmatpush1.bf16.msra.mxu0 0
    %5830 = vmatprep.subr.bf16.mxu0 0
    %5831 = vmatpush1.bf16.msra.mxu0 0
    %5832 = vmatprep.subr.bf16.mxu0 0
    %5833 = vmatpush1.bf16.msra.mxu0 0
    %5834 = vmatprep.subr.bf16.mxu0 0
    %5835 = vmatpush1.bf16.msra.mxu0 0
    %5836 = vmatprep.subr.bf16.mxu0 0
    %5837 = vmatpush1.bf16.msra.mxu0 0
    %5838 = vmatprep.subr.bf16.mxu0 0
    %5839 = vmatpush1.bf16.msra.mxu0 0
    %5840 = vmatprep.subr.bf16.mxu0 0
    %5841 = vmatpush1.bf16.msra.mxu0 0
    %5842 = vmatprep.subr.bf16.mxu0 0
    %5843 = vmatpush1.bf16.msra.mxu0 0
    %5844 = vmatprep.subr.bf16.mxu0 0
    %5845 = vmatpush1.bf16.msra.mxu0 0
    %5846 = vmatprep.mubr.bf16.mxu0 0
    %5847 = vmatmul.mubr.bf16.gmra.mrb[0].mxu0 %v5809
    %v5848 = vpop.f32.mrb[0].mxu0
    %v5849 = vadd.f32 %v5770, %v5848
    %v5850 = vpop.f32.mrb[0].mxu0
    %v5851 = vpop.f32.mrb[0].mxu0
    %v5852 = vadd.f32 %v5773, %v5851
    %v5853 = vpop.f32.mrb[0].mxu0
    %5854 = vmatprep.mubr.bf16.mxu0 0
    %5855 = vmatmul.mubr.bf16.gmra.mrb[0].mxu0 %v5812
    %v5856 = vpop.f32.mrb[0].mxu0
    %v5857 = vadd.f32 %v5778, %v5856
    %v5858 = vpop.f32.mrb[0].mxu0
    %v5859 = vpop.f32.mrb[0].mxu0
    %v5860 = vadd.f32 %v5781, %v5859
    %v5861 = vpop.f32.mrb[0].mxu0
    %5862 = vdwg.mxu0
    %s5863 = scalar_lea.vmem %s5, 16
    %v5864 = vld [vmem:[%s5863] sm:$0x1]
    %v5866 = vlaneseq
    %v5867 = vshrl.u32 %v5866, 7
    %v5868 = vsub.s32 0, %v5867
    %v5869 = vrot.slane %v5864, %v5868
    %v5871 = vadd.f32 %v5849, %v5869
    %v5872 = vadd.f32 %v5852, %v5869
    %v5873 = vadd.f32 %v5857, %v5869
    %v5874 = vadd.f32 %v5860, %v5869
    %s5875 = scalar_lea.vmem %s6, 16
    %v5876 = vld [vmem:[%s5875] sm:$0x1]
    %v5878 = vlaneseq
    %v5879 = vshrl.u32 %v5878, 7
    %v5880 = vsub.s32 0, %v5879
    %v5881 = vrot.slane %v5876, %v5880
    %v5883 = vmul.f32 %v310, %v5881
    %v5884 = vmul.f32 %v311, %v5881
    %v5885 = vmul.f32 %v312, %v5881
    %v5886 = vmul.f32 %v313, %v5881
    %v5887 = vadd.f32 %v5871, %v5883
    %v5888 = vadd.f32 %v5872, %v5884
    %v5889 = vadd.f32 %v5873, %v5885
    %v5890 = vadd.f32 %v5874, %v5886
    %v5891 = vadd.f32 %v5497, %v5601
    %v5892 = vadd.f32 %v5498, %v5604
    %v5893 = vadd.f32 %v5499, %v5609
    %v5894 = vadd.f32 %v5500, %v5612
    %v5895 = vtanh.pop %v5887
    %v5896 = vtanh.pop %v5888
    %v5897 = vtanh.pop %v5889
    %v5898 = vtanh.pop %v5890
    %v5899 = vmul.f32 %v5895, 0.5
    %v5900 = vmul.f32 %v5896, 0.5
    %v5901 = vmul.f32 %v5897, 0.5
    %v5902 = vmul.f32 %v5898, 0.5
    %v5903 = vadd.f32 %v5899, 0.5
    %v5904 = vadd.f32 %v5900, 0.5
    %v5905 = vadd.f32 %v5901, 0.5
    %v5906 = vadd.f32 %v5902, 0.5
    %5911 = vrot.lane.b32.xlu0 %v5903, 96
    %v5912 = vpop.permute.xlu0 %5911
    %5913 = vrot.lane.b32.xlu0 %v5904, 96
    %v5914 = vpop.permute.xlu0 %5913
    %5915 = vrot.lane.b32.xlu0 %v5905, 96
    %v5916 = vpop.permute.xlu0 %5915
    %5917 = vrot.lane.b32.xlu0 %v5906, 96
    %v5918 = vpop.permute.xlu0 %5917
    %v5923 = vmul.f32 %v5895, %v5912
    %v5924 = vmul.f32 %v5896, %v5914
    %v5925 = vmul.f32 %v5897, %v5916
    %v5926 = vmul.f32 %v5898, %v5918
    %v5927 = vpack.c.bf16 %v5924, %v5923
    %v5928 = vpack.c.bf16 %v5926, %v5925
    %s5929 = scalar_lea.vmem %s7, 272
    %v5930 = vld [vmem:[%s5929] sm:$0xf]
    %v5931 = vld [vmem:[%s5929 + $0x4] sm:$0xf]
    %v5932 = vld [vmem:[%s5929 + $0x8] sm:$0xf]
    %v5933 = vld [vmem:[%s5929 + $0xc] sm:$0xf]
    %s5934 = scalar_lea.vmem %s8, 17
    %v5935 = vld [vmem:[%s5934] sm:$0x1]
    %v5937 = vlaneseq
    %v5938 = vshrl.u32 %v5937, 7
    %v5939 = vsub.s32 0, %v5938
    %v5940 = vrot.slane %v5935, %v5939
    %v5946 = vunpack.c.l.b16 %v5930
    %v5947 = vunpack.c.l.b16 %v5931
    %v5948 = vunpack.c.l.b16 %v5932
    %v5949 = vunpack.c.l.b16 %v5933
    %v5950 = vpack.c.b16 %v5947, %v5946
    %v5951 = vpack.c.b16 %v5949, %v5948
    %v5955 = vsel %vm91, %v5927, 0
    %v5958 = vsel %vm91, %v5928, 0
    %5960 = vmatprep.subr.bf16.mxu0 0
    %5961 = vmatpush1.bf16.msra.mxu0 %v5950
    %5962 = vmatprep.subr.bf16.mxu0 0
    %5963 = vmatpush1.bf16.msra.mxu0 %v5951
    %5964 = vmatprep.subr.bf16.mxu0 0
    %5965 = vmatpush1.bf16.msra.mxu0 0
    %5966 = vmatprep.subr.bf16.mxu0 0
    %5967 = vmatpush1.bf16.msra.mxu0 0
    %5968 = vmatprep.subr.bf16.mxu0 0
    %5969 = vmatpush1.bf16.msra.mxu0 0
    %5970 = vmatprep.subr.bf16.mxu0 0
    %5971 = vmatpush1.bf16.msra.mxu0 0
    %5972 = vmatprep.subr.bf16.mxu0 0
    %5973 = vmatpush1.bf16.msra.mxu0 0
    %5974 = vmatprep.subr.bf16.mxu0 0
    %5975 = vmatpush1.bf16.msra.mxu0 0
    %5976 = vmatprep.subr.bf16.mxu0 0
    %5977 = vmatpush1.bf16.msra.mxu0 0
    %5978 = vmatprep.subr.bf16.mxu0 0
    %5979 = vmatpush1.bf16.msra.mxu0 0
    %5980 = vmatprep.subr.bf16.mxu0 0
    %5981 = vmatpush1.bf16.msra.mxu0 0
    %5982 = vmatprep.subr.bf16.mxu0 0
    %5983 = vmatpush1.bf16.msra.mxu0 0
    %5984 = vmatprep.subr.bf16.mxu0 0
    %5985 = vmatpush1.bf16.msra.mxu0 0
    %5986 = vmatprep.subr.bf16.mxu0 0
    %5987 = vmatpush1.bf16.msra.mxu0 0
    %5988 = vmatprep.subr.bf16.mxu0 0
    %5989 = vmatpush1.bf16.msra.mxu0 0
    %5990 = vmatprep.subr.bf16.mxu0 0
    %5991 = vmatpush1.bf16.msra.mxu0 0
    %5992 = vmatprep.mubr.bf16.mxu0 0
    %5993 = vmatmul.mubr.bf16.gmra.mrb[0].mxu0 %v5955
    %v5994 = vpop.f32.mrb[0].mxu0
    %v5995 = vadd.f32 %v5940, %v5994
    %v5996 = vpop.f32.mrb[0].mxu0
    %v5997 = vpop.f32.mrb[0].mxu0
    %v5998 = vadd.f32 %v5940, %v5997
    %v5999 = vpop.f32.mrb[0].mxu0
    %6000 = vmatprep.mubr.bf16.mxu0 0
    %6001 = vmatmul.mubr.bf16.gmra.mrb[0].mxu0 %v5958
    %v6002 = vpop.f32.mrb[0].mxu0
    %v6003 = vadd.f32 %v5940, %v6002
    %v6004 = vpop.f32.mrb[0].mxu0
    %v6005 = vpop.f32.mrb[0].mxu0
    %v6006 = vadd.f32 %v5940, %v6005
    %v6007 = vpop.f32.mrb[0].mxu0
    %6008 = vdwg.mxu0
    %v6009 = vadd.f32 %v5615, %v5995
    %v6010 = vadd.f32 %v5616, %v5998
    %v6011 = vadd.f32 %v5617, %v6003
    %v6012 = vadd.f32 %v5618, %v6006
    %v6013 = vrot.slane %v5891, 4
    %v6014 = vrot.slane %v5892, 4
    %v6015 = vrot.slane %v5893, 4
    %v6016 = vrot.slane %v5894, 4
    %v6017 = vsel %vm699, %v6015, %v6016
    %v6018 = vsel %vm699, %v6014, %v6015
    %v6019 = vsel %vm699, %v6013, %v6014
    %v6020 = vsel %vm699, %v6016, %v6013
    %v6021 = vmul.f32 %v691, %v6020
    %v6022 = vmul.f32 %v692, %v6019
    %v6023 = vmul.f32 %v693, %v6018
    %v6024 = vmul.f32 %v694, %v6017
    %6029 = vrot.lane.b32.xlu0 %v5891, 32
    %v6030 = vpop.permute.xlu0 %6029
    %6031 = vrot.lane.b32.xlu0 %v5892, 32
    %v6032 = vpop.permute.xlu0 %6031
    %6033 = vrot.lane.b32.xlu0 %v5893, 32
    %v6034 = vpop.permute.xlu0 %6033
    %6035 = vrot.lane.b32.xlu0 %v5894, 32
    %v6036 = vpop.permute.xlu0 %6035
    %v6041 = vsel %vm91, %v6021, %v6030
    %v6042 = vsel %vm91, %v6022, %v6032
    %v6043 = vsel %vm91, %v6023, %v6034
    %v6044 = vsel %vm91, %v6024, %v6036
    %v6045 = vpack.c.bf16 %v6042, %v6041
    %v6046 = vpack.c.bf16 %v6044, %v6043
    %v6047 = vrot.slane %v5923, 4
    %v6048 = vrot.slane %v5924, 4
    %v6049 = vrot.slane %v5925, 4
    %v6050 = vrot.slane %v5926, 4
    %v6051 = vsel %vm699, %v6049, %v6050
    %v6052 = vsel %vm699, %v6048, %v6049
    %v6053 = vsel %vm699, %v6047, %v6048
    %v6054 = vsel %vm699, %v6050, %v6047
    %v6055 = vmul.f32 %v691, %v6054
    %v6056 = vmul.f32 %v692, %v6053
    %v6057 = vmul.f32 %v693, %v6052
    %v6058 = vmul.f32 %v694, %v6051
    %6063 = vrot.lane.b32.xlu0 %v5923, 32
    %v6064 = vpop.permute.xlu0 %6063
    %6065 = vrot.lane.b32.xlu0 %v5924, 32
    %v6066 = vpop.permute.xlu0 %6065
    %6067 = vrot.lane.b32.xlu0 %v5925, 32
    %v6068 = vpop.permute.xlu0 %6067
    %6069 = vrot.lane.b32.xlu0 %v5926, 32
    %v6070 = vpop.permute.xlu0 %6069
    %v6075 = vsel %vm91, %v6055, %v6064
    %v6076 = vsel %vm91, %v6056, %v6066
    %v6077 = vsel %vm91, %v6057, %v6068
    %v6078 = vsel %vm91, %v6058, %v6070
    %v6079 = vpack.c.bf16 %v6076, %v6075
    %v6080 = vpack.c.bf16 %v6078, %v6077
    %s6081 = scalar_lea.vmem %s2, 576
    %v6082 = vld [vmem:[%s6081] sm:$0xf]
    %v6083 = vld [vmem:[%s6081 + $0x4] sm:$0xf]
    %v6084 = vld [vmem:[%s6081 + $0x8] sm:$0xf]
    %v6085 = vld [vmem:[%s6081 + $0xc] sm:$0xf]
    %v6086 = vld [vmem:[%s6081 + $0x10] sm:$0xf]
    %v6087 = vld [vmem:[%s6081 + $0x14] sm:$0xf]
    %v6088 = vld [vmem:[%s6081 + $0x18] sm:$0xf]
    %v6089 = vld [vmem:[%s6081 + $0x1c] sm:$0xf]
    %s6090 = scalar_lea.vmem %s4, 544
    %v6091 = vld [vmem:[%s6090] sm:$0xf]
    %v6092 = vld [vmem:[%s6090 + $0x4] sm:$0xf]
    %v6093 = vld [vmem:[%s6090 + $0x8] sm:$0xf]
    %v6094 = vld [vmem:[%s6090 + $0xc] sm:$0xf]
    %v6095 = vld [vmem:[%s6090 + $0x10] sm:$0xf]
    %v6096 = vld [vmem:[%s6090 + $0x14] sm:$0xf]
    %v6097 = vld [vmem:[%s6090 + $0x18] sm:$0xf]
    %v6098 = vld [vmem:[%s6090 + $0x1c] sm:$0xf]
    %v6107 = vunpack.c.l.b16 %v6091
    %v6108 = vunpack.c.l.b16 %v6092
    %v6109 = vunpack.c.l.b16 %v6093
    %v6110 = vunpack.c.l.b16 %v6094
    %v6111 = vunpack.c.l.b16 %v6095
    %v6112 = vunpack.c.l.b16 %v6096
    %v6113 = vunpack.c.l.b16 %v6097
    %v6114 = vunpack.c.l.b16 %v6098
    %v6115 = vpack.c.b16 %v6108, %v6107
    %v6116 = vpack.c.b16 %v6110, %v6109
    %v6117 = vpack.c.b16 %v6112, %v6111
    %v6118 = vpack.c.b16 %v6114, %v6113
    %v6124 = vsel %vm137, %v6079, 0
    %v6127 = vsel %vm137, %v6080, 0
    %6129 = vmatprep.subr.bf16.mxu0 0
    %6130 = vmatpush1.bf16.msra.mxu0 %v6115
    %6131 = vmatprep.subr.bf16.mxu0 0
    %6132 = vmatpush1.bf16.msra.mxu0 %v6116
    %6133 = vmatprep.subr.bf16.mxu0 0
    %6134 = vmatpush1.bf16.msra.mxu0 %v6117
    %6135 = vmatprep.subr.bf16.mxu0 0
    %6136 = vmatpush1.bf16.msra.mxu0 %v6118
    %6137 = vmatprep.subr.bf16.mxu0 0
    %6138 = vmatpush1.bf16.msra.mxu0 0
    %6139 = vmatprep.subr.bf16.mxu0 0
    %6140 = vmatpush1.bf16.msra.mxu0 0
    %6141 = vmatprep.subr.bf16.mxu0 0
    %6142 = vmatpush1.bf16.msra.mxu0 0
    %6143 = vmatprep.subr.bf16.mxu0 0
    %6144 = vmatpush1.bf16.msra.mxu0 0
    %6145 = vmatprep.subr.bf16.mxu0 0
    %6146 = vmatpush1.bf16.msra.mxu0 0
    %6147 = vmatprep.subr.bf16.mxu0 0
    %6148 = vmatpush1.bf16.msra.mxu0 0
    %6149 = vmatprep.subr.bf16.mxu0 0
    %6150 = vmatpush1.bf16.msra.mxu0 0
    %6151 = vmatprep.subr.bf16.mxu0 0
    %6152 = vmatpush1.bf16.msra.mxu0 0
    %6153 = vmatprep.subr.bf16.mxu0 0
    %6154 = vmatpush1.bf16.msra.mxu0 0
    %6155 = vmatprep.subr.bf16.mxu0 0
    %6156 = vmatpush1.bf16.msra.mxu0 0
    %6157 = vmatprep.subr.bf16.mxu0 0
    %6158 = vmatpush1.bf16.msra.mxu0 0
    %6159 = vmatprep.subr.bf16.mxu0 0
    %6160 = vmatpush1.bf16.msra.mxu0 0
    %6161 = vmatprep.mubr.bf16.mxu0 0
    %6162 = vmatmul.mubr.bf16.gmra.mrb[0].mxu0 %v6124
    %v6163 = vpop.f32.mrb[0].mxu0
    %v6164 = vadd.f32 0.0, %v6163
    %v6165 = vpop.f32.mrb[0].mxu0
    %v6166 = vpop.f32.mrb[0].mxu0
    %v6167 = vadd.f32 0.0, %v6166
    %v6168 = vpop.f32.mrb[0].mxu0
    %6169 = vmatprep.mubr.bf16.mxu0 0
    %6170 = vmatmul.mubr.bf16.gmra.mrb[0].mxu0 %v6127
    %v6171 = vpop.f32.mrb[0].mxu0
    %v6172 = vadd.f32 0.0, %v6171
    %v6173 = vpop.f32.mrb[0].mxu0
    %v6174 = vpop.f32.mrb[0].mxu0
    %v6175 = vadd.f32 0.0, %v6174
    %v6176 = vpop.f32.mrb[0].mxu0
    %6177 = vdwg.mxu0
    %v6186 = vunpack.c.l.b16 %v6082
    %v6187 = vunpack.c.l.b16 %v6083
    %v6188 = vunpack.c.l.b16 %v6084
    %v6189 = vunpack.c.l.b16 %v6085
    %v6190 = vunpack.c.l.b16 %v6086
    %v6191 = vunpack.c.l.b16 %v6087
    %v6192 = vunpack.c.l.b16 %v6088
    %v6193 = vunpack.c.l.b16 %v6089
    %v6194 = vpack.c.b16 %v6187, %v6186
    %v6195 = vpack.c.b16 %v6189, %v6188
    %v6196 = vpack.c.b16 %v6191, %v6190
    %v6197 = vpack.c.b16 %v6193, %v6192
    %v6203 = vsel %vm137, %v6045, 0
    %v6206 = vsel %vm137, %v6046, 0
    %6208 = vmatprep.subr.bf16.mxu0 0
    %6209 = vmatpush1.bf16.msra.mxu0 %v6194
    %6210 = vmatprep.subr.bf16.mxu0 0
    %6211 = vmatpush1.bf16.msra.mxu0 %v6195
    %6212 = vmatprep.subr.bf16.mxu0 0
    %6213 = vmatpush1.bf16.msra.mxu0 %v6196
    %6214 = vmatprep.subr.bf16.mxu0 0
    %6215 = vmatpush1.bf16.msra.mxu0 %v6197
    %6216 = vmatprep.subr.bf16.mxu0 0
    %6217 = vmatpush1.bf16.msra.mxu0 0
    %6218 = vmatprep.subr.bf16.mxu0 0
    %6219 = vmatpush1.bf16.msra.mxu0 0
    %6220 = vmatprep.subr.bf16.mxu0 0
    %6221 = vmatpush1.bf16.msra.mxu0 0
    %6222 = vmatprep.subr.bf16.mxu0 0
    %6223 = vmatpush1.bf16.msra.mxu0 0
    %6224 = vmatprep.subr.bf16.mxu0 0
    %6225 = vmatpush1.bf16.msra.mxu0 0
    %6226 = vmatprep.subr.bf16.mxu0 0
    %6227 = vmatpush1.bf16.msra.mxu0 0
    %6228 = vmatprep.subr.bf16.mxu0 0
    %6229 = vmatpush1.bf16.msra.mxu0 0
    %6230 = vmatprep.subr.bf16.mxu0 0
    %6231 = vmatpush1.bf16.msra.mxu0 0
    %6232 = vmatprep.subr.bf16.mxu0 0
    %6233 = vmatpush1.bf16.msra.mxu0 0
    %6234 = vmatprep.subr.bf16.mxu0 0
    %6235 = vmatpush1.bf16.msra.mxu0 0
    %6236 = vmatprep.subr.bf16.mxu0 0
    %6237 = vmatpush1.bf16.msra.mxu0 0
    %6238 = vmatprep.subr.bf16.mxu0 0
    %6239 = vmatpush1.bf16.msra.mxu0 0
    %6240 = vmatprep.mubr.bf16.mxu0 0
    %6241 = vmatmul.mubr.bf16.gmra.mrb[0].mxu0 %v6203
    %v6242 = vpop.f32.mrb[0].mxu0
    %v6243 = vadd.f32 %v6164, %v6242
    %v6244 = vpop.f32.mrb[0].mxu0
    %v6245 = vpop.f32.mrb[0].mxu0
    %v6246 = vadd.f32 %v6167, %v6245
    %v6247 = vpop.f32.mrb[0].mxu0
    %6248 = vmatprep.mubr.bf16.mxu0 0
    %6249 = vmatmul.mubr.bf16.gmra.mrb[0].mxu0 %v6206
    %v6250 = vpop.f32.mrb[0].mxu0
    %v6251 = vadd.f32 %v6172, %v6250
    %v6252 = vpop.f32.mrb[0].mxu0
    %v6253 = vpop.f32.mrb[0].mxu0
    %v6254 = vadd.f32 %v6175, %v6253
    %v6255 = vpop.f32.mrb[0].mxu0
    %6256 = vdwg.mxu0
    %s6257 = scalar_lea.vmem %s5, 17
    %v6258 = vld [vmem:[%s6257] sm:$0x1]
    %v6260 = vlaneseq
    %v6261 = vshrl.u32 %v6260, 7
    %v6262 = vsub.s32 0, %v6261
    %v6263 = vrot.slane %v6258, %v6262
    %v6265 = vadd.f32 %v6243, %v6263
    %v6266 = vadd.f32 %v6246, %v6263
    %v6267 = vadd.f32 %v6251, %v6263
    %v6268 = vadd.f32 %v6254, %v6263
    %s6269 = scalar_lea.vmem %s6, 17
    %v6270 = vld [vmem:[%s6269] sm:$0x1]
    %v6272 = vlaneseq
    %v6273 = vshrl.u32 %v6272, 7
    %v6274 = vsub.s32 0, %v6273
    %v6275 = vrot.slane %v6270, %v6274
    %v6277 = vmul.f32 %v691, %v6275
    %v6278 = vmul.f32 %v692, %v6275
    %v6279 = vmul.f32 %v693, %v6275
    %v6280 = vmul.f32 %v694, %v6275
    %v6281 = vadd.f32 %v6265, %v6277
    %v6282 = vadd.f32 %v6266, %v6278
    %v6283 = vadd.f32 %v6267, %v6279
    %v6284 = vadd.f32 %v6268, %v6280
    %v6285 = vadd.f32 %v5891, %v5995
    %v6286 = vadd.f32 %v5892, %v5998
    %v6287 = vadd.f32 %v5893, %v6003
    %v6288 = vadd.f32 %v5894, %v6006
    %v6289 = vtanh.pop %v6281
    %v6290 = vtanh.pop %v6282
    %v6291 = vtanh.pop %v6283
    %v6292 = vtanh.pop %v6284
    %v6293 = vmul.f32 %v6289, 0.5
    %v6294 = vmul.f32 %v6290, 0.5
    %v6295 = vmul.f32 %v6291, 0.5
    %v6296 = vmul.f32 %v6292, 0.5
    %v6297 = vadd.f32 %v6293, 0.5
    %v6298 = vadd.f32 %v6294, 0.5
    %v6299 = vadd.f32 %v6295, 0.5
    %v6300 = vadd.f32 %v6296, 0.5
    %6305 = vrot.lane.b32.xlu0 %v6297, 96
    %v6306 = vpop.permute.xlu0 %6305
    %6307 = vrot.lane.b32.xlu0 %v6298, 96
    %v6308 = vpop.permute.xlu0 %6307
    %6309 = vrot.lane.b32.xlu0 %v6299, 96
    %v6310 = vpop.permute.xlu0 %6309
    %6311 = vrot.lane.b32.xlu0 %v6300, 96
    %v6312 = vpop.permute.xlu0 %6311
    %v6317 = vmul.f32 %v6289, %v6306
    %v6318 = vmul.f32 %v6290, %v6308
    %v6319 = vmul.f32 %v6291, %v6310
    %v6320 = vmul.f32 %v6292, %v6312
    %v6321 = vpack.c.bf16 %v6318, %v6317
    %v6322 = vpack.c.bf16 %v6320, %v6319
    %s6323 = scalar_lea.vmem %s7, 288
    %v6324 = vld [vmem:[%s6323] sm:$0xf]
    %v6325 = vld [vmem:[%s6323 + $0x4] sm:$0xf]
    %v6326 = vld [vmem:[%s6323 + $0x8] sm:$0xf]
    %v6327 = vld [vmem:[%s6323 + $0xc] sm:$0xf]
    %s6328 = scalar_lea.vmem %s8, 18
    %v6329 = vld [vmem:[%s6328] sm:$0x1]
    %v6331 = vlaneseq
    %v6332 = vshrl.u32 %v6331, 7
    %v6333 = vsub.s32 0, %v6332
    %v6334 = vrot.slane %v6329, %v6333
    %v6340 = vunpack.c.l.b16 %v6324
    %v6341 = vunpack.c.l.b16 %v6325
    %v6342 = vunpack.c.l.b16 %v6326
    %v6343 = vunpack.c.l.b16 %v6327
    %v6344 = vpack.c.b16 %v6341, %v6340
    %v6345 = vpack.c.b16 %v6343, %v6342
    %v6349 = vsel %vm91, %v6321, 0
    %v6352 = vsel %vm91, %v6322, 0
    %6354 = vmatprep.subr.bf16.mxu0 0
    %6355 = vmatpush1.bf16.msra.mxu0 %v6344
    %6356 = vmatprep.subr.bf16.mxu0 0
    %6357 = vmatpush1.bf16.msra.mxu0 %v6345
    %6358 = vmatprep.subr.bf16.mxu0 0
    %6359 = vmatpush1.bf16.msra.mxu0 0
    %6360 = vmatprep.subr.bf16.mxu0 0
    %6361 = vmatpush1.bf16.msra.mxu0 0
    %6362 = vmatprep.subr.bf16.mxu0 0
    %6363 = vmatpush1.bf16.msra.mxu0 0
    %6364 = vmatprep.subr.bf16.mxu0 0
    %6365 = vmatpush1.bf16.msra.mxu0 0
    %6366 = vmatprep.subr.bf16.mxu0 0
    %6367 = vmatpush1.bf16.msra.mxu0 0
    %6368 = vmatprep.subr.bf16.mxu0 0
    %6369 = vmatpush1.bf16.msra.mxu0 0
    %6370 = vmatprep.subr.bf16.mxu0 0
    %6371 = vmatpush1.bf16.msra.mxu0 0
    %6372 = vmatprep.subr.bf16.mxu0 0
    %6373 = vmatpush1.bf16.msra.mxu0 0
    %6374 = vmatprep.subr.bf16.mxu0 0
    %6375 = vmatpush1.bf16.msra.mxu0 0
    %6376 = vmatprep.subr.bf16.mxu0 0
    %6377 = vmatpush1.bf16.msra.mxu0 0
    %6378 = vmatprep.subr.bf16.mxu0 0
    %6379 = vmatpush1.bf16.msra.mxu0 0
    %6380 = vmatprep.subr.bf16.mxu0 0
    %6381 = vmatpush1.bf16.msra.mxu0 0
    %6382 = vmatprep.subr.bf16.mxu0 0
    %6383 = vmatpush1.bf16.msra.mxu0 0
    %6384 = vmatprep.subr.bf16.mxu0 0
    %6385 = vmatpush1.bf16.msra.mxu0 0
    %6386 = vmatprep.mubr.bf16.mxu0 0
    %6387 = vmatmul.mubr.bf16.gmra.mrb[0].mxu0 %v6349
    %v6388 = vpop.f32.mrb[0].mxu0
    %v6389 = vadd.f32 %v6334, %v6388
    %v6390 = vpop.f32.mrb[0].mxu0
    %v6391 = vpop.f32.mrb[0].mxu0
    %v6392 = vadd.f32 %v6334, %v6391
    %v6393 = vpop.f32.mrb[0].mxu0
    %6394 = vmatprep.mubr.bf16.mxu0 0
    %6395 = vmatmul.mubr.bf16.gmra.mrb[0].mxu0 %v6352
    %v6396 = vpop.f32.mrb[0].mxu0
    %v6397 = vadd.f32 %v6334, %v6396
    %v6398 = vpop.f32.mrb[0].mxu0
    %v6399 = vpop.f32.mrb[0].mxu0
    %v6400 = vadd.f32 %v6334, %v6399
    %v6401 = vpop.f32.mrb[0].mxu0
    %6402 = vdwg.mxu0
    %v6403 = vadd.f32 %v6009, %v6389
    %v6404 = vadd.f32 %v6010, %v6392
    %v6405 = vadd.f32 %v6011, %v6397
    %v6406 = vadd.f32 %v6012, %v6400
    %v6407 = vmul.f32 %v1091, %v6288
    %v6408 = vmul.f32 %v1092, %v6285
    %v6409 = vmul.f32 %v1093, %v6286
    %v6410 = vmul.f32 %v1094, %v6287
    %6415 = vrot.lane.b32.xlu0 %v6285, 32
    %v6416 = vpop.permute.xlu0 %6415
    %6417 = vrot.lane.b32.xlu0 %v6286, 32
    %v6418 = vpop.permute.xlu0 %6417
    %6419 = vrot.lane.b32.xlu0 %v6287, 32
    %v6420 = vpop.permute.xlu0 %6419
    %6421 = vrot.lane.b32.xlu0 %v6288, 32
    %v6422 = vpop.permute.xlu0 %6421
    %v6427 = vsel %vm91, %v6407, %v6416
    %v6428 = vsel %vm91, %v6408, %v6418
    %v6429 = vsel %vm91, %v6409, %v6420
    %v6430 = vsel %vm91, %v6410, %v6422
    %v6431 = vpack.c.bf16 %v6428, %v6427
    %v6432 = vpack.c.bf16 %v6430, %v6429
    %v6433 = vmul.f32 %v1091, %v6320
    %v6434 = vmul.f32 %v1092, %v6317
    %v6435 = vmul.f32 %v1093, %v6318
    %v6436 = vmul.f32 %v1094, %v6319
    %6441 = vrot.lane.b32.xlu0 %v6317, 32
    %v6442 = vpop.permute.xlu0 %6441
    %6443 = vrot.lane.b32.xlu0 %v6318, 32
    %v6444 = vpop.permute.xlu0 %6443
    %6445 = vrot.lane.b32.xlu0 %v6319, 32
    %v6446 = vpop.permute.xlu0 %6445
    %6447 = vrot.lane.b32.xlu0 %v6320, 32
    %v6448 = vpop.permute.xlu0 %6447
    %v6453 = vsel %vm91, %v6433, %v6442
    %v6454 = vsel %vm91, %v6434, %v6444
    %v6455 = vsel %vm91, %v6435, %v6446
    %v6456 = vsel %vm91, %v6436, %v6448
    %v6457 = vpack.c.bf16 %v6454, %v6453
    %v6458 = vpack.c.bf16 %v6456, %v6455
    %s6459 = scalar_lea.vmem %s2, 608
    %v6460 = vld [vmem:[%s6459] sm:$0xf]
    %v6461 = vld [vmem:[%s6459 + $0x4] sm:$0xf]
    %v6462 = vld [vmem:[%s6459 + $0x8] sm:$0xf]
    %v6463 = vld [vmem:[%s6459 + $0xc] sm:$0xf]
    %v6464 = vld [vmem:[%s6459 + $0x10] sm:$0xf]
    %v6465 = vld [vmem:[%s6459 + $0x14] sm:$0xf]
    %v6466 = vld [vmem:[%s6459 + $0x18] sm:$0xf]
    %v6467 = vld [vmem:[%s6459 + $0x1c] sm:$0xf]
    %s6468 = scalar_lea.vmem %s4, 576
    %v6469 = vld [vmem:[%s6468] sm:$0xf]
    %v6470 = vld [vmem:[%s6468 + $0x4] sm:$0xf]
    %v6471 = vld [vmem:[%s6468 + $0x8] sm:$0xf]
    %v6472 = vld [vmem:[%s6468 + $0xc] sm:$0xf]
    %v6473 = vld [vmem:[%s6468 + $0x10] sm:$0xf]
    %v6474 = vld [vmem:[%s6468 + $0x14] sm:$0xf]
    %v6475 = vld [vmem:[%s6468 + $0x18] sm:$0xf]
    %v6476 = vld [vmem:[%s6468 + $0x1c] sm:$0xf]
    %v6485 = vunpack.c.l.b16 %v6469
    %v6486 = vunpack.c.l.b16 %v6470
    %v6487 = vunpack.c.l.b16 %v6471
    %v6488 = vunpack.c.l.b16 %v6472
    %v6489 = vunpack.c.l.b16 %v6473
    %v6490 = vunpack.c.l.b16 %v6474
    %v6491 = vunpack.c.l.b16 %v6475
    %v6492 = vunpack.c.l.b16 %v6476
    %v6493 = vpack.c.b16 %v6486, %v6485
    %v6494 = vpack.c.b16 %v6488, %v6487
    %v6495 = vpack.c.b16 %v6490, %v6489
    %v6496 = vpack.c.b16 %v6492, %v6491
    %v6502 = vsel %vm137, %v6457, 0
    %v6505 = vsel %vm137, %v6458, 0
    %6507 = vmatprep.subr.bf16.mxu0 0
    %6508 = vmatpush1.bf16.msra.mxu0 %v6493
    %6509 = vmatprep.subr.bf16.mxu0 0
    %6510 = vmatpush1.bf16.msra.mxu0 %v6494
    %6511 = vmatprep.subr.bf16.mxu0 0
    %6512 = vmatpush1.bf16.msra.mxu0 %v6495
    %6513 = vmatprep.subr.bf16.mxu0 0
    %6514 = vmatpush1.bf16.msra.mxu0 %v6496
    %6515 = vmatprep.subr.bf16.mxu0 0
    %6516 = vmatpush1.bf16.msra.mxu0 0
    %6517 = vmatprep.subr.bf16.mxu0 0
    %6518 = vmatpush1.bf16.msra.mxu0 0
    %6519 = vmatprep.subr.bf16.mxu0 0
    %6520 = vmatpush1.bf16.msra.mxu0 0
    %6521 = vmatprep.subr.bf16.mxu0 0
    %6522 = vmatpush1.bf16.msra.mxu0 0
    %6523 = vmatprep.subr.bf16.mxu0 0
    %6524 = vmatpush1.bf16.msra.mxu0 0
    %6525 = vmatprep.subr.bf16.mxu0 0
    %6526 = vmatpush1.bf16.msra.mxu0 0
    %6527 = vmatprep.subr.bf16.mxu0 0
    %6528 = vmatpush1.bf16.msra.mxu0 0
    %6529 = vmatprep.subr.bf16.mxu0 0
    %6530 = vmatpush1.bf16.msra.mxu0 0
    %6531 = vmatprep.subr.bf16.mxu0 0
    %6532 = vmatpush1.bf16.msra.mxu0 0
    %6533 = vmatprep.subr.bf16.mxu0 0
    %6534 = vmatpush1.bf16.msra.mxu0 0
    %6535 = vmatprep.subr.bf16.mxu0 0
    %6536 = vmatpush1.bf16.msra.mxu0 0
    %6537 = vmatprep.subr.bf16.mxu0 0
    %6538 = vmatpush1.bf16.msra.mxu0 0
    %6539 = vmatprep.mubr.bf16.mxu0 0
    %6540 = vmatmul.mubr.bf16.gmra.mrb[0].mxu0 %v6502
    %v6541 = vpop.f32.mrb[0].mxu0
    %v6542 = vadd.f32 0.0, %v6541
    %v6543 = vpop.f32.mrb[0].mxu0
    %v6544 = vpop.f32.mrb[0].mxu0
    %v6545 = vadd.f32 0.0, %v6544
    %v6546 = vpop.f32.mrb[0].mxu0
    %6547 = vmatprep.mubr.bf16.mxu0 0
    %6548 = vmatmul.mubr.bf16.gmra.mrb[0].mxu0 %v6505
    %v6549 = vpop.f32.mrb[0].mxu0
    %v6550 = vadd.f32 0.0, %v6549
    %v6551 = vpop.f32.mrb[0].mxu0
    %v6552 = vpop.f32.mrb[0].mxu0
    %v6553 = vadd.f32 0.0, %v6552
    %v6554 = vpop.f32.mrb[0].mxu0
    %6555 = vdwg.mxu0
    %v6564 = vunpack.c.l.b16 %v6460
    %v6565 = vunpack.c.l.b16 %v6461
    %v6566 = vunpack.c.l.b16 %v6462
    %v6567 = vunpack.c.l.b16 %v6463
    %v6568 = vunpack.c.l.b16 %v6464
    %v6569 = vunpack.c.l.b16 %v6465
    %v6570 = vunpack.c.l.b16 %v6466
    %v6571 = vunpack.c.l.b16 %v6467
    %v6572 = vpack.c.b16 %v6565, %v6564
    %v6573 = vpack.c.b16 %v6567, %v6566
    %v6574 = vpack.c.b16 %v6569, %v6568
    %v6575 = vpack.c.b16 %v6571, %v6570
    %v6581 = vsel %vm137, %v6431, 0
    %v6584 = vsel %vm137, %v6432, 0
    %6586 = vmatprep.subr.bf16.mxu0 0
    %6587 = vmatpush1.bf16.msra.mxu0 %v6572
    %6588 = vmatprep.subr.bf16.mxu0 0
    %6589 = vmatpush1.bf16.msra.mxu0 %v6573
    %6590 = vmatprep.subr.bf16.mxu0 0
    %6591 = vmatpush1.bf16.msra.mxu0 %v6574
    %6592 = vmatprep.subr.bf16.mxu0 0
    %6593 = vmatpush1.bf16.msra.mxu0 %v6575
    %6594 = vmatprep.subr.bf16.mxu0 0
    %6595 = vmatpush1.bf16.msra.mxu0 0
    %6596 = vmatprep.subr.bf16.mxu0 0
    %6597 = vmatpush1.bf16.msra.mxu0 0
    %6598 = vmatprep.subr.bf16.mxu0 0
    %6599 = vmatpush1.bf16.msra.mxu0 0
    %6600 = vmatprep.subr.bf16.mxu0 0
    %6601 = vmatpush1.bf16.msra.mxu0 0
    %6602 = vmatprep.subr.bf16.mxu0 0
    %6603 = vmatpush1.bf16.msra.mxu0 0
    %6604 = vmatprep.subr.bf16.mxu0 0
    %6605 = vmatpush1.bf16.msra.mxu0 0
    %6606 = vmatprep.subr.bf16.mxu0 0
    %6607 = vmatpush1.bf16.msra.mxu0 0
    %6608 = vmatprep.subr.bf16.mxu0 0
    %6609 = vmatpush1.bf16.msra.mxu0 0
    %6610 = vmatprep.subr.bf16.mxu0 0
    %6611 = vmatpush1.bf16.msra.mxu0 0
    %6612 = vmatprep.subr.bf16.mxu0 0
    %6613 = vmatpush1.bf16.msra.mxu0 0
    %6614 = vmatprep.subr.bf16.mxu0 0
    %6615 = vmatpush1.bf16.msra.mxu0 0
    %6616 = vmatprep.subr.bf16.mxu0 0
    %6617 = vmatpush1.bf16.msra.mxu0 0
    %6618 = vmatprep.mubr.bf16.mxu0 0
    %6619 = vmatmul.mubr.bf16.gmra.mrb[0].mxu0 %v6581
    %v6620 = vpop.f32.mrb[0].mxu0
    %v6621 = vadd.f32 %v6542, %v6620
    %v6622 = vpop.f32.mrb[0].mxu0
    %v6623 = vpop.f32.mrb[0].mxu0
    %v6624 = vadd.f32 %v6545, %v6623
    %v6625 = vpop.f32.mrb[0].mxu0
    %6626 = vmatprep.mubr.bf16.mxu0 0
    %6627 = vmatmul.mubr.bf16.gmra.mrb[0].mxu0 %v6584
    %v6628 = vpop.f32.mrb[0].mxu0
    %v6629 = vadd.f32 %v6550, %v6628
    %v6630 = vpop.f32.mrb[0].mxu0
    %v6631 = vpop.f32.mrb[0].mxu0
    %v6632 = vadd.f32 %v6553, %v6631
    %v6633 = vpop.f32.mrb[0].mxu0
    %6634 = vdwg.mxu0
    %s6635 = scalar_lea.vmem %s5, 18
    %v6636 = vld [vmem:[%s6635] sm:$0x1]
    %v6638 = vlaneseq
    %v6639 = vshrl.u32 %v6638, 7
    %v6640 = vsub.s32 0, %v6639
    %v6641 = vrot.slane %v6636, %v6640
    %v6643 = vadd.f32 %v6621, %v6641
    %v6644 = vadd.f32 %v6624, %v6641
    %v6645 = vadd.f32 %v6629, %v6641
    %v6646 = vadd.f32 %v6632, %v6641
    %s6647 = scalar_lea.vmem %s6, 18
    %v6648 = vld [vmem:[%s6647] sm:$0x1]
    %v6650 = vlaneseq
    %v6651 = vshrl.u32 %v6650, 7
    %v6652 = vsub.s32 0, %v6651
    %v6653 = vrot.slane %v6648, %v6652
    %v6655 = vmul.f32 %v1091, %v6653
    %v6656 = vmul.f32 %v1092, %v6653
    %v6657 = vmul.f32 %v1093, %v6653
    %v6658 = vmul.f32 %v1094, %v6653
    %v6659 = vadd.f32 %v6643, %v6655
    %v6660 = vadd.f32 %v6644, %v6656
    %v6661 = vadd.f32 %v6645, %v6657
    %v6662 = vadd.f32 %v6646, %v6658
    %v6663 = vadd.f32 %v6285, %v6389
    %v6664 = vadd.f32 %v6286, %v6392
    %v6665 = vadd.f32 %v6287, %v6397
    %v6666 = vadd.f32 %v6288, %v6400
    %v6667 = vtanh.pop %v6659
    %v6668 = vtanh.pop %v6660
    %v6669 = vtanh.pop %v6661
    %v6670 = vtanh.pop %v6662
    %v6671 = vmul.f32 %v6667, 0.5
    %v6672 = vmul.f32 %v6668, 0.5
    %v6673 = vmul.f32 %v6669, 0.5
    %v6674 = vmul.f32 %v6670, 0.5
    %v6675 = vadd.f32 %v6671, 0.5
    %v6676 = vadd.f32 %v6672, 0.5
    %v6677 = vadd.f32 %v6673, 0.5
    %v6678 = vadd.f32 %v6674, 0.5
    %6683 = vrot.lane.b32.xlu0 %v6675, 96
    %v6684 = vpop.permute.xlu0 %6683
    %6685 = vrot.lane.b32.xlu0 %v6676, 96
    %v6686 = vpop.permute.xlu0 %6685
    %6687 = vrot.lane.b32.xlu0 %v6677, 96
    %v6688 = vpop.permute.xlu0 %6687
    %6689 = vrot.lane.b32.xlu0 %v6678, 96
    %v6690 = vpop.permute.xlu0 %6689
    %v6695 = vmul.f32 %v6667, %v6684
    %v6696 = vmul.f32 %v6668, %v6686
    %v6697 = vmul.f32 %v6669, %v6688
    %v6698 = vmul.f32 %v6670, %v6690
    %v6699 = vpack.c.bf16 %v6696, %v6695
    %v6700 = vpack.c.bf16 %v6698, %v6697
    %s6701 = scalar_lea.vmem %s7, 304
    %v6702 = vld [vmem:[%s6701] sm:$0xf]
    %v6703 = vld [vmem:[%s6701 + $0x4] sm:$0xf]
    %v6704 = vld [vmem:[%s6701 + $0x8] sm:$0xf]
    %v6705 = vld [vmem:[%s6701 + $0xc] sm:$0xf]
    %s6706 = scalar_lea.vmem %s8, 19
    %v6707 = vld [vmem:[%s6706] sm:$0x1]
    %v6709 = vlaneseq
    %v6710 = vshrl.u32 %v6709, 7
    %v6711 = vsub.s32 0, %v6710
    %v6712 = vrot.slane %v6707, %v6711
    %v6718 = vunpack.c.l.b16 %v6702
    %v6719 = vunpack.c.l.b16 %v6703
    %v6720 = vunpack.c.l.b16 %v6704
    %v6721 = vunpack.c.l.b16 %v6705
    %v6722 = vpack.c.b16 %v6719, %v6718
    %v6723 = vpack.c.b16 %v6721, %v6720
    %v6727 = vsel %vm91, %v6699, 0
    %v6730 = vsel %vm91, %v6700, 0
    %6732 = vmatprep.subr.bf16.mxu0 0
    %6733 = vmatpush1.bf16.msra.mxu0 %v6722
    %6734 = vmatprep.subr.bf16.mxu0 0
    %6735 = vmatpush1.bf16.msra.mxu0 %v6723
    %6736 = vmatprep.subr.bf16.mxu0 0
    %6737 = vmatpush1.bf16.msra.mxu0 0
    %6738 = vmatprep.subr.bf16.mxu0 0
    %6739 = vmatpush1.bf16.msra.mxu0 0
    %6740 = vmatprep.subr.bf16.mxu0 0
    %6741 = vmatpush1.bf16.msra.mxu0 0
    %6742 = vmatprep.subr.bf16.mxu0 0
    %6743 = vmatpush1.bf16.msra.mxu0 0
    %6744 = vmatprep.subr.bf16.mxu0 0
    %6745 = vmatpush1.bf16.msra.mxu0 0
    %6746 = vmatprep.subr.bf16.mxu0 0
    %6747 = vmatpush1.bf16.msra.mxu0 0
    %6748 = vmatprep.subr.bf16.mxu0 0
    %6749 = vmatpush1.bf16.msra.mxu0 0
    %6750 = vmatprep.subr.bf16.mxu0 0
    %6751 = vmatpush1.bf16.msra.mxu0 0
    %6752 = vmatprep.subr.bf16.mxu0 0
    %6753 = vmatpush1.bf16.msra.mxu0 0
    %6754 = vmatprep.subr.bf16.mxu0 0
    %6755 = vmatpush1.bf16.msra.mxu0 0
    %6756 = vmatprep.subr.bf16.mxu0 0
    %6757 = vmatpush1.bf16.msra.mxu0 0
    %6758 = vmatprep.subr.bf16.mxu0 0
    %6759 = vmatpush1.bf16.msra.mxu0 0
    %6760 = vmatprep.subr.bf16.mxu0 0
    %6761 = vmatpush1.bf16.msra.mxu0 0
    %6762 = vmatprep.subr.bf16.mxu0 0
    %6763 = vmatpush1.bf16.msra.mxu0 0
    %6764 = vmatprep.mubr.bf16.mxu0 0
    %6765 = vmatmul.mubr.bf16.gmra.mrb[0].mxu0 %v6727
    %v6766 = vpop.f32.mrb[0].mxu0
    %v6767 = vadd.f32 %v6712, %v6766
    %v6768 = vpop.f32.mrb[0].mxu0
    %v6769 = vpop.f32.mrb[0].mxu0
    %v6770 = vadd.f32 %v6712, %v6769
    %v6771 = vpop.f32.mrb[0].mxu0
    %6772 = vmatprep.mubr.bf16.mxu0 0
    %6773 = vmatmul.mubr.bf16.gmra.mrb[0].mxu0 %v6730
    %v6774 = vpop.f32.mrb[0].mxu0
    %v6775 = vadd.f32 %v6712, %v6774
    %v6776 = vpop.f32.mrb[0].mxu0
    %v6777 = vpop.f32.mrb[0].mxu0
    %v6778 = vadd.f32 %v6712, %v6777
    %v6779 = vpop.f32.mrb[0].mxu0
    %6780 = vdwg.mxu0
    %v6781 = vadd.f32 %v6403, %v6767
    %v6782 = vadd.f32 %v6404, %v6770
    %v6783 = vadd.f32 %v6405, %v6775
    %v6784 = vadd.f32 %v6406, %v6778
    %v6785 = vpack.c.bf16 %v6664, %v6663
    %v6786 = vpack.c.bf16 %v6666, %v6665
    %s6787 = scalar_lea.vmem %s2, 640
    %v6788 = vld [vmem:[%s6787 + $0x10] sm:$0xf]
    %v6789 = vld [vmem:[%s6787 + $0x14] sm:$0xf]
    %v6790 = vld [vmem:[%s6787 + $0x18] sm:$0xf]
    %v6791 = vld [vmem:[%s6787 + $0x1c] sm:$0xf]
    %s6792 = scalar_lea.vmem %s4, 608
    %v6793 = vld [vmem:[%s6792 + $0x10] sm:$0xf]
    %v6794 = vld [vmem:[%s6792 + $0x14] sm:$0xf]
    %v6795 = vld [vmem:[%s6792 + $0x18] sm:$0xf]
    %v6796 = vld [vmem:[%s6792 + $0x1c] sm:$0xf]
    %v6801 = vunpack.c.l.b16 %v6793
    %v6802 = vunpack.c.l.b16 %v6794
    %v6803 = vunpack.c.l.b16 %v6795
    %v6804 = vunpack.c.l.b16 %v6796
    %v6805 = vpack.c.b16 %v6802, %v6801
    %v6806 = vpack.c.b16 %v6804, %v6803
    %6809 = vmatprep.subr.bf16.mxu0 0
    %6810 = vmatpush1.bf16.msra.mxu0 %v6805
    %6811 = vmatprep.subr.bf16.mxu0 0
    %6812 = vmatpush1.bf16.msra.mxu0 %v6806
    %6813 = vmatprep.subr.bf16.mxu0 0
    %6814 = vmatpush1.bf16.msra.mxu0 0
    %6815 = vmatprep.subr.bf16.mxu0 0
    %6816 = vmatpush1.bf16.msra.mxu0 0
    %6817 = vmatprep.subr.bf16.mxu0 0
    %6818 = vmatpush1.bf16.msra.mxu0 0
    %6819 = vmatprep.subr.bf16.mxu0 0
    %6820 = vmatpush1.bf16.msra.mxu0 0
    %6821 = vmatprep.subr.bf16.mxu0 0
    %6822 = vmatpush1.bf16.msra.mxu0 0
    %6823 = vmatprep.subr.bf16.mxu0 0
    %6824 = vmatpush1.bf16.msra.mxu0 0
    %6825 = vmatprep.subr.bf16.mxu0 0
    %6826 = vmatpush1.bf16.msra.mxu0 0
    %6827 = vmatprep.subr.bf16.mxu0 0
    %6828 = vmatpush1.bf16.msra.mxu0 0
    %6829 = vmatprep.subr.bf16.mxu0 0
    %6830 = vmatpush1.bf16.msra.mxu0 0
    %6831 = vmatprep.subr.bf16.mxu0 0
    %6832 = vmatpush1.bf16.msra.mxu0 0
    %6833 = vmatprep.subr.bf16.mxu0 0
    %6834 = vmatpush1.bf16.msra.mxu0 0
    %6835 = vmatprep.subr.bf16.mxu0 0
    %6836 = vmatpush1.bf16.msra.mxu0 0
    %6837 = vmatprep.subr.bf16.mxu0 0
    %6838 = vmatpush1.bf16.msra.mxu0 0
    %6839 = vmatprep.subr.bf16.mxu0 0
    %6840 = vmatpush1.bf16.msra.mxu0 0
    %6841 = vmatprep.mubr.bf16.mxu0 0
    %6842 = vmatmul.mubr.bf16.gmra.mrb[0].mxu0 %v6727
    %v6843 = vpop.f32.mrb[0].mxu0
    %v6844 = vadd.f32 0.0, %v6843
    %v6845 = vpop.f32.mrb[0].mxu0
    %v6846 = vpop.f32.mrb[0].mxu0
    %v6847 = vadd.f32 0.0, %v6846
    %v6848 = vpop.f32.mrb[0].mxu0
    %6849 = vmatprep.mubr.bf16.mxu0 0
    %6850 = vmatmul.mubr.bf16.gmra.mrb[0].mxu0 %v6730
    %v6851 = vpop.f32.mrb[0].mxu0
    %v6852 = vadd.f32 0.0, %v6851
    %v6853 = vpop.f32.mrb[0].mxu0
    %v6854 = vpop.f32.mrb[0].mxu0
    %v6855 = vadd.f32 0.0, %v6854
    %v6856 = vpop.f32.mrb[0].mxu0
    %6857 = vdwg.mxu0
    %v6862 = vunpack.c.l.b16 %v6788
    %v6863 = vunpack.c.l.b16 %v6789
    %v6864 = vunpack.c.l.b16 %v6790
    %v6865 = vunpack.c.l.b16 %v6791
    %v6866 = vpack.c.b16 %v6863, %v6862
    %v6867 = vpack.c.b16 %v6865, %v6864
    %v6871 = vsel %vm91, %v6785, 0
    %v6874 = vsel %vm91, %v6786, 0
    %6876 = vmatprep.subr.bf16.mxu0 0
    %6877 = vmatpush1.bf16.msra.mxu0 %v6866
    %6878 = vmatprep.subr.bf16.mxu0 0
    %6879 = vmatpush1.bf16.msra.mxu0 %v6867
    %6880 = vmatprep.subr.bf16.mxu0 0
    %6881 = vmatpush1.bf16.msra.mxu0 0
    %6882 = vmatprep.subr.bf16.mxu0 0
    %6883 = vmatpush1.bf16.msra.mxu0 0
    %6884 = vmatprep.subr.bf16.mxu0 0
    %6885 = vmatpush1.bf16.msra.mxu0 0
    %6886 = vmatprep.subr.bf16.mxu0 0
    %6887 = vmatpush1.bf16.msra.mxu0 0
    %6888 = vmatprep.subr.bf16.mxu0 0
    %6889 = vmatpush1.bf16.msra.mxu0 0
    %6890 = vmatprep.subr.bf16.mxu0 0
    %6891 = vmatpush1.bf16.msra.mxu0 0
    %6892 = vmatprep.subr.bf16.mxu0 0
    %6893 = vmatpush1.bf16.msra.mxu0 0
    %6894 = vmatprep.subr.bf16.mxu0 0
    %6895 = vmatpush1.bf16.msra.mxu0 0
    %6896 = vmatprep.subr.bf16.mxu0 0
    %6897 = vmatpush1.bf16.msra.mxu0 0
    %6898 = vmatprep.subr.bf16.mxu0 0
    %6899 = vmatpush1.bf16.msra.mxu0 0
    %6900 = vmatprep.subr.bf16.mxu0 0
    %6901 = vmatpush1.bf16.msra.mxu0 0
    %6902 = vmatprep.subr.bf16.mxu0 0
    %6903 = vmatpush1.bf16.msra.mxu0 0
    %6904 = vmatprep.subr.bf16.mxu0 0
    %6905 = vmatpush1.bf16.msra.mxu0 0
    %6906 = vmatprep.subr.bf16.mxu0 0
    %6907 = vmatpush1.bf16.msra.mxu0 0
    %6908 = vmatprep.mubr.bf16.mxu0 0
    %6909 = vmatmul.mubr.bf16.gmra.mrb[0].mxu0 %v6871
    %v6910 = vpop.f32.mrb[0].mxu0
    %v6911 = vadd.f32 %v6844, %v6910
    %v6912 = vpop.f32.mrb[0].mxu0
    %v6913 = vpop.f32.mrb[0].mxu0
    %v6914 = vadd.f32 %v6847, %v6913
    %v6915 = vpop.f32.mrb[0].mxu0
    %6916 = vmatprep.mubr.bf16.mxu0 0
    %6917 = vmatmul.mubr.bf16.gmra.mrb[0].mxu0 %v6874
    %v6918 = vpop.f32.mrb[0].mxu0
    %v6919 = vadd.f32 %v6852, %v6918
    %v6920 = vpop.f32.mrb[0].mxu0
    %v6921 = vpop.f32.mrb[0].mxu0
    %v6922 = vadd.f32 %v6855, %v6921
    %v6923 = vpop.f32.mrb[0].mxu0
    %6924 = vdwg.mxu0
    %s6925 = scalar_lea.vmem %s5, 19
    %v6926 = vld [vmem:[%s6925] sm:$0x1]
    %v6928 = vlaneseq
    %v6929 = vshrl.u32 %v6928, 7
    %v6930 = vsub.s32 0, %v6929
    %v6931 = vrot.slane %v6926, %v6930
    %v6933 = vadd.f32 %v6911, %v6931
    %v6934 = vadd.f32 %v6914, %v6931
    %v6935 = vadd.f32 %v6919, %v6931
    %v6936 = vadd.f32 %v6922, %v6931
    %v6937 = vadd.f32 %v6663, %v6767
    %v6938 = vadd.f32 %v6664, %v6770
    %v6939 = vadd.f32 %v6665, %v6775
    %v6940 = vadd.f32 %v6666, %v6778
    %v6941 = vtanh.pop %v6933
    %v6942 = vtanh.pop %v6934
    %v6943 = vtanh.pop %v6935
    %v6944 = vtanh.pop %v6936
    %v6945 = vmul.f32 %v6941, 0.5
    %v6946 = vmul.f32 %v6942, 0.5
    %v6947 = vmul.f32 %v6943, 0.5
    %v6948 = vmul.f32 %v6944, 0.5
    %v6949 = vadd.f32 %v6945, 0.5
    %v6950 = vadd.f32 %v6946, 0.5
    %v6951 = vadd.f32 %v6947, 0.5
    %v6952 = vadd.f32 %v6948, 0.5
    %6957 = vrot.lane.b32.xlu0 %v6949, 96
    %v6958 = vpop.permute.xlu0 %6957
    %6959 = vrot.lane.b32.xlu0 %v6950, 96
    %v6960 = vpop.permute.xlu0 %6959
    %6961 = vrot.lane.b32.xlu0 %v6951, 96
    %v6962 = vpop.permute.xlu0 %6961
    %6963 = vrot.lane.b32.xlu0 %v6952, 96
    %v6964 = vpop.permute.xlu0 %6963
    %v6969 = vmul.f32 %v6941, %v6958
    %v6970 = vmul.f32 %v6942, %v6960
    %v6971 = vmul.f32 %v6943, %v6962
    %v6972 = vmul.f32 %v6944, %v6964
    %v6973 = vpack.c.bf16 %v6970, %v6969
    %v6974 = vpack.c.bf16 %v6972, %v6971
    %s6975 = scalar_lea.vmem %s7, 320
    %v6976 = vld [vmem:[%s6975] sm:$0xf]
    %v6977 = vld [vmem:[%s6975 + $0x4] sm:$0xf]
    %v6978 = vld [vmem:[%s6975 + $0x8] sm:$0xf]
    %v6979 = vld [vmem:[%s6975 + $0xc] sm:$0xf]
    %s6980 = scalar_lea.vmem %s8, 20
    %v6981 = vld [vmem:[%s6980] sm:$0x1]
    %v6983 = vlaneseq
    %v6984 = vshrl.u32 %v6983, 7
    %v6985 = vsub.s32 0, %v6984
    %v6986 = vrot.slane %v6981, %v6985
    %v6992 = vunpack.c.l.b16 %v6976
    %v6993 = vunpack.c.l.b16 %v6977
    %v6994 = vunpack.c.l.b16 %v6978
    %v6995 = vunpack.c.l.b16 %v6979
    %v6996 = vpack.c.b16 %v6993, %v6992
    %v6997 = vpack.c.b16 %v6995, %v6994
    %v7001 = vsel %vm91, %v6973, 0
    %v7004 = vsel %vm91, %v6974, 0
    %7006 = vmatprep.subr.bf16.mxu0 0
    %7007 = vmatpush1.bf16.msra.mxu0 %v6996
    %7008 = vmatprep.subr.bf16.mxu0 0
    %7009 = vmatpush1.bf16.msra.mxu0 %v6997
    %7010 = vmatprep.subr.bf16.mxu0 0
    %7011 = vmatpush1.bf16.msra.mxu0 0
    %7012 = vmatprep.subr.bf16.mxu0 0
    %7013 = vmatpush1.bf16.msra.mxu0 0
    %7014 = vmatprep.subr.bf16.mxu0 0
    %7015 = vmatpush1.bf16.msra.mxu0 0
    %7016 = vmatprep.subr.bf16.mxu0 0
    %7017 = vmatpush1.bf16.msra.mxu0 0
    %7018 = vmatprep.subr.bf16.mxu0 0
    %7019 = vmatpush1.bf16.msra.mxu0 0
    %7020 = vmatprep.subr.bf16.mxu0 0
    %7021 = vmatpush1.bf16.msra.mxu0 0
    %7022 = vmatprep.subr.bf16.mxu0 0
    %7023 = vmatpush1.bf16.msra.mxu0 0
    %7024 = vmatprep.subr.bf16.mxu0 0
    %7025 = vmatpush1.bf16.msra.mxu0 0
    %7026 = vmatprep.subr.bf16.mxu0 0
    %7027 = vmatpush1.bf16.msra.mxu0 0
    %7028 = vmatprep.subr.bf16.mxu0 0
    %7029 = vmatpush1.bf16.msra.mxu0 0
    %7030 = vmatprep.subr.bf16.mxu0 0
    %7031 = vmatpush1.bf16.msra.mxu0 0
    %7032 = vmatprep.subr.bf16.mxu0 0
    %7033 = vmatpush1.bf16.msra.mxu0 0
    %7034 = vmatprep.subr.bf16.mxu0 0
    %7035 = vmatpush1.bf16.msra.mxu0 0
    %7036 = vmatprep.subr.bf16.mxu0 0
    %7037 = vmatpush1.bf16.msra.mxu0 0
    %7038 = vmatprep.mubr.bf16.mxu0 0
    %7039 = vmatmul.mubr.bf16.gmra.mrb[0].mxu0 %v7001
    %v7040 = vpop.f32.mrb[0].mxu0
    %v7041 = vadd.f32 %v6986, %v7040
    %v7042 = vpop.f32.mrb[0].mxu0
    %v7043 = vpop.f32.mrb[0].mxu0
    %v7044 = vadd.f32 %v6986, %v7043
    %v7045 = vpop.f32.mrb[0].mxu0
    %7046 = vmatprep.mubr.bf16.mxu0 0
    %7047 = vmatmul.mubr.bf16.gmra.mrb[0].mxu0 %v7004
    %v7048 = vpop.f32.mrb[0].mxu0
    %v7049 = vadd.f32 %v6986, %v7048
    %v7050 = vpop.f32.mrb[0].mxu0
    %v7051 = vpop.f32.mrb[0].mxu0
    %v7052 = vadd.f32 %v6986, %v7051
    %v7053 = vpop.f32.mrb[0].mxu0
    %7054 = vdwg.mxu0
    %v7055 = vadd.f32 %v6781, %v7041
    %v7056 = vadd.f32 %v6782, %v7044
    %v7057 = vadd.f32 %v6783, %v7049
    %v7058 = vadd.f32 %v6784, %v7052
    %v7059 = vpack.c.bf16 %v6938, %v6937
    %v7060 = vpack.c.bf16 %v6940, %v6939
    %s7061 = scalar_lea.vmem %s2, 672
    %v7062 = vld [vmem:[%s7061 + $0x10] sm:$0xf]
    %v7063 = vld [vmem:[%s7061 + $0x14] sm:$0xf]
    %v7064 = vld [vmem:[%s7061 + $0x18] sm:$0xf]
    %v7065 = vld [vmem:[%s7061 + $0x1c] sm:$0xf]
    %s7066 = scalar_lea.vmem %s4, 640
    %v7067 = vld [vmem:[%s7066 + $0x10] sm:$0xf]
    %v7068 = vld [vmem:[%s7066 + $0x14] sm:$0xf]
    %v7069 = vld [vmem:[%s7066 + $0x18] sm:$0xf]
    %v7070 = vld [vmem:[%s7066 + $0x1c] sm:$0xf]
    %v7075 = vunpack.c.l.b16 %v7067
    %v7076 = vunpack.c.l.b16 %v7068
    %v7077 = vunpack.c.l.b16 %v7069
    %v7078 = vunpack.c.l.b16 %v7070
    %v7079 = vpack.c.b16 %v7076, %v7075
    %v7080 = vpack.c.b16 %v7078, %v7077
    %7083 = vmatprep.subr.bf16.mxu0 0
    %7084 = vmatpush1.bf16.msra.mxu0 %v7079
    %7085 = vmatprep.subr.bf16.mxu0 0
    %7086 = vmatpush1.bf16.msra.mxu0 %v7080
    %7087 = vmatprep.subr.bf16.mxu0 0
    %7088 = vmatpush1.bf16.msra.mxu0 0
    %7089 = vmatprep.subr.bf16.mxu0 0
    %7090 = vmatpush1.bf16.msra.mxu0 0
    %7091 = vmatprep.subr.bf16.mxu0 0
    %7092 = vmatpush1.bf16.msra.mxu0 0
    %7093 = vmatprep.subr.bf16.mxu0 0
    %7094 = vmatpush1.bf16.msra.mxu0 0
    %7095 = vmatprep.subr.bf16.mxu0 0
    %7096 = vmatpush1.bf16.msra.mxu0 0
    %7097 = vmatprep.subr.bf16.mxu0 0
    %7098 = vmatpush1.bf16.msra.mxu0 0
    %7099 = vmatprep.subr.bf16.mxu0 0
    %7100 = vmatpush1.bf16.msra.mxu0 0
    %7101 = vmatprep.subr.bf16.mxu0 0
    %7102 = vmatpush1.bf16.msra.mxu0 0
    %7103 = vmatprep.subr.bf16.mxu0 0
    %7104 = vmatpush1.bf16.msra.mxu0 0
    %7105 = vmatprep.subr.bf16.mxu0 0
    %7106 = vmatpush1.bf16.msra.mxu0 0
    %7107 = vmatprep.subr.bf16.mxu0 0
    %7108 = vmatpush1.bf16.msra.mxu0 0
    %7109 = vmatprep.subr.bf16.mxu0 0
    %7110 = vmatpush1.bf16.msra.mxu0 0
    %7111 = vmatprep.subr.bf16.mxu0 0
    %7112 = vmatpush1.bf16.msra.mxu0 0
    %7113 = vmatprep.subr.bf16.mxu0 0
    %7114 = vmatpush1.bf16.msra.mxu0 0
    %7115 = vmatprep.mubr.bf16.mxu0 0
    %7116 = vmatmul.mubr.bf16.gmra.mrb[0].mxu0 %v7001
    %v7117 = vpop.f32.mrb[0].mxu0
    %v7118 = vadd.f32 0.0, %v7117
    %v7119 = vpop.f32.mrb[0].mxu0
    %v7120 = vpop.f32.mrb[0].mxu0
    %v7121 = vadd.f32 0.0, %v7120
    %v7122 = vpop.f32.mrb[0].mxu0
    %7123 = vmatprep.mubr.bf16.mxu0 0
    %7124 = vmatmul.mubr.bf16.gmra.mrb[0].mxu0 %v7004
    %v7125 = vpop.f32.mrb[0].mxu0
    %v7126 = vadd.f32 0.0, %v7125
    %v7127 = vpop.f32.mrb[0].mxu0
    %v7128 = vpop.f32.mrb[0].mxu0
    %v7129 = vadd.f32 0.0, %v7128
    %v7130 = vpop.f32.mrb[0].mxu0
    %7131 = vdwg.mxu0
    %v7136 = vunpack.c.l.b16 %v7062
    %v7137 = vunpack.c.l.b16 %v7063
    %v7138 = vunpack.c.l.b16 %v7064
    %v7139 = vunpack.c.l.b16 %v7065
    %v7140 = vpack.c.b16 %v7137, %v7136
    %v7141 = vpack.c.b16 %v7139, %v7138
    %v7145 = vsel %vm91, %v7059, 0
    %v7148 = vsel %vm91, %v7060, 0
    %7150 = vmatprep.subr.bf16.mxu0 0
    %7151 = vmatpush1.bf16.msra.mxu0 %v7140
    %7152 = vmatprep.subr.bf16.mxu0 0
    %7153 = vmatpush1.bf16.msra.mxu0 %v7141
    %7154 = vmatprep.subr.bf16.mxu0 0
    %7155 = vmatpush1.bf16.msra.mxu0 0
    %7156 = vmatprep.subr.bf16.mxu0 0
    %7157 = vmatpush1.bf16.msra.mxu0 0
    %7158 = vmatprep.subr.bf16.mxu0 0
    %7159 = vmatpush1.bf16.msra.mxu0 0
    %7160 = vmatprep.subr.bf16.mxu0 0
    %7161 = vmatpush1.bf16.msra.mxu0 0
    %7162 = vmatprep.subr.bf16.mxu0 0
    %7163 = vmatpush1.bf16.msra.mxu0 0
    %7164 = vmatprep.subr.bf16.mxu0 0
    %7165 = vmatpush1.bf16.msra.mxu0 0
    %7166 = vmatprep.subr.bf16.mxu0 0
    %7167 = vmatpush1.bf16.msra.mxu0 0
    %7168 = vmatprep.subr.bf16.mxu0 0
    %7169 = vmatpush1.bf16.msra.mxu0 0
    %7170 = vmatprep.subr.bf16.mxu0 0
    %7171 = vmatpush1.bf16.msra.mxu0 0
    %7172 = vmatprep.subr.bf16.mxu0 0
    %7173 = vmatpush1.bf16.msra.mxu0 0
    %7174 = vmatprep.subr.bf16.mxu0 0
    %7175 = vmatpush1.bf16.msra.mxu0 0
    %7176 = vmatprep.subr.bf16.mxu0 0
    %7177 = vmatpush1.bf16.msra.mxu0 0
    %7178 = vmatprep.subr.bf16.mxu0 0
    %7179 = vmatpush1.bf16.msra.mxu0 0
    %7180 = vmatprep.subr.bf16.mxu0 0
    %7181 = vmatpush1.bf16.msra.mxu0 0
    %7182 = vmatprep.mubr.bf16.mxu0 0
    %7183 = vmatmul.mubr.bf16.gmra.mrb[0].mxu0 %v7145
    %v7184 = vpop.f32.mrb[0].mxu0
    %v7185 = vadd.f32 %v7118, %v7184
    %v7186 = vpop.f32.mrb[0].mxu0
    %v7187 = vpop.f32.mrb[0].mxu0
    %v7188 = vadd.f32 %v7121, %v7187
    %v7189 = vpop.f32.mrb[0].mxu0
    %7190 = vmatprep.mubr.bf16.mxu0 0
    %7191 = vmatmul.mubr.bf16.gmra.mrb[0].mxu0 %v7148
    %v7192 = vpop.f32.mrb[0].mxu0
    %v7193 = vadd.f32 %v7126, %v7192
    %v7194 = vpop.f32.mrb[0].mxu0
    %v7195 = vpop.f32.mrb[0].mxu0
    %v7196 = vadd.f32 %v7129, %v7195
    %v7197 = vpop.f32.mrb[0].mxu0
    %7198 = vdwg.mxu0
    %s7199 = scalar_lea.vmem %s5, 20
    %v7200 = vld [vmem:[%s7199] sm:$0x1]
    %v7202 = vlaneseq
    %v7203 = vshrl.u32 %v7202, 7
    %v7204 = vsub.s32 0, %v7203
    %v7205 = vrot.slane %v7200, %v7204
    %v7207 = vadd.f32 %v7185, %v7205
    %v7208 = vadd.f32 %v7188, %v7205
    %v7209 = vadd.f32 %v7193, %v7205
    %v7210 = vadd.f32 %v7196, %v7205
    %v7211 = vadd.f32 %v6937, %v7041
    %v7212 = vadd.f32 %v6938, %v7044
    %v7213 = vadd.f32 %v6939, %v7049
    %v7214 = vadd.f32 %v6940, %v7052
    %v7215 = vtanh.pop %v7207
    %v7216 = vtanh.pop %v7208
    %v7217 = vtanh.pop %v7209
    %v7218 = vtanh.pop %v7210
    %v7219 = vmul.f32 %v7215, 0.5
    %v7220 = vmul.f32 %v7216, 0.5
    %v7221 = vmul.f32 %v7217, 0.5
    %v7222 = vmul.f32 %v7218, 0.5
    %v7223 = vadd.f32 %v7219, 0.5
    %v7224 = vadd.f32 %v7220, 0.5
    %v7225 = vadd.f32 %v7221, 0.5
    %v7226 = vadd.f32 %v7222, 0.5
    %7231 = vrot.lane.b32.xlu0 %v7223, 96
    %v7232 = vpop.permute.xlu0 %7231
    %7233 = vrot.lane.b32.xlu0 %v7224, 96
    %v7234 = vpop.permute.xlu0 %7233
    %7235 = vrot.lane.b32.xlu0 %v7225, 96
    %v7236 = vpop.permute.xlu0 %7235
    %7237 = vrot.lane.b32.xlu0 %v7226, 96
    %v7238 = vpop.permute.xlu0 %7237
    %v7243 = vmul.f32 %v7215, %v7232
    %v7244 = vmul.f32 %v7216, %v7234
    %v7245 = vmul.f32 %v7217, %v7236
    %v7246 = vmul.f32 %v7218, %v7238
    %v7247 = vpack.c.bf16 %v7244, %v7243
    %v7248 = vpack.c.bf16 %v7246, %v7245
    %s7249 = scalar_lea.vmem %s7, 336
    %v7250 = vld [vmem:[%s7249] sm:$0xf]
    %v7251 = vld [vmem:[%s7249 + $0x4] sm:$0xf]
    %v7252 = vld [vmem:[%s7249 + $0x8] sm:$0xf]
    %v7253 = vld [vmem:[%s7249 + $0xc] sm:$0xf]
    %s7254 = scalar_lea.vmem %s8, 21
    %v7255 = vld [vmem:[%s7254] sm:$0x1]
    %v7257 = vlaneseq
    %v7258 = vshrl.u32 %v7257, 7
    %v7259 = vsub.s32 0, %v7258
    %v7260 = vrot.slane %v7255, %v7259
    %v7266 = vunpack.c.l.b16 %v7250
    %v7267 = vunpack.c.l.b16 %v7251
    %v7268 = vunpack.c.l.b16 %v7252
    %v7269 = vunpack.c.l.b16 %v7253
    %v7270 = vpack.c.b16 %v7267, %v7266
    %v7271 = vpack.c.b16 %v7269, %v7268
    %v7275 = vsel %vm91, %v7247, 0
    %v7278 = vsel %vm91, %v7248, 0
    %7280 = vmatprep.subr.bf16.mxu0 0
    %7281 = vmatpush1.bf16.msra.mxu0 %v7270
    %7282 = vmatprep.subr.bf16.mxu0 0
    %7283 = vmatpush1.bf16.msra.mxu0 %v7271
    %7284 = vmatprep.subr.bf16.mxu0 0
    %7285 = vmatpush1.bf16.msra.mxu0 0
    %7286 = vmatprep.subr.bf16.mxu0 0
    %7287 = vmatpush1.bf16.msra.mxu0 0
    %7288 = vmatprep.subr.bf16.mxu0 0
    %7289 = vmatpush1.bf16.msra.mxu0 0
    %7290 = vmatprep.subr.bf16.mxu0 0
    %7291 = vmatpush1.bf16.msra.mxu0 0
    %7292 = vmatprep.subr.bf16.mxu0 0
    %7293 = vmatpush1.bf16.msra.mxu0 0
    %7294 = vmatprep.subr.bf16.mxu0 0
    %7295 = vmatpush1.bf16.msra.mxu0 0
    %7296 = vmatprep.subr.bf16.mxu0 0
    %7297 = vmatpush1.bf16.msra.mxu0 0
    %7298 = vmatprep.subr.bf16.mxu0 0
    %7299 = vmatpush1.bf16.msra.mxu0 0
    %7300 = vmatprep.subr.bf16.mxu0 0
    %7301 = vmatpush1.bf16.msra.mxu0 0
    %7302 = vmatprep.subr.bf16.mxu0 0
    %7303 = vmatpush1.bf16.msra.mxu0 0
    %7304 = vmatprep.subr.bf16.mxu0 0
    %7305 = vmatpush1.bf16.msra.mxu0 0
    %7306 = vmatprep.subr.bf16.mxu0 0
    %7307 = vmatpush1.bf16.msra.mxu0 0
    %7308 = vmatprep.subr.bf16.mxu0 0
    %7309 = vmatpush1.bf16.msra.mxu0 0
    %7310 = vmatprep.subr.bf16.mxu0 0
    %7311 = vmatpush1.bf16.msra.mxu0 0
    %7312 = vmatprep.mubr.bf16.mxu0 0
    %7313 = vmatmul.mubr.bf16.gmra.mrb[0].mxu0 %v7275
    %v7314 = vpop.f32.mrb[0].mxu0
    %v7315 = vadd.f32 %v7260, %v7314
    %v7316 = vpop.f32.mrb[0].mxu0
    %v7317 = vpop.f32.mrb[0].mxu0
    %v7318 = vadd.f32 %v7260, %v7317
    %v7319 = vpop.f32.mrb[0].mxu0
    %7320 = vmatprep.mubr.bf16.mxu0 0
    %7321 = vmatmul.mubr.bf16.gmra.mrb[0].mxu0 %v7278
    %v7322 = vpop.f32.mrb[0].mxu0
    %v7323 = vadd.f32 %v7260, %v7322
    %v7324 = vpop.f32.mrb[0].mxu0
    %v7325 = vpop.f32.mrb[0].mxu0
    %v7326 = vadd.f32 %v7260, %v7325
    %v7327 = vpop.f32.mrb[0].mxu0
    %7328 = vdwg.mxu0
    %v7329 = vadd.f32 %v7055, %v7315
    %v7330 = vadd.f32 %v7056, %v7318
    %v7331 = vadd.f32 %v7057, %v7323
    %v7332 = vadd.f32 %v7058, %v7326
    %v7333 = vpack.c.bf16 %v7212, %v7211
    %v7334 = vpack.c.bf16 %v7214, %v7213
    %s7335 = scalar_lea.vmem %s2, 704
    %v7336 = vld [vmem:[%s7335 + $0x10] sm:$0xf]
    %v7337 = vld [vmem:[%s7335 + $0x14] sm:$0xf]
    %v7338 = vld [vmem:[%s7335 + $0x18] sm:$0xf]
    %v7339 = vld [vmem:[%s7335 + $0x1c] sm:$0xf]
    %s7340 = scalar_lea.vmem %s4, 672
    %v7341 = vld [vmem:[%s7340 + $0x10] sm:$0xf]
    %v7342 = vld [vmem:[%s7340 + $0x14] sm:$0xf]
    %v7343 = vld [vmem:[%s7340 + $0x18] sm:$0xf]
    %v7344 = vld [vmem:[%s7340 + $0x1c] sm:$0xf]
    %v7349 = vunpack.c.l.b16 %v7341
    %v7350 = vunpack.c.l.b16 %v7342
    %v7351 = vunpack.c.l.b16 %v7343
    %v7352 = vunpack.c.l.b16 %v7344
    %v7353 = vpack.c.b16 %v7350, %v7349
    %v7354 = vpack.c.b16 %v7352, %v7351
    %7357 = vmatprep.subr.bf16.mxu0 0
    %7358 = vmatpush1.bf16.msra.mxu0 %v7353
    %7359 = vmatprep.subr.bf16.mxu0 0
    %7360 = vmatpush1.bf16.msra.mxu0 %v7354
    %7361 = vmatprep.subr.bf16.mxu0 0
    %7362 = vmatpush1.bf16.msra.mxu0 0
    %7363 = vmatprep.subr.bf16.mxu0 0
    %7364 = vmatpush1.bf16.msra.mxu0 0
    %7365 = vmatprep.subr.bf16.mxu0 0
    %7366 = vmatpush1.bf16.msra.mxu0 0
    %7367 = vmatprep.subr.bf16.mxu0 0
    %7368 = vmatpush1.bf16.msra.mxu0 0
    %7369 = vmatprep.subr.bf16.mxu0 0
    %7370 = vmatpush1.bf16.msra.mxu0 0
    %7371 = vmatprep.subr.bf16.mxu0 0
    %7372 = vmatpush1.bf16.msra.mxu0 0
    %7373 = vmatprep.subr.bf16.mxu0 0
    %7374 = vmatpush1.bf16.msra.mxu0 0
    %7375 = vmatprep.subr.bf16.mxu0 0
    %7376 = vmatpush1.bf16.msra.mxu0 0
    %7377 = vmatprep.subr.bf16.mxu0 0
    %7378 = vmatpush1.bf16.msra.mxu0 0
    %7379 = vmatprep.subr.bf16.mxu0 0
    %7380 = vmatpush1.bf16.msra.mxu0 0
    %7381 = vmatprep.subr.bf16.mxu0 0
    %7382 = vmatpush1.bf16.msra.mxu0 0
    %7383 = vmatprep.subr.bf16.mxu0 0
    %7384 = vmatpush1.bf16.msra.mxu0 0
    %7385 = vmatprep.subr.bf16.mxu0 0
    %7386 = vmatpush1.bf16.msra.mxu0 0
    %7387 = vmatprep.subr.bf16.mxu0 0
    %7388 = vmatpush1.bf16.msra.mxu0 0
    %7389 = vmatprep.mubr.bf16.mxu0 0
    %7390 = vmatmul.mubr.bf16.gmra.mrb[0].mxu0 %v7275
    %v7391 = vpop.f32.mrb[0].mxu0
    %v7392 = vadd.f32 0.0, %v7391
    %v7393 = vpop.f32.mrb[0].mxu0
    %v7394 = vpop.f32.mrb[0].mxu0
    %v7395 = vadd.f32 0.0, %v7394
    %v7396 = vpop.f32.mrb[0].mxu0
    %7397 = vmatprep.mubr.bf16.mxu0 0
    %7398 = vmatmul.mubr.bf16.gmra.mrb[0].mxu0 %v7278
    %v7399 = vpop.f32.mrb[0].mxu0
    %v7400 = vadd.f32 0.0, %v7399
    %v7401 = vpop.f32.mrb[0].mxu0
    %v7402 = vpop.f32.mrb[0].mxu0
    %v7403 = vadd.f32 0.0, %v7402
    %v7404 = vpop.f32.mrb[0].mxu0
    %7405 = vdwg.mxu0
    %v7410 = vunpack.c.l.b16 %v7336
    %v7411 = vunpack.c.l.b16 %v7337
    %v7412 = vunpack.c.l.b16 %v7338
    %v7413 = vunpack.c.l.b16 %v7339
    %v7414 = vpack.c.b16 %v7411, %v7410
    %v7415 = vpack.c.b16 %v7413, %v7412
    %v7419 = vsel %vm91, %v7333, 0
    %v7422 = vsel %vm91, %v7334, 0
    %7424 = vmatprep.subr.bf16.mxu0 0
    %7425 = vmatpush1.bf16.msra.mxu0 %v7414
    %7426 = vmatprep.subr.bf16.mxu0 0
    %7427 = vmatpush1.bf16.msra.mxu0 %v7415
    %7428 = vmatprep.subr.bf16.mxu0 0
    %7429 = vmatpush1.bf16.msra.mxu0 0
    %7430 = vmatprep.subr.bf16.mxu0 0
    %7431 = vmatpush1.bf16.msra.mxu0 0
    %7432 = vmatprep.subr.bf16.mxu0 0
    %7433 = vmatpush1.bf16.msra.mxu0 0
    %7434 = vmatprep.subr.bf16.mxu0 0
    %7435 = vmatpush1.bf16.msra.mxu0 0
    %7436 = vmatprep.subr.bf16.mxu0 0
    %7437 = vmatpush1.bf16.msra.mxu0 0
    %7438 = vmatprep.subr.bf16.mxu0 0
    %7439 = vmatpush1.bf16.msra.mxu0 0
    %7440 = vmatprep.subr.bf16.mxu0 0
    %7441 = vmatpush1.bf16.msra.mxu0 0
    %7442 = vmatprep.subr.bf16.mxu0 0
    %7443 = vmatpush1.bf16.msra.mxu0 0
    %7444 = vmatprep.subr.bf16.mxu0 0
    %7445 = vmatpush1.bf16.msra.mxu0 0
    %7446 = vmatprep.subr.bf16.mxu0 0
    %7447 = vmatpush1.bf16.msra.mxu0 0
    %7448 = vmatprep.subr.bf16.mxu0 0
    %7449 = vmatpush1.bf16.msra.mxu0 0
    %7450 = vmatprep.subr.bf16.mxu0 0
    %7451 = vmatpush1.bf16.msra.mxu0 0
    %7452 = vmatprep.subr.bf16.mxu0 0
    %7453 = vmatpush1.bf16.msra.mxu0 0
    %7454 = vmatprep.subr.bf16.mxu0 0
    %7455 = vmatpush1.bf16.msra.mxu0 0
    %7456 = vmatprep.mubr.bf16.mxu0 0
    %7457 = vmatmul.mubr.bf16.gmra.mrb[0].mxu0 %v7419
    %v7458 = vpop.f32.mrb[0].mxu0
    %v7459 = vadd.f32 %v7392, %v7458
    %v7460 = vpop.f32.mrb[0].mxu0
    %v7461 = vpop.f32.mrb[0].mxu0
    %v7462 = vadd.f32 %v7395, %v7461
    %v7463 = vpop.f32.mrb[0].mxu0
    %7464 = vmatprep.mubr.bf16.mxu0 0
    %7465 = vmatmul.mubr.bf16.gmra.mrb[0].mxu0 %v7422
    %v7466 = vpop.f32.mrb[0].mxu0
    %v7467 = vadd.f32 %v7400, %v7466
    %v7468 = vpop.f32.mrb[0].mxu0
    %v7469 = vpop.f32.mrb[0].mxu0
    %v7470 = vadd.f32 %v7403, %v7469
    %v7471 = vpop.f32.mrb[0].mxu0
    %7472 = vdwg.mxu0
    %s7473 = scalar_lea.vmem %s5, 21
    %v7474 = vld [vmem:[%s7473] sm:$0x1]
    %v7476 = vlaneseq
    %v7477 = vshrl.u32 %v7476, 7
    %v7478 = vsub.s32 0, %v7477
    %v7479 = vrot.slane %v7474, %v7478
    %v7481 = vadd.f32 %v7459, %v7479
    %v7482 = vadd.f32 %v7462, %v7479
    %v7483 = vadd.f32 %v7467, %v7479
    %v7484 = vadd.f32 %v7470, %v7479
    %v7485 = vadd.f32 %v7211, %v7315
    %v7486 = vadd.f32 %v7212, %v7318
    %v7487 = vadd.f32 %v7213, %v7323
    %v7488 = vadd.f32 %v7214, %v7326
    %v7489 = vtanh.pop %v7481
    %v7490 = vtanh.pop %v7482
    %v7491 = vtanh.pop %v7483
    %v7492 = vtanh.pop %v7484
    %v7493 = vmul.f32 %v7489, 0.5
    %v7494 = vmul.f32 %v7490, 0.5
    %v7495 = vmul.f32 %v7491, 0.5
    %v7496 = vmul.f32 %v7492, 0.5
    %v7497 = vadd.f32 %v7493, 0.5
    %v7498 = vadd.f32 %v7494, 0.5
    %v7499 = vadd.f32 %v7495, 0.5
    %v7500 = vadd.f32 %v7496, 0.5
    %7505 = vrot.lane.b32.xlu0 %v7497, 96
    %v7506 = vpop.permute.xlu0 %7505
    %7507 = vrot.lane.b32.xlu0 %v7498, 96
    %v7508 = vpop.permute.xlu0 %7507
    %7509 = vrot.lane.b32.xlu0 %v7499, 96
    %v7510 = vpop.permute.xlu0 %7509
    %7511 = vrot.lane.b32.xlu0 %v7500, 96
    %v7512 = vpop.permute.xlu0 %7511
    %v7517 = vmul.f32 %v7489, %v7506
    %v7518 = vmul.f32 %v7490, %v7508
    %v7519 = vmul.f32 %v7491, %v7510
    %v7520 = vmul.f32 %v7492, %v7512
    %v7521 = vpack.c.bf16 %v7518, %v7517
    %v7522 = vpack.c.bf16 %v7520, %v7519
    %s7523 = scalar_lea.vmem %s7, 352
    %v7524 = vld [vmem:[%s7523] sm:$0xf]
    %v7525 = vld [vmem:[%s7523 + $0x4] sm:$0xf]
    %v7526 = vld [vmem:[%s7523 + $0x8] sm:$0xf]
    %v7527 = vld [vmem:[%s7523 + $0xc] sm:$0xf]
    %s7528 = scalar_lea.vmem %s8, 22
    %v7529 = vld [vmem:[%s7528] sm:$0x1]
    %v7531 = vlaneseq
    %v7532 = vshrl.u32 %v7531, 7
    %v7533 = vsub.s32 0, %v7532
    %v7534 = vrot.slane %v7529, %v7533
    %v7540 = vunpack.c.l.b16 %v7524
    %v7541 = vunpack.c.l.b16 %v7525
    %v7542 = vunpack.c.l.b16 %v7526
    %v7543 = vunpack.c.l.b16 %v7527
    %v7544 = vpack.c.b16 %v7541, %v7540
    %v7545 = vpack.c.b16 %v7543, %v7542
    %v7549 = vsel %vm91, %v7521, 0
    %v7552 = vsel %vm91, %v7522, 0
    %7554 = vmatprep.subr.bf16.mxu0 0
    %7555 = vmatpush1.bf16.msra.mxu0 %v7544
    %7556 = vmatprep.subr.bf16.mxu0 0
    %7557 = vmatpush1.bf16.msra.mxu0 %v7545
    %7558 = vmatprep.subr.bf16.mxu0 0
    %7559 = vmatpush1.bf16.msra.mxu0 0
    %7560 = vmatprep.subr.bf16.mxu0 0
    %7561 = vmatpush1.bf16.msra.mxu0 0
    %7562 = vmatprep.subr.bf16.mxu0 0
    %7563 = vmatpush1.bf16.msra.mxu0 0
    %7564 = vmatprep.subr.bf16.mxu0 0
    %7565 = vmatpush1.bf16.msra.mxu0 0
    %7566 = vmatprep.subr.bf16.mxu0 0
    %7567 = vmatpush1.bf16.msra.mxu0 0
    %7568 = vmatprep.subr.bf16.mxu0 0
    %7569 = vmatpush1.bf16.msra.mxu0 0
    %7570 = vmatprep.subr.bf16.mxu0 0
    %7571 = vmatpush1.bf16.msra.mxu0 0
    %7572 = vmatprep.subr.bf16.mxu0 0
    %7573 = vmatpush1.bf16.msra.mxu0 0
    %7574 = vmatprep.subr.bf16.mxu0 0
    %7575 = vmatpush1.bf16.msra.mxu0 0
    %7576 = vmatprep.subr.bf16.mxu0 0
    %7577 = vmatpush1.bf16.msra.mxu0 0
    %7578 = vmatprep.subr.bf16.mxu0 0
    %7579 = vmatpush1.bf16.msra.mxu0 0
    %7580 = vmatprep.subr.bf16.mxu0 0
    %7581 = vmatpush1.bf16.msra.mxu0 0
    %7582 = vmatprep.subr.bf16.mxu0 0
    %7583 = vmatpush1.bf16.msra.mxu0 0
    %7584 = vmatprep.subr.bf16.mxu0 0
    %7585 = vmatpush1.bf16.msra.mxu0 0
    %7586 = vmatprep.mubr.bf16.mxu0 0
    %7587 = vmatmul.mubr.bf16.gmra.mrb[0].mxu0 %v7549
    %v7588 = vpop.f32.mrb[0].mxu0
    %v7589 = vadd.f32 %v7534, %v7588
    %v7590 = vpop.f32.mrb[0].mxu0
    %v7591 = vpop.f32.mrb[0].mxu0
    %v7592 = vadd.f32 %v7534, %v7591
    %v7593 = vpop.f32.mrb[0].mxu0
    %7594 = vmatprep.mubr.bf16.mxu0 0
    %7595 = vmatmul.mubr.bf16.gmra.mrb[0].mxu0 %v7552
    %v7596 = vpop.f32.mrb[0].mxu0
    %v7597 = vadd.f32 %v7534, %v7596
    %v7598 = vpop.f32.mrb[0].mxu0
    %v7599 = vpop.f32.mrb[0].mxu0
    %v7600 = vadd.f32 %v7534, %v7599
    %v7601 = vpop.f32.mrb[0].mxu0
    %7602 = vdwg.mxu0
    %v7603 = vadd.f32 %v7329, %v7589
    %v7604 = vadd.f32 %v7330, %v7592
    %v7605 = vadd.f32 %v7331, %v7597
    %v7606 = vadd.f32 %v7332, %v7600
    %v7607 = vpack.c.bf16 %v7486, %v7485
    %v7608 = vpack.c.bf16 %v7488, %v7487
    %s7609 = scalar_lea.vmem %s2, 736
    %v7610 = vld [vmem:[%s7609 + $0x10] sm:$0xf]
    %v7611 = vld [vmem:[%s7609 + $0x14] sm:$0xf]
    %v7612 = vld [vmem:[%s7609 + $0x18] sm:$0xf]
    %v7613 = vld [vmem:[%s7609 + $0x1c] sm:$0xf]
    %s7614 = scalar_lea.vmem %s4, 704
    %v7615 = vld [vmem:[%s7614 + $0x10] sm:$0xf]
    %v7616 = vld [vmem:[%s7614 + $0x14] sm:$0xf]
    %v7617 = vld [vmem:[%s7614 + $0x18] sm:$0xf]
    %v7618 = vld [vmem:[%s7614 + $0x1c] sm:$0xf]
    %v7623 = vunpack.c.l.b16 %v7615
    %v7624 = vunpack.c.l.b16 %v7616
    %v7625 = vunpack.c.l.b16 %v7617
    %v7626 = vunpack.c.l.b16 %v7618
    %v7627 = vpack.c.b16 %v7624, %v7623
    %v7628 = vpack.c.b16 %v7626, %v7625
    %7631 = vmatprep.subr.bf16.mxu0 0
    %7632 = vmatpush1.bf16.msra.mxu0 %v7627
    %7633 = vmatprep.subr.bf16.mxu0 0
    %7634 = vmatpush1.bf16.msra.mxu0 %v7628
    %7635 = vmatprep.subr.bf16.mxu0 0
    %7636 = vmatpush1.bf16.msra.mxu0 0
    %7637 = vmatprep.subr.bf16.mxu0 0
    %7638 = vmatpush1.bf16.msra.mxu0 0
    %7639 = vmatprep.subr.bf16.mxu0 0
    %7640 = vmatpush1.bf16.msra.mxu0 0
    %7641 = vmatprep.subr.bf16.mxu0 0
    %7642 = vmatpush1.bf16.msra.mxu0 0
    %7643 = vmatprep.subr.bf16.mxu0 0
    %7644 = vmatpush1.bf16.msra.mxu0 0
    %7645 = vmatprep.subr.bf16.mxu0 0
    %7646 = vmatpush1.bf16.msra.mxu0 0
    %7647 = vmatprep.subr.bf16.mxu0 0
    %7648 = vmatpush1.bf16.msra.mxu0 0
    %7649 = vmatprep.subr.bf16.mxu0 0
    %7650 = vmatpush1.bf16.msra.mxu0 0
    %7651 = vmatprep.subr.bf16.mxu0 0
    %7652 = vmatpush1.bf16.msra.mxu0 0
    %7653 = vmatprep.subr.bf16.mxu0 0
    %7654 = vmatpush1.bf16.msra.mxu0 0
    %7655 = vmatprep.subr.bf16.mxu0 0
    %7656 = vmatpush1.bf16.msra.mxu0 0
    %7657 = vmatprep.subr.bf16.mxu0 0
    %7658 = vmatpush1.bf16.msra.mxu0 0
    %7659 = vmatprep.subr.bf16.mxu0 0
    %7660 = vmatpush1.bf16.msra.mxu0 0
    %7661 = vmatprep.subr.bf16.mxu0 0
    %7662 = vmatpush1.bf16.msra.mxu0 0
    %7663 = vmatprep.mubr.bf16.mxu0 0
    %7664 = vmatmul.mubr.bf16.gmra.mrb[0].mxu0 %v7549
    %v7665 = vpop.f32.mrb[0].mxu0
    %v7666 = vadd.f32 0.0, %v7665
    %v7667 = vpop.f32.mrb[0].mxu0
    %v7668 = vpop.f32.mrb[0].mxu0
    %v7669 = vadd.f32 0.0, %v7668
    %v7670 = vpop.f32.mrb[0].mxu0
    %7671 = vmatprep.mubr.bf16.mxu0 0
    %7672 = vmatmul.mubr.bf16.gmra.mrb[0].mxu0 %v7552
    %v7673 = vpop.f32.mrb[0].mxu0
    %v7674 = vadd.f32 0.0, %v7673
    %v7675 = vpop.f32.mrb[0].mxu0
    %v7676 = vpop.f32.mrb[0].mxu0
    %v7677 = vadd.f32 0.0, %v7676
    %v7678 = vpop.f32.mrb[0].mxu0
    %7679 = vdwg.mxu0
    %v7684 = vunpack.c.l.b16 %v7610
    %v7685 = vunpack.c.l.b16 %v7611
    %v7686 = vunpack.c.l.b16 %v7612
    %v7687 = vunpack.c.l.b16 %v7613
    %v7688 = vpack.c.b16 %v7685, %v7684
    %v7689 = vpack.c.b16 %v7687, %v7686
    %v7693 = vsel %vm91, %v7607, 0
    %v7696 = vsel %vm91, %v7608, 0
    %7698 = vmatprep.subr.bf16.mxu0 0
    %7699 = vmatpush1.bf16.msra.mxu0 %v7688
    %7700 = vmatprep.subr.bf16.mxu0 0
    %7701 = vmatpush1.bf16.msra.mxu0 %v7689
    %7702 = vmatprep.subr.bf16.mxu0 0
    %7703 = vmatpush1.bf16.msra.mxu0 0
    %7704 = vmatprep.subr.bf16.mxu0 0
    %7705 = vmatpush1.bf16.msra.mxu0 0
    %7706 = vmatprep.subr.bf16.mxu0 0
    %7707 = vmatpush1.bf16.msra.mxu0 0
    %7708 = vmatprep.subr.bf16.mxu0 0
    %7709 = vmatpush1.bf16.msra.mxu0 0
    %7710 = vmatprep.subr.bf16.mxu0 0
    %7711 = vmatpush1.bf16.msra.mxu0 0
    %7712 = vmatprep.subr.bf16.mxu0 0
    %7713 = vmatpush1.bf16.msra.mxu0 0
    %7714 = vmatprep.subr.bf16.mxu0 0
    %7715 = vmatpush1.bf16.msra.mxu0 0
    %7716 = vmatprep.subr.bf16.mxu0 0
    %7717 = vmatpush1.bf16.msra.mxu0 0
    %7718 = vmatprep.subr.bf16.mxu0 0
    %7719 = vmatpush1.bf16.msra.mxu0 0
    %7720 = vmatprep.subr.bf16.mxu0 0
    %7721 = vmatpush1.bf16.msra.mxu0 0
    %7722 = vmatprep.subr.bf16.mxu0 0
    %7723 = vmatpush1.bf16.msra.mxu0 0
    %7724 = vmatprep.subr.bf16.mxu0 0
    %7725 = vmatpush1.bf16.msra.mxu0 0
    %7726 = vmatprep.subr.bf16.mxu0 0
    %7727 = vmatpush1.bf16.msra.mxu0 0
    %7728 = vmatprep.subr.bf16.mxu0 0
    %7729 = vmatpush1.bf16.msra.mxu0 0
    %7730 = vmatprep.mubr.bf16.mxu0 0
    %7731 = vmatmul.mubr.bf16.gmra.mrb[0].mxu0 %v7693
    %v7732 = vpop.f32.mrb[0].mxu0
    %v7733 = vadd.f32 %v7666, %v7732
    %v7734 = vpop.f32.mrb[0].mxu0
    %v7735 = vpop.f32.mrb[0].mxu0
    %v7736 = vadd.f32 %v7669, %v7735
    %v7737 = vpop.f32.mrb[0].mxu0
    %7738 = vmatprep.mubr.bf16.mxu0 0
    %7739 = vmatmul.mubr.bf16.gmra.mrb[0].mxu0 %v7696
    %v7740 = vpop.f32.mrb[0].mxu0
    %v7741 = vadd.f32 %v7674, %v7740
    %v7742 = vpop.f32.mrb[0].mxu0
    %v7743 = vpop.f32.mrb[0].mxu0
    %v7744 = vadd.f32 %v7677, %v7743
    %v7745 = vpop.f32.mrb[0].mxu0
    %7746 = vdwg.mxu0
    %s7747 = scalar_lea.vmem %s5, 22
    %v7748 = vld [vmem:[%s7747] sm:$0x1]
    %v7750 = vlaneseq
    %v7751 = vshrl.u32 %v7750, 7
    %v7752 = vsub.s32 0, %v7751
    %v7753 = vrot.slane %v7748, %v7752
    %v7755 = vadd.f32 %v7733, %v7753
    %v7756 = vadd.f32 %v7736, %v7753
    %v7757 = vadd.f32 %v7741, %v7753
    %v7758 = vadd.f32 %v7744, %v7753
    %v7759 = vtanh.pop %v7755
    %v7760 = vtanh.pop %v7756
    %v7761 = vtanh.pop %v7757
    %v7762 = vtanh.pop %v7758
    %v7763 = vmul.f32 %v7759, 0.5
    %v7764 = vmul.f32 %v7760, 0.5
    %v7765 = vmul.f32 %v7761, 0.5
    %v7766 = vmul.f32 %v7762, 0.5
    %v7767 = vadd.f32 %v7763, 0.5
    %v7768 = vadd.f32 %v7764, 0.5
    %v7769 = vadd.f32 %v7765, 0.5
    %v7770 = vadd.f32 %v7766, 0.5
    %7775 = vrot.lane.b32.xlu0 %v7767, 96
    %v7776 = vpop.permute.xlu0 %7775
    %7777 = vrot.lane.b32.xlu0 %v7768, 96
    %v7778 = vpop.permute.xlu0 %7777
    %7779 = vrot.lane.b32.xlu0 %v7769, 96
    %v7780 = vpop.permute.xlu0 %7779
    %7781 = vrot.lane.b32.xlu0 %v7770, 96
    %v7782 = vpop.permute.xlu0 %7781
    %v7787 = vmul.f32 %v7759, %v7776
    %v7788 = vmul.f32 %v7760, %v7778
    %v7789 = vmul.f32 %v7761, %v7780
    %v7790 = vmul.f32 %v7762, %v7782
    %v7791 = vpack.c.bf16 %v7788, %v7787
    %v7792 = vpack.c.bf16 %v7790, %v7789
    %s7793 = scalar_lea.vmem %s7, 368
    %v7794 = vld [vmem:[%s7793] sm:$0xf]
    %v7795 = vld [vmem:[%s7793 + $0x4] sm:$0xf]
    %v7796 = vld [vmem:[%s7793 + $0x8] sm:$0xf]
    %v7797 = vld [vmem:[%s7793 + $0xc] sm:$0xf]
    %s7798 = scalar_lea.vmem %s8, 23
    %v7799 = vld [vmem:[%s7798] sm:$0x1]
    %v7801 = vlaneseq
    %v7802 = vshrl.u32 %v7801, 7
    %v7803 = vsub.s32 0, %v7802
    %v7804 = vrot.slane %v7799, %v7803
    %v7810 = vunpack.c.l.b16 %v7794
    %v7811 = vunpack.c.l.b16 %v7795
    %v7812 = vunpack.c.l.b16 %v7796
    %v7813 = vunpack.c.l.b16 %v7797
    %v7814 = vpack.c.b16 %v7811, %v7810
    %v7815 = vpack.c.b16 %v7813, %v7812
    %v7819 = vsel %vm91, %v7791, 0
    %v7822 = vsel %vm91, %v7792, 0
    %7824 = vmatprep.subr.bf16.mxu0 0
    %7825 = vmatpush1.bf16.msra.mxu0 %v7814
    %7826 = vmatprep.subr.bf16.mxu0 0
    %7827 = vmatpush1.bf16.msra.mxu0 %v7815
    %7828 = vmatprep.subr.bf16.mxu0 0
    %7829 = vmatpush1.bf16.msra.mxu0 0
    %7830 = vmatprep.subr.bf16.mxu0 0
    %7831 = vmatpush1.bf16.msra.mxu0 0
    %7832 = vmatprep.subr.bf16.mxu0 0
    %7833 = vmatpush1.bf16.msra.mxu0 0
    %7834 = vmatprep.subr.bf16.mxu0 0
    %7835 = vmatpush1.bf16.msra.mxu0 0
    %7836 = vmatprep.subr.bf16.mxu0 0
    %7837 = vmatpush1.bf16.msra.mxu0 0
    %7838 = vmatprep.subr.bf16.mxu0 0
    %7839 = vmatpush1.bf16.msra.mxu0 0
    %7840 = vmatprep.subr.bf16.mxu0 0
    %7841 = vmatpush1.bf16.msra.mxu0 0
    %7842 = vmatprep.subr.bf16.mxu0 0
    %7843 = vmatpush1.bf16.msra.mxu0 0
    %7844 = vmatprep.subr.bf16.mxu0 0
    %7845 = vmatpush1.bf16.msra.mxu0 0
    %7846 = vmatprep.subr.bf16.mxu0 0
    %7847 = vmatpush1.bf16.msra.mxu0 0
    %7848 = vmatprep.subr.bf16.mxu0 0
    %7849 = vmatpush1.bf16.msra.mxu0 0
    %7850 = vmatprep.subr.bf16.mxu0 0
    %7851 = vmatpush1.bf16.msra.mxu0 0
    %7852 = vmatprep.subr.bf16.mxu0 0
    %7853 = vmatpush1.bf16.msra.mxu0 0
    %7854 = vmatprep.subr.bf16.mxu0 0
    %7855 = vmatpush1.bf16.msra.mxu0 0
    %7856 = vmatprep.mubr.bf16.mxu0 0
    %7857 = vmatmul.mubr.bf16.gmra.mrb[0].mxu0 %v7819
    %v7858 = vpop.f32.mrb[0].mxu0
    %v7859 = vadd.f32 %v7804, %v7858
    %v7860 = vpop.f32.mrb[0].mxu0
    %v7861 = vpop.f32.mrb[0].mxu0
    %v7862 = vadd.f32 %v7804, %v7861
    %v7863 = vpop.f32.mrb[0].mxu0
    %7864 = vmatprep.mubr.bf16.mxu0 0
    %7865 = vmatmul.mubr.bf16.gmra.mrb[0].mxu0 %v7822
    %v7866 = vpop.f32.mrb[0].mxu0
    %v7867 = vadd.f32 %v7804, %v7866
    %v7868 = vpop.f32.mrb[0].mxu0
    %v7869 = vpop.f32.mrb[0].mxu0
    %v7870 = vadd.f32 %v7804, %v7869
    %v7871 = vpop.f32.mrb[0].mxu0
    %7872 = vdwg.mxu0
    %v7873 = vadd.f32 %v7603, %v7859
    %v7874 = vadd.f32 %v7604, %v7862
    %v7875 = vadd.f32 %v7605, %v7867
    %v7876 = vadd.f32 %v7606, %v7870
    %v7877 = vmax.f32 %v7873, 0.0
    %v7878 = vmax.f32 %v7874, 0.0
    %v7879 = vmax.f32 %v7875, 0.0
    %v7880 = vmax.f32 %v7876, 0.0
    %v7881 = vpack.c.bf16 %v7878, %v7877
    %v7882 = vpack.c.bf16 %v7880, %v7879
    %v7883 = vld [vmem:[%s9] sm:$0xf]
    %v7884 = vld [vmem:[%s9 + $0x4] sm:$0xf]
    %v7885 = vld [vmem:[%s9 + $0x8] sm:$0xf]
    %v7886 = vld [vmem:[%s9 + $0xc] sm:$0xf]
    %v7887 = vld [vmem:[%s10] sm:$0x1]
    %v7889 = vlaneseq
    %v7890 = vshrl.u32 %v7889, 7
    %v7891 = vsub.s32 0, %v7890
    %v7892 = vrot.slane %v7887, %v7891
    %v7898 = vunpack.c.l.b16 %v7883
    %v7899 = vunpack.c.l.b16 %v7884
    %v7900 = vunpack.c.l.b16 %v7885
    %v7901 = vunpack.c.l.b16 %v7886
    %v7902 = vpack.c.b16 %v7899, %v7898
    %v7903 = vpack.c.b16 %v7901, %v7900
    %v7907 = vsel %vm91, %v7881, 0
    %v7910 = vsel %vm91, %v7882, 0
    %7912 = vmatprep.subr.bf16.mxu0 0
    %7913 = vmatpush1.bf16.msra.mxu0 %v7902
    %7914 = vmatprep.subr.bf16.mxu0 0
    %7915 = vmatpush1.bf16.msra.mxu0 %v7903
    %7916 = vmatprep.subr.bf16.mxu0 0
    %7917 = vmatpush1.bf16.msra.mxu0 0
    %7918 = vmatprep.subr.bf16.mxu0 0
    %7919 = vmatpush1.bf16.msra.mxu0 0
    %7920 = vmatprep.subr.bf16.mxu0 0
    %7921 = vmatpush1.bf16.msra.mxu0 0
    %7922 = vmatprep.subr.bf16.mxu0 0
    %7923 = vmatpush1.bf16.msra.mxu0 0
    %7924 = vmatprep.subr.bf16.mxu0 0
    %7925 = vmatpush1.bf16.msra.mxu0 0
    %7926 = vmatprep.subr.bf16.mxu0 0
    %7927 = vmatpush1.bf16.msra.mxu0 0
    %7928 = vmatprep.subr.bf16.mxu0 0
    %7929 = vmatpush1.bf16.msra.mxu0 0
    %7930 = vmatprep.subr.bf16.mxu0 0
    %7931 = vmatpush1.bf16.msra.mxu0 0
    %7932 = vmatprep.subr.bf16.mxu0 0
    %7933 = vmatpush1.bf16.msra.mxu0 0
    %7934 = vmatprep.subr.bf16.mxu0 0
    %7935 = vmatpush1.bf16.msra.mxu0 0
    %7936 = vmatprep.subr.bf16.mxu0 0
    %7937 = vmatpush1.bf16.msra.mxu0 0
    %7938 = vmatprep.subr.bf16.mxu0 0
    %7939 = vmatpush1.bf16.msra.mxu0 0
    %7940 = vmatprep.subr.bf16.mxu0 0
    %7941 = vmatpush1.bf16.msra.mxu0 0
    %7942 = vmatprep.subr.bf16.mxu0 0
    %7943 = vmatpush1.bf16.msra.mxu0 0
    %7944 = vmatprep.mubr.bf16.mxu0 0
    %7945 = vmatmul.mubr.bf16.gmra.mrb[0].mxu0 %v7907
    %v7946 = vpop.f32.mrb[0].mxu0
    %v7947 = vadd.f32 %v7892, %v7946
    %v7948 = vpop.f32.mrb[0].mxu0
    %v7949 = vpop.f32.mrb[0].mxu0
    %v7950 = vadd.f32 %v7892, %v7949
    %v7951 = vpop.f32.mrb[0].mxu0
    %7952 = vmatprep.mubr.bf16.mxu0 0
    %7953 = vmatmul.mubr.bf16.gmra.mrb[0].mxu0 %v7910
    %v7954 = vpop.f32.mrb[0].mxu0
    %v7955 = vadd.f32 %v7892, %v7954
    %v7956 = vpop.f32.mrb[0].mxu0
    %v7957 = vpop.f32.mrb[0].mxu0
    %v7958 = vadd.f32 %v7892, %v7957
    %v7959 = vpop.f32.mrb[0].mxu0
    %7960 = vdwg.mxu0
    %v7961 = vmax.f32 %v7947, 0.0
    %v7962 = vmax.f32 %v7950, 0.0
    %v7963 = vmax.f32 %v7955, 0.0
    %v7964 = vmax.f32 %v7958, 0.0
    %vm7965 = vcmask 257024
    %v7966 = vsel %vm7965, %v7961, -inf
    %v7967 = vrot.slane %v7966, 4
    %v7968 = vmax.f32 %v7966, %v7967
    %v7969 = vrot.slane %v7968, 2
    %v7970 = vmax.f32 %v7968, %v7969
    %v7971 = vrot.slane %v7970, 1
    %v7972 = vmax.f32 %v7970, %v7971
    %vm7973 = vcmask 261124
    %v7974 = vsel %vm7973, %v7961, -inf
    %v7975 = vrot.slane %v7974, 4
    %v7976 = vmax.f32 %v7974, %v7975
    %v7977 = vrot.slane %v7976, 2
    %v7978 = vmax.f32 %v7976, %v7977
    %v7979 = vrot.slane %v7978, 1
    %v7980 = vmax.f32 %v7978, %v7979
    %v7981 = vsel %vm7965, %v7962, -inf
    %v7982 = vrot.slane %v7981, 4
    %v7983 = vmax.f32 %v7981, %v7982
    %v7984 = vrot.slane %v7983, 2
    %v7985 = vmax.f32 %v7983, %v7984
    %v7986 = vrot.slane %v7985, 1
    %v7987 = vmax.f32 %v7985, %v7986
    %v7988 = vsel %vm7973, %v7962, -inf
    %v7989 = vrot.slane %v7988, 4
    %v7990 = vmax.f32 %v7988, %v7989
    %v7991 = vrot.slane %v7990, 2
    %v7992 = vmax.f32 %v7990, %v7991
    %v7993 = vrot.slane %v7992, 1
    %v7994 = vmax.f32 %v7992, %v7993
    %7996 = vrot.lane.b32.xlu0 %v7980, 32
    %v7997 = vpop.permute.xlu0 %7996
    %8000 = vrot.lane.b32.xlu0 %v7987, 64
    %v8001 = vpop.permute.xlu0 %8000
    %8004 = vrot.lane.b32.xlu0 %v7994, 96
    %v8005 = vpop.permute.xlu0 %8004
    %v8007 = vsel %vm91, %v7972, %v7997
    %v8008 = vsel %vm137, %v8007, %v8001
    %vm8009 = vcmask 785408
    %v8010 = vsel %vm8009, %v8008, %v8005
    %v8011 = vsel %vm7965, %v7963, -inf
    %v8012 = vrot.slane %v8011, 4
    %v8013 = vmax.f32 %v8011, %v8012
    %v8014 = vrot.slane %v8013, 2
    %v8015 = vmax.f32 %v8013, %v8014
    %v8016 = vrot.slane %v8015, 1
    %v8017 = vmax.f32 %v8015, %v8016
    %v8018 = vsel %vm7973, %v7963, -inf
    %v8019 = vrot.slane %v8018, 4
    %v8020 = vmax.f32 %v8018, %v8019
    %v8021 = vrot.slane %v8020, 2
    %v8022 = vmax.f32 %v8020, %v8021
    %v8023 = vrot.slane %v8022, 1
    %v8024 = vmax.f32 %v8022, %v8023
    %v8025 = vsel %vm7965, %v7964, -inf
    %v8026 = vrot.slane %v8025, 4
    %v8027 = vmax.f32 %v8025, %v8026
    %v8028 = vrot.slane %v8027, 2
    %v8029 = vmax.f32 %v8027, %v8028
    %v8030 = vrot.slane %v8029, 1
    %v8031 = vmax.f32 %v8029, %v8030
    %v8032 = vsel %vm7973, %v7964, -inf
    %v8033 = vrot.slane %v8032, 4
    %v8034 = vmax.f32 %v8032, %v8033
    %v8035 = vrot.slane %v8034, 2
    %v8036 = vmax.f32 %v8034, %v8035
    %v8037 = vrot.slane %v8036, 1
    %v8038 = vmax.f32 %v8036, %v8037
    %8040 = vrot.lane.b32.xlu0 %v8024, 32
    %v8041 = vpop.permute.xlu0 %8040
    %8044 = vrot.lane.b32.xlu0 %v8031, 64
    %v8045 = vpop.permute.xlu0 %8044
    %8048 = vrot.lane.b32.xlu0 %v8038, 96
    %v8049 = vpop.permute.xlu0 %8048
    %v8051 = vsel %vm91, %v8017, %v8041
    %v8052 = vsel %vm137, %v8051, %v8045
    %v8053 = vsel %vm8009, %v8052, %v8049
    %v8055 = vrot.slane %v8053, 7
    %vm8057 = vcmask 1040384
    %v8058 = vsel %vm8057, %v8010, %v8055
    %v8059 = vld [vmem:[%s11] sm:$0xff]
    %v8060 = vld [vmem:[%s11 + $0x8] sm:$0xff]
    %v8061 = vld [vmem:[%s11 + $0x10] sm:$0xff]
    %v8062 = vld [vmem:[%s11 + $0x18] sm:$0xff]
    %v8063 = vld [vmem:[%s11 + $0x20] sm:$0xff]
    %v8064 = vld [vmem:[%s11 + $0x28] sm:$0xff]
    %v8065 = vld [vmem:[%s11 + $0x30] sm:$0xff]
    %v8066 = vld [vmem:[%s11 + $0x38] sm:$0xff]
    %v8067 = vld [vmem:[%s11 + $0x40] sm:$0xff]
    %v8068 = vld [vmem:[%s11 + $0x48] sm:$0xff]
    %v8069 = vld [vmem:[%s11 + $0x50] sm:$0xff]
    %v8070 = vld [vmem:[%s11 + $0x58] sm:$0xff]
    %v8071 = vld [vmem:[%s11 + $0x60] sm:$0xff]
    %v8072 = vld [vmem:[%s11 + $0x68] sm:$0xff]
    %v8073 = vld [vmem:[%s11 + $0x70] sm:$0xff]
    %v8074 = vld [vmem:[%s11 + $0x78] sm:$0xff]
    %v8075 = vld [vmem:[%s12] sm:$0x1]
    %v8077 = vlaneseq
    %v8078 = vshrl.u32 %v8077, 7
    %v8079 = vsub.s32 0, %v8078
    %v8080 = vrot.slane %v8075, %v8079
    %8082 = vmatprep.subr.mxu0 0.0
    %8083 = vmatpush1.msra.mxu0 %v8059
    %8084 = vmatprep.subr.mxu0 0.0
    %8085 = vmatpush1.msra.mxu0 %v8060
    %8086 = vmatprep.subr.mxu0 0.0
    %8087 = vmatpush1.msra.mxu0 %v8061
    %8088 = vmatprep.subr.mxu0 0.0
    %8089 = vmatpush1.msra.mxu0 %v8062
    %8090 = vmatprep.subr.mxu0 0.0
    %8091 = vmatpush1.msra.mxu0 %v8063
    %8092 = vmatprep.subr.mxu0 0.0
    %8093 = vmatpush1.msra.mxu0 %v8064
    %8094 = vmatprep.subr.mxu0 0.0
    %8095 = vmatpush1.msra.mxu0 %v8065
    %8096 = vmatprep.subr.mxu0 0.0
    %8097 = vmatpush1.msra.mxu0 %v8066
    %8098 = vmatprep.subr.mxu0 0.0
    %8099 = vmatpush1.msra.mxu0 %v8067
    %8100 = vmatprep.subr.mxu0 0.0
    %8101 = vmatpush1.msra.mxu0 %v8068
    %8102 = vmatprep.subr.mxu0 0.0
    %8103 = vmatpush1.msra.mxu0 %v8069
    %8104 = vmatprep.subr.mxu0 0.0
    %8105 = vmatpush1.msra.mxu0 %v8070
    %8106 = vmatprep.subr.mxu0 0.0
    %8107 = vmatpush1.msra.mxu0 %v8071
    %8108 = vmatprep.subr.mxu0 0.0
    %8109 = vmatpush1.msra.mxu0 %v8072
    %8110 = vmatprep.subr.mxu0 0.0
    %8111 = vmatpush1.msra.mxu0 %v8073
    %8112 = vmatprep.subr.mxu0 0.0
    %8113 = vmatpush1.msra.mxu0 %v8074
    %8114 = vmatprep.subr.mxu0 0.0
    %8115 = vmatpush1.msra.mxu0 0.0
    %8116 = vmatprep.subr.mxu0 0.0
    %8117 = vmatpush1.msra.mxu0 0.0
    %8118 = vmatprep.subr.mxu0 0.0
    %8119 = vmatpush1.msra.mxu0 0.0
    %8120 = vmatprep.subr.mxu0 0.0
    %8121 = vmatpush1.msra.mxu0 0.0
    %8122 = vmatprep.subr.mxu0 0.0
    %8123 = vmatpush1.msra.mxu0 0.0
    %8124 = vmatprep.subr.mxu0 0.0
    %8125 = vmatpush1.msra.mxu0 0.0
    %8126 = vmatprep.subr.mxu0 0.0
    %8127 = vmatpush1.msra.mxu0 0.0
    %8128 = vmatprep.subr.mxu0 0.0
    %8129 = vmatpush1.msra.mxu0 0.0
    %8130 = vmatprep.subr.mxu0 0.0
    %8131 = vmatpush1.msra.mxu0 0.0
    %8132 = vmatprep.subr.mxu0 0.0
    %8133 = vmatpush1.msra.mxu0 0.0
    %8134 = vmatprep.subr.mxu0 0.0
    %8135 = vmatpush1.msra.mxu0 0.0
    %8136 = vmatprep.subr.mxu0 0.0
    %8137 = vmatpush1.msra.mxu0 0.0
    %8138 = vmatprep.subr.mxu0 0.0
    %8139 = vmatpush1.msra.mxu0 0.0
    %8140 = vmatprep.subr.mxu0 0.0
    %8141 = vmatpush1.msra.mxu0 0.0
    %8142 = vmatprep.subr.mxu0 0.0
    %8143 = vmatpush1.msra.mxu0 0.0
    %8144 = vmatprep.subr.mxu0 0.0
    %8145 = vmatpush1.msra.mxu0 0.0
    %8146 = vmatprep.mubr.f32.mxu0 0.0
    %8147 = vmatmul.mubr.f32.gmra.mrb[0].mxu0 %v8058
    %v8148 = vpop.f32.mrb[0].mxu0
    %v8149 = vadd.f32 %v8080, %v8148
    %v8150 = vpop.f32.mrb[0].mxu0
    %8151 = vdwg.mxu0
    %v8152 = vmax.f32 %v8149, 0.0
    %v8153 = vld [vmem:[%s13] sm:$0xff]
    %v8154 = vld [vmem:[%s13 + $0x8] sm:$0xff]
    %v8155 = vld [vmem:[%s13 + $0x10] sm:$0xff]
    %v8156 = vld [vmem:[%s13 + $0x18] sm:$0xff]
    %v8157 = vld [vmem:[%s13 + $0x20] sm:$0xff]
    %v8158 = vld [vmem:[%s13 + $0x28] sm:$0xff]
    %v8159 = vld [vmem:[%s13 + $0x30] sm:$0xff]
    %v8160 = vld [vmem:[%s13 + $0x38] sm:$0xff]
    %v8161 = vld [vmem:[%s14] sm:$0x1]
    %v8163 = vlaneseq
    %v8164 = vshrl.u32 %v8163, 7
    %v8165 = vsub.s32 0, %v8164
    %v8166 = vrot.slane %v8161, %v8165
    %v8169 = vsel %vm137, %v8152, 0
    %8171 = vmatprep.subr.mxu0 0.0
    %8172 = vmatpush1.msra.mxu0 %v8153
    %8173 = vmatprep.subr.mxu0 0.0
    %8174 = vmatpush1.msra.mxu0 %v8154
    %8175 = vmatprep.subr.mxu0 0.0
    %8176 = vmatpush1.msra.mxu0 %v8155
    %8177 = vmatprep.subr.mxu0 0.0
    %8178 = vmatpush1.msra.mxu0 %v8156
    %8179 = vmatprep.subr.mxu0 0.0
    %8180 = vmatpush1.msra.mxu0 %v8157
    %8181 = vmatprep.subr.mxu0 0.0
    %8182 = vmatpush1.msra.mxu0 %v8158
    %8183 = vmatprep.subr.mxu0 0.0
    %8184 = vmatpush1.msra.mxu0 %v8159
    %8185 = vmatprep.subr.mxu0 0.0
    %8186 = vmatpush1.msra.mxu0 %v8160
    %8187 = vmatprep.subr.mxu0 0.0
    %8188 = vmatpush1.msra.mxu0 0.0
    %8189 = vmatprep.subr.mxu0 0.0
    %8190 = vmatpush1.msra.mxu0 0.0
    %8191 = vmatprep.subr.mxu0 0.0
    %8192 = vmatpush1.msra.mxu0 0.0
    %8193 = vmatprep.subr.mxu0 0.0
    %8194 = vmatpush1.msra.mxu0 0.0
    %8195 = vmatprep.subr.mxu0 0.0
    %8196 = vmatpush1.msra.mxu0 0.0
    %8197 = vmatprep.subr.mxu0 0.0
    %8198 = vmatpush1.msra.mxu0 0.0
    %8199 = vmatprep.subr.mxu0 0.0
    %8200 = vmatpush1.msra.mxu0 0.0
    %8201 = vmatprep.subr.mxu0 0.0
    %8202 = vmatpush1.msra.mxu0 0.0
    %8203 = vmatprep.subr.mxu0 0.0
    %8204 = vmatpush1.msra.mxu0 0.0
    %8205 = vmatprep.subr.mxu0 0.0
    %8206 = vmatpush1.msra.mxu0 0.0
    %8207 = vmatprep.subr.mxu0 0.0
    %8208 = vmatpush1.msra.mxu0 0.0
    %8209 = vmatprep.subr.mxu0 0.0
    %8210 = vmatpush1.msra.mxu0 0.0
    %8211 = vmatprep.subr.mxu0 0.0
    %8212 = vmatpush1.msra.mxu0 0.0
    %8213 = vmatprep.subr.mxu0 0.0
    %8214 = vmatpush1.msra.mxu0 0.0
    %8215 = vmatprep.subr.mxu0 0.0
    %8216 = vmatpush1.msra.mxu0 0.0
    %8217 = vmatprep.subr.mxu0 0.0
    %8218 = vmatpush1.msra.mxu0 0.0
    %8219 = vmatprep.subr.mxu0 0.0
    %8220 = vmatpush1.msra.mxu0 0.0
    %8221 = vmatprep.subr.mxu0 0.0
    %8222 = vmatpush1.msra.mxu0 0.0
    %8223 = vmatprep.subr.mxu0 0.0
    %8224 = vmatpush1.msra.mxu0 0.0
    %8225 = vmatprep.subr.mxu0 0.0
    %8226 = vmatpush1.msra.mxu0 0.0
    %8227 = vmatprep.subr.mxu0 0.0
    %8228 = vmatpush1.msra.mxu0 0.0
    %8229 = vmatprep.subr.mxu0 0.0
    %8230 = vmatpush1.msra.mxu0 0.0
    %8231 = vmatprep.subr.mxu0 0.0
    %8232 = vmatpush1.msra.mxu0 0.0
    %8233 = vmatprep.subr.mxu0 0.0
    %8234 = vmatpush1.msra.mxu0 0.0
    %8235 = vmatprep.mubr.f32.mxu0 0.0
    %8236 = vmatmul.mubr.f32.gmra.mrb[0].mxu0 %v8169
    %v8237 = vpop.f32.mrb[0].mxu0
    %v8238 = vadd.f32 %v8166, %v8237
    %v8239 = vpop.f32.mrb[0].mxu0
    %8240 = vdwg.mxu0
    %8241 = vst [vmem:[#allocation2] sm:$0x3] %v8238
    // Predicated region
    $region62: #{_wavenet_forward_impl.1} parent=1 // pred_check
      _
    $region63: #{_wavenet_forward_impl.1} parent=1 // pred_check_branch
      %8243 = sbr.rel (0) target = $region65
    $region64: #{_wavenet_forward_impl.1} parent=1 // pred_region
      %s8245 = ssub.s32 32, 32
      %8246 = vsyncadd [#allocation3], %s8245
      %s8248 = sshll.u32 [#allocation2], 4
      %s8249 = int_to_ptr.vmem [resolvable:$true] %s8248
      %8251 = dma.vmem_to_hbm [thread:$0]  %s8249, 32, %s15, [#allocation3]
    $region65: #{_wavenet_forward_impl.1} parent=1 // pred_fallthru
      _
    // Predicated region
    $region66: #{_wavenet_forward_impl.1} parent=1 // pred_check
      _
    $region67: #{_wavenet_forward_impl.1} parent=1 // pred_check_branch
      %8253 = sbr.rel (0) target = $region69
    $region68: #{_wavenet_forward_impl.1} parent=1 // pred_region
      %8254 = dma.done [#allocation3], 32
    $region69: #{_wavenet_forward_impl.1} parent=1 // pred_fallthru
      _
    %8255 = vsyncpa [#allocation3], 1

</llo_original>
